<compile_context>
chip_gen: v7x
topology: tpu7x:2x2x1
jax: 0.10.0
libtpu: 0.0.40
codegen_flags: <defaults>
</compile_context>

<pallas_src>
import functools
import math

import jax
import jax.numpy as jnp
from jax.experimental import pallas as pl
from jax.experimental.pallas import tpu as pltpu

# ----------------------------- configuration --------------------------------
D_MODEL  = 256            # dec_d_model
HEADS    = 4              # decoder_heads
D_K      = D_MODEL // HEADS
DEC_SEQ  = 8              # decoder sequence length
ENC_SEQ  = 8              # encoder sequence length
D_FF     = 512            # d_ff
BS       = 2              # batch
NORM_EPS = 1e-5

FP = jnp.float32


# ------------------------------ fused kernel ---------------------------------
def _decoder_layer_kernel(
    # activations / biases
    x_ref, enc_ref, self_bias_ref, cross_bias_ref,
    # masked self-attention weights (QKV fused)
    wqkv_ref, bqkv_ref, wo1_ref, bo1_ref,
    # cross-attention weights (KV fused)
    wcq_ref, bcq_ref, wckv_ref, bckv_ref, wo2_ref, bo2_ref,
    # feed-forward weights
    wf1_ref, bf1_ref, wf2_ref, bf2_ref,
    # layer-norm params
    g1_ref, be1_ref, g2_ref, be2_ref, g3_ref, be3_ref,
    # output
    o_ref,
    # scratch (merged multi-head output)
    heads_scratch,
    *, bs, sq, sk, heads, d_k, eps,
):
    D = heads * d_k
    scale = 1.0 / math.sqrt(2.0 * d_k)

    def layer_norm(y, g, b):
        mu = jnp.mean(y, axis=-1, keepdims=True)
        var = jnp.mean((y - mu) ** 2, axis=-1, keepdims=True)
        return (y - mu) * jax.lax.rsqrt(var + eps) * g + b

    def attend(q2d, k2d, v2d, bias2d, seq_k):
        # q2d: (bs*sq, D), k2d/v2d: (bs*seq_k, D), bias2d: (bs*heads*sq, seq_k)
        # scores = q @ k.T / sqrt(2*d_k) + (scores_pe [+ mask bias]); softmax; @ v
        for b in range(bs):
            for h in range(heads):
                qh = q2d[b * sq:(b + 1) * sq, h * d_k:(h + 1) * d_k]        # (sq, dk)
                kh = k2d[b * seq_k:(b + 1) * seq_k, h * d_k:(h + 1) * d_k]  # (sk, dk)
                vh = v2d[b * seq_k:(b + 1) * seq_k, h * d_k:(h + 1) * d_k]  # (sk, dk)
                r0 = (b * heads + h) * sq
                bias = bias2d[r0:r0 + sq, :]                                # (sq, sk)
                s = jnp.dot(qh, kh.T, preferred_element_type=jnp.float32) * scale
                s = s + bias
                m = jnp.max(s, axis=-1, keepdims=True)
                e = jnp.exp(s - m)
                p = e * pl.reciprocal(
                    jnp.sum(e, axis=-1, keepdims=True), approx=True)
                heads_scratch[b * sq:(b + 1) * sq, h * d_k:(h + 1) * d_k] = (
                    jnp.dot(p, vh, preferred_element_type=jnp.float32))
        return heads_scratch[...]                                           # (bs*sq, D)

    x = x_ref[...]                        # (bs*sq, D)
    enc = enc_ref[...]                    # (bs*sk, D)
    self_bias = self_bias_ref[...]        # (bs*heads*sq, sq)
    cross_bias = cross_bias_ref[...]      # (bs*heads*sq, sk)

    # ---- masked self-attention + residual + LayerNorm ----
    qkv = jnp.dot(x, wqkv_ref[...], preferred_element_type=jnp.float32) + bqkv_ref[...]
    concat = attend(qkv[:, :D], qkv[:, D:2 * D], qkv[:, 2 * D:], self_bias, sq)
    attn = jnp.dot(concat, wo1_ref[...], preferred_element_type=jnp.float32) + bo1_ref[...]
    # TODO(synk): dropout_1 omitted (eval semantics: identity)
    y = layer_norm(attn + x, g1_ref[...], be1_ref[...])

    # ---- cross-attention + residual + LayerNorm (no mask) ----
    q2 = jnp.dot(y, wcq_ref[...], preferred_element_type=jnp.float32) + bcq_ref[...]
    kv = jnp.dot(enc, wckv_ref[...], preferred_element_type=jnp.float32) + bckv_ref[...]
    concat2 = attend(q2, kv[:, :D], kv[:, D:], cross_bias, sk)
    cross = jnp.dot(concat2, wo2_ref[...], preferred_element_type=jnp.float32) + bo2_ref[...]
    # TODO(synk): dropout_2 omitted (eval semantics: identity)
    y2 = layer_norm(cross + y, g2_ref[...], be2_ref[...])

    # ---- feed-forward (exact erf-GELU) + residual + LayerNorm ----
    h1 = jnp.dot(y2, wf1_ref[...], preferred_element_type=jnp.float32) + bf1_ref[...]
    h1 = 0.5 * h1 * (1.0 + jax.lax.erf(h1 * (1.0 / math.sqrt(2.0))))
    ff = jnp.dot(h1, wf2_ref[...], preferred_element_type=jnp.float32) + bf2_ref[...]
    # TODO(synk): dropout_3 omitted (eval semantics: identity)
    o_ref[...] = layer_norm(ff + y2, g3_ref[...], be3_ref[...])


def _full_spec(shape):
    n = len(shape)
    return pl.BlockSpec(shape, lambda i, _n=n: (0,) * _n)


def transformer_decoder_layer_untie(params, x, encoder_out, dec_scores_pe,
                                    enc_scores_pe, decoder_padding_mask):
    """x: (bs, sq, D), encoder_out: (bs, sk, D),
    dec_scores_pe: (bs, H, sq, sq), enc_scores_pe: (bs, H, sq, sk),
    decoder_padding_mask: (bs, 1, sq, sq) with 1 = keep, 0 = masked."""
    bs, sq, D = x.shape
    sk = encoder_out.shape[1]
    H = HEADS
    dk = D // H

    # mask -> additive bias, fused with the untied PE score bias (broadcast over heads)
    mask_bias = (1.0 - decoder_padding_mask.astype(FP)) * jnp.float32(-1e8)
    self_bias = (dec_scores_pe + mask_bias).reshape(bs * H * sq, sq)
    cross_bias = enc_scores_pe.reshape(bs * H * sq, sk)

    x2d = x.reshape(bs * sq, D)
    enc2d = encoder_out.reshape(bs * sk, D)

    args = (
        x2d, enc2d, self_bias, cross_bias,
        params["w_qkv"], params["b_qkv"], params["w_o1"], params["b_o1"],
        params["w_cq"], params["b_cq"], params["w_ckv"], params["b_ckv"],
        params["w_o2"], params["b_o2"],
        params["w_f1"], params["b_f1"], params["w_f2"], params["b_f2"],
        params["ln1_g"], params["ln1_b"], params["ln2_g"], params["ln2_b"],
        params["ln3_g"], params["ln3_b"],
    )

    kern = functools.partial(_decoder_layer_kernel, bs=bs, sq=sq, sk=sk,
                             heads=H, d_k=dk, eps=NORM_EPS)

    out2d = pl.pallas_call(
        kern,
        out_shape=jax.ShapeDtypeStruct((bs * sq, D), FP),
        grid=(1,),
        in_specs=[_full_spec(a.shape) for a in args],
        out_specs=_full_spec((bs * sq, D)),
        scratch_shapes=[pltpu.VMEM((bs * sq, D), FP)],
        compiler_params=pltpu.CompilerParams(
            dimension_semantics=("arbitrary",),
            vmem_limit_bytes=32 * 1024 * 1024),
    )(*args)
    return out2d.reshape(bs, sq, D)


# ------------------------------ parameter init -------------------------------
def _xavier(key, fan_in, fan_out):
    bound = math.sqrt(6.0 / (fan_in + fan_out))
    return jax.random.uniform(key, (fan_in, fan_out), FP, -bound, bound)


def init_params(key):
    ks = iter(jax.random.split(key, 16))
    D, F_ = D_MODEL, D_FF
    p = {}
    # masked self-attention (q, k, v fused into one (D, 3D) weight)
    p["w_qkv"] = jnp.concatenate([_xavier(next(ks), D, D) for _ in range(3)], axis=1)
    p["b_qkv"] = jnp.zeros((1, 3 * D), FP)
    p["w_o1"] = _xavier(next(ks), D, D)
    p["b_o1"] = jnp.zeros((1, D), FP)
    # cross-attention (k, v fused)
    p["w_cq"] = _xavier(next(ks), D, D)
    p["b_cq"] = jnp.zeros((1, D), FP)
    p["w_ckv"] = jnp.concatenate([_xavier(next(ks), D, D) for _ in range(2)], axis=1)
    p["b_ckv"] = jnp.zeros((1, 2 * D), FP)
    p["w_o2"] = _xavier(next(ks), D, D)
    p["b_o2"] = jnp.zeros((1, D), FP)
    # feed-forward
    p["w_f1"] = _xavier(next(ks), D, F_)
    p["b_f1"] = jnp.zeros((1, F_), FP)
    p["w_f2"] = _xavier(next(ks), F_, D)
    p["b_f2"] = jnp.zeros((1, D), FP)
    # layer norms
    for n in ("ln1", "ln2", "ln3"):
        p[n + "_g"] = jnp.ones((1, D), FP)
        p[n + "_b"] = jnp.zeros((1, D), FP)
    return p


# ---------------------------------- main --------------------------------------
if __name__ == "__main__":
    root = jax.random.PRNGKey(0)
    kp, kx, ke, kd, kc = jax.random.split(root, 5)

    params = init_params(kp)

    x = jax.random.normal(kx, (BS, DEC_SEQ, D_MODEL), FP)
    encoder_out = jax.random.normal(ke, (BS, ENC_SEQ, D_MODEL), FP)
    dec_scores_pe = 0.1 * jax.random.normal(kd, (BS, HEADS, DEC_SEQ, DEC_SEQ), FP)
    enc_scores_pe = 0.1 * jax.random.normal(kc, (BS, HEADS, DEC_SEQ, ENC_SEQ), FP)

    # decoder padding mask: 1 = attend, 0 = padded key (broadcast over heads)
    decoder_padding_mask = jnp.ones((BS, 1, DEC_SEQ, DEC_SEQ), FP)
    decoder_padding_mask = decoder_padding_mask.at[1, 0, :, -2:].set(0.0)

    fwd = jax.jit(transformer_decoder_layer_untie)
    out = fwd(params, x, encoder_out, dec_scores_pe, enc_scores_pe,
              decoder_padding_mask)
    jax.block_until_ready(out)

    assert out.shape == (BS, DEC_SEQ, D_MODEL)
    assert bool(jnp.all(jnp.isfinite(out)))
    print("KERNEL_OK")
</pallas_src>

<mosaic_0001>
module attributes {stable_mosaic.version = 11 : i64} {
  func.func @_decoder_layer_kernel(%arg0: i32, %arg1: memref<16x256xf32, #tpu.memory_space<vmem>>, %arg2: memref<16x256xf32, #tpu.memory_space<vmem>>, %arg3: memref<64x8xf32, #tpu.memory_space<vmem>>, %arg4: memref<64x8xf32, #tpu.memory_space<vmem>>, %arg5: memref<256x768xf32, #tpu.memory_space<vmem>>, %arg6: memref<1x768xf32, #tpu.memory_space<vmem>>, %arg7: memref<256x256xf32, #tpu.memory_space<vmem>>, %arg8: memref<1x256xf32, #tpu.memory_space<vmem>>, %arg9: memref<256x256xf32, #tpu.memory_space<vmem>>, %arg10: memref<1x256xf32, #tpu.memory_space<vmem>>, %arg11: memref<256x512xf32, #tpu.memory_space<vmem>>, %arg12: memref<1x512xf32, #tpu.memory_space<vmem>>, %arg13: memref<256x256xf32, #tpu.memory_space<vmem>>, %arg14: memref<1x256xf32, #tpu.memory_space<vmem>>, %arg15: memref<256x512xf32, #tpu.memory_space<vmem>>, %arg16: memref<1x512xf32, #tpu.memory_space<vmem>>, %arg17: memref<512x256xf32, #tpu.memory_space<vmem>>, %arg18: memref<1x256xf32, #tpu.memory_space<vmem>>, %arg19: memref<1x256xf32, #tpu.memory_space<vmem>>, %arg20: memref<1x256xf32, #tpu.memory_space<vmem>>, %arg21: memref<1x256xf32, #tpu.memory_space<vmem>>, %arg22: memref<1x256xf32, #tpu.memory_space<vmem>>, %arg23: memref<1x256xf32, #tpu.memory_space<vmem>>, %arg24: memref<1x256xf32, #tpu.memory_space<vmem>>, %arg25: memref<16x256xf32, #tpu.memory_space<vmem>>, %arg26: memref<16x256xf32, #tpu.memory_space<vmem>>) attributes {dimension_semantics = [#tpu.dimension_semantics<arbitrary>], iteration_bounds = array<i64: 1>, scalar_prefetch = 0 : i64, scratch_operands = 1 : i64, tpu.core_type = #tpu.core_type<tc>, window_params = [{pipeline_mode = #tpu.pipeline_mode<synchronous>, transform_indices = @transform_0, window_bounds = array<i64: 16, 256>}, {pipeline_mode = #tpu.pipeline_mode<synchronous>, transform_indices = @transform_1, window_bounds = array<i64: 16, 256>}, {pipeline_mode = #tpu.pipeline_mode<synchronous>, transform_indices = @transform_2, window_bounds = array<i64: 64, 8>}, {pipeline_mode = #tpu.pipeline_mode<synchronous>, transform_indices = @transform_3, window_bounds = array<i64: 64, 8>}, {pipeline_mode = #tpu.pipeline_mode<synchronous>, transform_indices = @transform_4, window_bounds = array<i64: 256, 768>}, {pipeline_mode = #tpu.pipeline_mode<synchronous>, transform_indices = @transform_5, window_bounds = array<i64: 1, 768>}, {pipeline_mode = #tpu.pipeline_mode<synchronous>, transform_indices = @transform_6, window_bounds = array<i64: 256, 256>}, {pipeline_mode = #tpu.pipeline_mode<synchronous>, transform_indices = @transform_7, window_bounds = array<i64: 1, 256>}, {pipeline_mode = #tpu.pipeline_mode<synchronous>, transform_indices = @transform_8, window_bounds = array<i64: 256, 256>}, {pipeline_mode = #tpu.pipeline_mode<synchronous>, transform_indices = @transform_9, window_bounds = array<i64: 1, 256>}, {pipeline_mode = #tpu.pipeline_mode<synchronous>, transform_indices = @transform_10, window_bounds = array<i64: 256, 512>}, {pipeline_mode = #tpu.pipeline_mode<synchronous>, transform_indices = @transform_11, window_bounds = array<i64: 1, 512>}, {pipeline_mode = #tpu.pipeline_mode<synchronous>, transform_indices = @transform_12, window_bounds = array<i64: 256, 256>}, {pipeline_mode = #tpu.pipeline_mode<synchronous>, transform_indices = @transform_13, window_bounds = array<i64: 1, 256>}, {pipeline_mode = #tpu.pipeline_mode<synchronous>, transform_indices = @transform_14, window_bounds = array<i64: 256, 512>}, {pipeline_mode = #tpu.pipeline_mode<synchronous>, transform_indices = @transform_15, window_bounds = array<i64: 1, 512>}, {pipeline_mode = #tpu.pipeline_mode<synchronous>, transform_indices = @transform_16, window_bounds = array<i64: 512, 256>}, {pipeline_mode = #tpu.pipeline_mode<synchronous>, transform_indices = @transform_17, window_bounds = array<i64: 1, 256>}, {pipeline_mode = #tpu.pipeline_mode<synchronous>, transform_indices = @transform_18, window_bounds = array<i64: 1, 256>}, {pipeline_mode = #tpu.pipeline_mode<synchronous>, transform_indices = @transform_19, window_bounds = array<i64: 1, 256>}, {pipeline_mode = #tpu.pipeline_mode<synchronous>, transform_indices = @transform_20, window_bounds = array<i64: 1, 256>}, {pipeline_mode = #tpu.pipeline_mode<synchronous>, transform_indices = @transform_21, window_bounds = array<i64: 1, 256>}, {pipeline_mode = #tpu.pipeline_mode<synchronous>, transform_indices = @transform_22, window_bounds = array<i64: 1, 256>}, {pipeline_mode = #tpu.pipeline_mode<synchronous>, transform_indices = @transform_23, window_bounds = array<i64: 1, 256>}, {pipeline_mode = #tpu.pipeline_mode<synchronous>, transform_indices = @transform_24, window_bounds = array<i64: 16, 256>}]} {
    %c0 = arith.constant 0 : index
    %c0_0 = arith.constant 0 : index
    %0 = vector.load %arg1[%c0, %c0_0] : memref<16x256xf32, #tpu.memory_space<vmem>>, vector<16x256xf32>
    %c0_1 = arith.constant 0 : index
    %c0_2 = arith.constant 0 : index
    %1 = vector.load %arg2[%c0_1, %c0_2] : memref<16x256xf32, #tpu.memory_space<vmem>>, vector<16x256xf32>
    %c0_3 = arith.constant 0 : index
    %c0_4 = arith.constant 0 : index
    %2 = vector.load %arg3[%c0_3, %c0_4] : memref<64x8xf32, #tpu.memory_space<vmem>>, vector<64x8xf32>
    %c0_5 = arith.constant 0 : index
    %c0_6 = arith.constant 0 : index
    %3 = vector.load %arg4[%c0_5, %c0_6] : memref<64x8xf32, #tpu.memory_space<vmem>>, vector<64x8xf32>
    %c0_7 = arith.constant 0 : index
    %c0_8 = arith.constant 0 : index
    %4 = vector.load %arg5[%c0_7, %c0_8] : memref<256x768xf32, #tpu.memory_space<vmem>>, vector<256x768xf32>
    %cst = arith.constant dense<0.000000e+00> : vector<16x768xf32>
    %5 = tpu.matmul %0, %4, %cst {dimension_numbers = #tpu.dot_dimension_numbers<[1], [0], [0], [1], [0, 0, 1, 1], [], []>} : vector<16x256xf32>, vector<256x768xf32>, vector<16x768xf32> -> vector<16x768xf32>
    %c0_9 = arith.constant 0 : index
    %c0_10 = arith.constant 0 : index
    %6 = vector.load %arg6[%c0_9, %c0_10] : memref<1x768xf32, #tpu.memory_space<vmem>>, vector<1x768xf32>
    %7 = vector.broadcast %6 : vector<1x768xf32> to vector<16x768xf32>
    %8 = arith.addf %5, %7 : vector<16x768xf32>
    %9 = vector.extract_strided_slice %8 {offsets = [0, 0], sizes = [16, 256], strides = [1, 1]} : vector<16x768xf32> to vector<16x256xf32>
    %10 = vector.extract_strided_slice %8 {offsets = [0, 256], sizes = [16, 256], strides = [1, 1]} : vector<16x768xf32> to vector<16x256xf32>
    %11 = vector.extract_strided_slice %8 {offsets = [0, 512], sizes = [16, 256], strides = [1, 1]} : vector<16x768xf32> to vector<16x256xf32>
    %12 = vector.extract_strided_slice %9 {offsets = [0, 0], sizes = [8, 64], strides = [1, 1]} : vector<16x256xf32> to vector<8x64xf32>
    %13 = vector.extract_strided_slice %10 {offsets = [0, 0], sizes = [8, 64], strides = [1, 1]} : vector<16x256xf32> to vector<8x64xf32>
    %14 = vector.extract_strided_slice %11 {offsets = [0, 0], sizes = [8, 64], strides = [1, 1]} : vector<16x256xf32> to vector<8x64xf32>
    %15 = vector.extract_strided_slice %2 {offsets = [0, 0], sizes = [8, 8], strides = [1, 1]} : vector<64x8xf32> to vector<8x8xf32>
    %16 = tpu.transpose %13, [1, 0] : vector<8x64xf32> -> vector<64x8xf32>
    %cst_11 = arith.constant dense<0.000000e+00> : vector<8x8xf32>
    %17 = tpu.matmul %12, %16, %cst_11 {dimension_numbers = #tpu.dot_dimension_numbers<[1], [0], [0], [1], [0, 0, 1, 1], [], []>} : vector<8x64xf32>, vector<64x8xf32>, vector<8x8xf32> -> vector<8x8xf32>
    %cst_12 = arith.constant 0.0883883461 : f32
    %18 = vector.broadcast %cst_12 : f32 to vector<8x8xf32>
    %19 = arith.mulf %17, %18 : vector<8x8xf32>
    %20 = arith.addf %19, %15 : vector<8x8xf32>
    %cst_13 = arith.constant dense<0xFF800000> : vector<8xf32>
    %21 = vector.multi_reduction <maximumf>, %20, %cst_13 [1] : vector<8x8xf32> to vector<8xf32>
    %22 = vector.shape_cast %21 : vector<8xf32> to vector<8x1xf32>
    %23 = vector.broadcast %22 : vector<8x1xf32> to vector<8x8xf32>
    %24 = arith.subf %20, %23 : vector<8x8xf32>
    %25 = math.exp %24 : vector<8x8xf32>
    %cst_14 = arith.constant dense<0.000000e+00> : vector<8xf32>
    %26 = vector.multi_reduction <add>, %25, %cst_14 [1] : vector<8x8xf32> to vector<8xf32>
    %27 = vector.shape_cast %26 : vector<8xf32> to vector<8x1xf32>
    %28 = tpu.reciprocal %27 {approx = true} : vector<8x1xf32> -> vector<8x1xf32>
    %29 = vector.broadcast %28 : vector<8x1xf32> to vector<8x8xf32>
    %30 = arith.mulf %25, %29 : vector<8x8xf32>
    %cst_15 = arith.constant dense<0.000000e+00> : vector<8x64xf32>
    %31 = tpu.matmul %30, %14, %cst_15 {dimension_numbers = #tpu.dot_dimension_numbers<[1], [0], [0], [1], [0, 0, 1, 1], [], []>} : vector<8x8xf32>, vector<8x64xf32>, vector<8x64xf32> -> vector<8x64xf32>
    %c0_16 = arith.constant 0 : index
    %c0_17 = arith.constant 0 : index
    %32 = vector.load %arg26[%c0_16, %c0_17] : memref<16x256xf32, #tpu.memory_space<vmem>>, vector<8x64xf32>
    tpu.vector_store %arg26[%c0_16, %c0_17], %31 {strides = array<i32>} : memref<16x256xf32, #tpu.memory_space<vmem>>, vector<8x64xf32>,
    %33 = vector.extract_strided_slice %9 {offsets = [0, 64], sizes = [8, 64], strides = [1, 1]} : vector<16x256xf32> to vector<8x64xf32>
    %34 = vector.extract_strided_slice %10 {offsets = [0, 64], sizes = [8, 64], strides = [1, 1]} : vector<16x256xf32> to vector<8x64xf32>
    %35 = vector.extract_strided_slice %11 {offsets = [0, 64], sizes = [8, 64], strides = [1, 1]} : vector<16x256xf32> to vector<8x64xf32>
    %36 = vector.extract_strided_slice %2 {offsets = [8, 0], sizes = [8, 8], strides = [1, 1]} : vector<64x8xf32> to vector<8x8xf32>
    %37 = tpu.transpose %34, [1, 0] : vector<8x64xf32> -> vector<64x8xf32>
    %cst_18 = arith.constant dense<0.000000e+00> : vector<8x8xf32>
    %38 = tpu.matmul %33, %37, %cst_18 {dimension_numbers = #tpu.dot_dimension_numbers<[1], [0], [0], [1], [0, 0, 1, 1], [], []>} : vector<8x64xf32>, vector<64x8xf32>, vector<8x8xf32> -> vector<8x8xf32>
    %cst_19 = arith.constant 0.0883883461 : f32
    %39 = vector.broadcast %cst_19 : f32 to vector<8x8xf32>
    %40 = arith.mulf %38, %39 : vector<8x8xf32>
    %41 = arith.addf %40, %36 : vector<8x8xf32>
    %cst_20 = arith.constant dense<0xFF800000> : vector<8xf32>
    %42 = vector.multi_reduction <maximumf>, %41, %cst_20 [1] : vector<8x8xf32> to vector<8xf32>
    %43 = vector.shape_cast %42 : vector<8xf32> to vector<8x1xf32>
    %44 = vector.broadcast %43 : vector<8x1xf32> to vector<8x8xf32>
    %45 = arith.subf %41, %44 : vector<8x8xf32>
    %46 = math.exp %45 : vector<8x8xf32>
    %cst_21 = arith.constant dense<0.000000e+00> : vector<8xf32>
    %47 = vector.multi_reduction <add>, %46, %cst_21 [1] : vector<8x8xf32> to vector<8xf32>
    %48 = vector.shape_cast %47 : vector<8xf32> to vector<8x1xf32>
    %49 = tpu.reciprocal %48 {approx = true} : vector<8x1xf32> -> vector<8x1xf32>
    %50 = vector.broadcast %49 : vector<8x1xf32> to vector<8x8xf32>
    %51 = arith.mulf %46, %50 : vector<8x8xf32>
    %cst_22 = arith.constant dense<0.000000e+00> : vector<8x64xf32>
    %52 = tpu.matmul %51, %35, %cst_22 {dimension_numbers = #tpu.dot_dimension_numbers<[1], [0], [0], [1], [0, 0, 1, 1], [], []>} : vector<8x8xf32>, vector<8x64xf32>, vector<8x64xf32> -> vector<8x64xf32>
    %c0_23 = arith.constant 0 : index
    %c64 = arith.constant 64 : index
    %53 = vector.load %arg26[%c0_23, %c64] : memref<16x256xf32, #tpu.memory_space<vmem>>, vector<8x64xf32>
    tpu.vector_store %arg26[%c0_23, %c64], %52 {strides = array<i32>} : memref<16x256xf32, #tpu.memory_space<vmem>>, vector<8x64xf32>,
    %54 = vector.extract_strided_slice %9 {offsets = [0, 128], sizes = [8, 64], strides = [1, 1]} : vector<16x256xf32> to vector<8x64xf32>
    %55 = vector.extract_strided_slice %10 {offsets = [0, 128], sizes = [8, 64], strides = [1, 1]} : vector<16x256xf32> to vector<8x64xf32>
    %56 = vector.extract_strided_slice %11 {offsets = [0, 128], sizes = [8, 64], strides = [1, 1]} : vector<16x256xf32> to vector<8x64xf32>
    %57 = vector.extract_strided_slice %2 {offsets = [16, 0], sizes = [8, 8], strides = [1, 1]} : vector<64x8xf32> to vector<8x8xf32>
    %58 = tpu.transpose %55, [1, 0] : vector<8x64xf32> -> vector<64x8xf32>
    %cst_24 = arith.constant dense<0.000000e+00> : vector<8x8xf32>
    %59 = tpu.matmul %54, %58, %cst_24 {dimension_numbers = #tpu.dot_dimension_numbers<[1], [0], [0], [1], [0, 0, 1, 1], [], []>} : vector<8x64xf32>, vector<64x8xf32>, vector<8x8xf32> -> vector<8x8xf32>
    %cst_25 = arith.constant 0.0883883461 : f32
    %60 = vector.broadcast %cst_25 : f32 to vector<8x8xf32>
    %61 = arith.mulf %59, %60 : vector<8x8xf32>
    %62 = arith.addf %61, %57 : vector<8x8xf32>
    %cst_26 = arith.constant dense<0xFF800000> : vector<8xf32>
    %63 = vector.multi_reduction <maximumf>, %62, %cst_26 [1] : vector<8x8xf32> to vector<8xf32>
    %64 = vector.shape_cast %63 : vector<8xf32> to vector<8x1xf32>
    %65 = vector.broadcast %64 : vector<8x1xf32> to vector<8x8xf32>
    %66 = arith.subf %62, %65 : vector<8x8xf32>
    %67 = math.exp %66 : vector<8x8xf32>
    %cst_27 = arith.constant dense<0.000000e+00> : vector<8xf32>
    %68 = vector.multi_reduction <add>, %67, %cst_27 [1] : vector<8x8xf32> to vector<8xf32>
    %69 = vector.shape_cast %68 : vector<8xf32> to vector<8x1xf32>
    %70 = tpu.reciprocal %69 {approx = true} : vector<8x1xf32> -> vector<8x1xf32>
    %71 = vector.broadcast %70 : vector<8x1xf32> to vector<8x8xf32>
    %72 = arith.mulf %67, %71 : vector<8x8xf32>
    %cst_28 = arith.constant dense<0.000000e+00> : vector<8x64xf32>
    %73 = tpu.matmul %72, %56, %cst_28 {dimension_numbers = #tpu.dot_dimension_numbers<[1], [0], [0], [1], [0, 0, 1, 1], [], []>} : vector<8x8xf32>, vector<8x64xf32>, vector<8x64xf32> -> vector<8x64xf32>
    %c0_29 = arith.constant 0 : index
    %c128 = arith.constant 128 : index
    %74 = vector.load %arg26[%c0_29, %c128] : memref<16x256xf32, #tpu.memory_space<vmem>>, vector<8x64xf32>
    tpu.vector_store %arg26[%c0_29, %c128], %73 {strides = array<i32>} : memref<16x256xf32, #tpu.memory_space<vmem>>, vector<8x64xf32>,
    %75 = vector.extract_strided_slice %9 {offsets = [0, 192], sizes = [8, 64], strides = [1, 1]} : vector<16x256xf32> to vector<8x64xf32>
    %76 = vector.extract_strided_slice %10 {offsets = [0, 192], sizes = [8, 64], strides = [1, 1]} : vector<16x256xf32> to vector<8x64xf32>
    %77 = vector.extract_strided_slice %11 {offsets = [0, 192], sizes = [8, 64], strides = [1, 1]} : vector<16x256xf32> to vector<8x64xf32>
    %78 = vector.extract_strided_slice %2 {offsets = [24, 0], sizes = [8, 8], strides = [1, 1]} : vector<64x8xf32> to vector<8x8xf32>
    %79 = tpu.transpose %76, [1, 0] : vector<8x64xf32> -> vector<64x8xf32>
    %cst_30 = arith.constant dense<0.000000e+00> : vector<8x8xf32>
    %80 = tpu.matmul %75, %79, %cst_30 {dimension_numbers = #tpu.dot_dimension_numbers<[1], [0], [0], [1], [0, 0, 1, 1], [], []>} : vector<8x64xf32>, vector<64x8xf32>, vector<8x8xf32> -> vector<8x8xf32>
    %cst_31 = arith.constant 0.0883883461 : f32
    %81 = vector.broadcast %cst_31 : f32 to vector<8x8xf32>
    %82 = arith.mulf %80, %81 : vector<8x8xf32>
    %83 = arith.addf %82, %78 : vector<8x8xf32>
    %cst_32 = arith.constant dense<0xFF800000> : vector<8xf32>
    %84 = vector.multi_reduction <maximumf>, %83, %cst_32 [1] : vector<8x8xf32> to vector<8xf32>
    %85 = vector.shape_cast %84 : vector<8xf32> to vector<8x1xf32>
    %86 = vector.broadcast %85 : vector<8x1xf32> to vector<8x8xf32>
    %87 = arith.subf %83, %86 : vector<8x8xf32>
    %88 = math.exp %87 : vector<8x8xf32>
    %cst_33 = arith.constant dense<0.000000e+00> : vector<8xf32>
    %89 = vector.multi_reduction <add>, %88, %cst_33 [1] : vector<8x8xf32> to vector<8xf32>
    %90 = vector.shape_cast %89 : vector<8xf32> to vector<8x1xf32>
    %91 = tpu.reciprocal %90 {approx = true} : vector<8x1xf32> -> vector<8x1xf32>
    %92 = vector.broadcast %91 : vector<8x1xf32> to vector<8x8xf32>
    %93 = arith.mulf %88, %92 : vector<8x8xf32>
    %cst_34 = arith.constant dense<0.000000e+00> : vector<8x64xf32>
    %94 = tpu.matmul %93, %77, %cst_34 {dimension_numbers = #tpu.dot_dimension_numbers<[1], [0], [0], [1], [0, 0, 1, 1], [], []>} : vector<8x8xf32>, vector<8x64xf32>, vector<8x64xf32> -> vector<8x64xf32>
    %c0_35 = arith.constant 0 : index
    %c192 = arith.constant 192 : index
    %95 = vector.load %arg26[%c0_35, %c192] : memref<16x256xf32, #tpu.memory_space<vmem>>, vector<8x64xf32>
    tpu.vector_store %arg26[%c0_35, %c192], %94 {strides = array<i32>} : memref<16x256xf32, #tpu.memory_space<vmem>>, vector<8x64xf32>,
    %96 = vector.extract_strided_slice %9 {offsets = [8, 0], sizes = [8, 64], strides = [1, 1]} : vector<16x256xf32> to vector<8x64xf32>
    %97 = vector.extract_strided_slice %10 {offsets = [8, 0], sizes = [8, 64], strides = [1, 1]} : vector<16x256xf32> to vector<8x64xf32>
    %98 = vector.extract_strided_slice %11 {offsets = [8, 0], sizes = [8, 64], strides = [1, 1]} : vector<16x256xf32> to vector<8x64xf32>
    %99 = vector.extract_strided_slice %2 {offsets = [32, 0], sizes = [8, 8], strides = [1, 1]} : vector<64x8xf32> to vector<8x8xf32>
    %100 = tpu.transpose %97, [1, 0] : vector<8x64xf32> -> vector<64x8xf32>
    %cst_36 = arith.constant dense<0.000000e+00> : vector<8x8xf32>
    %101 = tpu.matmul %96, %100, %cst_36 {dimension_numbers = #tpu.dot_dimension_numbers<[1], [0], [0], [1], [0, 0, 1, 1], [], []>} : vector<8x64xf32>, vector<64x8xf32>, vector<8x8xf32> -> vector<8x8xf32>
    %cst_37 = arith.constant 0.0883883461 : f32
    %102 = vector.broadcast %cst_37 : f32 to vector<8x8xf32>
    %103 = arith.mulf %101, %102 : vector<8x8xf32>
    %104 = arith.addf %103, %99 : vector<8x8xf32>
    %cst_38 = arith.constant dense<0xFF800000> : vector<8xf32>
    %105 = vector.multi_reduction <maximumf>, %104, %cst_38 [1] : vector<8x8xf32> to vector<8xf32>
    %106 = vector.shape_cast %105 : vector<8xf32> to vector<8x1xf32>
    %107 = vector.broadcast %106 : vector<8x1xf32> to vector<8x8xf32>
    %108 = arith.subf %104, %107 : vector<8x8xf32>
    %109 = math.exp %108 : vector<8x8xf32>
    %cst_39 = arith.constant dense<0.000000e+00> : vector<8xf32>
    %110 = vector.multi_reduction <add>, %109, %cst_39 [1] : vector<8x8xf32> to vector<8xf32>
    %111 = vector.shape_cast %110 : vector<8xf32> to vector<8x1xf32>
    %112 = tpu.reciprocal %111 {approx = true} : vector<8x1xf32> -> vector<8x1xf32>
    %113 = vector.broadcast %112 : vector<8x1xf32> to vector<8x8xf32>
    %114 = arith.mulf %109, %113 : vector<8x8xf32>
    %cst_40 = arith.constant dense<0.000000e+00> : vector<8x64xf32>
    %115 = tpu.matmul %114, %98, %cst_40 {dimension_numbers = #tpu.dot_dimension_numbers<[1], [0], [0], [1], [0, 0, 1, 1], [], []>} : vector<8x8xf32>, vector<8x64xf32>, vector<8x64xf32> -> vector<8x64xf32>
    %c8 = arith.constant 8 : index
    %c0_41 = arith.constant 0 : index
    %116 = vector.load %arg26[%c8, %c0_41] : memref<16x256xf32, #tpu.memory_space<vmem>>, vector<8x64xf32>
    tpu.vector_store %arg26[%c8, %c0_41], %115 {strides = array<i32>} : memref<16x256xf32, #tpu.memory_space<vmem>>, vector<8x64xf32>,
    %117 = vector.extract_strided_slice %9 {offsets = [8, 64], sizes = [8, 64], strides = [1, 1]} : vector<16x256xf32> to vector<8x64xf32>
    %118 = vector.extract_strided_slice %10 {offsets = [8, 64], sizes = [8, 64], strides = [1, 1]} : vector<16x256xf32> to vector<8x64xf32>
    %119 = vector.extract_strided_slice %11 {offsets = [8, 64], sizes = [8, 64], strides = [1, 1]} : vector<16x256xf32> to vector<8x64xf32>
    %120 = vector.extract_strided_slice %2 {offsets = [40, 0], sizes = [8, 8], strides = [1, 1]} : vector<64x8xf32> to vector<8x8xf32>
    %121 = tpu.transpose %118, [1, 0] : vector<8x64xf32> -> vector<64x8xf32>
    %cst_42 = arith.constant dense<0.000000e+00> : vector<8x8xf32>
    %122 = tpu.matmul %117, %121, %cst_42 {dimension_numbers = #tpu.dot_dimension_numbers<[1], [0], [0], [1], [0, 0, 1, 1], [], []>} : vector<8x64xf32>, vector<64x8xf32>, vector<8x8xf32> -> vector<8x8xf32>
    %cst_43 = arith.constant 0.0883883461 : f32
    %123 = vector.broadcast %cst_43 : f32 to vector<8x8xf32>
    %124 = arith.mulf %122, %123 : vector<8x8xf32>
    %125 = arith.addf %124, %120 : vector<8x8xf32>
    %cst_44 = arith.constant dense<0xFF800000> : vector<8xf32>
    %126 = vector.multi_reduction <maximumf>, %125, %cst_44 [1] : vector<8x8xf32> to vector<8xf32>
    %127 = vector.shape_cast %126 : vector<8xf32> to vector<8x1xf32>
    %128 = vector.broadcast %127 : vector<8x1xf32> to vector<8x8xf32>
    %129 = arith.subf %125, %128 : vector<8x8xf32>
    %130 = math.exp %129 : vector<8x8xf32>
    %cst_45 = arith.constant dense<0.000000e+00> : vector<8xf32>
    %131 = vector.multi_reduction <add>, %130, %cst_45 [1] : vector<8x8xf32> to vector<8xf32>
    %132 = vector.shape_cast %131 : vector<8xf32> to vector<8x1xf32>
    %133 = tpu.reciprocal %132 {approx = true} : vector<8x1xf32> -> vector<8x1xf32>
    %134 = vector.broadcast %133 : vector<8x1xf32> to vector<8x8xf32>
    %135 = arith.mulf %130, %134 : vector<8x8xf32>
    %cst_46 = arith.constant dense<0.000000e+00> : vector<8x64xf32>
    %136 = tpu.matmul %135, %119, %cst_46 {dimension_numbers = #tpu.dot_dimension_numbers<[1], [0], [0], [1], [0, 0, 1, 1], [], []>} : vector<8x8xf32>, vector<8x64xf32>, vector<8x64xf32> -> vector<8x64xf32>
    %c8_47 = arith.constant 8 : index
    %c64_48 = arith.constant 64 : index
    %137 = vector.load %arg26[%c8_47, %c64_48] : memref<16x256xf32, #tpu.memory_space<vmem>>, vector<8x64xf32>
    tpu.vector_store %arg26[%c8_47, %c64_48], %136 {strides = array<i32>} : memref<16x256xf32, #tpu.memory_space<vmem>>, vector<8x64xf32>,
    %138 = vector.extract_strided_slice %9 {offsets = [8, 128], sizes = [8, 64], strides = [1, 1]} : vector<16x256xf32> to vector<8x64xf32>
    %139 = vector.extract_strided_slice %10 {offsets = [8, 128], sizes = [8, 64], strides = [1, 1]} : vector<16x256xf32> to vector<8x64xf32>
    %140 = vector.extract_strided_slice %11 {offsets = [8, 128], sizes = [8, 64], strides = [1, 1]} : vector<16x256xf32> to vector<8x64xf32>
    %141 = vector.extract_strided_slice %2 {offsets = [48, 0], sizes = [8, 8], strides = [1, 1]} : vector<64x8xf32> to vector<8x8xf32>
    %142 = tpu.transpose %139, [1, 0] : vector<8x64xf32> -> vector<64x8xf32>
    %cst_49 = arith.constant dense<0.000000e+00> : vector<8x8xf32>
    %143 = tpu.matmul %138, %142, %cst_49 {dimension_numbers = #tpu.dot_dimension_numbers<[1], [0], [0], [1], [0, 0, 1, 1], [], []>} : vector<8x64xf32>, vector<64x8xf32>, vector<8x8xf32> -> vector<8x8xf32>
    %cst_50 = arith.constant 0.0883883461 : f32
    %144 = vector.broadcast %cst_50 : f32 to vector<8x8xf32>
    %145 = arith.mulf %143, %144 : vector<8x8xf32>
    %146 = arith.addf %145, %141 : vector<8x8xf32>
    %cst_51 = arith.constant dense<0xFF800000> : vector<8xf32>
    %147 = vector.multi_reduction <maximumf>, %146, %cst_51 [1] : vector<8x8xf32> to vector<8xf32>
    %148 = vector.shape_cast %147 : vector<8xf32> to vector<8x1xf32>
    %149 = vector.broadcast %148 : vector<8x1xf32> to vector<8x8xf32>
    %150 = arith.subf %146, %149 : vector<8x8xf32>
    %151 = math.exp %150 : vector<8x8xf32>
    %cst_52 = arith.constant dense<0.000000e+00> : vector<8xf32>
    %152 = vector.multi_reduction <add>, %151, %cst_52 [1] : vector<8x8xf32> to vector<8xf32>
    %153 = vector.shape_cast %152 : vector<8xf32> to vector<8x1xf32>
    %154 = tpu.reciprocal %153 {approx = true} : vector<8x1xf32> -> vector<8x1xf32>
    %155 = vector.broadcast %154 : vector<8x1xf32> to vector<8x8xf32>
    %156 = arith.mulf %151, %155 : vector<8x8xf32>
    %cst_53 = arith.constant dense<0.000000e+00> : vector<8x64xf32>
    %157 = tpu.matmul %156, %140, %cst_53 {dimension_numbers = #tpu.dot_dimension_numbers<[1], [0], [0], [1], [0, 0, 1, 1], [], []>} : vector<8x8xf32>, vector<8x64xf32>, vector<8x64xf32> -> vector<8x64xf32>
    %c8_54 = arith.constant 8 : index
    %c128_55 = arith.constant 128 : index
    %158 = vector.load %arg26[%c8_54, %c128_55] : memref<16x256xf32, #tpu.memory_space<vmem>>, vector<8x64xf32>
    tpu.vector_store %arg26[%c8_54, %c128_55], %157 {strides = array<i32>} : memref<16x256xf32, #tpu.memory_space<vmem>>, vector<8x64xf32>,
    %159 = vector.extract_strided_slice %9 {offsets = [8, 192], sizes = [8, 64], strides = [1, 1]} : vector<16x256xf32> to vector<8x64xf32>
    %160 = vector.extract_strided_slice %10 {offsets = [8, 192], sizes = [8, 64], strides = [1, 1]} : vector<16x256xf32> to vector<8x64xf32>
    %161 = vector.extract_strided_slice %11 {offsets = [8, 192], sizes = [8, 64], strides = [1, 1]} : vector<16x256xf32> to vector<8x64xf32>
    %162 = vector.extract_strided_slice %2 {offsets = [56, 0], sizes = [8, 8], strides = [1, 1]} : vector<64x8xf32> to vector<8x8xf32>
    %163 = tpu.transpose %160, [1, 0] : vector<8x64xf32> -> vector<64x8xf32>
    %cst_56 = arith.constant dense<0.000000e+00> : vector<8x8xf32>
    %164 = tpu.matmul %159, %163, %cst_56 {dimension_numbers = #tpu.dot_dimension_numbers<[1], [0], [0], [1], [0, 0, 1, 1], [], []>} : vector<8x64xf32>, vector<64x8xf32>, vector<8x8xf32> -> vector<8x8xf32>
    %cst_57 = arith.constant 0.0883883461 : f32
    %165 = vector.broadcast %cst_57 : f32 to vector<8x8xf32>
    %166 = arith.mulf %164, %165 : vector<8x8xf32>
    %167 = arith.addf %166, %162 : vector<8x8xf32>
    %cst_58 = arith.constant dense<0xFF800000> : vector<8xf32>
    %168 = vector.multi_reduction <maximumf>, %167, %cst_58 [1] : vector<8x8xf32> to vector<8xf32>
    %169 = vector.shape_cast %168 : vector<8xf32> to vector<8x1xf32>
    %170 = vector.broadcast %169 : vector<8x1xf32> to vector<8x8xf32>
    %171 = arith.subf %167, %170 : vector<8x8xf32>
    %172 = math.exp %171 : vector<8x8xf32>
    %cst_59 = arith.constant dense<0.000000e+00> : vector<8xf32>
    %173 = vector.multi_reduction <add>, %172, %cst_59 [1] : vector<8x8xf32> to vector<8xf32>
    %174 = vector.shape_cast %173 : vector<8xf32> to vector<8x1xf32>
    %175 = tpu.reciprocal %174 {approx = true} : vector<8x1xf32> -> vector<8x1xf32>
    %176 = vector.broadcast %175 : vector<8x1xf32> to vector<8x8xf32>
    %177 = arith.mulf %172, %176 : vector<8x8xf32>
    %cst_60 = arith.constant dense<0.000000e+00> : vector<8x64xf32>
    %178 = tpu.matmul %177, %161, %cst_60 {dimension_numbers = #tpu.dot_dimension_numbers<[1], [0], [0], [1], [0, 0, 1, 1], [], []>} : vector<8x8xf32>, vector<8x64xf32>, vector<8x64xf32> -> vector<8x64xf32>
    %c8_61 = arith.constant 8 : index
    %c192_62 = arith.constant 192 : index
    %179 = vector.load %arg26[%c8_61, %c192_62] : memref<16x256xf32, #tpu.memory_space<vmem>>, vector<8x64xf32>
    tpu.vector_store %arg26[%c8_61, %c192_62], %178 {strides = array<i32>} : memref<16x256xf32, #tpu.memory_space<vmem>>, vector<8x64xf32>,
    %c0_63 = arith.constant 0 : index
    %c0_64 = arith.constant 0 : index
    %180 = vector.load %arg26[%c0_63, %c0_64] : memref<16x256xf32, #tpu.memory_space<vmem>>, vector<16x256xf32>
    %c0_65 = arith.constant 0 : index
    %c0_66 = arith.constant 0 : index
    %181 = vector.load %arg7[%c0_65, %c0_66] : memref<256x256xf32, #tpu.memory_space<vmem>>, vector<256x256xf32>
    %cst_67 = arith.constant dense<0.000000e+00> : vector<16x256xf32>
    %182 = tpu.matmul %180, %181, %cst_67 {dimension_numbers = #tpu.dot_dimension_numbers<[1], [0], [0], [1], [0, 0, 1, 1], [], []>} : vector<16x256xf32>, vector<256x256xf32>, vector<16x256xf32> -> vector<16x256xf32>
    %c0_68 = arith.constant 0 : index
    %c0_69 = arith.constant 0 : index
    %183 = vector.load %arg8[%c0_68, %c0_69] : memref<1x256xf32, #tpu.memory_space<vmem>>, vector<1x256xf32>
    %184 = vector.broadcast %183 : vector<1x256xf32> to vector<16x256xf32>
    %185 = arith.addf %182, %184 : vector<16x256xf32>
    %186 = arith.addf %185, %0 : vector<16x256xf32>
    %c0_70 = arith.constant 0 : index
    %c0_71 = arith.constant 0 : index
    %187 = vector.load %arg19[%c0_70, %c0_71] : memref<1x256xf32, #tpu.memory_space<vmem>>, vector<1x256xf32>
    %c0_72 = arith.constant 0 : index
    %c0_73 = arith.constant 0 : index
    %188 = vector.load %arg20[%c0_72, %c0_73] : memref<1x256xf32, #tpu.memory_space<vmem>>, vector<1x256xf32>
    %cst_74 = arith.constant dense<0.000000e+00> : vector<16xf32>
    %189 = vector.multi_reduction <add>, %186, %cst_74 [1] : vector<16x256xf32> to vector<16xf32>
    %190 = vector.shape_cast %189 : vector<16xf32> to vector<16x1xf32>
    %cst_75 = arith.constant 2.560000e+02 : f32
    %191 = vector.broadcast %cst_75 : f32 to vector<16x1xf32>
    %192 = arith.divf %190, %191 : vector<16x1xf32>
    %193 = vector.broadcast %192 : vector<16x1xf32> to vector<16x256xf32>
    %194 = arith.subf %186, %193 : vector<16x256xf32>
    %195 = arith.mulf %194, %194 : vector<16x256xf32>
    %cst_76 = arith.constant dense<0.000000e+00> : vector<16xf32>
    %196 = vector.multi_reduction <add>, %195, %cst_76 [1] : vector<16x256xf32> to vector<16xf32>
    %197 = vector.shape_cast %196 : vector<16xf32> to vector<16x1xf32>
    %cst_77 = arith.constant 2.560000e+02 : f32
    %198 = vector.broadcast %cst_77 : f32 to vector<16x1xf32>
    %199 = arith.divf %197, %198 : vector<16x1xf32>
    %200 = vector.broadcast %192 : vector<16x1xf32> to vector<16x256xf32>
    %201 = arith.subf %186, %200 : vector<16x256xf32>
    %cst_78 = arith.constant 9.99999974E-6 : f32
    %202 = vector.broadcast %cst_78 : f32 to vector<16x1xf32>
    %203 = arith.addf %199, %202 : vector<16x1xf32>
    %204 = math.rsqrt %203 : vector<16x1xf32>
    %205 = vector.broadcast %204 : vector<16x1xf32> to vector<16x256xf32>
    %206 = arith.mulf %201, %205 : vector<16x256xf32>
    %207 = vector.broadcast %187 : vector<1x256xf32> to vector<16x256xf32>
    %208 = arith.mulf %206, %207 : vector<16x256xf32>
    %209 = vector.broadcast %188 : vector<1x256xf32> to vector<16x256xf32>
    %210 = arith.addf %208, %209 : vector<16x256xf32>
    %c0_79 = arith.constant 0 : index
    %c0_80 = arith.constant 0 : index
    %211 = vector.load %arg9[%c0_79, %c0_80] : memref<256x256xf32, #tpu.memory_space<vmem>>, vector<256x256xf32>
    %cst_81 = arith.constant dense<0.000000e+00> : vector<16x256xf32>
    %212 = tpu.matmul %210, %211, %cst_81 {dimension_numbers = #tpu.dot_dimension_numbers<[1], [0], [0], [1], [0, 0, 1, 1], [], []>} : vector<16x256xf32>, vector<256x256xf32>, vector<16x256xf32> -> vector<16x256xf32>
    %c0_82 = arith.constant 0 : index
    %c0_83 = arith.constant 0 : index
    %213 = vector.load %arg10[%c0_82, %c0_83] : memref<1x256xf32, #tpu.memory_space<vmem>>, vector<1x256xf32>
    %214 = vector.broadcast %213 : vector<1x256xf32> to vector<16x256xf32>
    %215 = arith.addf %212, %214 : vector<16x256xf32>
    %c0_84 = arith.constant 0 : index
    %c0_85 = arith.constant 0 : index
    %216 = vector.load %arg11[%c0_84, %c0_85] : memref<256x512xf32, #tpu.memory_space<vmem>>, vector<256x512xf32>
    %cst_86 = arith.constant dense<0.000000e+00> : vector<16x512xf32>
    %217 = tpu.matmul %1, %216, %cst_86 {dimension_numbers = #tpu.dot_dimension_numbers<[1], [0], [0], [1], [0, 0, 1, 1], [], []>} : vector<16x256xf32>, vector<256x512xf32>, vector<16x512xf32> -> vector<16x512xf32>
    %c0_87 = arith.constant 0 : index
    %c0_88 = arith.constant 0 : index
    %218 = vector.load %arg12[%c0_87, %c0_88] : memref<1x512xf32, #tpu.memory_space<vmem>>, vector<1x512xf32>
    %219 = vector.broadcast %218 : vector<1x512xf32> to vector<16x512xf32>
    %220 = arith.addf %217, %219 : vector<16x512xf32>
    %221 = vector.extract_strided_slice %220 {offsets = [0, 0], sizes = [16, 256], strides = [1, 1]} : vector<16x512xf32> to vector<16x256xf32>
    %222 = vector.extract_strided_slice %220 {offsets = [0, 256], sizes = [16, 256], strides = [1, 1]} : vector<16x512xf32> to vector<16x256xf32>
    %223 = vector.extract_strided_slice %215 {offsets = [0, 0], sizes = [8, 64], strides = [1, 1]} : vector<16x256xf32> to vector<8x64xf32>
    %224 = vector.extract_strided_slice %221 {offsets = [0, 0], sizes = [8, 64], strides = [1, 1]} : vector<16x256xf32> to vector<8x64xf32>
    %225 = vector.extract_strided_slice %222 {offsets = [0, 0], sizes = [8, 64], strides = [1, 1]} : vector<16x256xf32> to vector<8x64xf32>
    %226 = vector.extract_strided_slice %3 {offsets = [0, 0], sizes = [8, 8], strides = [1, 1]} : vector<64x8xf32> to vector<8x8xf32>
    %227 = tpu.transpose %224, [1, 0] : vector<8x64xf32> -> vector<64x8xf32>
    %cst_89 = arith.constant dense<0.000000e+00> : vector<8x8xf32>
    %228 = tpu.matmul %223, %227, %cst_89 {dimension_numbers = #tpu.dot_dimension_numbers<[1], [0], [0], [1], [0, 0, 1, 1], [], []>} : vector<8x64xf32>, vector<64x8xf32>, vector<8x8xf32> -> vector<8x8xf32>
    %cst_90 = arith.constant 0.0883883461 : f32
    %229 = vector.broadcast %cst_90 : f32 to vector<8x8xf32>
    %230 = arith.mulf %228, %229 : vector<8x8xf32>
    %231 = arith.addf %230, %226 : vector<8x8xf32>
    %cst_91 = arith.constant dense<0xFF800000> : vector<8xf32>
    %232 = vector.multi_reduction <maximumf>, %231, %cst_91 [1] : vector<8x8xf32> to vector<8xf32>
    %233 = vector.shape_cast %232 : vector<8xf32> to vector<8x1xf32>
    %234 = vector.broadcast %233 : vector<8x1xf32> to vector<8x8xf32>
    %235 = arith.subf %231, %234 : vector<8x8xf32>
    %236 = math.exp %235 : vector<8x8xf32>
    %cst_92 = arith.constant dense<0.000000e+00> : vector<8xf32>
    %237 = vector.multi_reduction <add>, %236, %cst_92 [1] : vector<8x8xf32> to vector<8xf32>
    %238 = vector.shape_cast %237 : vector<8xf32> to vector<8x1xf32>
    %239 = tpu.reciprocal %238 {approx = true} : vector<8x1xf32> -> vector<8x1xf32>
    %240 = vector.broadcast %239 : vector<8x1xf32> to vector<8x8xf32>
    %241 = arith.mulf %236, %240 : vector<8x8xf32>
    %cst_93 = arith.constant dense<0.000000e+00> : vector<8x64xf32>
    %242 = tpu.matmul %241, %225, %cst_93 {dimension_numbers = #tpu.dot_dimension_numbers<[1], [0], [0], [1], [0, 0, 1, 1], [], []>} : vector<8x8xf32>, vector<8x64xf32>, vector<8x64xf32> -> vector<8x64xf32>
    %c0_94 = arith.constant 0 : index
    %c0_95 = arith.constant 0 : index
    %243 = vector.load %arg26[%c0_94, %c0_95] : memref<16x256xf32, #tpu.memory_space<vmem>>, vector<8x64xf32>
    tpu.vector_store %arg26[%c0_94, %c0_95], %242 {strides = array<i32>} : memref<16x256xf32, #tpu.memory_space<vmem>>, vector<8x64xf32>,
    %244 = vector.extract_strided_slice %215 {offsets = [0, 64], sizes = [8, 64], strides = [1, 1]} : vector<16x256xf32> to vector<8x64xf32>
    %245 = vector.extract_strided_slice %221 {offsets = [0, 64], sizes = [8, 64], strides = [1, 1]} : vector<16x256xf32> to vector<8x64xf32>
    %246 = vector.extract_strided_slice %222 {offsets = [0, 64], sizes = [8, 64], strides = [1, 1]} : vector<16x256xf32> to vector<8x64xf32>
    %247 = vector.extract_strided_slice %3 {offsets = [8, 0], sizes = [8, 8], strides = [1, 1]} : vector<64x8xf32> to vector<8x8xf32>
    %248 = tpu.transpose %245, [1, 0] : vector<8x64xf32> -> vector<64x8xf32>
    %cst_96 = arith.constant dense<0.000000e+00> : vector<8x8xf32>
    %249 = tpu.matmul %244, %248, %cst_96 {dimension_numbers = #tpu.dot_dimension_numbers<[1], [0], [0], [1], [0, 0, 1, 1], [], []>} : vector<8x64xf32>, vector<64x8xf32>, vector<8x8xf32> -> vector<8x8xf32>
    %cst_97 = arith.constant 0.0883883461 : f32
    %250 = vector.broadcast %cst_97 : f32 to vector<8x8xf32>
    %251 = arith.mulf %249, %250 : vector<8x8xf32>
    %252 = arith.addf %251, %247 : vector<8x8xf32>
    %cst_98 = arith.constant dense<0xFF800000> : vector<8xf32>
    %253 = vector.multi_reduction <maximumf>, %252, %cst_98 [1] : vector<8x8xf32> to vector<8xf32>
    %254 = vector.shape_cast %253 : vector<8xf32> to vector<8x1xf32>
    %255 = vector.broadcast %254 : vector<8x1xf32> to vector<8x8xf32>
    %256 = arith.subf %252, %255 : vector<8x8xf32>
    %257 = math.exp %256 : vector<8x8xf32>
    %cst_99 = arith.constant dense<0.000000e+00> : vector<8xf32>
    %258 = vector.multi_reduction <add>, %257, %cst_99 [1] : vector<8x8xf32> to vector<8xf32>
    %259 = vector.shape_cast %258 : vector<8xf32> to vector<8x1xf32>
    %260 = tpu.reciprocal %259 {approx = true} : vector<8x1xf32> -> vector<8x1xf32>
    %261 = vector.broadcast %260 : vector<8x1xf32> to vector<8x8xf32>
    %262 = arith.mulf %257, %261 : vector<8x8xf32>
    %cst_100 = arith.constant dense<0.000000e+00> : vector<8x64xf32>
    %263 = tpu.matmul %262, %246, %cst_100 {dimension_numbers = #tpu.dot_dimension_numbers<[1], [0], [0], [1], [0, 0, 1, 1], [], []>} : vector<8x8xf32>, vector<8x64xf32>, vector<8x64xf32> -> vector<8x64xf32>
    %c0_101 = arith.constant 0 : index
    %c64_102 = arith.constant 64 : index
    %264 = vector.load %arg26[%c0_101, %c64_102] : memref<16x256xf32, #tpu.memory_space<vmem>>, vector<8x64xf32>
    tpu.vector_store %arg26[%c0_101, %c64_102], %263 {strides = array<i32>} : memref<16x256xf32, #tpu.memory_space<vmem>>, vector<8x64xf32>,
    %265 = vector.extract_strided_slice %215 {offsets = [0, 128], sizes = [8, 64], strides = [1, 1]} : vector<16x256xf32> to vector<8x64xf32>
    %266 = vector.extract_strided_slice %221 {offsets = [0, 128], sizes = [8, 64], strides = [1, 1]} : vector<16x256xf32> to vector<8x64xf32>
    %267 = vector.extract_strided_slice %222 {offsets = [0, 128], sizes = [8, 64], strides = [1, 1]} : vector<16x256xf32> to vector<8x64xf32>
    %268 = vector.extract_strided_slice %3 {offsets = [16, 0], sizes = [8, 8], strides = [1, 1]} : vector<64x8xf32> to vector<8x8xf32>
    %269 = tpu.transpose %266, [1, 0] : vector<8x64xf32> -> vector<64x8xf32>
    %cst_103 = arith.constant dense<0.000000e+00> : vector<8x8xf32>
    %270 = tpu.matmul %265, %269, %cst_103 {dimension_numbers = #tpu.dot_dimension_numbers<[1], [0], [0], [1], [0, 0, 1, 1], [], []>} : vector<8x64xf32>, vector<64x8xf32>, vector<8x8xf32> -> vector<8x8xf32>
    %cst_104 = arith.constant 0.0883883461 : f32
    %271 = vector.broadcast %cst_104 : f32 to vector<8x8xf32>
    %272 = arith.mulf %270, %271 : vector<8x8xf32>
    %273 = arith.addf %272, %268 : vector<8x8xf32>
    %cst_105 = arith.constant dense<0xFF800000> : vector<8xf32>
    %274 = vector.multi_reduction <maximumf>, %273, %cst_105 [1] : vector<8x8xf32> to vector<8xf32>
    %275 = vector.shape_cast %274 : vector<8xf32> to vector<8x1xf32>
    %276 = vector.broadcast %275 : vector<8x1xf32> to vector<8x8xf32>
    %277 = arith.subf %273, %276 : vector<8x8xf32>
    %278 = math.exp %277 : vector<8x8xf32>
    %cst_106 = arith.constant dense<0.000000e+00> : vector<8xf32>
    %279 = vector.multi_reduction <add>, %278, %cst_106 [1] : vector<8x8xf32> to vector<8xf32>
    %280 = vector.shape_cast %279 : vector<8xf32> to vector<8x1xf32>
    %281 = tpu.reciprocal %280 {approx = true} : vector<8x1xf32> -> vector<8x1xf32>
    %282 = vector.broadcast %281 : vector<8x1xf32> to vector<8x8xf32>
    %283 = arith.mulf %278, %282 : vector<8x8xf32>
    %cst_107 = arith.constant dense<0.000000e+00> : vector<8x64xf32>
    %284 = tpu.matmul %283, %267, %cst_107 {dimension_numbers = #tpu.dot_dimension_numbers<[1], [0], [0], [1], [0, 0, 1, 1], [], []>} : vector<8x8xf32>, vector<8x64xf32>, vector<8x64xf32> -> vector<8x64xf32>
    %c0_108 = arith.constant 0 : index
    %c128_109 = arith.constant 128 : index
    %285 = vector.load %arg26[%c0_108, %c128_109] : memref<16x256xf32, #tpu.memory_space<vmem>>, vector<8x64xf32>
    tpu.vector_store %arg26[%c0_108, %c128_109], %284 {strides = array<i32>} : memref<16x256xf32, #tpu.memory_space<vmem>>, vector<8x64xf32>,
    %286 = vector.extract_strided_slice %215 {offsets = [0, 192], sizes = [8, 64], strides = [1, 1]} : vector<16x256xf32> to vector<8x64xf32>
    %287 = vector.extract_strided_slice %221 {offsets = [0, 192], sizes = [8, 64], strides = [1, 1]} : vector<16x256xf32> to vector<8x64xf32>
    %288 = vector.extract_strided_slice %222 {offsets = [0, 192], sizes = [8, 64], strides = [1, 1]} : vector<16x256xf32> to vector<8x64xf32>
    %289 = vector.extract_strided_slice %3 {offsets = [24, 0], sizes = [8, 8], strides = [1, 1]} : vector<64x8xf32> to vector<8x8xf32>
    %290 = tpu.transpose %287, [1, 0] : vector<8x64xf32> -> vector<64x8xf32>
    %cst_110 = arith.constant dense<0.000000e+00> : vector<8x8xf32>
    %291 = tpu.matmul %286, %290, %cst_110 {dimension_numbers = #tpu.dot_dimension_numbers<[1], [0], [0], [1], [0, 0, 1, 1], [], []>} : vector<8x64xf32>, vector<64x8xf32>, vector<8x8xf32> -> vector<8x8xf32>
    %cst_111 = arith.constant 0.0883883461 : f32
    %292 = vector.broadcast %cst_111 : f32 to vector<8x8xf32>
    %293 = arith.mulf %291, %292 : vector<8x8xf32>
    %294 = arith.addf %293, %289 : vector<8x8xf32>
    %cst_112 = arith.constant dense<0xFF800000> : vector<8xf32>
    %295 = vector.multi_reduction <maximumf>, %294, %cst_112 [1] : vector<8x8xf32> to vector<8xf32>
    %296 = vector.shape_cast %295 : vector<8xf32> to vector<8x1xf32>
    %297 = vector.broadcast %296 : vector<8x1xf32> to vector<8x8xf32>
    %298 = arith.subf %294, %297 : vector<8x8xf32>
    %299 = math.exp %298 : vector<8x8xf32>
    %cst_113 = arith.constant dense<0.000000e+00> : vector<8xf32>
    %300 = vector.multi_reduction <add>, %299, %cst_113 [1] : vector<8x8xf32> to vector<8xf32>
    %301 = vector.shape_cast %300 : vector<8xf32> to vector<8x1xf32>
    %302 = tpu.reciprocal %301 {approx = true} : vector<8x1xf32> -> vector<8x1xf32>
    %303 = vector.broadcast %302 : vector<8x1xf32> to vector<8x8xf32>
    %304 = arith.mulf %299, %303 : vector<8x8xf32>
    %cst_114 = arith.constant dense<0.000000e+00> : vector<8x64xf32>
    %305 = tpu.matmul %304, %288, %cst_114 {dimension_numbers = #tpu.dot_dimension_numbers<[1], [0], [0], [1], [0, 0, 1, 1], [], []>} : vector<8x8xf32>, vector<8x64xf32>, vector<8x64xf32> -> vector<8x64xf32>
    %c0_115 = arith.constant 0 : index
    %c192_116 = arith.constant 192 : index
    %306 = vector.load %arg26[%c0_115, %c192_116] : memref<16x256xf32, #tpu.memory_space<vmem>>, vector<8x64xf32>
    tpu.vector_store %arg26[%c0_115, %c192_116], %305 {strides = array<i32>} : memref<16x256xf32, #tpu.memory_space<vmem>>, vector<8x64xf32>,
    %307 = vector.extract_strided_slice %215 {offsets = [8, 0], sizes = [8, 64], strides = [1, 1]} : vector<16x256xf32> to vector<8x64xf32>
    %308 = vector.extract_strided_slice %221 {offsets = [8, 0], sizes = [8, 64], strides = [1, 1]} : vector<16x256xf32> to vector<8x64xf32>
    %309 = vector.extract_strided_slice %222 {offsets = [8, 0], sizes = [8, 64], strides = [1, 1]} : vector<16x256xf32> to vector<8x64xf32>
    %310 = vector.extract_strided_slice %3 {offsets = [32, 0], sizes = [8, 8], strides = [1, 1]} : vector<64x8xf32> to vector<8x8xf32>
    %311 = tpu.transpose %308, [1, 0] : vector<8x64xf32> -> vector<64x8xf32>
    %cst_117 = arith.constant dense<0.000000e+00> : vector<8x8xf32>
    %312 = tpu.matmul %307, %311, %cst_117 {dimension_numbers = #tpu.dot_dimension_numbers<[1], [0], [0], [1], [0, 0, 1, 1], [], []>} : vector<8x64xf32>, vector<64x8xf32>, vector<8x8xf32> -> vector<8x8xf32>
    %cst_118 = arith.constant 0.0883883461 : f32
    %313 = vector.broadcast %cst_118 : f32 to vector<8x8xf32>
    %314 = arith.mulf %312, %313 : vector<8x8xf32>
    %315 = arith.addf %314, %310 : vector<8x8xf32>
    %cst_119 = arith.constant dense<0xFF800000> : vector<8xf32>
    %316 = vector.multi_reduction <maximumf>, %315, %cst_119 [1] : vector<8x8xf32> to vector<8xf32>
    %317 = vector.shape_cast %316 : vector<8xf32> to vector<8x1xf32>
    %318 = vector.broadcast %317 : vector<8x1xf32> to vector<8x8xf32>
    %319 = arith.subf %315, %318 : vector<8x8xf32>
    %320 = math.exp %319 : vector<8x8xf32>
    %cst_120 = arith.constant dense<0.000000e+00> : vector<8xf32>
    %321 = vector.multi_reduction <add>, %320, %cst_120 [1] : vector<8x8xf32> to vector<8xf32>
    %322 = vector.shape_cast %321 : vector<8xf32> to vector<8x1xf32>
    %323 = tpu.reciprocal %322 {approx = true} : vector<8x1xf32> -> vector<8x1xf32>
    %324 = vector.broadcast %323 : vector<8x1xf32> to vector<8x8xf32>
    %325 = arith.mulf %320, %324 : vector<8x8xf32>
    %cst_121 = arith.constant dense<0.000000e+00> : vector<8x64xf32>
    %326 = tpu.matmul %325, %309, %cst_121 {dimension_numbers = #tpu.dot_dimension_numbers<[1], [0], [0], [1], [0, 0, 1, 1], [], []>} : vector<8x8xf32>, vector<8x64xf32>, vector<8x64xf32> -> vector<8x64xf32>
    %c8_122 = arith.constant 8 : index
    %c0_123 = arith.constant 0 : index
    %327 = vector.load %arg26[%c8_122, %c0_123] : memref<16x256xf32, #tpu.memory_space<vmem>>, vector<8x64xf32>
    tpu.vector_store %arg26[%c8_122, %c0_123], %326 {strides = array<i32>} : memref<16x256xf32, #tpu.memory_space<vmem>>, vector<8x64xf32>,
    %328 = vector.extract_strided_slice %215 {offsets = [8, 64], sizes = [8, 64], strides = [1, 1]} : vector<16x256xf32> to vector<8x64xf32>
    %329 = vector.extract_strided_slice %221 {offsets = [8, 64], sizes = [8, 64], strides = [1, 1]} : vector<16x256xf32> to vector<8x64xf32>
    %330 = vector.extract_strided_slice %222 {offsets = [8, 64], sizes = [8, 64], strides = [1, 1]} : vector<16x256xf32> to vector<8x64xf32>
    %331 = vector.extract_strided_slice %3 {offsets = [40, 0], sizes = [8, 8], strides = [1, 1]} : vector<64x8xf32> to vector<8x8xf32>
    %332 = tpu.transpose %329, [1, 0] : vector<8x64xf32> -> vector<64x8xf32>
    %cst_124 = arith.constant dense<0.000000e+00> : vector<8x8xf32>
    %333 = tpu.matmul %328, %332, %cst_124 {dimension_numbers = #tpu.dot_dimension_numbers<[1], [0], [0], [1], [0, 0, 1, 1], [], []>} : vector<8x64xf32>, vector<64x8xf32>, vector<8x8xf32> -> vector<8x8xf32>
    %cst_125 = arith.constant 0.0883883461 : f32
    %334 = vector.broadcast %cst_125 : f32 to vector<8x8xf32>
    %335 = arith.mulf %333, %334 : vector<8x8xf32>
    %336 = arith.addf %335, %331 : vector<8x8xf32>
    %cst_126 = arith.constant dense<0xFF800000> : vector<8xf32>
    %337 = vector.multi_reduction <maximumf>, %336, %cst_126 [1] : vector<8x8xf32> to vector<8xf32>
    %338 = vector.shape_cast %337 : vector<8xf32> to vector<8x1xf32>
    %339 = vector.broadcast %338 : vector<8x1xf32> to vector<8x8xf32>
    %340 = arith.subf %336, %339 : vector<8x8xf32>
    %341 = math.exp %340 : vector<8x8xf32>
    %cst_127 = arith.constant dense<0.000000e+00> : vector<8xf32>
    %342 = vector.multi_reduction <add>, %341, %cst_127 [1] : vector<8x8xf32> to vector<8xf32>
    %343 = vector.shape_cast %342 : vector<8xf32> to vector<8x1xf32>
    %344 = tpu.reciprocal %343 {approx = true} : vector<8x1xf32> -> vector<8x1xf32>
    %345 = vector.broadcast %344 : vector<8x1xf32> to vector<8x8xf32>
    %346 = arith.mulf %341, %345 : vector<8x8xf32>
    %cst_128 = arith.constant dense<0.000000e+00> : vector<8x64xf32>
    %347 = tpu.matmul %346, %330, %cst_128 {dimension_numbers = #tpu.dot_dimension_numbers<[1], [0], [0], [1], [0, 0, 1, 1], [], []>} : vector<8x8xf32>, vector<8x64xf32>, vector<8x64xf32> -> vector<8x64xf32>
    %c8_129 = arith.constant 8 : index
    %c64_130 = arith.constant 64 : index
    %348 = vector.load %arg26[%c8_129, %c64_130] : memref<16x256xf32, #tpu.memory_space<vmem>>, vector<8x64xf32>
    tpu.vector_store %arg26[%c8_129, %c64_130], %347 {strides = array<i32>} : memref<16x256xf32, #tpu.memory_space<vmem>>, vector<8x64xf32>,
    %349 = vector.extract_strided_slice %215 {offsets = [8, 128], sizes = [8, 64], strides = [1, 1]} : vector<16x256xf32> to vector<8x64xf32>
    %350 = vector.extract_strided_slice %221 {offsets = [8, 128], sizes = [8, 64], strides = [1, 1]} : vector<16x256xf32> to vector<8x64xf32>
    %351 = vector.extract_strided_slice %222 {offsets = [8, 128], sizes = [8, 64], strides = [1, 1]} : vector<16x256xf32> to vector<8x64xf32>
    %352 = vector.extract_strided_slice %3 {offsets = [48, 0], sizes = [8, 8], strides = [1, 1]} : vector<64x8xf32> to vector<8x8xf32>
    %353 = tpu.transpose %350, [1, 0] : vector<8x64xf32> -> vector<64x8xf32>
    %cst_131 = arith.constant dense<0.000000e+00> : vector<8x8xf32>
    %354 = tpu.matmul %349, %353, %cst_131 {dimension_numbers = #tpu.dot_dimension_numbers<[1], [0], [0], [1], [0, 0, 1, 1], [], []>} : vector<8x64xf32>, vector<64x8xf32>, vector<8x8xf32> -> vector<8x8xf32>
    %cst_132 = arith.constant 0.0883883461 : f32
    %355 = vector.broadcast %cst_132 : f32 to vector<8x8xf32>
    %356 = arith.mulf %354, %355 : vector<8x8xf32>
    %357 = arith.addf %356, %352 : vector<8x8xf32>
    %cst_133 = arith.constant dense<0xFF800000> : vector<8xf32>
    %358 = vector.multi_reduction <maximumf>, %357, %cst_133 [1] : vector<8x8xf32> to vector<8xf32>
    %359 = vector.shape_cast %358 : vector<8xf32> to vector<8x1xf32>
    %360 = vector.broadcast %359 : vector<8x1xf32> to vector<8x8xf32>
    %361 = arith.subf %357, %360 : vector<8x8xf32>
    %362 = math.exp %361 : vector<8x8xf32>
    %cst_134 = arith.constant dense<0.000000e+00> : vector<8xf32>
    %363 = vector.multi_reduction <add>, %362, %cst_134 [1] : vector<8x8xf32> to vector<8xf32>
    %364 = vector.shape_cast %363 : vector<8xf32> to vector<8x1xf32>
    %365 = tpu.reciprocal %364 {approx = true} : vector<8x1xf32> -> vector<8x1xf32>
    %366 = vector.broadcast %365 : vector<8x1xf32> to vector<8x8xf32>
    %367 = arith.mulf %362, %366 : vector<8x8xf32>
    %cst_135 = arith.constant dense<0.000000e+00> : vector<8x64xf32>
    %368 = tpu.matmul %367, %351, %cst_135 {dimension_numbers = #tpu.dot_dimension_numbers<[1], [0], [0], [1], [0, 0, 1, 1], [], []>} : vector<8x8xf32>, vector<8x64xf32>, vector<8x64xf32> -> vector<8x64xf32>
    %c8_136 = arith.constant 8 : index
    %c128_137 = arith.constant 128 : index
    %369 = vector.load %arg26[%c8_136, %c128_137] : memref<16x256xf32, #tpu.memory_space<vmem>>, vector<8x64xf32>
    tpu.vector_store %arg26[%c8_136, %c128_137], %368 {strides = array<i32>} : memref<16x256xf32, #tpu.memory_space<vmem>>, vector<8x64xf32>,
    %370 = vector.extract_strided_slice %215 {offsets = [8, 192], sizes = [8, 64], strides = [1, 1]} : vector<16x256xf32> to vector<8x64xf32>
    %371 = vector.extract_strided_slice %221 {offsets = [8, 192], sizes = [8, 64], strides = [1, 1]} : vector<16x256xf32> to vector<8x64xf32>
    %372 = vector.extract_strided_slice %222 {offsets = [8, 192], sizes = [8, 64], strides = [1, 1]} : vector<16x256xf32> to vector<8x64xf32>
    %373 = vector.extract_strided_slice %3 {offsets = [56, 0], sizes = [8, 8], strides = [1, 1]} : vector<64x8xf32> to vector<8x8xf32>
    %374 = tpu.transpose %371, [1, 0] : vector<8x64xf32> -> vector<64x8xf32>
    %cst_138 = arith.constant dense<0.000000e+00> : vector<8x8xf32>
    %375 = tpu.matmul %370, %374, %cst_138 {dimension_numbers = #tpu.dot_dimension_numbers<[1], [0], [0], [1], [0, 0, 1, 1], [], []>} : vector<8x64xf32>, vector<64x8xf32>, vector<8x8xf32> -> vector<8x8xf32>
    %cst_139 = arith.constant 0.0883883461 : f32
    %376 = vector.broadcast %cst_139 : f32 to vector<8x8xf32>
    %377 = arith.mulf %375, %376 : vector<8x8xf32>
    %378 = arith.addf %377, %373 : vector<8x8xf32>
    %cst_140 = arith.constant dense<0xFF800000> : vector<8xf32>
    %379 = vector.multi_reduction <maximumf>, %378, %cst_140 [1] : vector<8x8xf32> to vector<8xf32>
    %380 = vector.shape_cast %379 : vector<8xf32> to vector<8x1xf32>
    %381 = vector.broadcast %380 : vector<8x1xf32> to vector<8x8xf32>
    %382 = arith.subf %378, %381 : vector<8x8xf32>
    %383 = math.exp %382 : vector<8x8xf32>
    %cst_141 = arith.constant dense<0.000000e+00> : vector<8xf32>
    %384 = vector.multi_reduction <add>, %383, %cst_141 [1] : vector<8x8xf32> to vector<8xf32>
    %385 = vector.shape_cast %384 : vector<8xf32> to vector<8x1xf32>
    %386 = tpu.reciprocal %385 {approx = true} : vector<8x1xf32> -> vector<8x1xf32>
    %387 = vector.broadcast %386 : vector<8x1xf32> to vector<8x8xf32>
    %388 = arith.mulf %383, %387 : vector<8x8xf32>
    %cst_142 = arith.constant dense<0.000000e+00> : vector<8x64xf32>
    %389 = tpu.matmul %388, %372, %cst_142 {dimension_numbers = #tpu.dot_dimension_numbers<[1], [0], [0], [1], [0, 0, 1, 1], [], []>} : vector<8x8xf32>, vector<8x64xf32>, vector<8x64xf32> -> vector<8x64xf32>
    %c8_143 = arith.constant 8 : index
    %c192_144 = arith.constant 192 : index
    %390 = vector.load %arg26[%c8_143, %c192_144] : memref<16x256xf32, #tpu.memory_space<vmem>>, vector<8x64xf32>
    tpu.vector_store %arg26[%c8_143, %c192_144], %389 {strides = array<i32>} : memref<16x256xf32, #tpu.memory_space<vmem>>, vector<8x64xf32>,
    %c0_145 = arith.constant 0 : index
    %c0_146 = arith.constant 0 : index
    %391 = vector.load %arg26[%c0_145, %c0_146] : memref<16x256xf32, #tpu.memory_space<vmem>>, vector<16x256xf32>
    %c0_147 = arith.constant 0 : index
    %c0_148 = arith.constant 0 : index
    %392 = vector.load %arg13[%c0_147, %c0_148] : memref<256x256xf32, #tpu.memory_space<vmem>>, vector<256x256xf32>
    %cst_149 = arith.constant dense<0.000000e+00> : vector<16x256xf32>
    %393 = tpu.matmul %391, %392, %cst_149 {dimension_numbers = #tpu.dot_dimension_numbers<[1], [0], [0], [1], [0, 0, 1, 1], [], []>} : vector<16x256xf32>, vector<256x256xf32>, vector<16x256xf32> -> vector<16x256xf32>
    %c0_150 = arith.constant 0 : index
    %c0_151 = arith.constant 0 : index
    %394 = vector.load %arg14[%c0_150, %c0_151] : memref<1x256xf32, #tpu.memory_space<vmem>>, vector<1x256xf32>
    %395 = vector.broadcast %394 : vector<1x256xf32> to vector<16x256xf32>
    %396 = arith.addf %393, %395 : vector<16x256xf32>
    %397 = arith.addf %396, %210 : vector<16x256xf32>
    %c0_152 = arith.constant 0 : index
    %c0_153 = arith.constant 0 : index
    %398 = vector.load %arg21[%c0_152, %c0_153] : memref<1x256xf32, #tpu.memory_space<vmem>>, vector<1x256xf32>
    %c0_154 = arith.constant 0 : index
    %c0_155 = arith.constant 0 : index
    %399 = vector.load %arg22[%c0_154, %c0_155] : memref<1x256xf32, #tpu.memory_space<vmem>>, vector<1x256xf32>
    %cst_156 = arith.constant dense<0.000000e+00> : vector<16xf32>
    %400 = vector.multi_reduction <add>, %397, %cst_156 [1] : vector<16x256xf32> to vector<16xf32>
    %401 = vector.shape_cast %400 : vector<16xf32> to vector<16x1xf32>
    %cst_157 = arith.constant 2.560000e+02 : f32
    %402 = vector.broadcast %cst_157 : f32 to vector<16x1xf32>
    %403 = arith.divf %401, %402 : vector<16x1xf32>
    %404 = vector.broadcast %403 : vector<16x1xf32> to vector<16x256xf32>
    %405 = arith.subf %397, %404 : vector<16x256xf32>
    %406 = arith.mulf %405, %405 : vector<16x256xf32>
    %cst_158 = arith.constant dense<0.000000e+00> : vector<16xf32>
    %407 = vector.multi_reduction <add>, %406, %cst_158 [1] : vector<16x256xf32> to vector<16xf32>
    %408 = vector.shape_cast %407 : vector<16xf32> to vector<16x1xf32>
    %cst_159 = arith.constant 2.560000e+02 : f32
    %409 = vector.broadcast %cst_159 : f32 to vector<16x1xf32>
    %410 = arith.divf %408, %409 : vector<16x1xf32>
    %411 = vector.broadcast %403 : vector<16x1xf32> to vector<16x256xf32>
    %412 = arith.subf %397, %411 : vector<16x256xf32>
    %cst_160 = arith.constant 9.99999974E-6 : f32
    %413 = vector.broadcast %cst_160 : f32 to vector<16x1xf32>
    %414 = arith.addf %410, %413 : vector<16x1xf32>
    %415 = math.rsqrt %414 : vector<16x1xf32>
    %416 = vector.broadcast %415 : vector<16x1xf32> to vector<16x256xf32>
    %417 = arith.mulf %412, %416 : vector<16x256xf32>
    %418 = vector.broadcast %398 : vector<1x256xf32> to vector<16x256xf32>
    %419 = arith.mulf %417, %418 : vector<16x256xf32>
    %420 = vector.broadcast %399 : vector<1x256xf32> to vector<16x256xf32>
    %421 = arith.addf %419, %420 : vector<16x256xf32>
    %c0_161 = arith.constant 0 : index
    %c0_162 = arith.constant 0 : index
    %422 = vector.load %arg15[%c0_161, %c0_162] : memref<256x512xf32, #tpu.memory_space<vmem>>, vector<256x512xf32>
    %cst_163 = arith.constant dense<0.000000e+00> : vector<16x512xf32>
    %423 = tpu.matmul %421, %422, %cst_163 {dimension_numbers = #tpu.dot_dimension_numbers<[1], [0], [0], [1], [0, 0, 1, 1], [], []>} : vector<16x256xf32>, vector<256x512xf32>, vector<16x512xf32> -> vector<16x512xf32>
    %c0_164 = arith.constant 0 : index
    %c0_165 = arith.constant 0 : index
    %424 = vector.load %arg16[%c0_164, %c0_165] : memref<1x512xf32, #tpu.memory_space<vmem>>, vector<1x512xf32>
    %425 = vector.broadcast %424 : vector<1x512xf32> to vector<16x512xf32>
    %426 = arith.addf %423, %425 : vector<16x512xf32>
    %cst_166 = arith.constant 5.000000e-01 : f32
    %427 = vector.broadcast %cst_166 : f32 to vector<16x512xf32>
    %428 = arith.mulf %427, %426 : vector<16x512xf32>
    %cst_167 = arith.constant 0.707106769 : f32
    %429 = vector.broadcast %cst_167 : f32 to vector<16x512xf32>
    %430 = arith.mulf %426, %429 : vector<16x512xf32>
    %431 = math.erf %430 : vector<16x512xf32>
    %cst_168 = arith.constant 1.000000e+00 : f32
    %432 = vector.broadcast %cst_168 : f32 to vector<16x512xf32>
    %433 = arith.addf %432, %431 : vector<16x512xf32>
    %434 = arith.mulf %428, %433 : vector<16x512xf32>
    %c0_169 = arith.constant 0 : index
    %c0_170 = arith.constant 0 : index
    %435 = vector.load %arg17[%c0_169, %c0_170] : memref<512x256xf32, #tpu.memory_space<vmem>>, vector<512x256xf32>
    %cst_171 = arith.constant dense<0.000000e+00> : vector<16x256xf32>
    %436 = tpu.matmul %434, %435, %cst_171 {dimension_numbers = #tpu.dot_dimension_numbers<[1], [0], [0], [1], [0, 0, 1, 1], [], []>} : vector<16x512xf32>, vector<512x256xf32>, vector<16x256xf32> -> vector<16x256xf32>
    %c0_172 = arith.constant 0 : index
    %c0_173 = arith.constant 0 : index
    %437 = vector.load %arg18[%c0_172, %c0_173] : memref<1x256xf32, #tpu.memory_space<vmem>>, vector<1x256xf32>
    %438 = vector.broadcast %437 : vector<1x256xf32> to vector<16x256xf32>
    %439 = arith.addf %436, %438 : vector<16x256xf32>
    %440 = arith.addf %439, %421 : vector<16x256xf32>
    %c0_174 = arith.constant 0 : index
    %c0_175 = arith.constant 0 : index
    %441 = vector.load %arg23[%c0_174, %c0_175] : memref<1x256xf32, #tpu.memory_space<vmem>>, vector<1x256xf32>
    %c0_176 = arith.constant 0 : index
    %c0_177 = arith.constant 0 : index
    %442 = vector.load %arg24[%c0_176, %c0_177] : memref<1x256xf32, #tpu.memory_space<vmem>>, vector<1x256xf32>
    %cst_178 = arith.constant dense<0.000000e+00> : vector<16xf32>
    %443 = vector.multi_reduction <add>, %440, %cst_178 [1] : vector<16x256xf32> to vector<16xf32>
    %444 = vector.shape_cast %443 : vector<16xf32> to vector<16x1xf32>
    %cst_179 = arith.constant 2.560000e+02 : f32
    %445 = vector.broadcast %cst_179 : f32 to vector<16x1xf32>
    %446 = arith.divf %444, %445 : vector<16x1xf32>
    %447 = vector.broadcast %446 : vector<16x1xf32> to vector<16x256xf32>
    %448 = arith.subf %440, %447 : vector<16x256xf32>
    %449 = arith.mulf %448, %448 : vector<16x256xf32>
    %cst_180 = arith.constant dense<0.000000e+00> : vector<16xf32>
    %450 = vector.multi_reduction <add>, %449, %cst_180 [1] : vector<16x256xf32> to vector<16xf32>
    %451 = vector.shape_cast %450 : vector<16xf32> to vector<16x1xf32>
    %cst_181 = arith.constant 2.560000e+02 : f32
    %452 = vector.broadcast %cst_181 : f32 to vector<16x1xf32>
    %453 = arith.divf %451, %452 : vector<16x1xf32>
    %454 = vector.broadcast %446 : vector<16x1xf32> to vector<16x256xf32>
    %455 = arith.subf %440, %454 : vector<16x256xf32>
    %cst_182 = arith.constant 9.99999974E-6 : f32
    %456 = vector.broadcast %cst_182 : f32 to vector<16x1xf32>
    %457 = arith.addf %453, %456 : vector<16x1xf32>
    %458 = math.rsqrt %457 : vector<16x1xf32>
    %459 = vector.broadcast %458 : vector<16x1xf32> to vector<16x256xf32>
    %460 = arith.mulf %455, %459 : vector<16x256xf32>
    %461 = vector.broadcast %441 : vector<1x256xf32> to vector<16x256xf32>
    %462 = arith.mulf %460, %461 : vector<16x256xf32>
    %463 = vector.broadcast %442 : vector<1x256xf32> to vector<16x256xf32>
    %464 = arith.addf %462, %463 : vector<16x256xf32>
    %c0_183 = arith.constant 0 : index
    %c0_184 = arith.constant 0 : index
    %465 = vector.load %arg25[%c0_183, %c0_184] : memref<16x256xf32, #tpu.memory_space<vmem>>, vector<16x256xf32>
    tpu.vector_store %arg25[%c0_183, %c0_184], %464 {strides = array<i32>} : memref<16x256xf32, #tpu.memory_space<vmem>>, vector<16x256xf32>,
    return
  }
  func.func @transform_0(%arg0: i32) -> (i32, i32) {
    %c0_i32 = arith.constant 0 : i32
    %c0_i32_0 = arith.constant 0 : i32
    %c0_i32_1 = arith.constant 0 : i32
    return %c0_i32, %c0_i32_0 : i32, i32
  }
  func.func @transform_1(%arg0: i32) -> (i32, i32) {
    %c0_i32 = arith.constant 0 : i32
    %c0_i32_0 = arith.constant 0 : i32
    %c0_i32_1 = arith.constant 0 : i32
    return %c0_i32, %c0_i32_0 : i32, i32
  }
  func.func @transform_2(%arg0: i32) -> (i32, i32) {
    %c0_i32 = arith.constant 0 : i32
    %c0_i32_0 = arith.constant 0 : i32
    %c0_i32_1 = arith.constant 0 : i32
    return %c0_i32, %c0_i32_0 : i32, i32
  }
  func.func @transform_3(%arg0: i32) -> (i32, i32) {
    %c0_i32 = arith.constant 0 : i32
    %c0_i32_0 = arith.constant 0 : i32
    %c0_i32_1 = arith.constant 0 : i32
    return %c0_i32, %c0_i32_0 : i32, i32
  }
  func.func @transform_4(%arg0: i32) -> (i32, i32) {
    %c0_i32 = arith.constant 0 : i32
    %c0_i32_0 = arith.constant 0 : i32
    %c0_i32_1 = arith.constant 0 : i32
    return %c0_i32, %c0_i32_0 : i32, i32
  }
  func.func @transform_5(%arg0: i32) -> (i32, i32) {
    %c0_i32 = arith.constant 0 : i32
    %c0_i32_0 = arith.constant 0 : i32
    %c0_i32_1 = arith.constant 0 : i32
    return %c0_i32, %c0_i32_0 : i32, i32
  }
  func.func @transform_6(%arg0: i32) -> (i32, i32) {
    %c0_i32 = arith.constant 0 : i32
    %c0_i32_0 = arith.constant 0 : i32
    %c0_i32_1 = arith.constant 0 : i32
    return %c0_i32, %c0_i32_0 : i32, i32
  }
  func.func @transform_7(%arg0: i32) -> (i32, i32) {
    %c0_i32 = arith.constant 0 : i32
    %c0_i32_0 = arith.constant 0 : i32
    %c0_i32_1 = arith.constant 0 : i32
    return %c0_i32, %c0_i32_0 : i32, i32
  }
  func.func @transform_8(%arg0: i32) -> (i32, i32) {
    %c0_i32 = arith.constant 0 : i32
    %c0_i32_0 = arith.constant 0 : i32
    %c0_i32_1 = arith.constant 0 : i32
    return %c0_i32, %c0_i32_0 : i32, i32
  }
  func.func @transform_9(%arg0: i32) -> (i32, i32) {
    %c0_i32 = arith.constant 0 : i32
    %c0_i32_0 = arith.constant 0 : i32
    %c0_i32_1 = arith.constant 0 : i32
    return %c0_i32, %c0_i32_0 : i32, i32
  }
  func.func @transform_10(%arg0: i32) -> (i32, i32) {
    %c0_i32 = arith.constant 0 : i32
    %c0_i32_0 = arith.constant 0 : i32
    %c0_i32_1 = arith.constant 0 : i32
    return %c0_i32, %c0_i32_0 : i32, i32
  }
  func.func @transform_11(%arg0: i32) -> (i32, i32) {
    %c0_i32 = arith.constant 0 : i32
    %c0_i32_0 = arith.constant 0 : i32
    %c0_i32_1 = arith.constant 0 : i32
    return %c0_i32, %c0_i32_0 : i32, i32
  }
  func.func @transform_12(%arg0: i32) -> (i32, i32) {
    %c0_i32 = arith.constant 0 : i32
    %c0_i32_0 = arith.constant 0 : i32
    %c0_i32_1 = arith.constant 0 : i32
    return %c0_i32, %c0_i32_0 : i32, i32
  }
  func.func @transform_13(%arg0: i32) -> (i32, i32) {
    %c0_i32 = arith.constant 0 : i32
    %c0_i32_0 = arith.constant 0 : i32
    %c0_i32_1 = arith.constant 0 : i32
    return %c0_i32, %c0_i32_0 : i32, i32
  }
  func.func @transform_14(%arg0: i32) -> (i32, i32) {
    %c0_i32 = arith.constant 0 : i32
    %c0_i32_0 = arith.constant 0 : i32
    %c0_i32_1 = arith.constant 0 : i32
    return %c0_i32, %c0_i32_0 : i32, i32
  }
  func.func @transform_15(%arg0: i32) -> (i32, i32) {
    %c0_i32 = arith.constant 0 : i32
    %c0_i32_0 = arith.constant 0 : i32
    %c0_i32_1 = arith.constant 0 : i32
    return %c0_i32, %c0_i32_0 : i32, i32
  }
  func.func @transform_16(%arg0: i32) -> (i32, i32) {
    %c0_i32 = arith.constant 0 : i32
    %c0_i32_0 = arith.constant 0 : i32
    %c0_i32_1 = arith.constant 0 : i32
    return %c0_i32, %c0_i32_0 : i32, i32
  }
  func.func @transform_17(%arg0: i32) -> (i32, i32) {
    %c0_i32 = arith.constant 0 : i32
    %c0_i32_0 = arith.constant 0 : i32
    %c0_i32_1 = arith.constant 0 : i32
    return %c0_i32, %c0_i32_0 : i32, i32
  }
  func.func @transform_18(%arg0: i32) -> (i32, i32) {
    %c0_i32 = arith.constant 0 : i32
    %c0_i32_0 = arith.constant 0 : i32
    %c0_i32_1 = arith.constant 0 : i32
    return %c0_i32, %c0_i32_0 : i32, i32
  }
  func.func @transform_19(%arg0: i32) -> (i32, i32) {
    %c0_i32 = arith.constant 0 : i32
    %c0_i32_0 = arith.constant 0 : i32
    %c0_i32_1 = arith.constant 0 : i32
    return %c0_i32, %c0_i32_0 : i32, i32
  }
  func.func @transform_20(%arg0: i32) -> (i32, i32) {
    %c0_i32 = arith.constant 0 : i32
    %c0_i32_0 = arith.constant 0 : i32
    %c0_i32_1 = arith.constant 0 : i32
    return %c0_i32, %c0_i32_0 : i32, i32
  }
  func.func @transform_21(%arg0: i32) -> (i32, i32) {
    %c0_i32 = arith.constant 0 : i32
    %c0_i32_0 = arith.constant 0 : i32
    %c0_i32_1 = arith.constant 0 : i32
    return %c0_i32, %c0_i32_0 : i32, i32
  }
  func.func @transform_22(%arg0: i32) -> (i32, i32) {
    %c0_i32 = arith.constant 0 : i32
    %c0_i32_0 = arith.constant 0 : i32
    %c0_i32_1 = arith.constant 0 : i32
    return %c0_i32, %c0_i32_0 : i32, i32
  }
  func.func @transform_23(%arg0: i32) -> (i32, i32) {
    %c0_i32 = arith.constant 0 : i32
    %c0_i32_0 = arith.constant 0 : i32
    %c0_i32_1 = arith.constant 0 : i32
    return %c0_i32, %c0_i32_0 : i32, i32
  }
  func.func @transform_24(%arg0: i32) -> (i32, i32) {
    %c0_i32 = arith.constant 0 : i32
    %c0_i32_0 = arith.constant 0 : i32
    %c0_i32_1 = arith.constant 0 : i32
    return %c0_i32, %c0_i32_0 : i32, i32
  }
}

</mosaic_0001>

<llo_original>
// kernel: transformer_decoder_layer_untie.1
$region0: #{transformer_decoder_layer_untie.1}
  #allocation0 [shape = 'u32[]', space=smem, size = 0x4, offset = 0x4, fixed_abs, tag = 'smem constant byte address 0x4 - core index']
  #allocation1 [shape = 'u32[144,128]{1,0:T(1,128)}', space=vmem, size = 0x12000, scoped, tag = 'internal scratch']
  #allocation2 [shape = 'f32[16,256]{1,0:T(8,128)}', space=vmem, size = 0x4000, scoped, tag = 'scratch operand']
  %s0 = inlined_call_operand.vmem [shape: f32[16,256], index: 0, kind: input, shape index: {}]
  %s1 = inlined_call_operand.vmem [shape: f32[16,256], index: 1, kind: input, shape index: {}]
  %s2 = inlined_call_operand.vmem [shape: f32[64,8], index: 2, kind: input, shape index: {}]
  %s3 = inlined_call_operand.vmem [shape: f32[64,8], index: 3, kind: input, shape index: {}]
  %s4 = inlined_call_operand.hbm [shape: f32[256,768], index: 4, kind: input, shape index: {}]
  %s5 = inlined_call_operand.vmem [shape: f32[1,768], index: 5, kind: input, shape index: {}]
  %s6 = inlined_call_operand.hbm [shape: f32[256,256], index: 6, kind: input, shape index: {}]
  %s7 = inlined_call_operand.vmem [shape: f32[1,256], index: 7, kind: input, shape index: {}]
  %s8 = inlined_call_operand.hbm [shape: f32[256,256], index: 8, kind: input, shape index: {}]
  %s9 = inlined_call_operand.vmem [shape: f32[1,256], index: 9, kind: input, shape index: {}]
  %s10 = inlined_call_operand.hbm [shape: f32[256,512], index: 10, kind: input, shape index: {}]
  %s11 = inlined_call_operand.vmem [shape: f32[1,512], index: 11, kind: input, shape index: {}]
  %s12 = inlined_call_operand.hbm [shape: f32[256,256], index: 12, kind: input, shape index: {}]
  %s13 = inlined_call_operand.vmem [shape: f32[1,256], index: 13, kind: input, shape index: {}]
  %s14 = inlined_call_operand.hbm [shape: f32[256,512], index: 14, kind: input, shape index: {}]
  %s15 = inlined_call_operand.vmem [shape: f32[1,512], index: 15, kind: input, shape index: {}]
  %s16 = inlined_call_operand.hbm [shape: f32[512,256], index: 16, kind: input, shape index: {}]
  %s17 = inlined_call_operand.vmem [shape: f32[1,256], index: 17, kind: input, shape index: {}]
  %s18 = inlined_call_operand.vmem [shape: f32[1,256], index: 18, kind: input, shape index: {}]
  %s19 = inlined_call_operand.vmem [shape: f32[1,256], index: 19, kind: input, shape index: {}]
  %s20 = inlined_call_operand.vmem [shape: f32[1,256], index: 20, kind: input, shape index: {}]
  %s21 = inlined_call_operand.vmem [shape: f32[1,256], index: 21, kind: input, shape index: {}]
  %s22 = inlined_call_operand.vmem [shape: f32[1,256], index: 22, kind: input, shape index: {}]
  %s23 = inlined_call_operand.vmem [shape: f32[1,256], index: 23, kind: input, shape index: {}]
  %s24 = inlined_call_operand.hbm [shape: f32[16,256], index: 24, kind: output, shape index: {}]
  %s25 = sld [smem:[#allocation0]]
  $region134: #{transformer_decoder_layer_untie.1} parent=0
    _
  %s27 = ssub.s32 1, %s25
  %s28 = scalar_select 0, %s27, %s25
  $region1: #{transformer_decoder_layer_untie.1} parent=0
    #allocation3 [shape = 'u8[786432]{0}', space=vmem, size = 0xc0000, scoped, tag = 'input window, operand 4, single buffered']
    #allocation4 [shape = 's32[1]{0}', space=sflag, size = 0x4, scoped, tag = 'scoped memory for transformer_decoder_layer_untie.1']
    #allocation5 [shape = 's32[1]{0}', space=sflag, size = 0x4, scoped, tag = 'scoped memory for transformer_decoder_layer_untie.1']
    #allocation6 [shape = 'u8[262144]{0}', space=vmem, size = 0x40000, scoped, tag = 'input window, operand 6, single buffered']
    #allocation7 [shape = 's32[1]{0}', space=sflag, size = 0x4, scoped, tag = 'scoped memory for transformer_decoder_layer_untie.1']
    #allocation8 [shape = 'u8[262144]{0}', space=vmem, size = 0x40000, scoped, tag = 'input window, operand 8, single buffered']
    #allocation9 [shape = 'u8[524288]{0}', space=vmem, size = 0x80000, scoped, tag = 'input window, operand 10, single buffered']
    #allocation10 [shape = 's32[1]{0}', space=sflag, size = 0x4, scoped, tag = 'scoped memory for transformer_decoder_layer_untie.1']
    #allocation11 [shape = 'u8[262144]{0}', space=vmem, size = 0x40000, scoped, tag = 'input window, operand 12, single buffered']
    #allocation12 [shape = 'u8[524288]{0}', space=vmem, size = 0x80000, scoped, tag = 'input window, operand 14, single buffered']
    #allocation13 [shape = 's32[1]{0}', space=sflag, size = 0x4, scoped, tag = 'scoped memory for transformer_decoder_layer_untie.1']
    #allocation14 [shape = 'u8[524288]{0}', space=vmem, size = 0x80000, scoped, tag = 'input window, operand 16, single buffered']
    #allocation15 [shape = 'u8[16384]{0}', space=vmem, size = 0x4000, scoped, tag = 'output window, operand 0, single buffered']
    %29 = vsyncpa [#allocation4], 0
    %30 = vsyncpa [#allocation7], 0
    %31 = vsyncpa [#allocation10], 0
    %32 = vsyncpa [#allocation13], 0
    %33 = vsyncpa [#allocation5], 0
    // Predicated region
    $region2: #{transformer_decoder_layer_untie.1} parent=1 // pred_check
      _
    $region3: #{transformer_decoder_layer_untie.1} parent=1 // pred_check_branch
      %35 = sbr.rel (0) target = $region5
    $region4: #{transformer_decoder_layer_untie.1} parent=1 // pred_region
      _
    $region5: #{transformer_decoder_layer_untie.1} parent=1 // pred_fallthru
      _
    // Predicated region
    $region6: #{transformer_decoder_layer_untie.1} parent=1 // pred_check
      _
    $region7: #{transformer_decoder_layer_untie.1} parent=1 // pred_check_branch
      %37 = sbr.rel (0) target = $region9
    $region8: #{transformer_decoder_layer_untie.1} parent=1 // pred_region
      _
    $region9: #{transformer_decoder_layer_untie.1} parent=1 // pred_fallthru
      _
    // Predicated region
    $region10: #{transformer_decoder_layer_untie.1} parent=1 // pred_check
      _
    $region11: #{transformer_decoder_layer_untie.1} parent=1 // pred_check_branch
      %39 = sbr.rel (0) target = $region13
    $region12: #{transformer_decoder_layer_untie.1} parent=1 // pred_region
      _
    $region13: #{transformer_decoder_layer_untie.1} parent=1 // pred_fallthru
      _
    // Predicated region
    $region14: #{transformer_decoder_layer_untie.1} parent=1 // pred_check
      _
    $region15: #{transformer_decoder_layer_untie.1} parent=1 // pred_check_branch
      %41 = sbr.rel (0) target = $region17
    $region16: #{transformer_decoder_layer_untie.1} parent=1 // pred_region
      _
    $region17: #{transformer_decoder_layer_untie.1} parent=1 // pred_fallthru
      _
    // Predicated region
    $region18: #{transformer_decoder_layer_untie.1} parent=1 // pred_check
      _
    $region19: #{transformer_decoder_layer_untie.1} parent=1 // pred_check_branch
      %43 = sbr.rel (0) target = $region21
    $region20: #{transformer_decoder_layer_untie.1} parent=1 // pred_region
      %s45 = ssub.s32 24576, 24576
      %46 = vsyncadd [#allocation4], %s45
      %s47 = sshll.u32 [#allocation3], 4
      %s48 = int_to_ptr.vmem [resolvable:$true] %s47
      %53 = dma.hbm_to_vmem [thread:$0]  %s4, 24576, %s48, [#allocation4], 768, 768, 48
    $region21: #{transformer_decoder_layer_untie.1} parent=1 // pred_fallthru
      _
    // Predicated region
    $region22: #{transformer_decoder_layer_untie.1} parent=1 // pred_check
      _
    $region23: #{transformer_decoder_layer_untie.1} parent=1 // pred_check_branch
      %55 = sbr.rel (0) target = $region25
    $region24: #{transformer_decoder_layer_untie.1} parent=1 // pred_region
      _
    $region25: #{transformer_decoder_layer_untie.1} parent=1 // pred_fallthru
      _
    // Predicated region
    $region26: #{transformer_decoder_layer_untie.1} parent=1 // pred_check
      _
    $region27: #{transformer_decoder_layer_untie.1} parent=1 // pred_check_branch
      %57 = sbr.rel (0) target = $region29
    $region28: #{transformer_decoder_layer_untie.1} parent=1 // pred_region
      %s59 = ssub.s32 8192, 8192
      %60 = vsyncadd [#allocation7], %s59
      %s61 = sshll.u32 [#allocation6], 4
      %s62 = int_to_ptr.vmem [resolvable:$true] %s61
      %67 = dma.hbm_to_vmem [thread:$0]  %s6, 8192, %s62, [#allocation7], 256, 256, 16
    $region29: #{transformer_decoder_layer_untie.1} parent=1 // pred_fallthru
      _
    // Predicated region
    $region30: #{transformer_decoder_layer_untie.1} parent=1 // pred_check
      _
    $region31: #{transformer_decoder_layer_untie.1} parent=1 // pred_check_branch
      %69 = sbr.rel (0) target = $region33
    $region32: #{transformer_decoder_layer_untie.1} parent=1 // pred_region
      _
    $region33: #{transformer_decoder_layer_untie.1} parent=1 // pred_fallthru
      _
    // Predicated region
    $region34: #{transformer_decoder_layer_untie.1} parent=1 // pred_check
      _
    $region35: #{transformer_decoder_layer_untie.1} parent=1 // pred_check_branch
      %71 = sbr.rel (0) target = $region37
    $region36: #{transformer_decoder_layer_untie.1} parent=1 // pred_region
      %s73 = ssub.s32 8192, 8192
      %74 = vsyncadd [#allocation7], %s73
      %s75 = sshll.u32 [#allocation8], 4
      %s76 = int_to_ptr.vmem [resolvable:$true] %s75
      %81 = dma.hbm_to_vmem [thread:$0]  %s8, 8192, %s76, [#allocation7], 256, 256, 16
    $region37: #{transformer_decoder_layer_untie.1} parent=1 // pred_fallthru
      _
    // Predicated region
    $region38: #{transformer_decoder_layer_untie.1} parent=1 // pred_check
      _
    $region39: #{transformer_decoder_layer_untie.1} parent=1 // pred_check_branch
      %83 = sbr.rel (0) target = $region41
    $region40: #{transformer_decoder_layer_untie.1} parent=1 // pred_region
      _
    $region41: #{transformer_decoder_layer_untie.1} parent=1 // pred_fallthru
      _
    // Predicated region
    $region42: #{transformer_decoder_layer_untie.1} parent=1 // pred_check
      _
    $region43: #{transformer_decoder_layer_untie.1} parent=1 // pred_check_branch
      %85 = sbr.rel (0) target = $region45
    $region44: #{transformer_decoder_layer_untie.1} parent=1 // pred_region
      %s87 = ssub.s32 16384, 16384
      %88 = vsyncadd [#allocation10], %s87
      %s89 = sshll.u32 [#allocation9], 4
      %s90 = int_to_ptr.vmem [resolvable:$true] %s89
      %95 = dma.hbm_to_vmem [thread:$0]  %s10, 16384, %s90, [#allocation10], 512, 512, 32
    $region45: #{transformer_decoder_layer_untie.1} parent=1 // pred_fallthru
      _
    // Predicated region
    $region46: #{transformer_decoder_layer_untie.1} parent=1 // pred_check
      _
    $region47: #{transformer_decoder_layer_untie.1} parent=1 // pred_check_branch
      %97 = sbr.rel (0) target = $region49
    $region48: #{transformer_decoder_layer_untie.1} parent=1 // pred_region
      _
    $region49: #{transformer_decoder_layer_untie.1} parent=1 // pred_fallthru
      _
    // Predicated region
    $region50: #{transformer_decoder_layer_untie.1} parent=1 // pred_check
      _
    $region51: #{transformer_decoder_layer_untie.1} parent=1 // pred_check_branch
      %99 = sbr.rel (0) target = $region53
    $region52: #{transformer_decoder_layer_untie.1} parent=1 // pred_region
      %s101 = ssub.s32 8192, 8192
      %102 = vsyncadd [#allocation10], %s101
      %s103 = sshll.u32 [#allocation11], 4
      %s104 = int_to_ptr.vmem [resolvable:$true] %s103
      %109 = dma.hbm_to_vmem [thread:$0]  %s12, 8192, %s104, [#allocation10], 256, 256, 16
    $region53: #{transformer_decoder_layer_untie.1} parent=1 // pred_fallthru
      _
    // Predicated region
    $region54: #{transformer_decoder_layer_untie.1} parent=1 // pred_check
      _
    $region55: #{transformer_decoder_layer_untie.1} parent=1 // pred_check_branch
      %111 = sbr.rel (0) target = $region57
    $region56: #{transformer_decoder_layer_untie.1} parent=1 // pred_region
      _
    $region57: #{transformer_decoder_layer_untie.1} parent=1 // pred_fallthru
      _
    // Predicated region
    $region58: #{transformer_decoder_layer_untie.1} parent=1 // pred_check
      _
    $region59: #{transformer_decoder_layer_untie.1} parent=1 // pred_check_branch
      %113 = sbr.rel (0) target = $region61
    $region60: #{transformer_decoder_layer_untie.1} parent=1 // pred_region
      %s115 = ssub.s32 16384, 16384
      %116 = vsyncadd [#allocation13], %s115
      %s117 = sshll.u32 [#allocation12], 4
      %s118 = int_to_ptr.vmem [resolvable:$true] %s117
      %123 = dma.hbm_to_vmem [thread:$0]  %s14, 16384, %s118, [#allocation13], 512, 512, 32
    $region61: #{transformer_decoder_layer_untie.1} parent=1 // pred_fallthru
      _
    // Predicated region
    $region62: #{transformer_decoder_layer_untie.1} parent=1 // pred_check
      _
    $region63: #{transformer_decoder_layer_untie.1} parent=1 // pred_check_branch
      %125 = sbr.rel (0) target = $region65
    $region64: #{transformer_decoder_layer_untie.1} parent=1 // pred_region
      _
    $region65: #{transformer_decoder_layer_untie.1} parent=1 // pred_fallthru
      _
    // Predicated region
    $region66: #{transformer_decoder_layer_untie.1} parent=1 // pred_check
      _
    $region67: #{transformer_decoder_layer_untie.1} parent=1 // pred_check_branch
      %127 = sbr.rel (0) target = $region69
    $region68: #{transformer_decoder_layer_untie.1} parent=1 // pred_region
      %s129 = ssub.s32 16384, 16384
      %130 = vsyncadd [#allocation13], %s129
      %s131 = sshll.u32 [#allocation14], 4
      %s132 = int_to_ptr.vmem [resolvable:$true] %s131
      %137 = dma.hbm_to_vmem [thread:$0]  %s16, 16384, %s132, [#allocation13], 256, 256, 16
    $region69: #{transformer_decoder_layer_untie.1} parent=1 // pred_fallthru
      _
    // Predicated region
    $region70: #{transformer_decoder_layer_untie.1} parent=1 // pred_check
      _
    $region71: #{transformer_decoder_layer_untie.1} parent=1 // pred_check_branch
      %139 = sbr.rel (0) target = $region73
    $region72: #{transformer_decoder_layer_untie.1} parent=1 // pred_region
      _
    $region73: #{transformer_decoder_layer_untie.1} parent=1 // pred_fallthru
      _
    // Predicated region
    $region74: #{transformer_decoder_layer_untie.1} parent=1 // pred_check
      _
    $region75: #{transformer_decoder_layer_untie.1} parent=1 // pred_check_branch
      %141 = sbr.rel (0) target = $region77
    $region76: #{transformer_decoder_layer_untie.1} parent=1 // pred_region
      _
    $region77: #{transformer_decoder_layer_untie.1} parent=1 // pred_fallthru
      _
    // Predicated region
    $region78: #{transformer_decoder_layer_untie.1} parent=1 // pred_check
      _
    $region79: #{transformer_decoder_layer_untie.1} parent=1 // pred_check_branch
      %143 = sbr.rel (0) target = $region81
    $region80: #{transformer_decoder_layer_untie.1} parent=1 // pred_region
      _
    $region81: #{transformer_decoder_layer_untie.1} parent=1 // pred_fallthru
      _
    // Predicated region
    $region82: #{transformer_decoder_layer_untie.1} parent=1 // pred_check
      _
    $region83: #{transformer_decoder_layer_untie.1} parent=1 // pred_check_branch
      %145 = sbr.rel (0) target = $region85
    $region84: #{transformer_decoder_layer_untie.1} parent=1 // pred_region
      _
    $region85: #{transformer_decoder_layer_untie.1} parent=1 // pred_fallthru
      _
    // Predicated region
    $region86: #{transformer_decoder_layer_untie.1} parent=1 // pred_check
      _
    $region87: #{transformer_decoder_layer_untie.1} parent=1 // pred_check_branch
      %147 = sbr.rel (0) target = $region89
    $region88: #{transformer_decoder_layer_untie.1} parent=1 // pred_region
      _
    $region89: #{transformer_decoder_layer_untie.1} parent=1 // pred_fallthru
      _
    // Predicated region
    $region90: #{transformer_decoder_layer_untie.1} parent=1 // pred_check
      _
    $region91: #{transformer_decoder_layer_untie.1} parent=1 // pred_check_branch
      %149 = sbr.rel (0) target = $region93
    $region92: #{transformer_decoder_layer_untie.1} parent=1 // pred_region
      _
    $region93: #{transformer_decoder_layer_untie.1} parent=1 // pred_fallthru
      _
    // Predicated region
    $region94: #{transformer_decoder_layer_untie.1} parent=1 // pred_check
      _
    $region95: #{transformer_decoder_layer_untie.1} parent=1 // pred_check_branch
      %151 = sbr.rel (0) target = $region97
    $region96: #{transformer_decoder_layer_untie.1} parent=1 // pred_region
      _
    $region97: #{transformer_decoder_layer_untie.1} parent=1 // pred_fallthru
      _
    // Predicated region
    $region98: #{transformer_decoder_layer_untie.1} parent=1 // pred_check
      _
    $region99: #{transformer_decoder_layer_untie.1} parent=1 // pred_check_branch
      %153 = sbr.rel (0) target = $region101
    $region100: #{transformer_decoder_layer_untie.1} parent=1 // pred_region
      %154 = dma.done [#allocation4], 24576
    $region101: #{transformer_decoder_layer_untie.1} parent=1 // pred_fallthru
      _
    // Predicated region
    $region102: #{transformer_decoder_layer_untie.1} parent=1 // pred_check
      _
    $region103: #{transformer_decoder_layer_untie.1} parent=1 // pred_check_branch
      %156 = sbr.rel (0) target = $region105
    $region104: #{transformer_decoder_layer_untie.1} parent=1 // pred_region
      %157 = dma.done [#allocation7], 8192
    $region105: #{transformer_decoder_layer_untie.1} parent=1 // pred_fallthru
      _
    // Predicated region
    $region106: #{transformer_decoder_layer_untie.1} parent=1 // pred_check
      _
    $region107: #{transformer_decoder_layer_untie.1} parent=1 // pred_check_branch
      %159 = sbr.rel (0) target = $region109
    $region108: #{transformer_decoder_layer_untie.1} parent=1 // pred_region
      %160 = dma.done [#allocation7], 8192
    $region109: #{transformer_decoder_layer_untie.1} parent=1 // pred_fallthru
      _
    // Predicated region
    $region110: #{transformer_decoder_layer_untie.1} parent=1 // pred_check
      _
    $region111: #{transformer_decoder_layer_untie.1} parent=1 // pred_check_branch
      %162 = sbr.rel (0) target = $region113
    $region112: #{transformer_decoder_layer_untie.1} parent=1 // pred_region
      %163 = dma.done [#allocation10], 16384
    $region113: #{transformer_decoder_layer_untie.1} parent=1 // pred_fallthru
      _
    // Predicated region
    $region114: #{transformer_decoder_layer_untie.1} parent=1 // pred_check
      _
    $region115: #{transformer_decoder_layer_untie.1} parent=1 // pred_check_branch
      %165 = sbr.rel (0) target = $region117
    $region116: #{transformer_decoder_layer_untie.1} parent=1 // pred_region
      %166 = dma.done [#allocation10], 8192
    $region117: #{transformer_decoder_layer_untie.1} parent=1 // pred_fallthru
      _
    // Predicated region
    $region118: #{transformer_decoder_layer_untie.1} parent=1 // pred_check
      _
    $region119: #{transformer_decoder_layer_untie.1} parent=1 // pred_check_branch
      %168 = sbr.rel (0) target = $region121
    $region120: #{transformer_decoder_layer_untie.1} parent=1 // pred_region
      %169 = dma.done [#allocation13], 16384
    $region121: #{transformer_decoder_layer_untie.1} parent=1 // pred_fallthru
      _
    // Predicated region
    $region122: #{transformer_decoder_layer_untie.1} parent=1 // pred_check
      _
    $region123: #{transformer_decoder_layer_untie.1} parent=1 // pred_check_branch
      %171 = sbr.rel (0) target = $region125
    $region124: #{transformer_decoder_layer_untie.1} parent=1 // pred_region
      %172 = dma.done [#allocation13], 16384
    $region125: #{transformer_decoder_layer_untie.1} parent=1 // pred_fallthru
      _
    %v173 = vld [vmem:[%s0] sm:$0xff]
    %v174 = vld [vmem:[%s0 + $0x8] sm:$0xff]
    %v175 = vld [vmem:[%s0 + $0x10] sm:$0xff]
    %v176 = vld [vmem:[%s0 + $0x18] sm:$0xff]
    %v177 = vld [vmem:[%s1] sm:$0xff]
    %v178 = vld [vmem:[%s1 + $0x8] sm:$0xff]
    %v179 = vld [vmem:[%s1 + $0x10] sm:$0xff]
    %v180 = vld [vmem:[%s1 + $0x18] sm:$0xff]
    %v181 = vld [vmem:[%s2] sm:$0xff]
    %v182 = vld [vmem:[%s2 + $0x8] sm:$0xff]
    %v183 = vld [vmem:[%s2 + $0x10] sm:$0xff]
    %v184 = vld [vmem:[%s2 + $0x18] sm:$0xff]
    %v185 = vld [vmem:[%s2 + $0x20] sm:$0xff]
    %v186 = vld [vmem:[%s2 + $0x28] sm:$0xff]
    %v187 = vld [vmem:[%s2 + $0x30] sm:$0xff]
    %v188 = vld [vmem:[%s2 + $0x38] sm:$0xff]
    %v189 = vld [vmem:[%s3] sm:$0xff]
    %v190 = vld [vmem:[%s3 + $0x8] sm:$0xff]
    %v191 = vld [vmem:[%s3 + $0x10] sm:$0xff]
    %v192 = vld [vmem:[%s3 + $0x18] sm:$0xff]
    %v193 = vld [vmem:[%s3 + $0x20] sm:$0xff]
    %v194 = vld [vmem:[%s3 + $0x28] sm:$0xff]
    %v195 = vld [vmem:[%s3 + $0x30] sm:$0xff]
    %v196 = vld [vmem:[%s3 + $0x38] sm:$0xff]
    %v197 = vld [vmem:[#allocation3] sm:$0xff]
    %v198 = vld [vmem:[#allocation3 + $0x8] sm:$0xff]
    %v199 = vld [vmem:[#allocation3 + $0x10] sm:$0xff]
    %v200 = vld [vmem:[#allocation3 + $0x18] sm:$0xff]
    %v201 = vld [vmem:[#allocation3 + $0x20] sm:$0xff]
    %v202 = vld [vmem:[#allocation3 + $0x28] sm:$0xff]
    %v203 = vld [vmem:[#allocation3 + $0x30] sm:$0xff]
    %v204 = vld [vmem:[#allocation3 + $0x38] sm:$0xff]
    %v205 = vld [vmem:[#allocation3 + $0x40] sm:$0xff]
    %v206 = vld [vmem:[#allocation3 + $0x48] sm:$0xff]
    %v207 = vld [vmem:[#allocation3 + $0x50] sm:$0xff]
    %v208 = vld [vmem:[#allocation3 + $0x58] sm:$0xff]
    %v209 = vld [vmem:[#allocation3 + $0x60] sm:$0xff]
    %v210 = vld [vmem:[#allocation3 + $0x68] sm:$0xff]
    %v211 = vld [vmem:[#allocation3 + $0x70] sm:$0xff]
    %v212 = vld [vmem:[#allocation3 + $0x78] sm:$0xff]
    %v213 = vld [vmem:[#allocation3 + $0x80] sm:$0xff]
    %v214 = vld [vmem:[#allocation3 + $0x88] sm:$0xff]
    %v215 = vld [vmem:[#allocation3 + $0x90] sm:$0xff]
    %v216 = vld [vmem:[#allocation3 + $0x98] sm:$0xff]
    %v217 = vld [vmem:[#allocation3 + $0xa0] sm:$0xff]
    %v218 = vld [vmem:[#allocation3 + $0xa8] sm:$0xff]
    %v219 = vld [vmem:[#allocation3 + $0xb0] sm:$0xff]
    %v220 = vld [vmem:[#allocation3 + $0xb8] sm:$0xff]
    %v221 = vld [vmem:[#allocation3 + $0xc0] sm:$0xff]
    %v222 = vld [vmem:[#allocation3 + $0xc8] sm:$0xff]
    %v223 = vld [vmem:[#allocation3 + $0xd0] sm:$0xff]
    %v224 = vld [vmem:[#allocation3 + $0xd8] sm:$0xff]
    %v225 = vld [vmem:[#allocation3 + $0xe0] sm:$0xff]
    %v226 = vld [vmem:[#allocation3 + $0xe8] sm:$0xff]
    %v227 = vld [vmem:[#allocation3 + $0xf0] sm:$0xff]
    %v228 = vld [vmem:[#allocation3 + $0xf8] sm:$0xff]
    %v229 = vld [vmem:[#allocation3 + $0x100] sm:$0xff]
    %v230 = vld [vmem:[#allocation3 + $0x108] sm:$0xff]
    %v231 = vld [vmem:[#allocation3 + $0x110] sm:$0xff]
    %v232 = vld [vmem:[#allocation3 + $0x118] sm:$0xff]
    %v233 = vld [vmem:[#allocation3 + $0x120] sm:$0xff]
    %v234 = vld [vmem:[#allocation3 + $0x128] sm:$0xff]
    %v235 = vld [vmem:[#allocation3 + $0x130] sm:$0xff]
    %v236 = vld [vmem:[#allocation3 + $0x138] sm:$0xff]
    %v237 = vld [vmem:[#allocation3 + $0x140] sm:$0xff]
    %v238 = vld [vmem:[#allocation3 + $0x148] sm:$0xff]
    %v239 = vld [vmem:[#allocation3 + $0x150] sm:$0xff]
    %v240 = vld [vmem:[#allocation3 + $0x158] sm:$0xff]
    %v241 = vld [vmem:[#allocation3 + $0x160] sm:$0xff]
    %v242 = vld [vmem:[#allocation3 + $0x168] sm:$0xff]
    %v243 = vld [vmem:[#allocation3 + $0x170] sm:$0xff]
    %v244 = vld [vmem:[#allocation3 + $0x178] sm:$0xff]
    %v245 = vld [vmem:[#allocation3 + $0x180] sm:$0xff]
    %v246 = vld [vmem:[#allocation3 + $0x188] sm:$0xff]
    %v247 = vld [vmem:[#allocation3 + $0x190] sm:$0xff]
    %v248 = vld [vmem:[#allocation3 + $0x198] sm:$0xff]
    %v249 = vld [vmem:[#allocation3 + $0x1a0] sm:$0xff]
    %v250 = vld [vmem:[#allocation3 + $0x1a8] sm:$0xff]
    %v251 = vld [vmem:[#allocation3 + $0x1b0] sm:$0xff]
    %v252 = vld [vmem:[#allocation3 + $0x1b8] sm:$0xff]
    %v253 = vld [vmem:[#allocation3 + $0x1c0] sm:$0xff]
    %v254 = vld [vmem:[#allocation3 + $0x1c8] sm:$0xff]
    %v255 = vld [vmem:[#allocation3 + $0x1d0] sm:$0xff]
    %v256 = vld [vmem:[#allocation3 + $0x1d8] sm:$0xff]
    %v257 = vld [vmem:[#allocation3 + $0x1e0] sm:$0xff]
    %v258 = vld [vmem:[#allocation3 + $0x1e8] sm:$0xff]
    %v259 = vld [vmem:[#allocation3 + $0x1f0] sm:$0xff]
    %v260 = vld [vmem:[#allocation3 + $0x1f8] sm:$0xff]
    %v261 = vld [vmem:[#allocation3 + $0x200] sm:$0xff]
    %v262 = vld [vmem:[#allocation3 + $0x208] sm:$0xff]
    %v263 = vld [vmem:[#allocation3 + $0x210] sm:$0xff]
    %v264 = vld [vmem:[#allocation3 + $0x218] sm:$0xff]
    %v265 = vld [vmem:[#allocation3 + $0x220] sm:$0xff]
    %v266 = vld [vmem:[#allocation3 + $0x228] sm:$0xff]
    %v267 = vld [vmem:[#allocation3 + $0x230] sm:$0xff]
    %v268 = vld [vmem:[#allocation3 + $0x238] sm:$0xff]
    %v269 = vld [vmem:[#allocation3 + $0x240] sm:$0xff]
    %v270 = vld [vmem:[#allocation3 + $0x248] sm:$0xff]
    %v271 = vld [vmem:[#allocation3 + $0x250] sm:$0xff]
    %v272 = vld [vmem:[#allocation3 + $0x258] sm:$0xff]
    %v273 = vld [vmem:[#allocation3 + $0x260] sm:$0xff]
    %v274 = vld [vmem:[#allocation3 + $0x268] sm:$0xff]
    %v275 = vld [vmem:[#allocation3 + $0x270] sm:$0xff]
    %v276 = vld [vmem:[#allocation3 + $0x278] sm:$0xff]
    %v277 = vld [vmem:[#allocation3 + $0x280] sm:$0xff]
    %v278 = vld [vmem:[#allocation3 + $0x288] sm:$0xff]
    %v279 = vld [vmem:[#allocation3 + $0x290] sm:$0xff]
    %v280 = vld [vmem:[#allocation3 + $0x298] sm:$0xff]
    %v281 = vld [vmem:[#allocation3 + $0x2a0] sm:$0xff]
    %v282 = vld [vmem:[#allocation3 + $0x2a8] sm:$0xff]
    %v283 = vld [vmem:[#allocation3 + $0x2b0] sm:$0xff]
    %v284 = vld [vmem:[#allocation3 + $0x2b8] sm:$0xff]
    %v285 = vld [vmem:[#allocation3 + $0x2c0] sm:$0xff]
    %v286 = vld [vmem:[#allocation3 + $0x2c8] sm:$0xff]
    %v287 = vld [vmem:[#allocation3 + $0x2d0] sm:$0xff]
    %v288 = vld [vmem:[#allocation3 + $0x2d8] sm:$0xff]
    %v289 = vld [vmem:[#allocation3 + $0x2e0] sm:$0xff]
    %v290 = vld [vmem:[#allocation3 + $0x2e8] sm:$0xff]
    %v291 = vld [vmem:[#allocation3 + $0x2f0] sm:$0xff]
    %v292 = vld [vmem:[#allocation3 + $0x2f8] sm:$0xff]
    %v293 = vld [vmem:[#allocation3 + $0x300] sm:$0xff]
    %v294 = vld [vmem:[#allocation3 + $0x308] sm:$0xff]
    %v295 = vld [vmem:[#allocation3 + $0x310] sm:$0xff]
    %v296 = vld [vmem:[#allocation3 + $0x318] sm:$0xff]
    %v297 = vld [vmem:[#allocation3 + $0x320] sm:$0xff]
    %v298 = vld [vmem:[#allocation3 + $0x328] sm:$0xff]
    %v299 = vld [vmem:[#allocation3 + $0x330] sm:$0xff]
    %v300 = vld [vmem:[#allocation3 + $0x338] sm:$0xff]
    %v301 = vld [vmem:[#allocation3 + $0x340] sm:$0xff]
    %v302 = vld [vmem:[#allocation3 + $0x348] sm:$0xff]
    %v303 = vld [vmem:[#allocation3 + $0x350] sm:$0xff]
    %v304 = vld [vmem:[#allocation3 + $0x358] sm:$0xff]
    %v305 = vld [vmem:[#allocation3 + $0x360] sm:$0xff]
    %v306 = vld [vmem:[#allocation3 + $0x368] sm:$0xff]
    %v307 = vld [vmem:[#allocation3 + $0x370] sm:$0xff]
    %v308 = vld [vmem:[#allocation3 + $0x378] sm:$0xff]
    %v309 = vld [vmem:[#allocation3 + $0x380] sm:$0xff]
    %v310 = vld [vmem:[#allocation3 + $0x388] sm:$0xff]
    %v311 = vld [vmem:[#allocation3 + $0x390] sm:$0xff]
    %v312 = vld [vmem:[#allocation3 + $0x398] sm:$0xff]
    %v313 = vld [vmem:[#allocation3 + $0x3a0] sm:$0xff]
    %v314 = vld [vmem:[#allocation3 + $0x3a8] sm:$0xff]
    %v315 = vld [vmem:[#allocation3 + $0x3b0] sm:$0xff]
    %v316 = vld [vmem:[#allocation3 + $0x3b8] sm:$0xff]
    %v317 = vld [vmem:[#allocation3 + $0x3c0] sm:$0xff]
    %v318 = vld [vmem:[#allocation3 + $0x3c8] sm:$0xff]
    %v319 = vld [vmem:[#allocation3 + $0x3d0] sm:$0xff]
    %v320 = vld [vmem:[#allocation3 + $0x3d8] sm:$0xff]
    %v321 = vld [vmem:[#allocation3 + $0x3e0] sm:$0xff]
    %v322 = vld [vmem:[#allocation3 + $0x3e8] sm:$0xff]
    %v323 = vld [vmem:[#allocation3 + $0x3f0] sm:$0xff]
    %v324 = vld [vmem:[#allocation3 + $0x3f8] sm:$0xff]
    %v325 = vld [vmem:[#allocation3 + $0x400] sm:$0xff]
    %v326 = vld [vmem:[#allocation3 + $0x408] sm:$0xff]
    %v327 = vld [vmem:[#allocation3 + $0x410] sm:$0xff]
    %v328 = vld [vmem:[#allocation3 + $0x418] sm:$0xff]
    %v329 = vld [vmem:[#allocation3 + $0x420] sm:$0xff]
    %v330 = vld [vmem:[#allocation3 + $0x428] sm:$0xff]
    %v331 = vld [vmem:[#allocation3 + $0x430] sm:$0xff]
    %v332 = vld [vmem:[#allocation3 + $0x438] sm:$0xff]
    %v333 = vld [vmem:[#allocation3 + $0x440] sm:$0xff]
    %v334 = vld [vmem:[#allocation3 + $0x448] sm:$0xff]
    %v335 = vld [vmem:[#allocation3 + $0x450] sm:$0xff]
    %v336 = vld [vmem:[#allocation3 + $0x458] sm:$0xff]
    %v337 = vld [vmem:[#allocation3 + $0x460] sm:$0xff]
    %v338 = vld [vmem:[#allocation3 + $0x468] sm:$0xff]
    %v339 = vld [vmem:[#allocation3 + $0x470] sm:$0xff]
    %v340 = vld [vmem:[#allocation3 + $0x478] sm:$0xff]
    %v341 = vld [vmem:[#allocation3 + $0x480] sm:$0xff]
    %v342 = vld [vmem:[#allocation3 + $0x488] sm:$0xff]
    %v343 = vld [vmem:[#allocation3 + $0x490] sm:$0xff]
    %v344 = vld [vmem:[#allocation3 + $0x498] sm:$0xff]
    %v345 = vld [vmem:[#allocation3 + $0x4a0] sm:$0xff]
    %v346 = vld [vmem:[#allocation3 + $0x4a8] sm:$0xff]
    %v347 = vld [vmem:[#allocation3 + $0x4b0] sm:$0xff]
    %v348 = vld [vmem:[#allocation3 + $0x4b8] sm:$0xff]
    %v349 = vld [vmem:[#allocation3 + $0x4c0] sm:$0xff]
    %v350 = vld [vmem:[#allocation3 + $0x4c8] sm:$0xff]
    %v351 = vld [vmem:[#allocation3 + $0x4d0] sm:$0xff]
    %v352 = vld [vmem:[#allocation3 + $0x4d8] sm:$0xff]
    %v353 = vld [vmem:[#allocation3 + $0x4e0] sm:$0xff]
    %v354 = vld [vmem:[#allocation3 + $0x4e8] sm:$0xff]
    %v355 = vld [vmem:[#allocation3 + $0x4f0] sm:$0xff]
    %v356 = vld [vmem:[#allocation3 + $0x4f8] sm:$0xff]
    %v357 = vld [vmem:[#allocation3 + $0x500] sm:$0xff]
    %v358 = vld [vmem:[#allocation3 + $0x508] sm:$0xff]
    %v359 = vld [vmem:[#allocation3 + $0x510] sm:$0xff]
    %v360 = vld [vmem:[#allocation3 + $0x518] sm:$0xff]
    %v361 = vld [vmem:[#allocation3 + $0x520] sm:$0xff]
    %v362 = vld [vmem:[#allocation3 + $0x528] sm:$0xff]
    %v363 = vld [vmem:[#allocation3 + $0x530] sm:$0xff]
    %v364 = vld [vmem:[#allocation3 + $0x538] sm:$0xff]
    %v365 = vld [vmem:[#allocation3 + $0x540] sm:$0xff]
    %v366 = vld [vmem:[#allocation3 + $0x548] sm:$0xff]
    %v367 = vld [vmem:[#allocation3 + $0x550] sm:$0xff]
    %v368 = vld [vmem:[#allocation3 + $0x558] sm:$0xff]
    %v369 = vld [vmem:[#allocation3 + $0x560] sm:$0xff]
    %v370 = vld [vmem:[#allocation3 + $0x568] sm:$0xff]
    %v371 = vld [vmem:[#allocation3 + $0x570] sm:$0xff]
    %v372 = vld [vmem:[#allocation3 + $0x578] sm:$0xff]
    %v373 = vld [vmem:[#allocation3 + $0x580] sm:$0xff]
    %v374 = vld [vmem:[#allocation3 + $0x588] sm:$0xff]
    %v375 = vld [vmem:[#allocation3 + $0x590] sm:$0xff]
    %v376 = vld [vmem:[#allocation3 + $0x598] sm:$0xff]
    %v377 = vld [vmem:[#allocation3 + $0x5a0] sm:$0xff]
    %v378 = vld [vmem:[#allocation3 + $0x5a8] sm:$0xff]
    %v379 = vld [vmem:[#allocation3 + $0x5b0] sm:$0xff]
    %v380 = vld [vmem:[#allocation3 + $0x5b8] sm:$0xff]
    %v381 = vld [vmem:[#allocation3 + $0x5c0] sm:$0xff]
    %v382 = vld [vmem:[#allocation3 + $0x5c8] sm:$0xff]
    %v383 = vld [vmem:[#allocation3 + $0x5d0] sm:$0xff]
    %v384 = vld [vmem:[#allocation3 + $0x5d8] sm:$0xff]
    %v385 = vld [vmem:[#allocation3 + $0x5e0] sm:$0xff]
    %v386 = vld [vmem:[#allocation3 + $0x5e8] sm:$0xff]
    %v387 = vld [vmem:[#allocation3 + $0x5f0] sm:$0xff]
    %v388 = vld [vmem:[#allocation3 + $0x5f8] sm:$0xff]
    %v389 = vld [vmem:[%s5] sm:$0x3f]
    %v391 = vlaneseq
    %v392 = vshrl.u32 %v391, 7
    %v393 = vsub.s32 0, %v392
    %v394 = vrot.slane %v389, %v393
    %v395 = vlaneseq
    %v396 = vshrl.u32 %v395, 7
    %v397 = vsub.s32 1, %v396
    %v398 = vrot.slane %v389, %v397
    %v399 = vlaneseq
    %v400 = vshrl.u32 %v399, 7
    %v401 = vsub.s32 2, %v400
    %v402 = vrot.slane %v389, %v401
    %v403 = vlaneseq
    %v404 = vshrl.u32 %v403, 7
    %v405 = vsub.s32 3, %v404
    %v406 = vrot.slane %v389, %v405
    %v407 = vlaneseq
    %v408 = vshrl.u32 %v407, 7
    %v409 = vsub.s32 4, %v408
    %v410 = vrot.slane %v389, %v409
    %v411 = vlaneseq
    %v412 = vshrl.u32 %v411, 7
    %v413 = vsub.s32 5, %v412
    %v414 = vrot.slane %v389, %v413
    %421 = vmatprep.subr.mxu0 %v198
    %422 = vmatpush1.msra.mxu0 %v197
    %423 = vmatprep.subr.mxu0 %v204
    %424 = vmatpush1.msra.mxu0 %v203
    %425 = vmatprep.subr.mxu0 %v210
    %426 = vmatpush1.msra.mxu0 %v209
    %427 = vmatprep.subr.mxu0 %v216
    %428 = vmatpush1.msra.mxu0 %v215
    %429 = vmatprep.subr.mxu0 %v222
    %430 = vmatpush1.msra.mxu0 %v221
    %431 = vmatprep.subr.mxu0 %v228
    %432 = vmatpush1.msra.mxu0 %v227
    %433 = vmatprep.subr.mxu0 %v234
    %434 = vmatpush1.msra.mxu0 %v233
    %435 = vmatprep.subr.mxu0 %v240
    %436 = vmatpush1.msra.mxu0 %v239
    %437 = vmatprep.subr.mxu0 %v246
    %438 = vmatpush1.msra.mxu0 %v245
    %439 = vmatprep.subr.mxu0 %v252
    %440 = vmatpush1.msra.mxu0 %v251
    %441 = vmatprep.subr.mxu0 %v258
    %442 = vmatpush1.msra.mxu0 %v257
    %443 = vmatprep.subr.mxu0 %v264
    %444 = vmatpush1.msra.mxu0 %v263
    %445 = vmatprep.subr.mxu0 %v270
    %446 = vmatpush1.msra.mxu0 %v269
    %447 = vmatprep.subr.mxu0 %v276
    %448 = vmatpush1.msra.mxu0 %v275
    %449 = vmatprep.subr.mxu0 %v282
    %450 = vmatpush1.msra.mxu0 %v281
    %451 = vmatprep.subr.mxu0 %v288
    %452 = vmatpush1.msra.mxu0 %v287
    %453 = vmatprep.subr.mxu0 %v294
    %454 = vmatpush1.msra.mxu0 %v293
    %455 = vmatprep.subr.mxu0 %v300
    %456 = vmatpush1.msra.mxu0 %v299
    %457 = vmatprep.subr.mxu0 %v306
    %458 = vmatpush1.msra.mxu0 %v305
    %459 = vmatprep.subr.mxu0 %v312
    %460 = vmatpush1.msra.mxu0 %v311
    %461 = vmatprep.subr.mxu0 %v318
    %462 = vmatpush1.msra.mxu0 %v317
    %463 = vmatprep.subr.mxu0 %v324
    %464 = vmatpush1.msra.mxu0 %v323
    %465 = vmatprep.subr.mxu0 %v330
    %466 = vmatpush1.msra.mxu0 %v329
    %467 = vmatprep.subr.mxu0 %v336
    %468 = vmatpush1.msra.mxu0 %v335
    %469 = vmatprep.subr.mxu0 %v342
    %470 = vmatpush1.msra.mxu0 %v341
    %471 = vmatprep.subr.mxu0 %v348
    %472 = vmatpush1.msra.mxu0 %v347
    %473 = vmatprep.subr.mxu0 %v354
    %474 = vmatpush1.msra.mxu0 %v353
    %475 = vmatprep.subr.mxu0 %v360
    %476 = vmatpush1.msra.mxu0 %v359
    %477 = vmatprep.subr.mxu0 %v366
    %478 = vmatpush1.msra.mxu0 %v365
    %479 = vmatprep.subr.mxu0 %v372
    %480 = vmatpush1.msra.mxu0 %v371
    %481 = vmatprep.subr.mxu0 %v378
    %482 = vmatpush1.msra.mxu0 %v377
    %483 = vmatprep.subr.mxu0 %v384
    %484 = vmatpush1.msra.mxu0 %v383
    %485 = vmatprep.mubr.f32.mxu0 %v174
    %486 = vmatmul.mubr.f32.gmra.mrb[0].mxu0 %v173
    %v487 = vpop.f32.mrb[0].mxu0
    %v488 = vadd.f32 %v394, %v487
    %v489 = vpop.f32.mrb[0].mxu0
    %v490 = vadd.f32 %v398, %v489
    %491 = vmatprep.mubr.f32.mxu0 %v176
    %492 = vmatmul.mubr.f32.gmra.mrb[0].mxu0 %v175
    %v493 = vpop.f32.mrb[0].mxu0
    %v494 = vadd.f32 %v394, %v493
    %v495 = vpop.f32.mrb[0].mxu0
    %v496 = vadd.f32 %v398, %v495
    %497 = vdwg.mxu0
    %498 = vmatprep.subr.mxu0 %v200
    %499 = vmatpush1.msra.mxu0 %v199
    %500 = vmatprep.subr.mxu0 %v206
    %501 = vmatpush1.msra.mxu0 %v205
    %502 = vmatprep.subr.mxu0 %v212
    %503 = vmatpush1.msra.mxu0 %v211
    %504 = vmatprep.subr.mxu0 %v218
    %505 = vmatpush1.msra.mxu0 %v217
    %506 = vmatprep.subr.mxu0 %v224
    %507 = vmatpush1.msra.mxu0 %v223
    %508 = vmatprep.subr.mxu0 %v230
    %509 = vmatpush1.msra.mxu0 %v229
    %510 = vmatprep.subr.mxu0 %v236
    %511 = vmatpush1.msra.mxu0 %v235
    %512 = vmatprep.subr.mxu0 %v242
    %513 = vmatpush1.msra.mxu0 %v241
    %514 = vmatprep.subr.mxu0 %v248
    %515 = vmatpush1.msra.mxu0 %v247
    %516 = vmatprep.subr.mxu0 %v254
    %517 = vmatpush1.msra.mxu0 %v253
    %518 = vmatprep.subr.mxu0 %v260
    %519 = vmatpush1.msra.mxu0 %v259
    %520 = vmatprep.subr.mxu0 %v266
    %521 = vmatpush1.msra.mxu0 %v265
    %522 = vmatprep.subr.mxu0 %v272
    %523 = vmatpush1.msra.mxu0 %v271
    %524 = vmatprep.subr.mxu0 %v278
    %525 = vmatpush1.msra.mxu0 %v277
    %526 = vmatprep.subr.mxu0 %v284
    %527 = vmatpush1.msra.mxu0 %v283
    %528 = vmatprep.subr.mxu0 %v290
    %529 = vmatpush1.msra.mxu0 %v289
    %530 = vmatprep.subr.mxu0 %v296
    %531 = vmatpush1.msra.mxu0 %v295
    %532 = vmatprep.subr.mxu0 %v302
    %533 = vmatpush1.msra.mxu0 %v301
    %534 = vmatprep.subr.mxu0 %v308
    %535 = vmatpush1.msra.mxu0 %v307
    %536 = vmatprep.subr.mxu0 %v314
    %537 = vmatpush1.msra.mxu0 %v313
    %538 = vmatprep.subr.mxu0 %v320
    %539 = vmatpush1.msra.mxu0 %v319
    %540 = vmatprep.subr.mxu0 %v326
    %541 = vmatpush1.msra.mxu0 %v325
    %542 = vmatprep.subr.mxu0 %v332
    %543 = vmatpush1.msra.mxu0 %v331
    %544 = vmatprep.subr.mxu0 %v338
    %545 = vmatpush1.msra.mxu0 %v337
    %546 = vmatprep.subr.mxu0 %v344
    %547 = vmatpush1.msra.mxu0 %v343
    %548 = vmatprep.subr.mxu0 %v350
    %549 = vmatpush1.msra.mxu0 %v349
    %550 = vmatprep.subr.mxu0 %v356
    %551 = vmatpush1.msra.mxu0 %v355
    %552 = vmatprep.subr.mxu0 %v362
    %553 = vmatpush1.msra.mxu0 %v361
    %554 = vmatprep.subr.mxu0 %v368
    %555 = vmatpush1.msra.mxu0 %v367
    %556 = vmatprep.subr.mxu0 %v374
    %557 = vmatpush1.msra.mxu0 %v373
    %558 = vmatprep.subr.mxu0 %v380
    %559 = vmatpush1.msra.mxu0 %v379
    %560 = vmatprep.subr.mxu0 %v386
    %561 = vmatpush1.msra.mxu0 %v385
    %562 = vmatprep.mubr.f32.mxu0 %v174
    %563 = vmatmul.mubr.f32.gmra.mrb[0].mxu0 %v173
    %v564 = vpop.f32.mrb[0].mxu0
    %v565 = vadd.f32 %v402, %v564
    %v566 = vpop.f32.mrb[0].mxu0
    %v567 = vadd.f32 %v406, %v566
    %568 = vmatprep.mubr.f32.mxu0 %v176
    %569 = vmatmul.mubr.f32.gmra.mrb[0].mxu0 %v175
    %v570 = vpop.f32.mrb[0].mxu0
    %v571 = vadd.f32 %v402, %v570
    %v572 = vpop.f32.mrb[0].mxu0
    %v573 = vadd.f32 %v406, %v572
    %574 = vdwg.mxu0
    %575 = vmatprep.subr.mxu0 %v202
    %576 = vmatpush1.msra.mxu0 %v201
    %577 = vmatprep.subr.mxu0 %v208
    %578 = vmatpush1.msra.mxu0 %v207
    %579 = vmatprep.subr.mxu0 %v214
    %580 = vmatpush1.msra.mxu0 %v213
    %581 = vmatprep.subr.mxu0 %v220
    %582 = vmatpush1.msra.mxu0 %v219
    %583 = vmatprep.subr.mxu0 %v226
    %584 = vmatpush1.msra.mxu0 %v225
    %585 = vmatprep.subr.mxu0 %v232
    %586 = vmatpush1.msra.mxu0 %v231
    %587 = vmatprep.subr.mxu0 %v238
    %588 = vmatpush1.msra.mxu0 %v237
    %589 = vmatprep.subr.mxu0 %v244
    %590 = vmatpush1.msra.mxu0 %v243
    %591 = vmatprep.subr.mxu0 %v250
    %592 = vmatpush1.msra.mxu0 %v249
    %593 = vmatprep.subr.mxu0 %v256
    %594 = vmatpush1.msra.mxu0 %v255
    %595 = vmatprep.subr.mxu0 %v262
    %596 = vmatpush1.msra.mxu0 %v261
    %597 = vmatprep.subr.mxu0 %v268
    %598 = vmatpush1.msra.mxu0 %v267
    %599 = vmatprep.subr.mxu0 %v274
    %600 = vmatpush1.msra.mxu0 %v273
    %601 = vmatprep.subr.mxu0 %v280
    %602 = vmatpush1.msra.mxu0 %v279
    %603 = vmatprep.subr.mxu0 %v286
    %604 = vmatpush1.msra.mxu0 %v285
    %605 = vmatprep.subr.mxu0 %v292
    %606 = vmatpush1.msra.mxu0 %v291
    %607 = vmatprep.subr.mxu0 %v298
    %608 = vmatpush1.msra.mxu0 %v297
    %609 = vmatprep.subr.mxu0 %v304
    %610 = vmatpush1.msra.mxu0 %v303
    %611 = vmatprep.subr.mxu0 %v310
    %612 = vmatpush1.msra.mxu0 %v309
    %613 = vmatprep.subr.mxu0 %v316
    %614 = vmatpush1.msra.mxu0 %v315
    %615 = vmatprep.subr.mxu0 %v322
    %616 = vmatpush1.msra.mxu0 %v321
    %617 = vmatprep.subr.mxu0 %v328
    %618 = vmatpush1.msra.mxu0 %v327
    %619 = vmatprep.subr.mxu0 %v334
    %620 = vmatpush1.msra.mxu0 %v333
    %621 = vmatprep.subr.mxu0 %v340
    %622 = vmatpush1.msra.mxu0 %v339
    %623 = vmatprep.subr.mxu0 %v346
    %624 = vmatpush1.msra.mxu0 %v345
    %625 = vmatprep.subr.mxu0 %v352
    %626 = vmatpush1.msra.mxu0 %v351
    %627 = vmatprep.subr.mxu0 %v358
    %628 = vmatpush1.msra.mxu0 %v357
    %629 = vmatprep.subr.mxu0 %v364
    %630 = vmatpush1.msra.mxu0 %v363
    %631 = vmatprep.subr.mxu0 %v370
    %632 = vmatpush1.msra.mxu0 %v369
    %633 = vmatprep.subr.mxu0 %v376
    %634 = vmatpush1.msra.mxu0 %v375
    %635 = vmatprep.subr.mxu0 %v382
    %636 = vmatpush1.msra.mxu0 %v381
    %637 = vmatprep.subr.mxu0 %v388
    %638 = vmatpush1.msra.mxu0 %v387
    %639 = vmatprep.mubr.f32.mxu0 %v174
    %640 = vmatmul.mubr.f32.gmra.mrb[0].mxu0 %v173
    %v641 = vpop.f32.mrb[0].mxu0
    %v642 = vadd.f32 %v410, %v641
    %v643 = vpop.f32.mrb[0].mxu0
    %v644 = vadd.f32 %v414, %v643
    %645 = vmatprep.mubr.f32.mxu0 %v176
    %646 = vmatmul.mubr.f32.gmra.mrb[0].mxu0 %v175
    %v647 = vpop.f32.mrb[0].mxu0
    %v648 = vadd.f32 %v410, %v647
    %v649 = vpop.f32.mrb[0].mxu0
    %v650 = vadd.f32 %v414, %v649
    %651 = vdwg.mxu0
    %vm652 = vcmask 523264
    %v654 = vsel %vm652, %v488, 0
    %v657 = vsel %vm652, %v565, 0
    %659 = vmatprep.subr.mxu0 0.0
    %660 = vmatpush1.xpose.msra.mxu0 %v657
    %661 = vmatprep.subr.mxu0 0.0
    %662 = vmatpush1.xpose.msra.mxu0 0.0
    %663 = vmatprep.subr.mxu0 0.0
    %664 = vmatpush1.xpose.msra.mxu0 0.0
    %665 = vmatprep.subr.mxu0 0.0
    %666 = vmatpush1.xpose.msra.mxu0 0.0
    %667 = vmatprep.subr.mxu0 0.0
    %668 = vmatpush1.xpose.msra.mxu0 0.0
    %669 = vmatprep.subr.mxu0 0.0
    %670 = vmatpush1.xpose.msra.mxu0 0.0
    %671 = vmatprep.subr.mxu0 0.0
    %672 = vmatpush1.xpose.msra.mxu0 0.0
    %673 = vmatprep.subr.mxu0 0.0
    %674 = vmatpush1.xpose.msra.mxu0 0.0
    %675 = vmatprep.subr.mxu0 0.0
    %676 = vmatpush1.xpose.msra.mxu0 0.0
    %677 = vmatprep.subr.mxu0 0.0
    %678 = vmatpush1.xpose.msra.mxu0 0.0
    %679 = vmatprep.subr.mxu0 0.0
    %680 = vmatpush1.xpose.msra.mxu0 0.0
    %681 = vmatprep.subr.mxu0 0.0
    %682 = vmatpush1.xpose.msra.mxu0 0.0
    %683 = vmatprep.subr.mxu0 0.0
    %684 = vmatpush1.xpose.msra.mxu0 0.0
    %685 = vmatprep.subr.mxu0 0.0
    %686 = vmatpush1.xpose.msra.mxu0 0.0
    %687 = vmatprep.subr.mxu0 0.0
    %688 = vmatpush1.xpose.msra.mxu0 0.0
    %689 = vmatprep.subr.mxu0 0.0
    %690 = vmatpush1.xpose.msra.mxu0 0.0
    %691 = vmatprep.subr.mxu0 0.0
    %692 = vmatpush1.xpose.msra.mxu0 0.0
    %693 = vmatprep.subr.mxu0 0.0
    %694 = vmatpush1.xpose.msra.mxu0 0.0
    %695 = vmatprep.subr.mxu0 0.0
    %696 = vmatpush1.xpose.msra.mxu0 0.0
    %697 = vmatprep.subr.mxu0 0.0
    %698 = vmatpush1.xpose.msra.mxu0 0.0
    %699 = vmatprep.subr.mxu0 0.0
    %700 = vmatpush1.xpose.msra.mxu0 0.0
    %701 = vmatprep.subr.mxu0 0.0
    %702 = vmatpush1.xpose.msra.mxu0 0.0
    %703 = vmatprep.subr.mxu0 0.0
    %704 = vmatpush1.xpose.msra.mxu0 0.0
    %705 = vmatprep.subr.mxu0 0.0
    %706 = vmatpush1.xpose.msra.mxu0 0.0
    %707 = vmatprep.subr.mxu0 0.0
    %708 = vmatpush1.xpose.msra.mxu0 0.0
    %709 = vmatprep.subr.mxu0 0.0
    %710 = vmatpush1.xpose.msra.mxu0 0.0
    %711 = vmatprep.subr.mxu0 0.0
    %712 = vmatpush1.xpose.msra.mxu0 0.0
    %713 = vmatprep.subr.mxu0 0.0
    %714 = vmatpush1.xpose.msra.mxu0 0.0
    %715 = vmatprep.subr.mxu0 0.0
    %716 = vmatpush1.xpose.msra.mxu0 0.0
    %717 = vmatprep.subr.mxu0 0.0
    %718 = vmatpush1.xpose.msra.mxu0 0.0
    %719 = vmatprep.subr.mxu0 0.0
    %720 = vmatpush1.xpose.msra.mxu0 0.0
    %721 = vmatprep.subr.mxu0 0.0
    %722 = vmatpush1.xpose.msra.mxu0 0.0
    %723 = vmatprep.mubr.f32.mxu0 0.0
    %724 = vmatmul.mubr.f32.gmra.mrb[0].mxu0 %v654
    %v725 = vpop.f32.mrb[0].mxu0
    %v726 = vadd.f32 0.0, %v725
    %v727 = vpop.f32.mrb[0].mxu0
    %728 = vdwg.mxu0
    %v729 = vmul.f32 %v726, 0.088388346
    %v730 = vadd.f32 %v729, %v181
    %vm731 = vcmask 64512
    %v732 = vsel %vm731, %v730, -inf
    %733 = vmax.xlane.f32.xlu0 %v732
    %v734 = vpop.xlane.xlu0 %733
    %v735 = vsub.f32 %v730, %v734
    %v736 = vmul.f32 %v735, 1.442695
    %v737 = vpow.pop %v736
    %v738 = vsel %vm731, %v737, 0.0
    %739 = vadd.xlane.f32.xlu0 %v738
    %v740 = vpop.xlane.xlu0 %739
    %v741 = vrcp.pop %v740
    %v742 = vmul.f32 %v737, %v741
    %v744 = vsel %vm731, %v742, 0
    %746 = vmatprep.subr.mxu0 0.0
    %747 = vmatpush1.msra.mxu0 %v642
    %748 = vmatprep.subr.mxu0 0.0
    %749 = vmatpush1.msra.mxu0 0.0
    %750 = vmatprep.subr.mxu0 0.0
    %751 = vmatpush1.msra.mxu0 0.0
    %752 = vmatprep.subr.mxu0 0.0
    %753 = vmatpush1.msra.mxu0 0.0
    %754 = vmatprep.subr.mxu0 0.0
    %755 = vmatpush1.msra.mxu0 0.0
    %756 = vmatprep.subr.mxu0 0.0
    %757 = vmatpush1.msra.mxu0 0.0
    %758 = vmatprep.subr.mxu0 0.0
    %759 = vmatpush1.msra.mxu0 0.0
    %760 = vmatprep.subr.mxu0 0.0
    %761 = vmatpush1.msra.mxu0 0.0
    %762 = vmatprep.subr.mxu0 0.0
    %763 = vmatpush1.msra.mxu0 0.0
    %764 = vmatprep.subr.mxu0 0.0
    %765 = vmatpush1.msra.mxu0 0.0
    %766 = vmatprep.subr.mxu0 0.0
    %767 = vmatpush1.msra.mxu0 0.0
    %768 = vmatprep.subr.mxu0 0.0
    %769 = vmatpush1.msra.mxu0 0.0
    %770 = vmatprep.subr.mxu0 0.0
    %771 = vmatpush1.msra.mxu0 0.0
    %772 = vmatprep.subr.mxu0 0.0
    %773 = vmatpush1.msra.mxu0 0.0
    %774 = vmatprep.subr.mxu0 0.0
    %775 = vmatpush1.msra.mxu0 0.0
    %776 = vmatprep.subr.mxu0 0.0
    %777 = vmatpush1.msra.mxu0 0.0
    %778 = vmatprep.subr.mxu0 0.0
    %779 = vmatpush1.msra.mxu0 0.0
    %780 = vmatprep.subr.mxu0 0.0
    %781 = vmatpush1.msra.mxu0 0.0
    %782 = vmatprep.subr.mxu0 0.0
    %783 = vmatpush1.msra.mxu0 0.0
    %784 = vmatprep.subr.mxu0 0.0
    %785 = vmatpush1.msra.mxu0 0.0
    %786 = vmatprep.subr.mxu0 0.0
    %787 = vmatpush1.msra.mxu0 0.0
    %788 = vmatprep.subr.mxu0 0.0
    %789 = vmatpush1.msra.mxu0 0.0
    %790 = vmatprep.subr.mxu0 0.0
    %791 = vmatpush1.msra.mxu0 0.0
    %792 = vmatprep.subr.mxu0 0.0
    %793 = vmatpush1.msra.mxu0 0.0
    %794 = vmatprep.subr.mxu0 0.0
    %795 = vmatpush1.msra.mxu0 0.0
    %796 = vmatprep.subr.mxu0 0.0
    %797 = vmatpush1.msra.mxu0 0.0
    %798 = vmatprep.subr.mxu0 0.0
    %799 = vmatpush1.msra.mxu0 0.0
    %800 = vmatprep.subr.mxu0 0.0
    %801 = vmatpush1.msra.mxu0 0.0
    %802 = vmatprep.subr.mxu0 0.0
    %803 = vmatpush1.msra.mxu0 0.0
    %804 = vmatprep.subr.mxu0 0.0
    %805 = vmatpush1.msra.mxu0 0.0
    %806 = vmatprep.subr.mxu0 0.0
    %807 = vmatpush1.msra.mxu0 0.0
    %808 = vmatprep.subr.mxu0 0.0
    %809 = vmatpush1.msra.mxu0 0.0
    %810 = vmatprep.mubr.f32.mxu0 0.0
    %811 = vmatmul.mubr.f32.gmra.mrb[0].mxu0 %v744
    %v812 = vpop.f32.mrb[0].mxu0
    %v813 = vadd.f32 0.0, %v812
    %v814 = vpop.f32.mrb[0].mxu0
    %815 = vdwg.mxu0
    %816 = vst.msk [vmem:[#allocation2] sm:$0xff] %vm652, %v813
    %817 = vrot.lane.b32.xlu0 %v488, 64
    %v818 = vpop.permute.xlu0 %817
    %819 = vrot.lane.b32.xlu0 %v565, 64
    %v820 = vpop.permute.xlu0 %819
    %v821 = vsel %vm652, %v818, 0
    %v823 = vsel %vm652, %v820, 0
    %825 = vmatprep.subr.mxu0 0.0
    %826 = vmatpush1.xpose.msra.mxu0 %v823
    %827 = vmatprep.subr.mxu0 0.0
    %828 = vmatpush1.xpose.msra.mxu0 0.0
    %829 = vmatprep.subr.mxu0 0.0
    %830 = vmatpush1.xpose.msra.mxu0 0.0
    %831 = vmatprep.subr.mxu0 0.0
    %832 = vmatpush1.xpose.msra.mxu0 0.0
    %833 = vmatprep.subr.mxu0 0.0
    %834 = vmatpush1.xpose.msra.mxu0 0.0
    %835 = vmatprep.subr.mxu0 0.0
    %836 = vmatpush1.xpose.msra.mxu0 0.0
    %837 = vmatprep.subr.mxu0 0.0
    %838 = vmatpush1.xpose.msra.mxu0 0.0
    %839 = vmatprep.subr.mxu0 0.0
    %840 = vmatpush1.xpose.msra.mxu0 0.0
    %841 = vmatprep.subr.mxu0 0.0
    %842 = vmatpush1.xpose.msra.mxu0 0.0
    %843 = vmatprep.subr.mxu0 0.0
    %844 = vmatpush1.xpose.msra.mxu0 0.0
    %845 = vmatprep.subr.mxu0 0.0
    %846 = vmatpush1.xpose.msra.mxu0 0.0
    %847 = vmatprep.subr.mxu0 0.0
    %848 = vmatpush1.xpose.msra.mxu0 0.0
    %849 = vmatprep.subr.mxu0 0.0
    %850 = vmatpush1.xpose.msra.mxu0 0.0
    %851 = vmatprep.subr.mxu0 0.0
    %852 = vmatpush1.xpose.msra.mxu0 0.0
    %853 = vmatprep.subr.mxu0 0.0
    %854 = vmatpush1.xpose.msra.mxu0 0.0
    %855 = vmatprep.subr.mxu0 0.0
    %856 = vmatpush1.xpose.msra.mxu0 0.0
    %857 = vmatprep.subr.mxu0 0.0
    %858 = vmatpush1.xpose.msra.mxu0 0.0
    %859 = vmatprep.subr.mxu0 0.0
    %860 = vmatpush1.xpose.msra.mxu0 0.0
    %861 = vmatprep.subr.mxu0 0.0
    %862 = vmatpush1.xpose.msra.mxu0 0.0
    %863 = vmatprep.subr.mxu0 0.0
    %864 = vmatpush1.xpose.msra.mxu0 0.0
    %865 = vmatprep.subr.mxu0 0.0
    %866 = vmatpush1.xpose.msra.mxu0 0.0
    %867 = vmatprep.subr.mxu0 0.0
    %868 = vmatpush1.xpose.msra.mxu0 0.0
    %869 = vmatprep.subr.mxu0 0.0
    %870 = vmatpush1.xpose.msra.mxu0 0.0
    %871 = vmatprep.subr.mxu0 0.0
    %872 = vmatpush1.xpose.msra.mxu0 0.0
    %873 = vmatprep.subr.mxu0 0.0
    %874 = vmatpush1.xpose.msra.mxu0 0.0
    %875 = vmatprep.subr.mxu0 0.0
    %876 = vmatpush1.xpose.msra.mxu0 0.0
    %877 = vmatprep.subr.mxu0 0.0
    %878 = vmatpush1.xpose.msra.mxu0 0.0
    %879 = vmatprep.subr.mxu0 0.0
    %880 = vmatpush1.xpose.msra.mxu0 0.0
    %881 = vmatprep.subr.mxu0 0.0
    %882 = vmatpush1.xpose.msra.mxu0 0.0
    %883 = vmatprep.subr.mxu0 0.0
    %884 = vmatpush1.xpose.msra.mxu0 0.0
    %885 = vmatprep.subr.mxu0 0.0
    %886 = vmatpush1.xpose.msra.mxu0 0.0
    %887 = vmatprep.subr.mxu0 0.0
    %888 = vmatpush1.xpose.msra.mxu0 0.0
    %889 = vmatprep.mubr.f32.mxu0 0.0
    %890 = vmatmul.mubr.f32.gmra.mrb[0].mxu0 %v821
    %v891 = vpop.f32.mrb[0].mxu0
    %v892 = vadd.f32 0.0, %v891
    %v893 = vpop.f32.mrb[0].mxu0
    %894 = vdwg.mxu0
    %v895 = vmul.f32 %v892, 0.088388346
    %v896 = vadd.f32 %v895, %v182
    %v897 = vsel %vm731, %v896, -inf
    %898 = vmax.xlane.f32.xlu0 %v897
    %v899 = vpop.xlane.xlu0 %898
    %v900 = vsub.f32 %v896, %v899
    %v901 = vmul.f32 %v900, 1.442695
    %v902 = vpow.pop %v901
    %v903 = vsel %vm731, %v902, 0.0
    %904 = vadd.xlane.f32.xlu0 %v903
    %v905 = vpop.xlane.xlu0 %904
    %v906 = vrcp.pop %v905
    %v907 = vmul.f32 %v902, %v906
    %909 = vrot.lane.b32.xlu0 %v642, 64
    %v910 = vpop.permute.xlu0 %909
    %v913 = vsel %vm731, %v907, 0
    %915 = vmatprep.subr.mxu0 0.0
    %916 = vmatpush1.msra.mxu0 %v910
    %917 = vmatprep.subr.mxu0 0.0
    %918 = vmatpush1.msra.mxu0 0.0
    %919 = vmatprep.subr.mxu0 0.0
    %920 = vmatpush1.msra.mxu0 0.0
    %921 = vmatprep.subr.mxu0 0.0
    %922 = vmatpush1.msra.mxu0 0.0
    %923 = vmatprep.subr.mxu0 0.0
    %924 = vmatpush1.msra.mxu0 0.0
    %925 = vmatprep.subr.mxu0 0.0
    %926 = vmatpush1.msra.mxu0 0.0
    %927 = vmatprep.subr.mxu0 0.0
    %928 = vmatpush1.msra.mxu0 0.0
    %929 = vmatprep.subr.mxu0 0.0
    %930 = vmatpush1.msra.mxu0 0.0
    %931 = vmatprep.subr.mxu0 0.0
    %932 = vmatpush1.msra.mxu0 0.0
    %933 = vmatprep.subr.mxu0 0.0
    %934 = vmatpush1.msra.mxu0 0.0
    %935 = vmatprep.subr.mxu0 0.0
    %936 = vmatpush1.msra.mxu0 0.0
    %937 = vmatprep.subr.mxu0 0.0
    %938 = vmatpush1.msra.mxu0 0.0
    %939 = vmatprep.subr.mxu0 0.0
    %940 = vmatpush1.msra.mxu0 0.0
    %941 = vmatprep.subr.mxu0 0.0
    %942 = vmatpush1.msra.mxu0 0.0
    %943 = vmatprep.subr.mxu0 0.0
    %944 = vmatpush1.msra.mxu0 0.0
    %945 = vmatprep.subr.mxu0 0.0
    %946 = vmatpush1.msra.mxu0 0.0
    %947 = vmatprep.subr.mxu0 0.0
    %948 = vmatpush1.msra.mxu0 0.0
    %949 = vmatprep.subr.mxu0 0.0
    %950 = vmatpush1.msra.mxu0 0.0
    %951 = vmatprep.subr.mxu0 0.0
    %952 = vmatpush1.msra.mxu0 0.0
    %953 = vmatprep.subr.mxu0 0.0
    %954 = vmatpush1.msra.mxu0 0.0
    %955 = vmatprep.subr.mxu0 0.0
    %956 = vmatpush1.msra.mxu0 0.0
    %957 = vmatprep.subr.mxu0 0.0
    %958 = vmatpush1.msra.mxu0 0.0
    %959 = vmatprep.subr.mxu0 0.0
    %960 = vmatpush1.msra.mxu0 0.0
    %961 = vmatprep.subr.mxu0 0.0
    %962 = vmatpush1.msra.mxu0 0.0
    %963 = vmatprep.subr.mxu0 0.0
    %964 = vmatpush1.msra.mxu0 0.0
    %965 = vmatprep.subr.mxu0 0.0
    %966 = vmatpush1.msra.mxu0 0.0
    %967 = vmatprep.subr.mxu0 0.0
    %968 = vmatpush1.msra.mxu0 0.0
    %969 = vmatprep.subr.mxu0 0.0
    %970 = vmatpush1.msra.mxu0 0.0
    %971 = vmatprep.subr.mxu0 0.0
    %972 = vmatpush1.msra.mxu0 0.0
    %973 = vmatprep.subr.mxu0 0.0
    %974 = vmatpush1.msra.mxu0 0.0
    %975 = vmatprep.subr.mxu0 0.0
    %976 = vmatpush1.msra.mxu0 0.0
    %977 = vmatprep.subr.mxu0 0.0
    %978 = vmatpush1.msra.mxu0 0.0
    %979 = vmatprep.mubr.f32.mxu0 0.0
    %980 = vmatmul.mubr.f32.gmra.mrb[0].mxu0 %v913
    %v981 = vpop.f32.mrb[0].mxu0
    %v982 = vadd.f32 0.0, %v981
    %v983 = vpop.f32.mrb[0].mxu0
    %984 = vdwg.mxu0
    %986 = vrot.lane.b32.xlu0 %v982, 64
    %v987 = vpop.permute.xlu0 %986
    %vm989 = vcmask 1048064
    %990 = vst.msk [vmem:[#allocation2] sm:$0xff] %vm989, %v987
    %v992 = vsel %vm652, %v490, 0
    %v995 = vsel %vm652, %v567, 0
    %997 = vmatprep.subr.mxu0 0.0
    %998 = vmatpush1.xpose.msra.mxu0 %v995
    %999 = vmatprep.subr.mxu0 0.0
    %1000 = vmatpush1.xpose.msra.mxu0 0.0
    %1001 = vmatprep.subr.mxu0 0.0
    %1002 = vmatpush1.xpose.msra.mxu0 0.0
    %1003 = vmatprep.subr.mxu0 0.0
    %1004 = vmatpush1.xpose.msra.mxu0 0.0
    %1005 = vmatprep.subr.mxu0 0.0
    %1006 = vmatpush1.xpose.msra.mxu0 0.0
    %1007 = vmatprep.subr.mxu0 0.0
    %1008 = vmatpush1.xpose.msra.mxu0 0.0
    %1009 = vmatprep.subr.mxu0 0.0
    %1010 = vmatpush1.xpose.msra.mxu0 0.0
    %1011 = vmatprep.subr.mxu0 0.0
    %1012 = vmatpush1.xpose.msra.mxu0 0.0
    %1013 = vmatprep.subr.mxu0 0.0
    %1014 = vmatpush1.xpose.msra.mxu0 0.0
    %1015 = vmatprep.subr.mxu0 0.0
    %1016 = vmatpush1.xpose.msra.mxu0 0.0
    %1017 = vmatprep.subr.mxu0 0.0
    %1018 = vmatpush1.xpose.msra.mxu0 0.0
    %1019 = vmatprep.subr.mxu0 0.0
    %1020 = vmatpush1.xpose.msra.mxu0 0.0
    %1021 = vmatprep.subr.mxu0 0.0
    %1022 = vmatpush1.xpose.msra.mxu0 0.0
    %1023 = vmatprep.subr.mxu0 0.0
    %1024 = vmatpush1.xpose.msra.mxu0 0.0
    %1025 = vmatprep.subr.mxu0 0.0
    %1026 = vmatpush1.xpose.msra.mxu0 0.0
    %1027 = vmatprep.subr.mxu0 0.0
    %1028 = vmatpush1.xpose.msra.mxu0 0.0
    %1029 = vmatprep.subr.mxu0 0.0
    %1030 = vmatpush1.xpose.msra.mxu0 0.0
    %1031 = vmatprep.subr.mxu0 0.0
    %1032 = vmatpush1.xpose.msra.mxu0 0.0
    %1033 = vmatprep.subr.mxu0 0.0
    %1034 = vmatpush1.xpose.msra.mxu0 0.0
    %1035 = vmatprep.subr.mxu0 0.0
    %1036 = vmatpush1.xpose.msra.mxu0 0.0
    %1037 = vmatprep.subr.mxu0 0.0
    %1038 = vmatpush1.xpose.msra.mxu0 0.0
    %1039 = vmatprep.subr.mxu0 0.0
    %1040 = vmatpush1.xpose.msra.mxu0 0.0
    %1041 = vmatprep.subr.mxu0 0.0
    %1042 = vmatpush1.xpose.msra.mxu0 0.0
    %1043 = vmatprep.subr.mxu0 0.0
    %1044 = vmatpush1.xpose.msra.mxu0 0.0
    %1045 = vmatprep.subr.mxu0 0.0
    %1046 = vmatpush1.xpose.msra.mxu0 0.0
    %1047 = vmatprep.subr.mxu0 0.0
    %1048 = vmatpush1.xpose.msra.mxu0 0.0
    %1049 = vmatprep.subr.mxu0 0.0
    %1050 = vmatpush1.xpose.msra.mxu0 0.0
    %1051 = vmatprep.subr.mxu0 0.0
    %1052 = vmatpush1.xpose.msra.mxu0 0.0
    %1053 = vmatprep.subr.mxu0 0.0
    %1054 = vmatpush1.xpose.msra.mxu0 0.0
    %1055 = vmatprep.subr.mxu0 0.0
    %1056 = vmatpush1.xpose.msra.mxu0 0.0
    %1057 = vmatprep.subr.mxu0 0.0
    %1058 = vmatpush1.xpose.msra.mxu0 0.0
    %1059 = vmatprep.subr.mxu0 0.0
    %1060 = vmatpush1.xpose.msra.mxu0 0.0
    %1061 = vmatprep.mubr.f32.mxu0 0.0
    %1062 = vmatmul.mubr.f32.gmra.mrb[0].mxu0 %v992
    %v1063 = vpop.f32.mrb[0].mxu0
    %v1064 = vadd.f32 0.0, %v1063
    %v1065 = vpop.f32.mrb[0].mxu0
    %1066 = vdwg.mxu0
    %v1067 = vmul.f32 %v1064, 0.088388346
    %v1068 = vadd.f32 %v1067, %v183
    %v1069 = vsel %vm731, %v1068, -inf
    %1070 = vmax.xlane.f32.xlu0 %v1069
    %v1071 = vpop.xlane.xlu0 %1070
    %v1072 = vsub.f32 %v1068, %v1071
    %v1073 = vmul.f32 %v1072, 1.442695
    %v1074 = vpow.pop %v1073
    %v1075 = vsel %vm731, %v1074, 0.0
    %1076 = vadd.xlane.f32.xlu0 %v1075
    %v1077 = vpop.xlane.xlu0 %1076
    %v1078 = vrcp.pop %v1077
    %v1079 = vmul.f32 %v1074, %v1078
    %v1081 = vsel %vm731, %v1079, 0
    %1083 = vmatprep.subr.mxu0 0.0
    %1084 = vmatpush1.msra.mxu0 %v644
    %1085 = vmatprep.subr.mxu0 0.0
    %1086 = vmatpush1.msra.mxu0 0.0
    %1087 = vmatprep.subr.mxu0 0.0
    %1088 = vmatpush1.msra.mxu0 0.0
    %1089 = vmatprep.subr.mxu0 0.0
    %1090 = vmatpush1.msra.mxu0 0.0
    %1091 = vmatprep.subr.mxu0 0.0
    %1092 = vmatpush1.msra.mxu0 0.0
    %1093 = vmatprep.subr.mxu0 0.0
    %1094 = vmatpush1.msra.mxu0 0.0
    %1095 = vmatprep.subr.mxu0 0.0
    %1096 = vmatpush1.msra.mxu0 0.0
    %1097 = vmatprep.subr.mxu0 0.0
    %1098 = vmatpush1.msra.mxu0 0.0
    %1099 = vmatprep.subr.mxu0 0.0
    %1100 = vmatpush1.msra.mxu0 0.0
    %1101 = vmatprep.subr.mxu0 0.0
    %1102 = vmatpush1.msra.mxu0 0.0
    %1103 = vmatprep.subr.mxu0 0.0
    %1104 = vmatpush1.msra.mxu0 0.0
    %1105 = vmatprep.subr.mxu0 0.0
    %1106 = vmatpush1.msra.mxu0 0.0
    %1107 = vmatprep.subr.mxu0 0.0
    %1108 = vmatpush1.msra.mxu0 0.0
    %1109 = vmatprep.subr.mxu0 0.0
    %1110 = vmatpush1.msra.mxu0 0.0
    %1111 = vmatprep.subr.mxu0 0.0
    %1112 = vmatpush1.msra.mxu0 0.0
    %1113 = vmatprep.subr.mxu0 0.0
    %1114 = vmatpush1.msra.mxu0 0.0
    %1115 = vmatprep.subr.mxu0 0.0
    %1116 = vmatpush1.msra.mxu0 0.0
    %1117 = vmatprep.subr.mxu0 0.0
    %1118 = vmatpush1.msra.mxu0 0.0
    %1119 = vmatprep.subr.mxu0 0.0
    %1120 = vmatpush1.msra.mxu0 0.0
    %1121 = vmatprep.subr.mxu0 0.0
    %1122 = vmatpush1.msra.mxu0 0.0
    %1123 = vmatprep.subr.mxu0 0.0
    %1124 = vmatpush1.msra.mxu0 0.0
    %1125 = vmatprep.subr.mxu0 0.0
    %1126 = vmatpush1.msra.mxu0 0.0
    %1127 = vmatprep.subr.mxu0 0.0
    %1128 = vmatpush1.msra.mxu0 0.0
    %1129 = vmatprep.subr.mxu0 0.0
    %1130 = vmatpush1.msra.mxu0 0.0
    %1131 = vmatprep.subr.mxu0 0.0
    %1132 = vmatpush1.msra.mxu0 0.0
    %1133 = vmatprep.subr.mxu0 0.0
    %1134 = vmatpush1.msra.mxu0 0.0
    %1135 = vmatprep.subr.mxu0 0.0
    %1136 = vmatpush1.msra.mxu0 0.0
    %1137 = vmatprep.subr.mxu0 0.0
    %1138 = vmatpush1.msra.mxu0 0.0
    %1139 = vmatprep.subr.mxu0 0.0
    %1140 = vmatpush1.msra.mxu0 0.0
    %1141 = vmatprep.subr.mxu0 0.0
    %1142 = vmatpush1.msra.mxu0 0.0
    %1143 = vmatprep.subr.mxu0 0.0
    %1144 = vmatpush1.msra.mxu0 0.0
    %1145 = vmatprep.subr.mxu0 0.0
    %1146 = vmatpush1.msra.mxu0 0.0
    %1147 = vmatprep.mubr.f32.mxu0 0.0
    %1148 = vmatmul.mubr.f32.gmra.mrb[0].mxu0 %v1081
    %v1149 = vpop.f32.mrb[0].mxu0
    %v1150 = vadd.f32 0.0, %v1149
    %v1151 = vpop.f32.mrb[0].mxu0
    %1152 = vdwg.mxu0
    %1153 = vst.msk [vmem:[#allocation2 + $0x8] sm:$0xff] %vm652, %v1150
    %1154 = vrot.lane.b32.xlu0 %v490, 64
    %v1155 = vpop.permute.xlu0 %1154
    %1156 = vrot.lane.b32.xlu0 %v567, 64
    %v1157 = vpop.permute.xlu0 %1156
    %v1158 = vsel %vm652, %v1155, 0
    %v1160 = vsel %vm652, %v1157, 0
    %1162 = vmatprep.subr.mxu0 0.0
    %1163 = vmatpush1.xpose.msra.mxu0 %v1160
    %1164 = vmatprep.subr.mxu0 0.0
    %1165 = vmatpush1.xpose.msra.mxu0 0.0
    %1166 = vmatprep.subr.mxu0 0.0
    %1167 = vmatpush1.xpose.msra.mxu0 0.0
    %1168 = vmatprep.subr.mxu0 0.0
    %1169 = vmatpush1.xpose.msra.mxu0 0.0
    %1170 = vmatprep.subr.mxu0 0.0
    %1171 = vmatpush1.xpose.msra.mxu0 0.0
    %1172 = vmatprep.subr.mxu0 0.0
    %1173 = vmatpush1.xpose.msra.mxu0 0.0
    %1174 = vmatprep.subr.mxu0 0.0
    %1175 = vmatpush1.xpose.msra.mxu0 0.0
    %1176 = vmatprep.subr.mxu0 0.0
    %1177 = vmatpush1.xpose.msra.mxu0 0.0
    %1178 = vmatprep.subr.mxu0 0.0
    %1179 = vmatpush1.xpose.msra.mxu0 0.0
    %1180 = vmatprep.subr.mxu0 0.0
    %1181 = vmatpush1.xpose.msra.mxu0 0.0
    %1182 = vmatprep.subr.mxu0 0.0
    %1183 = vmatpush1.xpose.msra.mxu0 0.0
    %1184 = vmatprep.subr.mxu0 0.0
    %1185 = vmatpush1.xpose.msra.mxu0 0.0
    %1186 = vmatprep.subr.mxu0 0.0
    %1187 = vmatpush1.xpose.msra.mxu0 0.0
    %1188 = vmatprep.subr.mxu0 0.0
    %1189 = vmatpush1.xpose.msra.mxu0 0.0
    %1190 = vmatprep.subr.mxu0 0.0
    %1191 = vmatpush1.xpose.msra.mxu0 0.0
    %1192 = vmatprep.subr.mxu0 0.0
    %1193 = vmatpush1.xpose.msra.mxu0 0.0
    %1194 = vmatprep.subr.mxu0 0.0
    %1195 = vmatpush1.xpose.msra.mxu0 0.0
    %1196 = vmatprep.subr.mxu0 0.0
    %1197 = vmatpush1.xpose.msra.mxu0 0.0
    %1198 = vmatprep.subr.mxu0 0.0
    %1199 = vmatpush1.xpose.msra.mxu0 0.0
    %1200 = vmatprep.subr.mxu0 0.0
    %1201 = vmatpush1.xpose.msra.mxu0 0.0
    %1202 = vmatprep.subr.mxu0 0.0
    %1203 = vmatpush1.xpose.msra.mxu0 0.0
    %1204 = vmatprep.subr.mxu0 0.0
    %1205 = vmatpush1.xpose.msra.mxu0 0.0
    %1206 = vmatprep.subr.mxu0 0.0
    %1207 = vmatpush1.xpose.msra.mxu0 0.0
    %1208 = vmatprep.subr.mxu0 0.0
    %1209 = vmatpush1.xpose.msra.mxu0 0.0
    %1210 = vmatprep.subr.mxu0 0.0
    %1211 = vmatpush1.xpose.msra.mxu0 0.0
    %1212 = vmatprep.subr.mxu0 0.0
    %1213 = vmatpush1.xpose.msra.mxu0 0.0
    %1214 = vmatprep.subr.mxu0 0.0
    %1215 = vmatpush1.xpose.msra.mxu0 0.0
    %1216 = vmatprep.subr.mxu0 0.0
    %1217 = vmatpush1.xpose.msra.mxu0 0.0
    %1218 = vmatprep.subr.mxu0 0.0
    %1219 = vmatpush1.xpose.msra.mxu0 0.0
    %1220 = vmatprep.subr.mxu0 0.0
    %1221 = vmatpush1.xpose.msra.mxu0 0.0
    %1222 = vmatprep.subr.mxu0 0.0
    %1223 = vmatpush1.xpose.msra.mxu0 0.0
    %1224 = vmatprep.subr.mxu0 0.0
    %1225 = vmatpush1.xpose.msra.mxu0 0.0
    %1226 = vmatprep.mubr.f32.mxu0 0.0
    %1227 = vmatmul.mubr.f32.gmra.mrb[0].mxu0 %v1158
    %v1228 = vpop.f32.mrb[0].mxu0
    %v1229 = vadd.f32 0.0, %v1228
    %v1230 = vpop.f32.mrb[0].mxu0
    %1231 = vdwg.mxu0
    %v1232 = vmul.f32 %v1229, 0.088388346
    %v1233 = vadd.f32 %v1232, %v184
    %v1234 = vsel %vm731, %v1233, -inf
    %1235 = vmax.xlane.f32.xlu0 %v1234
    %v1236 = vpop.xlane.xlu0 %1235
    %v1237 = vsub.f32 %v1233, %v1236
    %v1238 = vmul.f32 %v1237, 1.442695
    %v1239 = vpow.pop %v1238
    %v1240 = vsel %vm731, %v1239, 0.0
    %1241 = vadd.xlane.f32.xlu0 %v1240
    %v1242 = vpop.xlane.xlu0 %1241
    %v1243 = vrcp.pop %v1242
    %v1244 = vmul.f32 %v1239, %v1243
    %1246 = vrot.lane.b32.xlu0 %v644, 64
    %v1247 = vpop.permute.xlu0 %1246
    %v1250 = vsel %vm731, %v1244, 0
    %1252 = vmatprep.subr.mxu0 0.0
    %1253 = vmatpush1.msra.mxu0 %v1247
    %1254 = vmatprep.subr.mxu0 0.0
    %1255 = vmatpush1.msra.mxu0 0.0
    %1256 = vmatprep.subr.mxu0 0.0
    %1257 = vmatpush1.msra.mxu0 0.0
    %1258 = vmatprep.subr.mxu0 0.0
    %1259 = vmatpush1.msra.mxu0 0.0
    %1260 = vmatprep.subr.mxu0 0.0
    %1261 = vmatpush1.msra.mxu0 0.0
    %1262 = vmatprep.subr.mxu0 0.0
    %1263 = vmatpush1.msra.mxu0 0.0
    %1264 = vmatprep.subr.mxu0 0.0
    %1265 = vmatpush1.msra.mxu0 0.0
    %1266 = vmatprep.subr.mxu0 0.0
    %1267 = vmatpush1.msra.mxu0 0.0
    %1268 = vmatprep.subr.mxu0 0.0
    %1269 = vmatpush1.msra.mxu0 0.0
    %1270 = vmatprep.subr.mxu0 0.0
    %1271 = vmatpush1.msra.mxu0 0.0
    %1272 = vmatprep.subr.mxu0 0.0
    %1273 = vmatpush1.msra.mxu0 0.0
    %1274 = vmatprep.subr.mxu0 0.0
    %1275 = vmatpush1.msra.mxu0 0.0
    %1276 = vmatprep.subr.mxu0 0.0
    %1277 = vmatpush1.msra.mxu0 0.0
    %1278 = vmatprep.subr.mxu0 0.0
    %1279 = vmatpush1.msra.mxu0 0.0
    %1280 = vmatprep.subr.mxu0 0.0
    %1281 = vmatpush1.msra.mxu0 0.0
    %1282 = vmatprep.subr.mxu0 0.0
    %1283 = vmatpush1.msra.mxu0 0.0
    %1284 = vmatprep.subr.mxu0 0.0
    %1285 = vmatpush1.msra.mxu0 0.0
    %1286 = vmatprep.subr.mxu0 0.0
    %1287 = vmatpush1.msra.mxu0 0.0
    %1288 = vmatprep.subr.mxu0 0.0
    %1289 = vmatpush1.msra.mxu0 0.0
    %1290 = vmatprep.subr.mxu0 0.0
    %1291 = vmatpush1.msra.mxu0 0.0
    %1292 = vmatprep.subr.mxu0 0.0
    %1293 = vmatpush1.msra.mxu0 0.0
    %1294 = vmatprep.subr.mxu0 0.0
    %1295 = vmatpush1.msra.mxu0 0.0
    %1296 = vmatprep.subr.mxu0 0.0
    %1297 = vmatpush1.msra.mxu0 0.0
    %1298 = vmatprep.subr.mxu0 0.0
    %1299 = vmatpush1.msra.mxu0 0.0
    %1300 = vmatprep.subr.mxu0 0.0
    %1301 = vmatpush1.msra.mxu0 0.0
    %1302 = vmatprep.subr.mxu0 0.0
    %1303 = vmatpush1.msra.mxu0 0.0
    %1304 = vmatprep.subr.mxu0 0.0
    %1305 = vmatpush1.msra.mxu0 0.0
    %1306 = vmatprep.subr.mxu0 0.0
    %1307 = vmatpush1.msra.mxu0 0.0
    %1308 = vmatprep.subr.mxu0 0.0
    %1309 = vmatpush1.msra.mxu0 0.0
    %1310 = vmatprep.subr.mxu0 0.0
    %1311 = vmatpush1.msra.mxu0 0.0
    %1312 = vmatprep.subr.mxu0 0.0
    %1313 = vmatpush1.msra.mxu0 0.0
    %1314 = vmatprep.subr.mxu0 0.0
    %1315 = vmatpush1.msra.mxu0 0.0
    %1316 = vmatprep.mubr.f32.mxu0 0.0
    %1317 = vmatmul.mubr.f32.gmra.mrb[0].mxu0 %v1250
    %v1318 = vpop.f32.mrb[0].mxu0
    %v1319 = vadd.f32 0.0, %v1318
    %v1320 = vpop.f32.mrb[0].mxu0
    %1321 = vdwg.mxu0
    %1323 = vrot.lane.b32.xlu0 %v1319, 64
    %v1324 = vpop.permute.xlu0 %1323
    %1326 = vst.msk [vmem:[#allocation2 + $0x8] sm:$0xff] %vm989, %v1324
    %v1328 = vsel %vm652, %v494, 0
    %v1331 = vsel %vm652, %v571, 0
    %1333 = vmatprep.subr.mxu0 0.0
    %1334 = vmatpush1.xpose.msra.mxu0 %v1331
    %1335 = vmatprep.subr.mxu0 0.0
    %1336 = vmatpush1.xpose.msra.mxu0 0.0
    %1337 = vmatprep.subr.mxu0 0.0
    %1338 = vmatpush1.xpose.msra.mxu0 0.0
    %1339 = vmatprep.subr.mxu0 0.0
    %1340 = vmatpush1.xpose.msra.mxu0 0.0
    %1341 = vmatprep.subr.mxu0 0.0
    %1342 = vmatpush1.xpose.msra.mxu0 0.0
    %1343 = vmatprep.subr.mxu0 0.0
    %1344 = vmatpush1.xpose.msra.mxu0 0.0
    %1345 = vmatprep.subr.mxu0 0.0
    %1346 = vmatpush1.xpose.msra.mxu0 0.0
    %1347 = vmatprep.subr.mxu0 0.0
    %1348 = vmatpush1.xpose.msra.mxu0 0.0
    %1349 = vmatprep.subr.mxu0 0.0
    %1350 = vmatpush1.xpose.msra.mxu0 0.0
    %1351 = vmatprep.subr.mxu0 0.0
    %1352 = vmatpush1.xpose.msra.mxu0 0.0
    %1353 = vmatprep.subr.mxu0 0.0
    %1354 = vmatpush1.xpose.msra.mxu0 0.0
    %1355 = vmatprep.subr.mxu0 0.0
    %1356 = vmatpush1.xpose.msra.mxu0 0.0
    %1357 = vmatprep.subr.mxu0 0.0
    %1358 = vmatpush1.xpose.msra.mxu0 0.0
    %1359 = vmatprep.subr.mxu0 0.0
    %1360 = vmatpush1.xpose.msra.mxu0 0.0
    %1361 = vmatprep.subr.mxu0 0.0
    %1362 = vmatpush1.xpose.msra.mxu0 0.0
    %1363 = vmatprep.subr.mxu0 0.0
    %1364 = vmatpush1.xpose.msra.mxu0 0.0
    %1365 = vmatprep.subr.mxu0 0.0
    %1366 = vmatpush1.xpose.msra.mxu0 0.0
    %1367 = vmatprep.subr.mxu0 0.0
    %1368 = vmatpush1.xpose.msra.mxu0 0.0
    %1369 = vmatprep.subr.mxu0 0.0
    %1370 = vmatpush1.xpose.msra.mxu0 0.0
    %1371 = vmatprep.subr.mxu0 0.0
    %1372 = vmatpush1.xpose.msra.mxu0 0.0
    %1373 = vmatprep.subr.mxu0 0.0
    %1374 = vmatpush1.xpose.msra.mxu0 0.0
    %1375 = vmatprep.subr.mxu0 0.0
    %1376 = vmatpush1.xpose.msra.mxu0 0.0
    %1377 = vmatprep.subr.mxu0 0.0
    %1378 = vmatpush1.xpose.msra.mxu0 0.0
    %1379 = vmatprep.subr.mxu0 0.0
    %1380 = vmatpush1.xpose.msra.mxu0 0.0
    %1381 = vmatprep.subr.mxu0 0.0
    %1382 = vmatpush1.xpose.msra.mxu0 0.0
    %1383 = vmatprep.subr.mxu0 0.0
    %1384 = vmatpush1.xpose.msra.mxu0 0.0
    %1385 = vmatprep.subr.mxu0 0.0
    %1386 = vmatpush1.xpose.msra.mxu0 0.0
    %1387 = vmatprep.subr.mxu0 0.0
    %1388 = vmatpush1.xpose.msra.mxu0 0.0
    %1389 = vmatprep.subr.mxu0 0.0
    %1390 = vmatpush1.xpose.msra.mxu0 0.0
    %1391 = vmatprep.subr.mxu0 0.0
    %1392 = vmatpush1.xpose.msra.mxu0 0.0
    %1393 = vmatprep.subr.mxu0 0.0
    %1394 = vmatpush1.xpose.msra.mxu0 0.0
    %1395 = vmatprep.subr.mxu0 0.0
    %1396 = vmatpush1.xpose.msra.mxu0 0.0
    %1397 = vmatprep.mubr.f32.mxu0 0.0
    %1398 = vmatmul.mubr.f32.gmra.mrb[0].mxu0 %v1328
    %v1399 = vpop.f32.mrb[0].mxu0
    %v1400 = vadd.f32 0.0, %v1399
    %v1401 = vpop.f32.mrb[0].mxu0
    %1402 = vdwg.mxu0
    %v1403 = vmul.f32 %v1400, 0.088388346
    %v1404 = vadd.f32 %v1403, %v185
    %v1405 = vsel %vm731, %v1404, -inf
    %1406 = vmax.xlane.f32.xlu0 %v1405
    %v1407 = vpop.xlane.xlu0 %1406
    %v1408 = vsub.f32 %v1404, %v1407
    %v1409 = vmul.f32 %v1408, 1.442695
    %v1410 = vpow.pop %v1409
    %v1411 = vsel %vm731, %v1410, 0.0
    %1412 = vadd.xlane.f32.xlu0 %v1411
    %v1413 = vpop.xlane.xlu0 %1412
    %v1414 = vrcp.pop %v1413
    %v1415 = vmul.f32 %v1410, %v1414
    %v1417 = vsel %vm731, %v1415, 0
    %1419 = vmatprep.subr.mxu0 0.0
    %1420 = vmatpush1.msra.mxu0 %v648
    %1421 = vmatprep.subr.mxu0 0.0
    %1422 = vmatpush1.msra.mxu0 0.0
    %1423 = vmatprep.subr.mxu0 0.0
    %1424 = vmatpush1.msra.mxu0 0.0
    %1425 = vmatprep.subr.mxu0 0.0
    %1426 = vmatpush1.msra.mxu0 0.0
    %1427 = vmatprep.subr.mxu0 0.0
    %1428 = vmatpush1.msra.mxu0 0.0
    %1429 = vmatprep.subr.mxu0 0.0
    %1430 = vmatpush1.msra.mxu0 0.0
    %1431 = vmatprep.subr.mxu0 0.0
    %1432 = vmatpush1.msra.mxu0 0.0
    %1433 = vmatprep.subr.mxu0 0.0
    %1434 = vmatpush1.msra.mxu0 0.0
    %1435 = vmatprep.subr.mxu0 0.0
    %1436 = vmatpush1.msra.mxu0 0.0
    %1437 = vmatprep.subr.mxu0 0.0
    %1438 = vmatpush1.msra.mxu0 0.0
    %1439 = vmatprep.subr.mxu0 0.0
    %1440 = vmatpush1.msra.mxu0 0.0
    %1441 = vmatprep.subr.mxu0 0.0
    %1442 = vmatpush1.msra.mxu0 0.0
    %1443 = vmatprep.subr.mxu0 0.0
    %1444 = vmatpush1.msra.mxu0 0.0
    %1445 = vmatprep.subr.mxu0 0.0
    %1446 = vmatpush1.msra.mxu0 0.0
    %1447 = vmatprep.subr.mxu0 0.0
    %1448 = vmatpush1.msra.mxu0 0.0
    %1449 = vmatprep.subr.mxu0 0.0
    %1450 = vmatpush1.msra.mxu0 0.0
    %1451 = vmatprep.subr.mxu0 0.0
    %1452 = vmatpush1.msra.mxu0 0.0
    %1453 = vmatprep.subr.mxu0 0.0
    %1454 = vmatpush1.msra.mxu0 0.0
    %1455 = vmatprep.subr.mxu0 0.0
    %1456 = vmatpush1.msra.mxu0 0.0
    %1457 = vmatprep.subr.mxu0 0.0
    %1458 = vmatpush1.msra.mxu0 0.0
    %1459 = vmatprep.subr.mxu0 0.0
    %1460 = vmatpush1.msra.mxu0 0.0
    %1461 = vmatprep.subr.mxu0 0.0
    %1462 = vmatpush1.msra.mxu0 0.0
    %1463 = vmatprep.subr.mxu0 0.0
    %1464 = vmatpush1.msra.mxu0 0.0
    %1465 = vmatprep.subr.mxu0 0.0
    %1466 = vmatpush1.msra.mxu0 0.0
    %1467 = vmatprep.subr.mxu0 0.0
    %1468 = vmatpush1.msra.mxu0 0.0
    %1469 = vmatprep.subr.mxu0 0.0
    %1470 = vmatpush1.msra.mxu0 0.0
    %1471 = vmatprep.subr.mxu0 0.0
    %1472 = vmatpush1.msra.mxu0 0.0
    %1473 = vmatprep.subr.mxu0 0.0
    %1474 = vmatpush1.msra.mxu0 0.0
    %1475 = vmatprep.subr.mxu0 0.0
    %1476 = vmatpush1.msra.mxu0 0.0
    %1477 = vmatprep.subr.mxu0 0.0
    %1478 = vmatpush1.msra.mxu0 0.0
    %1479 = vmatprep.subr.mxu0 0.0
    %1480 = vmatpush1.msra.mxu0 0.0
    %1481 = vmatprep.subr.mxu0 0.0
    %1482 = vmatpush1.msra.mxu0 0.0
    %1483 = vmatprep.mubr.f32.mxu0 0.0
    %1484 = vmatmul.mubr.f32.gmra.mrb[0].mxu0 %v1417
    %v1485 = vpop.f32.mrb[0].mxu0
    %v1486 = vadd.f32 0.0, %v1485
    %v1487 = vpop.f32.mrb[0].mxu0
    %1488 = vdwg.mxu0
    %1489 = vst.msk [vmem:[#allocation2 + $0x10] sm:$0xff] %vm652, %v1486
    %1490 = vrot.lane.b32.xlu0 %v494, 64
    %v1491 = vpop.permute.xlu0 %1490
    %1492 = vrot.lane.b32.xlu0 %v571, 64
    %v1493 = vpop.permute.xlu0 %1492
    %v1494 = vsel %vm652, %v1491, 0
    %v1496 = vsel %vm652, %v1493, 0
    %1498 = vmatprep.subr.mxu0 0.0
    %1499 = vmatpush1.xpose.msra.mxu0 %v1496
    %1500 = vmatprep.subr.mxu0 0.0
    %1501 = vmatpush1.xpose.msra.mxu0 0.0
    %1502 = vmatprep.subr.mxu0 0.0
    %1503 = vmatpush1.xpose.msra.mxu0 0.0
    %1504 = vmatprep.subr.mxu0 0.0
    %1505 = vmatpush1.xpose.msra.mxu0 0.0
    %1506 = vmatprep.subr.mxu0 0.0
    %1507 = vmatpush1.xpose.msra.mxu0 0.0
    %1508 = vmatprep.subr.mxu0 0.0
    %1509 = vmatpush1.xpose.msra.mxu0 0.0
    %1510 = vmatprep.subr.mxu0 0.0
    %1511 = vmatpush1.xpose.msra.mxu0 0.0
    %1512 = vmatprep.subr.mxu0 0.0
    %1513 = vmatpush1.xpose.msra.mxu0 0.0
    %1514 = vmatprep.subr.mxu0 0.0
    %1515 = vmatpush1.xpose.msra.mxu0 0.0
    %1516 = vmatprep.subr.mxu0 0.0
    %1517 = vmatpush1.xpose.msra.mxu0 0.0
    %1518 = vmatprep.subr.mxu0 0.0
    %1519 = vmatpush1.xpose.msra.mxu0 0.0
    %1520 = vmatprep.subr.mxu0 0.0
    %1521 = vmatpush1.xpose.msra.mxu0 0.0
    %1522 = vmatprep.subr.mxu0 0.0
    %1523 = vmatpush1.xpose.msra.mxu0 0.0
    %1524 = vmatprep.subr.mxu0 0.0
    %1525 = vmatpush1.xpose.msra.mxu0 0.0
    %1526 = vmatprep.subr.mxu0 0.0
    %1527 = vmatpush1.xpose.msra.mxu0 0.0
    %1528 = vmatprep.subr.mxu0 0.0
    %1529 = vmatpush1.xpose.msra.mxu0 0.0
    %1530 = vmatprep.subr.mxu0 0.0
    %1531 = vmatpush1.xpose.msra.mxu0 0.0
    %1532 = vmatprep.subr.mxu0 0.0
    %1533 = vmatpush1.xpose.msra.mxu0 0.0
    %1534 = vmatprep.subr.mxu0 0.0
    %1535 = vmatpush1.xpose.msra.mxu0 0.0
    %1536 = vmatprep.subr.mxu0 0.0
    %1537 = vmatpush1.xpose.msra.mxu0 0.0
    %1538 = vmatprep.subr.mxu0 0.0
    %1539 = vmatpush1.xpose.msra.mxu0 0.0
    %1540 = vmatprep.subr.mxu0 0.0
    %1541 = vmatpush1.xpose.msra.mxu0 0.0
    %1542 = vmatprep.subr.mxu0 0.0
    %1543 = vmatpush1.xpose.msra.mxu0 0.0
    %1544 = vmatprep.subr.mxu0 0.0
    %1545 = vmatpush1.xpose.msra.mxu0 0.0
    %1546 = vmatprep.subr.mxu0 0.0
    %1547 = vmatpush1.xpose.msra.mxu0 0.0
    %1548 = vmatprep.subr.mxu0 0.0
    %1549 = vmatpush1.xpose.msra.mxu0 0.0
    %1550 = vmatprep.subr.mxu0 0.0
    %1551 = vmatpush1.xpose.msra.mxu0 0.0
    %1552 = vmatprep.subr.mxu0 0.0
    %1553 = vmatpush1.xpose.msra.mxu0 0.0
    %1554 = vmatprep.subr.mxu0 0.0
    %1555 = vmatpush1.xpose.msra.mxu0 0.0
    %1556 = vmatprep.subr.mxu0 0.0
    %1557 = vmatpush1.xpose.msra.mxu0 0.0
    %1558 = vmatprep.subr.mxu0 0.0
    %1559 = vmatpush1.xpose.msra.mxu0 0.0
    %1560 = vmatprep.subr.mxu0 0.0
    %1561 = vmatpush1.xpose.msra.mxu0 0.0
    %1562 = vmatprep.mubr.f32.mxu0 0.0
    %1563 = vmatmul.mubr.f32.gmra.mrb[0].mxu0 %v1494
    %v1564 = vpop.f32.mrb[0].mxu0
    %v1565 = vadd.f32 0.0, %v1564
    %v1566 = vpop.f32.mrb[0].mxu0
    %1567 = vdwg.mxu0
    %v1568 = vmul.f32 %v1565, 0.088388346
    %v1569 = vadd.f32 %v1568, %v186
    %v1570 = vsel %vm731, %v1569, -inf
    %1571 = vmax.xlane.f32.xlu0 %v1570
    %v1572 = vpop.xlane.xlu0 %1571
    %v1573 = vsub.f32 %v1569, %v1572
    %v1574 = vmul.f32 %v1573, 1.442695
    %v1575 = vpow.pop %v1574
    %v1576 = vsel %vm731, %v1575, 0.0
    %1577 = vadd.xlane.f32.xlu0 %v1576
    %v1578 = vpop.xlane.xlu0 %1577
    %v1579 = vrcp.pop %v1578
    %v1580 = vmul.f32 %v1575, %v1579
    %1582 = vrot.lane.b32.xlu0 %v648, 64
    %v1583 = vpop.permute.xlu0 %1582
    %v1586 = vsel %vm731, %v1580, 0
    %1588 = vmatprep.subr.mxu0 0.0
    %1589 = vmatpush1.msra.mxu0 %v1583
    %1590 = vmatprep.subr.mxu0 0.0
    %1591 = vmatpush1.msra.mxu0 0.0
    %1592 = vmatprep.subr.mxu0 0.0
    %1593 = vmatpush1.msra.mxu0 0.0
    %1594 = vmatprep.subr.mxu0 0.0
    %1595 = vmatpush1.msra.mxu0 0.0
    %1596 = vmatprep.subr.mxu0 0.0
    %1597 = vmatpush1.msra.mxu0 0.0
    %1598 = vmatprep.subr.mxu0 0.0
    %1599 = vmatpush1.msra.mxu0 0.0
    %1600 = vmatprep.subr.mxu0 0.0
    %1601 = vmatpush1.msra.mxu0 0.0
    %1602 = vmatprep.subr.mxu0 0.0
    %1603 = vmatpush1.msra.mxu0 0.0
    %1604 = vmatprep.subr.mxu0 0.0
    %1605 = vmatpush1.msra.mxu0 0.0
    %1606 = vmatprep.subr.mxu0 0.0
    %1607 = vmatpush1.msra.mxu0 0.0
    %1608 = vmatprep.subr.mxu0 0.0
    %1609 = vmatpush1.msra.mxu0 0.0
    %1610 = vmatprep.subr.mxu0 0.0
    %1611 = vmatpush1.msra.mxu0 0.0
    %1612 = vmatprep.subr.mxu0 0.0
    %1613 = vmatpush1.msra.mxu0 0.0
    %1614 = vmatprep.subr.mxu0 0.0
    %1615 = vmatpush1.msra.mxu0 0.0
    %1616 = vmatprep.subr.mxu0 0.0
    %1617 = vmatpush1.msra.mxu0 0.0
    %1618 = vmatprep.subr.mxu0 0.0
    %1619 = vmatpush1.msra.mxu0 0.0
    %1620 = vmatprep.subr.mxu0 0.0
    %1621 = vmatpush1.msra.mxu0 0.0
    %1622 = vmatprep.subr.mxu0 0.0
    %1623 = vmatpush1.msra.mxu0 0.0
    %1624 = vmatprep.subr.mxu0 0.0
    %1625 = vmatpush1.msra.mxu0 0.0
    %1626 = vmatprep.subr.mxu0 0.0
    %1627 = vmatpush1.msra.mxu0 0.0
    %1628 = vmatprep.subr.mxu0 0.0
    %1629 = vmatpush1.msra.mxu0 0.0
    %1630 = vmatprep.subr.mxu0 0.0
    %1631 = vmatpush1.msra.mxu0 0.0
    %1632 = vmatprep.subr.mxu0 0.0
    %1633 = vmatpush1.msra.mxu0 0.0
    %1634 = vmatprep.subr.mxu0 0.0
    %1635 = vmatpush1.msra.mxu0 0.0
    %1636 = vmatprep.subr.mxu0 0.0
    %1637 = vmatpush1.msra.mxu0 0.0
    %1638 = vmatprep.subr.mxu0 0.0
    %1639 = vmatpush1.msra.mxu0 0.0
    %1640 = vmatprep.subr.mxu0 0.0
    %1641 = vmatpush1.msra.mxu0 0.0
    %1642 = vmatprep.subr.mxu0 0.0
    %1643 = vmatpush1.msra.mxu0 0.0
    %1644 = vmatprep.subr.mxu0 0.0
    %1645 = vmatpush1.msra.mxu0 0.0
    %1646 = vmatprep.subr.mxu0 0.0
    %1647 = vmatpush1.msra.mxu0 0.0
    %1648 = vmatprep.subr.mxu0 0.0
    %1649 = vmatpush1.msra.mxu0 0.0
    %1650 = vmatprep.subr.mxu0 0.0
    %1651 = vmatpush1.msra.mxu0 0.0
    %1652 = vmatprep.mubr.f32.mxu0 0.0
    %1653 = vmatmul.mubr.f32.gmra.mrb[0].mxu0 %v1586
    %v1654 = vpop.f32.mrb[0].mxu0
    %v1655 = vadd.f32 0.0, %v1654
    %v1656 = vpop.f32.mrb[0].mxu0
    %1657 = vdwg.mxu0
    %1659 = vrot.lane.b32.xlu0 %v1655, 64
    %v1660 = vpop.permute.xlu0 %1659
    %1662 = vst.msk [vmem:[#allocation2 + $0x10] sm:$0xff] %vm989, %v1660
    %v1664 = vsel %vm652, %v496, 0
    %v1667 = vsel %vm652, %v573, 0
    %1669 = vmatprep.subr.mxu0 0.0
    %1670 = vmatpush1.xpose.msra.mxu0 %v1667
    %1671 = vmatprep.subr.mxu0 0.0
    %1672 = vmatpush1.xpose.msra.mxu0 0.0
    %1673 = vmatprep.subr.mxu0 0.0
    %1674 = vmatpush1.xpose.msra.mxu0 0.0
    %1675 = vmatprep.subr.mxu0 0.0
    %1676 = vmatpush1.xpose.msra.mxu0 0.0
    %1677 = vmatprep.subr.mxu0 0.0
    %1678 = vmatpush1.xpose.msra.mxu0 0.0
    %1679 = vmatprep.subr.mxu0 0.0
    %1680 = vmatpush1.xpose.msra.mxu0 0.0
    %1681 = vmatprep.subr.mxu0 0.0
    %1682 = vmatpush1.xpose.msra.mxu0 0.0
    %1683 = vmatprep.subr.mxu0 0.0
    %1684 = vmatpush1.xpose.msra.mxu0 0.0
    %1685 = vmatprep.subr.mxu0 0.0
    %1686 = vmatpush1.xpose.msra.mxu0 0.0
    %1687 = vmatprep.subr.mxu0 0.0
    %1688 = vmatpush1.xpose.msra.mxu0 0.0
    %1689 = vmatprep.subr.mxu0 0.0
    %1690 = vmatpush1.xpose.msra.mxu0 0.0
    %1691 = vmatprep.subr.mxu0 0.0
    %1692 = vmatpush1.xpose.msra.mxu0 0.0
    %1693 = vmatprep.subr.mxu0 0.0
    %1694 = vmatpush1.xpose.msra.mxu0 0.0
    %1695 = vmatprep.subr.mxu0 0.0
    %1696 = vmatpush1.xpose.msra.mxu0 0.0
    %1697 = vmatprep.subr.mxu0 0.0
    %1698 = vmatpush1.xpose.msra.mxu0 0.0
    %1699 = vmatprep.subr.mxu0 0.0
    %1700 = vmatpush1.xpose.msra.mxu0 0.0
    %1701 = vmatprep.subr.mxu0 0.0
    %1702 = vmatpush1.xpose.msra.mxu0 0.0
    %1703 = vmatprep.subr.mxu0 0.0
    %1704 = vmatpush1.xpose.msra.mxu0 0.0
    %1705 = vmatprep.subr.mxu0 0.0
    %1706 = vmatpush1.xpose.msra.mxu0 0.0
    %1707 = vmatprep.subr.mxu0 0.0
    %1708 = vmatpush1.xpose.msra.mxu0 0.0
    %1709 = vmatprep.subr.mxu0 0.0
    %1710 = vmatpush1.xpose.msra.mxu0 0.0
    %1711 = vmatprep.subr.mxu0 0.0
    %1712 = vmatpush1.xpose.msra.mxu0 0.0
    %1713 = vmatprep.subr.mxu0 0.0
    %1714 = vmatpush1.xpose.msra.mxu0 0.0
    %1715 = vmatprep.subr.mxu0 0.0
    %1716 = vmatpush1.xpose.msra.mxu0 0.0
    %1717 = vmatprep.subr.mxu0 0.0
    %1718 = vmatpush1.xpose.msra.mxu0 0.0
    %1719 = vmatprep.subr.mxu0 0.0
    %1720 = vmatpush1.xpose.msra.mxu0 0.0
    %1721 = vmatprep.subr.mxu0 0.0
    %1722 = vmatpush1.xpose.msra.mxu0 0.0
    %1723 = vmatprep.subr.mxu0 0.0
    %1724 = vmatpush1.xpose.msra.mxu0 0.0
    %1725 = vmatprep.subr.mxu0 0.0
    %1726 = vmatpush1.xpose.msra.mxu0 0.0
    %1727 = vmatprep.subr.mxu0 0.0
    %1728 = vmatpush1.xpose.msra.mxu0 0.0
    %1729 = vmatprep.subr.mxu0 0.0
    %1730 = vmatpush1.xpose.msra.mxu0 0.0
    %1731 = vmatprep.subr.mxu0 0.0
    %1732 = vmatpush1.xpose.msra.mxu0 0.0
    %1733 = vmatprep.mubr.f32.mxu0 0.0
    %1734 = vmatmul.mubr.f32.gmra.mrb[0].mxu0 %v1664
    %v1735 = vpop.f32.mrb[0].mxu0
    %v1736 = vadd.f32 0.0, %v1735
    %v1737 = vpop.f32.mrb[0].mxu0
    %1738 = vdwg.mxu0
    %v1739 = vmul.f32 %v1736, 0.088388346
    %v1740 = vadd.f32 %v1739, %v187
    %v1741 = vsel %vm731, %v1740, -inf
    %1742 = vmax.xlane.f32.xlu0 %v1741
    %v1743 = vpop.xlane.xlu0 %1742
    %v1744 = vsub.f32 %v1740, %v1743
    %v1745 = vmul.f32 %v1744, 1.442695
    %v1746 = vpow.pop %v1745
    %v1747 = vsel %vm731, %v1746, 0.0
    %1748 = vadd.xlane.f32.xlu0 %v1747
    %v1749 = vpop.xlane.xlu0 %1748
    %v1750 = vrcp.pop %v1749
    %v1751 = vmul.f32 %v1746, %v1750
    %v1753 = vsel %vm731, %v1751, 0
    %1755 = vmatprep.subr.mxu0 0.0
    %1756 = vmatpush1.msra.mxu0 %v650
    %1757 = vmatprep.subr.mxu0 0.0
    %1758 = vmatpush1.msra.mxu0 0.0
    %1759 = vmatprep.subr.mxu0 0.0
    %1760 = vmatpush1.msra.mxu0 0.0
    %1761 = vmatprep.subr.mxu0 0.0
    %1762 = vmatpush1.msra.mxu0 0.0
    %1763 = vmatprep.subr.mxu0 0.0
    %1764 = vmatpush1.msra.mxu0 0.0
    %1765 = vmatprep.subr.mxu0 0.0
    %1766 = vmatpush1.msra.mxu0 0.0
    %1767 = vmatprep.subr.mxu0 0.0
    %1768 = vmatpush1.msra.mxu0 0.0
    %1769 = vmatprep.subr.mxu0 0.0
    %1770 = vmatpush1.msra.mxu0 0.0
    %1771 = vmatprep.subr.mxu0 0.0
    %1772 = vmatpush1.msra.mxu0 0.0
    %1773 = vmatprep.subr.mxu0 0.0
    %1774 = vmatpush1.msra.mxu0 0.0
    %1775 = vmatprep.subr.mxu0 0.0
    %1776 = vmatpush1.msra.mxu0 0.0
    %1777 = vmatprep.subr.mxu0 0.0
    %1778 = vmatpush1.msra.mxu0 0.0
    %1779 = vmatprep.subr.mxu0 0.0
    %1780 = vmatpush1.msra.mxu0 0.0
    %1781 = vmatprep.subr.mxu0 0.0
    %1782 = vmatpush1.msra.mxu0 0.0
    %1783 = vmatprep.subr.mxu0 0.0
    %1784 = vmatpush1.msra.mxu0 0.0
    %1785 = vmatprep.subr.mxu0 0.0
    %1786 = vmatpush1.msra.mxu0 0.0
    %1787 = vmatprep.subr.mxu0 0.0
    %1788 = vmatpush1.msra.mxu0 0.0
    %1789 = vmatprep.subr.mxu0 0.0
    %1790 = vmatpush1.msra.mxu0 0.0
    %1791 = vmatprep.subr.mxu0 0.0
    %1792 = vmatpush1.msra.mxu0 0.0
    %1793 = vmatprep.subr.mxu0 0.0
    %1794 = vmatpush1.msra.mxu0 0.0
    %1795 = vmatprep.subr.mxu0 0.0
    %1796 = vmatpush1.msra.mxu0 0.0
    %1797 = vmatprep.subr.mxu0 0.0
    %1798 = vmatpush1.msra.mxu0 0.0
    %1799 = vmatprep.subr.mxu0 0.0
    %1800 = vmatpush1.msra.mxu0 0.0
    %1801 = vmatprep.subr.mxu0 0.0
    %1802 = vmatpush1.msra.mxu0 0.0
    %1803 = vmatprep.subr.mxu0 0.0
    %1804 = vmatpush1.msra.mxu0 0.0
    %1805 = vmatprep.subr.mxu0 0.0
    %1806 = vmatpush1.msra.mxu0 0.0
    %1807 = vmatprep.subr.mxu0 0.0
    %1808 = vmatpush1.msra.mxu0 0.0
    %1809 = vmatprep.subr.mxu0 0.0
    %1810 = vmatpush1.msra.mxu0 0.0
    %1811 = vmatprep.subr.mxu0 0.0
    %1812 = vmatpush1.msra.mxu0 0.0
    %1813 = vmatprep.subr.mxu0 0.0
    %1814 = vmatpush1.msra.mxu0 0.0
    %1815 = vmatprep.subr.mxu0 0.0
    %1816 = vmatpush1.msra.mxu0 0.0
    %1817 = vmatprep.subr.mxu0 0.0
    %1818 = vmatpush1.msra.mxu0 0.0
    %1819 = vmatprep.mubr.f32.mxu0 0.0
    %1820 = vmatmul.mubr.f32.gmra.mrb[0].mxu0 %v1753
    %v1821 = vpop.f32.mrb[0].mxu0
    %v1822 = vadd.f32 0.0, %v1821
    %v1823 = vpop.f32.mrb[0].mxu0
    %1824 = vdwg.mxu0
    %1825 = vst.msk [vmem:[#allocation2 + $0x18] sm:$0xff] %vm652, %v1822
    %1826 = vrot.lane.b32.xlu0 %v496, 64
    %v1827 = vpop.permute.xlu0 %1826
    %1828 = vrot.lane.b32.xlu0 %v573, 64
    %v1829 = vpop.permute.xlu0 %1828
    %v1830 = vsel %vm652, %v1827, 0
    %v1832 = vsel %vm652, %v1829, 0
    %1834 = vmatprep.subr.mxu0 0.0
    %1835 = vmatpush1.xpose.msra.mxu0 %v1832
    %1836 = vmatprep.subr.mxu0 0.0
    %1837 = vmatpush1.xpose.msra.mxu0 0.0
    %1838 = vmatprep.subr.mxu0 0.0
    %1839 = vmatpush1.xpose.msra.mxu0 0.0
    %1840 = vmatprep.subr.mxu0 0.0
    %1841 = vmatpush1.xpose.msra.mxu0 0.0
    %1842 = vmatprep.subr.mxu0 0.0
    %1843 = vmatpush1.xpose.msra.mxu0 0.0
    %1844 = vmatprep.subr.mxu0 0.0
    %1845 = vmatpush1.xpose.msra.mxu0 0.0
    %1846 = vmatprep.subr.mxu0 0.0
    %1847 = vmatpush1.xpose.msra.mxu0 0.0
    %1848 = vmatprep.subr.mxu0 0.0
    %1849 = vmatpush1.xpose.msra.mxu0 0.0
    %1850 = vmatprep.subr.mxu0 0.0
    %1851 = vmatpush1.xpose.msra.mxu0 0.0
    %1852 = vmatprep.subr.mxu0 0.0
    %1853 = vmatpush1.xpose.msra.mxu0 0.0
    %1854 = vmatprep.subr.mxu0 0.0
    %1855 = vmatpush1.xpose.msra.mxu0 0.0
    %1856 = vmatprep.subr.mxu0 0.0
    %1857 = vmatpush1.xpose.msra.mxu0 0.0
    %1858 = vmatprep.subr.mxu0 0.0
    %1859 = vmatpush1.xpose.msra.mxu0 0.0
    %1860 = vmatprep.subr.mxu0 0.0
    %1861 = vmatpush1.xpose.msra.mxu0 0.0
    %1862 = vmatprep.subr.mxu0 0.0
    %1863 = vmatpush1.xpose.msra.mxu0 0.0
    %1864 = vmatprep.subr.mxu0 0.0
    %1865 = vmatpush1.xpose.msra.mxu0 0.0
    %1866 = vmatprep.subr.mxu0 0.0
    %1867 = vmatpush1.xpose.msra.mxu0 0.0
    %1868 = vmatprep.subr.mxu0 0.0
    %1869 = vmatpush1.xpose.msra.mxu0 0.0
    %1870 = vmatprep.subr.mxu0 0.0
    %1871 = vmatpush1.xpose.msra.mxu0 0.0
    %1872 = vmatprep.subr.mxu0 0.0
    %1873 = vmatpush1.xpose.msra.mxu0 0.0
    %1874 = vmatprep.subr.mxu0 0.0
    %1875 = vmatpush1.xpose.msra.mxu0 0.0
    %1876 = vmatprep.subr.mxu0 0.0
    %1877 = vmatpush1.xpose.msra.mxu0 0.0
    %1878 = vmatprep.subr.mxu0 0.0
    %1879 = vmatpush1.xpose.msra.mxu0 0.0
    %1880 = vmatprep.subr.mxu0 0.0
    %1881 = vmatpush1.xpose.msra.mxu0 0.0
    %1882 = vmatprep.subr.mxu0 0.0
    %1883 = vmatpush1.xpose.msra.mxu0 0.0
    %1884 = vmatprep.subr.mxu0 0.0
    %1885 = vmatpush1.xpose.msra.mxu0 0.0
    %1886 = vmatprep.subr.mxu0 0.0
    %1887 = vmatpush1.xpose.msra.mxu0 0.0
    %1888 = vmatprep.subr.mxu0 0.0
    %1889 = vmatpush1.xpose.msra.mxu0 0.0
    %1890 = vmatprep.subr.mxu0 0.0
    %1891 = vmatpush1.xpose.msra.mxu0 0.0
    %1892 = vmatprep.subr.mxu0 0.0
    %1893 = vmatpush1.xpose.msra.mxu0 0.0
    %1894 = vmatprep.subr.mxu0 0.0
    %1895 = vmatpush1.xpose.msra.mxu0 0.0
    %1896 = vmatprep.subr.mxu0 0.0
    %1897 = vmatpush1.xpose.msra.mxu0 0.0
    %1898 = vmatprep.mubr.f32.mxu0 0.0
    %1899 = vmatmul.mubr.f32.gmra.mrb[0].mxu0 %v1830
    %v1900 = vpop.f32.mrb[0].mxu0
    %v1901 = vadd.f32 0.0, %v1900
    %v1902 = vpop.f32.mrb[0].mxu0
    %1903 = vdwg.mxu0
    %v1904 = vmul.f32 %v1901, 0.088388346
    %v1905 = vadd.f32 %v1904, %v188
    %v1906 = vsel %vm731, %v1905, -inf
    %1907 = vmax.xlane.f32.xlu0 %v1906
    %v1908 = vpop.xlane.xlu0 %1907
    %v1909 = vsub.f32 %v1905, %v1908
    %v1910 = vmul.f32 %v1909, 1.442695
    %v1911 = vpow.pop %v1910
    %v1912 = vsel %vm731, %v1911, 0.0
    %1913 = vadd.xlane.f32.xlu0 %v1912
    %v1914 = vpop.xlane.xlu0 %1913
    %v1915 = vrcp.pop %v1914
    %v1916 = vmul.f32 %v1911, %v1915
    %1918 = vrot.lane.b32.xlu0 %v650, 64
    %v1919 = vpop.permute.xlu0 %1918
    %v1922 = vsel %vm731, %v1916, 0
    %1924 = vmatprep.subr.mxu0 0.0
    %1925 = vmatpush1.msra.mxu0 %v1919
    %1926 = vmatprep.subr.mxu0 0.0
    %1927 = vmatpush1.msra.mxu0 0.0
    %1928 = vmatprep.subr.mxu0 0.0
    %1929 = vmatpush1.msra.mxu0 0.0
    %1930 = vmatprep.subr.mxu0 0.0
    %1931 = vmatpush1.msra.mxu0 0.0
    %1932 = vmatprep.subr.mxu0 0.0
    %1933 = vmatpush1.msra.mxu0 0.0
    %1934 = vmatprep.subr.mxu0 0.0
    %1935 = vmatpush1.msra.mxu0 0.0
    %1936 = vmatprep.subr.mxu0 0.0
    %1937 = vmatpush1.msra.mxu0 0.0
    %1938 = vmatprep.subr.mxu0 0.0
    %1939 = vmatpush1.msra.mxu0 0.0
    %1940 = vmatprep.subr.mxu0 0.0
    %1941 = vmatpush1.msra.mxu0 0.0
    %1942 = vmatprep.subr.mxu0 0.0
    %1943 = vmatpush1.msra.mxu0 0.0
    %1944 = vmatprep.subr.mxu0 0.0
    %1945 = vmatpush1.msra.mxu0 0.0
    %1946 = vmatprep.subr.mxu0 0.0
    %1947 = vmatpush1.msra.mxu0 0.0
    %1948 = vmatprep.subr.mxu0 0.0
    %1949 = vmatpush1.msra.mxu0 0.0
    %1950 = vmatprep.subr.mxu0 0.0
    %1951 = vmatpush1.msra.mxu0 0.0
    %1952 = vmatprep.subr.mxu0 0.0
    %1953 = vmatpush1.msra.mxu0 0.0
    %1954 = vmatprep.subr.mxu0 0.0
    %1955 = vmatpush1.msra.mxu0 0.0
    %1956 = vmatprep.subr.mxu0 0.0
    %1957 = vmatpush1.msra.mxu0 0.0
    %1958 = vmatprep.subr.mxu0 0.0
    %1959 = vmatpush1.msra.mxu0 0.0
    %1960 = vmatprep.subr.mxu0 0.0
    %1961 = vmatpush1.msra.mxu0 0.0
    %1962 = vmatprep.subr.mxu0 0.0
    %1963 = vmatpush1.msra.mxu0 0.0
    %1964 = vmatprep.subr.mxu0 0.0
    %1965 = vmatpush1.msra.mxu0 0.0
    %1966 = vmatprep.subr.mxu0 0.0
    %1967 = vmatpush1.msra.mxu0 0.0
    %1968 = vmatprep.subr.mxu0 0.0
    %1969 = vmatpush1.msra.mxu0 0.0
    %1970 = vmatprep.subr.mxu0 0.0
    %1971 = vmatpush1.msra.mxu0 0.0
    %1972 = vmatprep.subr.mxu0 0.0
    %1973 = vmatpush1.msra.mxu0 0.0
    %1974 = vmatprep.subr.mxu0 0.0
    %1975 = vmatpush1.msra.mxu0 0.0
    %1976 = vmatprep.subr.mxu0 0.0
    %1977 = vmatpush1.msra.mxu0 0.0
    %1978 = vmatprep.subr.mxu0 0.0
    %1979 = vmatpush1.msra.mxu0 0.0
    %1980 = vmatprep.subr.mxu0 0.0
    %1981 = vmatpush1.msra.mxu0 0.0
    %1982 = vmatprep.subr.mxu0 0.0
    %1983 = vmatpush1.msra.mxu0 0.0
    %1984 = vmatprep.subr.mxu0 0.0
    %1985 = vmatpush1.msra.mxu0 0.0
    %1986 = vmatprep.subr.mxu0 0.0
    %1987 = vmatpush1.msra.mxu0 0.0
    %1988 = vmatprep.mubr.f32.mxu0 0.0
    %1989 = vmatmul.mubr.f32.gmra.mrb[0].mxu0 %v1922
    %v1990 = vpop.f32.mrb[0].mxu0
    %v1991 = vadd.f32 0.0, %v1990
    %v1992 = vpop.f32.mrb[0].mxu0
    %1993 = vdwg.mxu0
    %1995 = vrot.lane.b32.xlu0 %v1991, 64
    %v1996 = vpop.permute.xlu0 %1995
    %1998 = vst.msk [vmem:[#allocation2 + $0x18] sm:$0xff] %vm989, %v1996
    %v1999 = vld [vmem:[#allocation2] sm:$0xff]
    %v2000 = vld [vmem:[#allocation2 + $0x8] sm:$0xff]
    %v2001 = vld [vmem:[#allocation2 + $0x10] sm:$0xff]
    %v2002 = vld [vmem:[#allocation2 + $0x18] sm:$0xff]
    %v2003 = vld [vmem:[#allocation6] sm:$0xff]
    %v2004 = vld [vmem:[#allocation6 + $0x8] sm:$0xff]
    %v2005 = vld [vmem:[#allocation6 + $0x10] sm:$0xff]
    %v2006 = vld [vmem:[#allocation6 + $0x18] sm:$0xff]
    %v2007 = vld [vmem:[#allocation6 + $0x20] sm:$0xff]
    %v2008 = vld [vmem:[#allocation6 + $0x28] sm:$0xff]
    %v2009 = vld [vmem:[#allocation6 + $0x30] sm:$0xff]
    %v2010 = vld [vmem:[#allocation6 + $0x38] sm:$0xff]
    %v2011 = vld [vmem:[#allocation6 + $0x40] sm:$0xff]
    %v2012 = vld [vmem:[#allocation6 + $0x48] sm:$0xff]
    %v2013 = vld [vmem:[#allocation6 + $0x50] sm:$0xff]
    %v2014 = vld [vmem:[#allocation6 + $0x58] sm:$0xff]
    %v2015 = vld [vmem:[#allocation6 + $0x60] sm:$0xff]
    %v2016 = vld [vmem:[#allocation6 + $0x68] sm:$0xff]
    %v2017 = vld [vmem:[#allocation6 + $0x70] sm:$0xff]
    %v2018 = vld [vmem:[#allocation6 + $0x78] sm:$0xff]
    %v2019 = vld [vmem:[#allocation6 + $0x80] sm:$0xff]
    %v2020 = vld [vmem:[#allocation6 + $0x88] sm:$0xff]
    %v2021 = vld [vmem:[#allocation6 + $0x90] sm:$0xff]
    %v2022 = vld [vmem:[#allocation6 + $0x98] sm:$0xff]
    %v2023 = vld [vmem:[#allocation6 + $0xa0] sm:$0xff]
    %v2024 = vld [vmem:[#allocation6 + $0xa8] sm:$0xff]
    %v2025 = vld [vmem:[#allocation6 + $0xb0] sm:$0xff]
    %v2026 = vld [vmem:[#allocation6 + $0xb8] sm:$0xff]
    %v2027 = vld [vmem:[#allocation6 + $0xc0] sm:$0xff]
    %v2028 = vld [vmem:[#allocation6 + $0xc8] sm:$0xff]
    %v2029 = vld [vmem:[#allocation6 + $0xd0] sm:$0xff]
    %v2030 = vld [vmem:[#allocation6 + $0xd8] sm:$0xff]
    %v2031 = vld [vmem:[#allocation6 + $0xe0] sm:$0xff]
    %v2032 = vld [vmem:[#allocation6 + $0xe8] sm:$0xff]
    %v2033 = vld [vmem:[#allocation6 + $0xf0] sm:$0xff]
    %v2034 = vld [vmem:[#allocation6 + $0xf8] sm:$0xff]
    %v2035 = vld [vmem:[#allocation6 + $0x100] sm:$0xff]
    %v2036 = vld [vmem:[#allocation6 + $0x108] sm:$0xff]
    %v2037 = vld [vmem:[#allocation6 + $0x110] sm:$0xff]
    %v2038 = vld [vmem:[#allocation6 + $0x118] sm:$0xff]
    %v2039 = vld [vmem:[#allocation6 + $0x120] sm:$0xff]
    %v2040 = vld [vmem:[#allocation6 + $0x128] sm:$0xff]
    %v2041 = vld [vmem:[#allocation6 + $0x130] sm:$0xff]
    %v2042 = vld [vmem:[#allocation6 + $0x138] sm:$0xff]
    %v2043 = vld [vmem:[#allocation6 + $0x140] sm:$0xff]
    %v2044 = vld [vmem:[#allocation6 + $0x148] sm:$0xff]
    %v2045 = vld [vmem:[#allocation6 + $0x150] sm:$0xff]
    %v2046 = vld [vmem:[#allocation6 + $0x158] sm:$0xff]
    %v2047 = vld [vmem:[#allocation6 + $0x160] sm:$0xff]
    %v2048 = vld [vmem:[#allocation6 + $0x168] sm:$0xff]
    %v2049 = vld [vmem:[#allocation6 + $0x170] sm:$0xff]
    %v2050 = vld [vmem:[#allocation6 + $0x178] sm:$0xff]
    %v2051 = vld [vmem:[#allocation6 + $0x180] sm:$0xff]
    %v2052 = vld [vmem:[#allocation6 + $0x188] sm:$0xff]
    %v2053 = vld [vmem:[#allocation6 + $0x190] sm:$0xff]
    %v2054 = vld [vmem:[#allocation6 + $0x198] sm:$0xff]
    %v2055 = vld [vmem:[#allocation6 + $0x1a0] sm:$0xff]
    %v2056 = vld [vmem:[#allocation6 + $0x1a8] sm:$0xff]
    %v2057 = vld [vmem:[#allocation6 + $0x1b0] sm:$0xff]
    %v2058 = vld [vmem:[#allocation6 + $0x1b8] sm:$0xff]
    %v2059 = vld [vmem:[#allocation6 + $0x1c0] sm:$0xff]
    %v2060 = vld [vmem:[#allocation6 + $0x1c8] sm:$0xff]
    %v2061 = vld [vmem:[#allocation6 + $0x1d0] sm:$0xff]
    %v2062 = vld [vmem:[#allocation6 + $0x1d8] sm:$0xff]
    %v2063 = vld [vmem:[#allocation6 + $0x1e0] sm:$0xff]
    %v2064 = vld [vmem:[#allocation6 + $0x1e8] sm:$0xff]
    %v2065 = vld [vmem:[#allocation6 + $0x1f0] sm:$0xff]
    %v2066 = vld [vmem:[#allocation6 + $0x1f8] sm:$0xff]
    %v2067 = vld [vmem:[%s7] sm:$0x3]
    %v2069 = vlaneseq
    %v2070 = vshrl.u32 %v2069, 7
    %v2071 = vsub.s32 0, %v2070
    %v2072 = vrot.slane %v2067, %v2071
    %v2073 = vlaneseq
    %v2074 = vshrl.u32 %v2073, 7
    %v2075 = vsub.s32 1, %v2074
    %v2076 = vrot.slane %v2067, %v2075
    %2079 = vmatprep.subr.mxu0 %v2004
    %2080 = vmatpush1.msra.mxu0 %v2003
    %2081 = vmatprep.subr.mxu0 %v2006
    %2082 = vmatpush1.msra.mxu0 %v2005
    %2083 = vmatprep.subr.mxu0 %v2008
    %2084 = vmatpush1.msra.mxu0 %v2007
    %2085 = vmatprep.subr.mxu0 %v2010
    %2086 = vmatpush1.msra.mxu0 %v2009
    %2087 = vmatprep.subr.mxu0 %v2012
    %2088 = vmatpush1.msra.mxu0 %v2011
    %2089 = vmatprep.subr.mxu0 %v2014
    %2090 = vmatpush1.msra.mxu0 %v2013
    %2091 = vmatprep.subr.mxu0 %v2016
    %2092 = vmatpush1.msra.mxu0 %v2015
    %2093 = vmatprep.subr.mxu0 %v2018
    %2094 = vmatpush1.msra.mxu0 %v2017
    %2095 = vmatprep.subr.mxu0 %v2020
    %2096 = vmatpush1.msra.mxu0 %v2019
    %2097 = vmatprep.subr.mxu0 %v2022
    %2098 = vmatpush1.msra.mxu0 %v2021
    %2099 = vmatprep.subr.mxu0 %v2024
    %2100 = vmatpush1.msra.mxu0 %v2023
    %2101 = vmatprep.subr.mxu0 %v2026
    %2102 = vmatpush1.msra.mxu0 %v2025
    %2103 = vmatprep.subr.mxu0 %v2028
    %2104 = vmatpush1.msra.mxu0 %v2027
    %2105 = vmatprep.subr.mxu0 %v2030
    %2106 = vmatpush1.msra.mxu0 %v2029
    %2107 = vmatprep.subr.mxu0 %v2032
    %2108 = vmatpush1.msra.mxu0 %v2031
    %2109 = vmatprep.subr.mxu0 %v2034
    %2110 = vmatpush1.msra.mxu0 %v2033
    %2111 = vmatprep.subr.mxu0 %v2036
    %2112 = vmatpush1.msra.mxu0 %v2035
    %2113 = vmatprep.subr.mxu0 %v2038
    %2114 = vmatpush1.msra.mxu0 %v2037
    %2115 = vmatprep.subr.mxu0 %v2040
    %2116 = vmatpush1.msra.mxu0 %v2039
    %2117 = vmatprep.subr.mxu0 %v2042
    %2118 = vmatpush1.msra.mxu0 %v2041
    %2119 = vmatprep.subr.mxu0 %v2044
    %2120 = vmatpush1.msra.mxu0 %v2043
    %2121 = vmatprep.subr.mxu0 %v2046
    %2122 = vmatpush1.msra.mxu0 %v2045
    %2123 = vmatprep.subr.mxu0 %v2048
    %2124 = vmatpush1.msra.mxu0 %v2047
    %2125 = vmatprep.subr.mxu0 %v2050
    %2126 = vmatpush1.msra.mxu0 %v2049
    %2127 = vmatprep.subr.mxu0 %v2052
    %2128 = vmatpush1.msra.mxu0 %v2051
    %2129 = vmatprep.subr.mxu0 %v2054
    %2130 = vmatpush1.msra.mxu0 %v2053
    %2131 = vmatprep.subr.mxu0 %v2056
    %2132 = vmatpush1.msra.mxu0 %v2055
    %2133 = vmatprep.subr.mxu0 %v2058
    %2134 = vmatpush1.msra.mxu0 %v2057
    %2135 = vmatprep.subr.mxu0 %v2060
    %2136 = vmatpush1.msra.mxu0 %v2059
    %2137 = vmatprep.subr.mxu0 %v2062
    %2138 = vmatpush1.msra.mxu0 %v2061
    %2139 = vmatprep.subr.mxu0 %v2064
    %2140 = vmatpush1.msra.mxu0 %v2063
    %2141 = vmatprep.subr.mxu0 %v2066
    %2142 = vmatpush1.msra.mxu0 %v2065
    %2143 = vmatprep.mubr.f32.mxu0 %v2000
    %2144 = vmatmul.mubr.f32.gmra.mrb[0].mxu0 %v1999
    %v2145 = vpop.f32.mrb[0].mxu0
    %v2146 = vadd.f32 %v2072, %v2145
    %v2147 = vpop.f32.mrb[0].mxu0
    %v2148 = vadd.f32 %v2076, %v2147
    %2149 = vmatprep.mubr.f32.mxu0 %v2002
    %2150 = vmatmul.mubr.f32.gmra.mrb[0].mxu0 %v2001
    %v2151 = vpop.f32.mrb[0].mxu0
    %v2152 = vadd.f32 %v2072, %v2151
    %v2153 = vpop.f32.mrb[0].mxu0
    %v2154 = vadd.f32 %v2076, %v2153
    %2155 = vdwg.mxu0
    %v2156 = vadd.f32 %v2146, %v173
    %v2157 = vadd.f32 %v2148, %v174
    %v2158 = vadd.f32 %v2152, %v175
    %v2159 = vadd.f32 %v2154, %v176
    %v2160 = vld [vmem:[%s18] sm:$0x3]
    %v2161 = vld [vmem:[%s19] sm:$0x3]
    %v2162 = vadd.f32 %v2156, %v2157
    %2163 = vadd.xlane.f32.xlu0 %v2162
    %v2164 = vpop.xlane.xlu0 %2163
    %v2165 = vadd.f32 %v2158, %v2159
    %2166 = vadd.xlane.f32.xlu0 %v2165
    %v2167 = vpop.xlane.xlu0 %2166
    %v2168 = vrcp.pop 256.0
    %v2169 = vmul.f32 %v2164, %v2168
    %v2170 = vmul.f32 %v2167, %v2168
    %v2171 = vsub.f32 %v2156, %v2169
    %v2172 = vsub.f32 %v2157, %v2169
    %v2173 = vsub.f32 %v2158, %v2170
    %v2174 = vsub.f32 %v2159, %v2170
    %v2175 = vmul.f32 %v2171, %v2171
    %v2176 = vmul.f32 %v2172, %v2172
    %v2177 = vmul.f32 %v2173, %v2173
    %v2178 = vmul.f32 %v2174, %v2174
    %v2179 = vadd.f32 %v2175, %v2176
    %2180 = vadd.xlane.f32.xlu0 %v2179
    %v2181 = vpop.xlane.xlu0 %2180
    %v2182 = vadd.f32 %v2177, %v2178
    %2183 = vadd.xlane.f32.xlu0 %v2182
    %v2184 = vpop.xlane.xlu0 %2183
    %v2185 = vmul.f32 %v2181, %v2168
    %v2186 = vmul.f32 %v2184, %v2168
    %v2187 = vadd.f32 %v2185, 1e-05
    %v2188 = vadd.f32 %v2186, 1e-05
    %v2189 = vrsqrt.pop %v2187
    %v2190 = vrsqrt.pop %v2188
    %v2191 = vmul.f32 %v2171, %v2189
    %v2192 = vmul.f32 %v2172, %v2189
    %v2193 = vmul.f32 %v2173, %v2190
    %v2194 = vmul.f32 %v2174, %v2190
    %v2196 = vlaneseq
    %v2197 = vshrl.u32 %v2196, 7
    %v2198 = vsub.s32 0, %v2197
    %v2199 = vrot.slane %v2160, %v2198
    %v2200 = vlaneseq
    %v2201 = vshrl.u32 %v2200, 7
    %v2202 = vsub.s32 1, %v2201
    %v2203 = vrot.slane %v2160, %v2202
    %v2206 = vmul.f32 %v2191, %v2199
    %v2207 = vmul.f32 %v2192, %v2203
    %v2208 = vmul.f32 %v2193, %v2199
    %v2209 = vmul.f32 %v2194, %v2203
    %v2211 = vlaneseq
    %v2212 = vshrl.u32 %v2211, 7
    %v2213 = vsub.s32 0, %v2212
    %v2214 = vrot.slane %v2161, %v2213
    %v2215 = vlaneseq
    %v2216 = vshrl.u32 %v2215, 7
    %v2217 = vsub.s32 1, %v2216
    %v2218 = vrot.slane %v2161, %v2217
    %v2221 = vadd.f32 %v2206, %v2214
    %v2222 = vadd.f32 %v2207, %v2218
    %v2223 = vadd.f32 %v2208, %v2214
    %v2224 = vadd.f32 %v2209, %v2218
    %v2225 = vld [vmem:[#allocation8] sm:$0xff]
    %v2226 = vld [vmem:[#allocation8 + $0x8] sm:$0xff]
    %v2227 = vld [vmem:[#allocation8 + $0x10] sm:$0xff]
    %v2228 = vld [vmem:[#allocation8 + $0x18] sm:$0xff]
    %v2229 = vld [vmem:[#allocation8 + $0x20] sm:$0xff]
    %v2230 = vld [vmem:[#allocation8 + $0x28] sm:$0xff]
    %v2231 = vld [vmem:[#allocation8 + $0x30] sm:$0xff]
    %v2232 = vld [vmem:[#allocation8 + $0x38] sm:$0xff]
    %v2233 = vld [vmem:[#allocation8 + $0x40] sm:$0xff]
    %v2234 = vld [vmem:[#allocation8 + $0x48] sm:$0xff]
    %v2235 = vld [vmem:[#allocation8 + $0x50] sm:$0xff]
    %v2236 = vld [vmem:[#allocation8 + $0x58] sm:$0xff]
    %v2237 = vld [vmem:[#allocation8 + $0x60] sm:$0xff]
    %v2238 = vld [vmem:[#allocation8 + $0x68] sm:$0xff]
    %v2239 = vld [vmem:[#allocation8 + $0x70] sm:$0xff]
    %v2240 = vld [vmem:[#allocation8 + $0x78] sm:$0xff]
    %v2241 = vld [vmem:[#allocation8 + $0x80] sm:$0xff]
    %v2242 = vld [vmem:[#allocation8 + $0x88] sm:$0xff]
    %v2243 = vld [vmem:[#allocation8 + $0x90] sm:$0xff]
    %v2244 = vld [vmem:[#allocation8 + $0x98] sm:$0xff]
    %v2245 = vld [vmem:[#allocation8 + $0xa0] sm:$0xff]
    %v2246 = vld [vmem:[#allocation8 + $0xa8] sm:$0xff]
    %v2247 = vld [vmem:[#allocation8 + $0xb0] sm:$0xff]
    %v2248 = vld [vmem:[#allocation8 + $0xb8] sm:$0xff]
    %v2249 = vld [vmem:[#allocation8 + $0xc0] sm:$0xff]
    %v2250 = vld [vmem:[#allocation8 + $0xc8] sm:$0xff]
    %v2251 = vld [vmem:[#allocation8 + $0xd0] sm:$0xff]
    %v2252 = vld [vmem:[#allocation8 + $0xd8] sm:$0xff]
    %v2253 = vld [vmem:[#allocation8 + $0xe0] sm:$0xff]
    %v2254 = vld [vmem:[#allocation8 + $0xe8] sm:$0xff]
    %v2255 = vld [vmem:[#allocation8 + $0xf0] sm:$0xff]
    %v2256 = vld [vmem:[#allocation8 + $0xf8] sm:$0xff]
    %v2257 = vld [vmem:[#allocation8 + $0x100] sm:$0xff]
    %v2258 = vld [vmem:[#allocation8 + $0x108] sm:$0xff]
    %v2259 = vld [vmem:[#allocation8 + $0x110] sm:$0xff]
    %v2260 = vld [vmem:[#allocation8 + $0x118] sm:$0xff]
    %v2261 = vld [vmem:[#allocation8 + $0x120] sm:$0xff]
    %v2262 = vld [vmem:[#allocation8 + $0x128] sm:$0xff]
    %v2263 = vld [vmem:[#allocation8 + $0x130] sm:$0xff]
    %v2264 = vld [vmem:[#allocation8 + $0x138] sm:$0xff]
    %v2265 = vld [vmem:[#allocation8 + $0x140] sm:$0xff]
    %v2266 = vld [vmem:[#allocation8 + $0x148] sm:$0xff]
    %v2267 = vld [vmem:[#allocation8 + $0x150] sm:$0xff]
    %v2268 = vld [vmem:[#allocation8 + $0x158] sm:$0xff]
    %v2269 = vld [vmem:[#allocation8 + $0x160] sm:$0xff]
    %v2270 = vld [vmem:[#allocation8 + $0x168] sm:$0xff]
    %v2271 = vld [vmem:[#allocation8 + $0x170] sm:$0xff]
    %v2272 = vld [vmem:[#allocation8 + $0x178] sm:$0xff]
    %v2273 = vld [vmem:[#allocation8 + $0x180] sm:$0xff]
    %v2274 = vld [vmem:[#allocation8 + $0x188] sm:$0xff]
    %v2275 = vld [vmem:[#allocation8 + $0x190] sm:$0xff]
    %v2276 = vld [vmem:[#allocation8 + $0x198] sm:$0xff]
    %v2277 = vld [vmem:[#allocation8 + $0x1a0] sm:$0xff]
    %v2278 = vld [vmem:[#allocation8 + $0x1a8] sm:$0xff]
    %v2279 = vld [vmem:[#allocation8 + $0x1b0] sm:$0xff]
    %v2280 = vld [vmem:[#allocation8 + $0x1b8] sm:$0xff]
    %v2281 = vld [vmem:[#allocation8 + $0x1c0] sm:$0xff]
    %v2282 = vld [vmem:[#allocation8 + $0x1c8] sm:$0xff]
    %v2283 = vld [vmem:[#allocation8 + $0x1d0] sm:$0xff]
    %v2284 = vld [vmem:[#allocation8 + $0x1d8] sm:$0xff]
    %v2285 = vld [vmem:[#allocation8 + $0x1e0] sm:$0xff]
    %v2286 = vld [vmem:[#allocation8 + $0x1e8] sm:$0xff]
    %v2287 = vld [vmem:[#allocation8 + $0x1f0] sm:$0xff]
    %v2288 = vld [vmem:[#allocation8 + $0x1f8] sm:$0xff]
    %v2289 = vld [vmem:[%s9] sm:$0x3]
    %v2291 = vlaneseq
    %v2292 = vshrl.u32 %v2291, 7
    %v2293 = vsub.s32 0, %v2292
    %v2294 = vrot.slane %v2289, %v2293
    %v2295 = vlaneseq
    %v2296 = vshrl.u32 %v2295, 7
    %v2297 = vsub.s32 1, %v2296
    %v2298 = vrot.slane %v2289, %v2297
    %2301 = vmatprep.subr.mxu0 %v2226
    %2302 = vmatpush1.msra.mxu0 %v2225
    %2303 = vmatprep.subr.mxu0 %v2228
    %2304 = vmatpush1.msra.mxu0 %v2227
    %2305 = vmatprep.subr.mxu0 %v2230
    %2306 = vmatpush1.msra.mxu0 %v2229
    %2307 = vmatprep.subr.mxu0 %v2232
    %2308 = vmatpush1.msra.mxu0 %v2231
    %2309 = vmatprep.subr.mxu0 %v2234
    %2310 = vmatpush1.msra.mxu0 %v2233
    %2311 = vmatprep.subr.mxu0 %v2236
    %2312 = vmatpush1.msra.mxu0 %v2235
    %2313 = vmatprep.subr.mxu0 %v2238
    %2314 = vmatpush1.msra.mxu0 %v2237
    %2315 = vmatprep.subr.mxu0 %v2240
    %2316 = vmatpush1.msra.mxu0 %v2239
    %2317 = vmatprep.subr.mxu0 %v2242
    %2318 = vmatpush1.msra.mxu0 %v2241
    %2319 = vmatprep.subr.mxu0 %v2244
    %2320 = vmatpush1.msra.mxu0 %v2243
    %2321 = vmatprep.subr.mxu0 %v2246
    %2322 = vmatpush1.msra.mxu0 %v2245
    %2323 = vmatprep.subr.mxu0 %v2248
    %2324 = vmatpush1.msra.mxu0 %v2247
    %2325 = vmatprep.subr.mxu0 %v2250
    %2326 = vmatpush1.msra.mxu0 %v2249
    %2327 = vmatprep.subr.mxu0 %v2252
    %2328 = vmatpush1.msra.mxu0 %v2251
    %2329 = vmatprep.subr.mxu0 %v2254
    %2330 = vmatpush1.msra.mxu0 %v2253
    %2331 = vmatprep.subr.mxu0 %v2256
    %2332 = vmatpush1.msra.mxu0 %v2255
    %2333 = vmatprep.subr.mxu0 %v2258
    %2334 = vmatpush1.msra.mxu0 %v2257
    %2335 = vmatprep.subr.mxu0 %v2260
    %2336 = vmatpush1.msra.mxu0 %v2259
    %2337 = vmatprep.subr.mxu0 %v2262
    %2338 = vmatpush1.msra.mxu0 %v2261
    %2339 = vmatprep.subr.mxu0 %v2264
    %2340 = vmatpush1.msra.mxu0 %v2263
    %2341 = vmatprep.subr.mxu0 %v2266
    %2342 = vmatpush1.msra.mxu0 %v2265
    %2343 = vmatprep.subr.mxu0 %v2268
    %2344 = vmatpush1.msra.mxu0 %v2267
    %2345 = vmatprep.subr.mxu0 %v2270
    %2346 = vmatpush1.msra.mxu0 %v2269
    %2347 = vmatprep.subr.mxu0 %v2272
    %2348 = vmatpush1.msra.mxu0 %v2271
    %2349 = vmatprep.subr.mxu0 %v2274
    %2350 = vmatpush1.msra.mxu0 %v2273
    %2351 = vmatprep.subr.mxu0 %v2276
    %2352 = vmatpush1.msra.mxu0 %v2275
    %2353 = vmatprep.subr.mxu0 %v2278
    %2354 = vmatpush1.msra.mxu0 %v2277
    %2355 = vmatprep.subr.mxu0 %v2280
    %2356 = vmatpush1.msra.mxu0 %v2279
    %2357 = vmatprep.subr.mxu0 %v2282
    %2358 = vmatpush1.msra.mxu0 %v2281
    %2359 = vmatprep.subr.mxu0 %v2284
    %2360 = vmatpush1.msra.mxu0 %v2283
    %2361 = vmatprep.subr.mxu0 %v2286
    %2362 = vmatpush1.msra.mxu0 %v2285
    %2363 = vmatprep.subr.mxu0 %v2288
    %2364 = vmatpush1.msra.mxu0 %v2287
    %2365 = vmatprep.mubr.f32.mxu0 %v2222
    %2366 = vmatmul.mubr.f32.gmra.mrb[0].mxu0 %v2221
    %v2367 = vpop.f32.mrb[0].mxu0
    %v2368 = vadd.f32 %v2294, %v2367
    %v2369 = vpop.f32.mrb[0].mxu0
    %v2370 = vadd.f32 %v2298, %v2369
    %2371 = vmatprep.mubr.f32.mxu0 %v2224
    %2372 = vmatmul.mubr.f32.gmra.mrb[0].mxu0 %v2223
    %v2373 = vpop.f32.mrb[0].mxu0
    %v2374 = vadd.f32 %v2294, %v2373
    %v2375 = vpop.f32.mrb[0].mxu0
    %v2376 = vadd.f32 %v2298, %v2375
    %2377 = vdwg.mxu0
    %v2378 = vld [vmem:[#allocation9] sm:$0xff]
    %v2379 = vld [vmem:[#allocation9 + $0x8] sm:$0xff]
    %v2380 = vld [vmem:[#allocation9 + $0x10] sm:$0xff]
    %v2381 = vld [vmem:[#allocation9 + $0x18] sm:$0xff]
    %v2382 = vld [vmem:[#allocation9 + $0x20] sm:$0xff]
    %v2383 = vld [vmem:[#allocation9 + $0x28] sm:$0xff]
    %v2384 = vld [vmem:[#allocation9 + $0x30] sm:$0xff]
    %v2385 = vld [vmem:[#allocation9 + $0x38] sm:$0xff]
    %v2386 = vld [vmem:[#allocation9 + $0x40] sm:$0xff]
    %v2387 = vld [vmem:[#allocation9 + $0x48] sm:$0xff]
    %v2388 = vld [vmem:[#allocation9 + $0x50] sm:$0xff]
    %v2389 = vld [vmem:[#allocation9 + $0x58] sm:$0xff]
    %v2390 = vld [vmem:[#allocation9 + $0x60] sm:$0xff]
    %v2391 = vld [vmem:[#allocation9 + $0x68] sm:$0xff]
    %v2392 = vld [vmem:[#allocation9 + $0x70] sm:$0xff]
    %v2393 = vld [vmem:[#allocation9 + $0x78] sm:$0xff]
    %v2394 = vld [vmem:[#allocation9 + $0x80] sm:$0xff]
    %v2395 = vld [vmem:[#allocation9 + $0x88] sm:$0xff]
    %v2396 = vld [vmem:[#allocation9 + $0x90] sm:$0xff]
    %v2397 = vld [vmem:[#allocation9 + $0x98] sm:$0xff]
    %v2398 = vld [vmem:[#allocation9 + $0xa0] sm:$0xff]
    %v2399 = vld [vmem:[#allocation9 + $0xa8] sm:$0xff]
    %v2400 = vld [vmem:[#allocation9 + $0xb0] sm:$0xff]
    %v2401 = vld [vmem:[#allocation9 + $0xb8] sm:$0xff]
    %v2402 = vld [vmem:[#allocation9 + $0xc0] sm:$0xff]
    %v2403 = vld [vmem:[#allocation9 + $0xc8] sm:$0xff]
    %v2404 = vld [vmem:[#allocation9 + $0xd0] sm:$0xff]
    %v2405 = vld [vmem:[#allocation9 + $0xd8] sm:$0xff]
    %v2406 = vld [vmem:[#allocation9 + $0xe0] sm:$0xff]
    %v2407 = vld [vmem:[#allocation9 + $0xe8] sm:$0xff]
    %v2408 = vld [vmem:[#allocation9 + $0xf0] sm:$0xff]
    %v2409 = vld [vmem:[#allocation9 + $0xf8] sm:$0xff]
    %v2410 = vld [vmem:[#allocation9 + $0x100] sm:$0xff]
    %v2411 = vld [vmem:[#allocation9 + $0x108] sm:$0xff]
    %v2412 = vld [vmem:[#allocation9 + $0x110] sm:$0xff]
    %v2413 = vld [vmem:[#allocation9 + $0x118] sm:$0xff]
    %v2414 = vld [vmem:[#allocation9 + $0x120] sm:$0xff]
    %v2415 = vld [vmem:[#allocation9 + $0x128] sm:$0xff]
    %v2416 = vld [vmem:[#allocation9 + $0x130] sm:$0xff]
    %v2417 = vld [vmem:[#allocation9 + $0x138] sm:$0xff]
    %v2418 = vld [vmem:[#allocation9 + $0x140] sm:$0xff]
    %v2419 = vld [vmem:[#allocation9 + $0x148] sm:$0xff]
    %v2420 = vld [vmem:[#allocation9 + $0x150] sm:$0xff]
    %v2421 = vld [vmem:[#allocation9 + $0x158] sm:$0xff]
    %v2422 = vld [vmem:[#allocation9 + $0x160] sm:$0xff]
    %v2423 = vld [vmem:[#allocation9 + $0x168] sm:$0xff]
    %v2424 = vld [vmem:[#allocation9 + $0x170] sm:$0xff]
    %v2425 = vld [vmem:[#allocation9 + $0x178] sm:$0xff]
    %v2426 = vld [vmem:[#allocation9 + $0x180] sm:$0xff]
    %v2427 = vld [vmem:[#allocation9 + $0x188] sm:$0xff]
    %v2428 = vld [vmem:[#allocation9 + $0x190] sm:$0xff]
    %v2429 = vld [vmem:[#allocation9 + $0x198] sm:$0xff]
    %v2430 = vld [vmem:[#allocation9 + $0x1a0] sm:$0xff]
    %v2431 = vld [vmem:[#allocation9 + $0x1a8] sm:$0xff]
    %v2432 = vld [vmem:[#allocation9 + $0x1b0] sm:$0xff]
    %v2433 = vld [vmem:[#allocation9 + $0x1b8] sm:$0xff]
    %v2434 = vld [vmem:[#allocation9 + $0x1c0] sm:$0xff]
    %v2435 = vld [vmem:[#allocation9 + $0x1c8] sm:$0xff]
    %v2436 = vld [vmem:[#allocation9 + $0x1d0] sm:$0xff]
    %v2437 = vld [vmem:[#allocation9 + $0x1d8] sm:$0xff]
    %v2438 = vld [vmem:[#allocation9 + $0x1e0] sm:$0xff]
    %v2439 = vld [vmem:[#allocation9 + $0x1e8] sm:$0xff]
    %v2440 = vld [vmem:[#allocation9 + $0x1f0] sm:$0xff]
    %v2441 = vld [vmem:[#allocation9 + $0x1f8] sm:$0xff]
    %v2442 = vld [vmem:[#allocation9 + $0x200] sm:$0xff]
    %v2443 = vld [vmem:[#allocation9 + $0x208] sm:$0xff]
    %v2444 = vld [vmem:[#allocation9 + $0x210] sm:$0xff]
    %v2445 = vld [vmem:[#allocation9 + $0x218] sm:$0xff]
    %v2446 = vld [vmem:[#allocation9 + $0x220] sm:$0xff]
    %v2447 = vld [vmem:[#allocation9 + $0x228] sm:$0xff]
    %v2448 = vld [vmem:[#allocation9 + $0x230] sm:$0xff]
    %v2449 = vld [vmem:[#allocation9 + $0x238] sm:$0xff]
    %v2450 = vld [vmem:[#allocation9 + $0x240] sm:$0xff]
    %v2451 = vld [vmem:[#allocation9 + $0x248] sm:$0xff]
    %v2452 = vld [vmem:[#allocation9 + $0x250] sm:$0xff]
    %v2453 = vld [vmem:[#allocation9 + $0x258] sm:$0xff]
    %v2454 = vld [vmem:[#allocation9 + $0x260] sm:$0xff]
    %v2455 = vld [vmem:[#allocation9 + $0x268] sm:$0xff]
    %v2456 = vld [vmem:[#allocation9 + $0x270] sm:$0xff]
    %v2457 = vld [vmem:[#allocation9 + $0x278] sm:$0xff]
    %v2458 = vld [vmem:[#allocation9 + $0x280] sm:$0xff]
    %v2459 = vld [vmem:[#allocation9 + $0x288] sm:$0xff]
    %v2460 = vld [vmem:[#allocation9 + $0x290] sm:$0xff]
    %v2461 = vld [vmem:[#allocation9 + $0x298] sm:$0xff]
    %v2462 = vld [vmem:[#allocation9 + $0x2a0] sm:$0xff]
    %v2463 = vld [vmem:[#allocation9 + $0x2a8] sm:$0xff]
    %v2464 = vld [vmem:[#allocation9 + $0x2b0] sm:$0xff]
    %v2465 = vld [vmem:[#allocation9 + $0x2b8] sm:$0xff]
    %v2466 = vld [vmem:[#allocation9 + $0x2c0] sm:$0xff]
    %v2467 = vld [vmem:[#allocation9 + $0x2c8] sm:$0xff]
    %v2468 = vld [vmem:[#allocation9 + $0x2d0] sm:$0xff]
    %v2469 = vld [vmem:[#allocation9 + $0x2d8] sm:$0xff]
    %v2470 = vld [vmem:[#allocation9 + $0x2e0] sm:$0xff]
    %v2471 = vld [vmem:[#allocation9 + $0x2e8] sm:$0xff]
    %v2472 = vld [vmem:[#allocation9 + $0x2f0] sm:$0xff]
    %v2473 = vld [vmem:[#allocation9 + $0x2f8] sm:$0xff]
    %v2474 = vld [vmem:[#allocation9 + $0x300] sm:$0xff]
    %v2475 = vld [vmem:[#allocation9 + $0x308] sm:$0xff]
    %v2476 = vld [vmem:[#allocation9 + $0x310] sm:$0xff]
    %v2477 = vld [vmem:[#allocation9 + $0x318] sm:$0xff]
    %v2478 = vld [vmem:[#allocation9 + $0x320] sm:$0xff]
    %v2479 = vld [vmem:[#allocation9 + $0x328] sm:$0xff]
    %v2480 = vld [vmem:[#allocation9 + $0x330] sm:$0xff]
    %v2481 = vld [vmem:[#allocation9 + $0x338] sm:$0xff]
    %v2482 = vld [vmem:[#allocation9 + $0x340] sm:$0xff]
    %v2483 = vld [vmem:[#allocation9 + $0x348] sm:$0xff]
    %v2484 = vld [vmem:[#allocation9 + $0x350] sm:$0xff]
    %v2485 = vld [vmem:[#allocation9 + $0x358] sm:$0xff]
    %v2486 = vld [vmem:[#allocation9 + $0x360] sm:$0xff]
    %v2487 = vld [vmem:[#allocation9 + $0x368] sm:$0xff]
    %v2488 = vld [vmem:[#allocation9 + $0x370] sm:$0xff]
    %v2489 = vld [vmem:[#allocation9 + $0x378] sm:$0xff]
    %v2490 = vld [vmem:[#allocation9 + $0x380] sm:$0xff]
    %v2491 = vld [vmem:[#allocation9 + $0x388] sm:$0xff]
    %v2492 = vld [vmem:[#allocation9 + $0x390] sm:$0xff]
    %v2493 = vld [vmem:[#allocation9 + $0x398] sm:$0xff]
    %v2494 = vld [vmem:[#allocation9 + $0x3a0] sm:$0xff]
    %v2495 = vld [vmem:[#allocation9 + $0x3a8] sm:$0xff]
    %v2496 = vld [vmem:[#allocation9 + $0x3b0] sm:$0xff]
    %v2497 = vld [vmem:[#allocation9 + $0x3b8] sm:$0xff]
    %v2498 = vld [vmem:[#allocation9 + $0x3c0] sm:$0xff]
    %v2499 = vld [vmem:[#allocation9 + $0x3c8] sm:$0xff]
    %v2500 = vld [vmem:[#allocation9 + $0x3d0] sm:$0xff]
    %v2501 = vld [vmem:[#allocation9 + $0x3d8] sm:$0xff]
    %v2502 = vld [vmem:[#allocation9 + $0x3e0] sm:$0xff]
    %v2503 = vld [vmem:[#allocation9 + $0x3e8] sm:$0xff]
    %v2504 = vld [vmem:[#allocation9 + $0x3f0] sm:$0xff]
    %v2505 = vld [vmem:[#allocation9 + $0x3f8] sm:$0xff]
    %v2506 = vld [vmem:[%s11] sm:$0xf]
    %v2508 = vlaneseq
    %v2509 = vshrl.u32 %v2508, 7
    %v2510 = vsub.s32 0, %v2509
    %v2511 = vrot.slane %v2506, %v2510
    %v2512 = vlaneseq
    %v2513 = vshrl.u32 %v2512, 7
    %v2514 = vsub.s32 1, %v2513
    %v2515 = vrot.slane %v2506, %v2514
    %v2516 = vlaneseq
    %v2517 = vshrl.u32 %v2516, 7
    %v2518 = vsub.s32 2, %v2517
    %v2519 = vrot.slane %v2506, %v2518
    %v2520 = vlaneseq
    %v2521 = vshrl.u32 %v2520, 7
    %v2522 = vsub.s32 3, %v2521
    %v2523 = vrot.slane %v2506, %v2522
    %2528 = vmatprep.subr.mxu0 %v2379
    %2529 = vmatpush1.msra.mxu0 %v2378
    %2530 = vmatprep.subr.mxu0 %v2383
    %2531 = vmatpush1.msra.mxu0 %v2382
    %2532 = vmatprep.subr.mxu0 %v2387
    %2533 = vmatpush1.msra.mxu0 %v2386
    %2534 = vmatprep.subr.mxu0 %v2391
    %2535 = vmatpush1.msra.mxu0 %v2390
    %2536 = vmatprep.subr.mxu0 %v2395
    %2537 = vmatpush1.msra.mxu0 %v2394
    %2538 = vmatprep.subr.mxu0 %v2399
    %2539 = vmatpush1.msra.mxu0 %v2398
    %2540 = vmatprep.subr.mxu0 %v2403
    %2541 = vmatpush1.msra.mxu0 %v2402
    %2542 = vmatprep.subr.mxu0 %v2407
    %2543 = vmatpush1.msra.mxu0 %v2406
    %2544 = vmatprep.subr.mxu0 %v2411
    %2545 = vmatpush1.msra.mxu0 %v2410
    %2546 = vmatprep.subr.mxu0 %v2415
    %2547 = vmatpush1.msra.mxu0 %v2414
    %2548 = vmatprep.subr.mxu0 %v2419
    %2549 = vmatpush1.msra.mxu0 %v2418
    %2550 = vmatprep.subr.mxu0 %v2423
    %2551 = vmatpush1.msra.mxu0 %v2422
    %2552 = vmatprep.subr.mxu0 %v2427
    %2553 = vmatpush1.msra.mxu0 %v2426
    %2554 = vmatprep.subr.mxu0 %v2431
    %2555 = vmatpush1.msra.mxu0 %v2430
    %2556 = vmatprep.subr.mxu0 %v2435
    %2557 = vmatpush1.msra.mxu0 %v2434
    %2558 = vmatprep.subr.mxu0 %v2439
    %2559 = vmatpush1.msra.mxu0 %v2438
    %2560 = vmatprep.subr.mxu0 %v2443
    %2561 = vmatpush1.msra.mxu0 %v2442
    %2562 = vmatprep.subr.mxu0 %v2447
    %2563 = vmatpush1.msra.mxu0 %v2446
    %2564 = vmatprep.subr.mxu0 %v2451
    %2565 = vmatpush1.msra.mxu0 %v2450
    %2566 = vmatprep.subr.mxu0 %v2455
    %2567 = vmatpush1.msra.mxu0 %v2454
    %2568 = vmatprep.subr.mxu0 %v2459
    %2569 = vmatpush1.msra.mxu0 %v2458
    %2570 = vmatprep.subr.mxu0 %v2463
    %2571 = vmatpush1.msra.mxu0 %v2462
    %2572 = vmatprep.subr.mxu0 %v2467
    %2573 = vmatpush1.msra.mxu0 %v2466
    %2574 = vmatprep.subr.mxu0 %v2471
    %2575 = vmatpush1.msra.mxu0 %v2470
    %2576 = vmatprep.subr.mxu0 %v2475
    %2577 = vmatpush1.msra.mxu0 %v2474
    %2578 = vmatprep.subr.mxu0 %v2479
    %2579 = vmatpush1.msra.mxu0 %v2478
    %2580 = vmatprep.subr.mxu0 %v2483
    %2581 = vmatpush1.msra.mxu0 %v2482
    %2582 = vmatprep.subr.mxu0 %v2487
    %2583 = vmatpush1.msra.mxu0 %v2486
    %2584 = vmatprep.subr.mxu0 %v2491
    %2585 = vmatpush1.msra.mxu0 %v2490
    %2586 = vmatprep.subr.mxu0 %v2495
    %2587 = vmatpush1.msra.mxu0 %v2494
    %2588 = vmatprep.subr.mxu0 %v2499
    %2589 = vmatpush1.msra.mxu0 %v2498
    %2590 = vmatprep.subr.mxu0 %v2503
    %2591 = vmatpush1.msra.mxu0 %v2502
    %2592 = vmatprep.mubr.f32.mxu0 %v178
    %2593 = vmatmul.mubr.f32.gmra.mrb[0].mxu0 %v177
    %v2594 = vpop.f32.mrb[0].mxu0
    %v2595 = vadd.f32 %v2511, %v2594
    %v2596 = vpop.f32.mrb[0].mxu0
    %v2597 = vadd.f32 %v2515, %v2596
    %2598 = vmatprep.mubr.f32.mxu0 %v180
    %2599 = vmatmul.mubr.f32.gmra.mrb[0].mxu0 %v179
    %v2600 = vpop.f32.mrb[0].mxu0
    %v2601 = vadd.f32 %v2511, %v2600
    %v2602 = vpop.f32.mrb[0].mxu0
    %v2603 = vadd.f32 %v2515, %v2602
    %2604 = vdwg.mxu0
    %2605 = vmatprep.subr.mxu0 %v2381
    %2606 = vmatpush1.msra.mxu0 %v2380
    %2607 = vmatprep.subr.mxu0 %v2385
    %2608 = vmatpush1.msra.mxu0 %v2384
    %2609 = vmatprep.subr.mxu0 %v2389
    %2610 = vmatpush1.msra.mxu0 %v2388
    %2611 = vmatprep.subr.mxu0 %v2393
    %2612 = vmatpush1.msra.mxu0 %v2392
    %2613 = vmatprep.subr.mxu0 %v2397
    %2614 = vmatpush1.msra.mxu0 %v2396
    %2615 = vmatprep.subr.mxu0 %v2401
    %2616 = vmatpush1.msra.mxu0 %v2400
    %2617 = vmatprep.subr.mxu0 %v2405
    %2618 = vmatpush1.msra.mxu0 %v2404
    %2619 = vmatprep.subr.mxu0 %v2409
    %2620 = vmatpush1.msra.mxu0 %v2408
    %2621 = vmatprep.subr.mxu0 %v2413
    %2622 = vmatpush1.msra.mxu0 %v2412
    %2623 = vmatprep.subr.mxu0 %v2417
    %2624 = vmatpush1.msra.mxu0 %v2416
    %2625 = vmatprep.subr.mxu0 %v2421
    %2626 = vmatpush1.msra.mxu0 %v2420
    %2627 = vmatprep.subr.mxu0 %v2425
    %2628 = vmatpush1.msra.mxu0 %v2424
    %2629 = vmatprep.subr.mxu0 %v2429
    %2630 = vmatpush1.msra.mxu0 %v2428
    %2631 = vmatprep.subr.mxu0 %v2433
    %2632 = vmatpush1.msra.mxu0 %v2432
    %2633 = vmatprep.subr.mxu0 %v2437
    %2634 = vmatpush1.msra.mxu0 %v2436
    %2635 = vmatprep.subr.mxu0 %v2441
    %2636 = vmatpush1.msra.mxu0 %v2440
    %2637 = vmatprep.subr.mxu0 %v2445
    %2638 = vmatpush1.msra.mxu0 %v2444
    %2639 = vmatprep.subr.mxu0 %v2449
    %2640 = vmatpush1.msra.mxu0 %v2448
    %2641 = vmatprep.subr.mxu0 %v2453
    %2642 = vmatpush1.msra.mxu0 %v2452
    %2643 = vmatprep.subr.mxu0 %v2457
    %2644 = vmatpush1.msra.mxu0 %v2456
    %2645 = vmatprep.subr.mxu0 %v2461
    %2646 = vmatpush1.msra.mxu0 %v2460
    %2647 = vmatprep.subr.mxu0 %v2465
    %2648 = vmatpush1.msra.mxu0 %v2464
    %2649 = vmatprep.subr.mxu0 %v2469
    %2650 = vmatpush1.msra.mxu0 %v2468
    %2651 = vmatprep.subr.mxu0 %v2473
    %2652 = vmatpush1.msra.mxu0 %v2472
    %2653 = vmatprep.subr.mxu0 %v2477
    %2654 = vmatpush1.msra.mxu0 %v2476
    %2655 = vmatprep.subr.mxu0 %v2481
    %2656 = vmatpush1.msra.mxu0 %v2480
    %2657 = vmatprep.subr.mxu0 %v2485
    %2658 = vmatpush1.msra.mxu0 %v2484
    %2659 = vmatprep.subr.mxu0 %v2489
    %2660 = vmatpush1.msra.mxu0 %v2488
    %2661 = vmatprep.subr.mxu0 %v2493
    %2662 = vmatpush1.msra.mxu0 %v2492
    %2663 = vmatprep.subr.mxu0 %v2497
    %2664 = vmatpush1.msra.mxu0 %v2496
    %2665 = vmatprep.subr.mxu0 %v2501
    %2666 = vmatpush1.msra.mxu0 %v2500
    %2667 = vmatprep.subr.mxu0 %v2505
    %2668 = vmatpush1.msra.mxu0 %v2504
    %2669 = vmatprep.mubr.f32.mxu0 %v178
    %2670 = vmatmul.mubr.f32.gmra.mrb[0].mxu0 %v177
    %v2671 = vpop.f32.mrb[0].mxu0
    %v2672 = vadd.f32 %v2519, %v2671
    %v2673 = vpop.f32.mrb[0].mxu0
    %v2674 = vadd.f32 %v2523, %v2673
    %2675 = vmatprep.mubr.f32.mxu0 %v180
    %2676 = vmatmul.mubr.f32.gmra.mrb[0].mxu0 %v179
    %v2677 = vpop.f32.mrb[0].mxu0
    %v2678 = vadd.f32 %v2519, %v2677
    %v2679 = vpop.f32.mrb[0].mxu0
    %v2680 = vadd.f32 %v2523, %v2679
    %2681 = vdwg.mxu0
    %v2683 = vsel %vm652, %v2368, 0
    %v2686 = vsel %vm652, %v2595, 0
    %2688 = vmatprep.subr.mxu0 0.0
    %2689 = vmatpush1.xpose.msra.mxu0 %v2686
    %2690 = vmatprep.subr.mxu0 0.0
    %2691 = vmatpush1.xpose.msra.mxu0 0.0
    %2692 = vmatprep.subr.mxu0 0.0
    %2693 = vmatpush1.xpose.msra.mxu0 0.0
    %2694 = vmatprep.subr.mxu0 0.0
    %2695 = vmatpush1.xpose.msra.mxu0 0.0
    %2696 = vmatprep.subr.mxu0 0.0
    %2697 = vmatpush1.xpose.msra.mxu0 0.0
    %2698 = vmatprep.subr.mxu0 0.0
    %2699 = vmatpush1.xpose.msra.mxu0 0.0
    %2700 = vmatprep.subr.mxu0 0.0
    %2701 = vmatpush1.xpose.msra.mxu0 0.0
    %2702 = vmatprep.subr.mxu0 0.0
    %2703 = vmatpush1.xpose.msra.mxu0 0.0
    %2704 = vmatprep.subr.mxu0 0.0
    %2705 = vmatpush1.xpose.msra.mxu0 0.0
    %2706 = vmatprep.subr.mxu0 0.0
    %2707 = vmatpush1.xpose.msra.mxu0 0.0
    %2708 = vmatprep.subr.mxu0 0.0
    %2709 = vmatpush1.xpose.msra.mxu0 0.0
    %2710 = vmatprep.subr.mxu0 0.0
    %2711 = vmatpush1.xpose.msra.mxu0 0.0
    %2712 = vmatprep.subr.mxu0 0.0
    %2713 = vmatpush1.xpose.msra.mxu0 0.0
    %2714 = vmatprep.subr.mxu0 0.0
    %2715 = vmatpush1.xpose.msra.mxu0 0.0
    %2716 = vmatprep.subr.mxu0 0.0
    %2717 = vmatpush1.xpose.msra.mxu0 0.0
    %2718 = vmatprep.subr.mxu0 0.0
    %2719 = vmatpush1.xpose.msra.mxu0 0.0
    %2720 = vmatprep.subr.mxu0 0.0
    %2721 = vmatpush1.xpose.msra.mxu0 0.0
    %2722 = vmatprep.subr.mxu0 0.0
    %2723 = vmatpush1.xpose.msra.mxu0 0.0
    %2724 = vmatprep.subr.mxu0 0.0
    %2725 = vmatpush1.xpose.msra.mxu0 0.0
    %2726 = vmatprep.subr.mxu0 0.0
    %2727 = vmatpush1.xpose.msra.mxu0 0.0
    %2728 = vmatprep.subr.mxu0 0.0
    %2729 = vmatpush1.xpose.msra.mxu0 0.0
    %2730 = vmatprep.subr.mxu0 0.0
    %2731 = vmatpush1.xpose.msra.mxu0 0.0
    %2732 = vmatprep.subr.mxu0 0.0
    %2733 = vmatpush1.xpose.msra.mxu0 0.0
    %2734 = vmatprep.subr.mxu0 0.0
    %2735 = vmatpush1.xpose.msra.mxu0 0.0
    %2736 = vmatprep.subr.mxu0 0.0
    %2737 = vmatpush1.xpose.msra.mxu0 0.0
    %2738 = vmatprep.subr.mxu0 0.0
    %2739 = vmatpush1.xpose.msra.mxu0 0.0
    %2740 = vmatprep.subr.mxu0 0.0
    %2741 = vmatpush1.xpose.msra.mxu0 0.0
    %2742 = vmatprep.subr.mxu0 0.0
    %2743 = vmatpush1.xpose.msra.mxu0 0.0
    %2744 = vmatprep.subr.mxu0 0.0
    %2745 = vmatpush1.xpose.msra.mxu0 0.0
    %2746 = vmatprep.subr.mxu0 0.0
    %2747 = vmatpush1.xpose.msra.mxu0 0.0
    %2748 = vmatprep.subr.mxu0 0.0
    %2749 = vmatpush1.xpose.msra.mxu0 0.0
    %2750 = vmatprep.subr.mxu0 0.0
    %2751 = vmatpush1.xpose.msra.mxu0 0.0
    %2752 = vmatprep.mubr.f32.mxu0 0.0
    %2753 = vmatmul.mubr.f32.gmra.mrb[0].mxu0 %v2683
    %v2754 = vpop.f32.mrb[0].mxu0
    %v2755 = vadd.f32 0.0, %v2754
    %v2756 = vpop.f32.mrb[0].mxu0
    %2757 = vdwg.mxu0
    %v2758 = vmul.f32 %v2755, 0.088388346
    %v2759 = vadd.f32 %v2758, %v189
    %v2760 = vsel %vm731, %v2759, -inf
    %2761 = vmax.xlane.f32.xlu0 %v2760
    %v2762 = vpop.xlane.xlu0 %2761
    %v2763 = vsub.f32 %v2759, %v2762
    %v2764 = vmul.f32 %v2763, 1.442695
    %v2765 = vpow.pop %v2764
    %v2766 = vsel %vm731, %v2765, 0.0
    %2767 = vadd.xlane.f32.xlu0 %v2766
    %v2768 = vpop.xlane.xlu0 %2767
    %v2769 = vrcp.pop %v2768
    %v2770 = vmul.f32 %v2765, %v2769
    %v2772 = vsel %vm731, %v2770, 0
    %2774 = vmatprep.subr.mxu0 0.0
    %2775 = vmatpush1.msra.mxu0 %v2672
    %2776 = vmatprep.subr.mxu0 0.0
    %2777 = vmatpush1.msra.mxu0 0.0
    %2778 = vmatprep.subr.mxu0 0.0
    %2779 = vmatpush1.msra.mxu0 0.0
    %2780 = vmatprep.subr.mxu0 0.0
    %2781 = vmatpush1.msra.mxu0 0.0
    %2782 = vmatprep.subr.mxu0 0.0
    %2783 = vmatpush1.msra.mxu0 0.0
    %2784 = vmatprep.subr.mxu0 0.0
    %2785 = vmatpush1.msra.mxu0 0.0
    %2786 = vmatprep.subr.mxu0 0.0
    %2787 = vmatpush1.msra.mxu0 0.0
    %2788 = vmatprep.subr.mxu0 0.0
    %2789 = vmatpush1.msra.mxu0 0.0
    %2790 = vmatprep.subr.mxu0 0.0
    %2791 = vmatpush1.msra.mxu0 0.0
    %2792 = vmatprep.subr.mxu0 0.0
    %2793 = vmatpush1.msra.mxu0 0.0
    %2794 = vmatprep.subr.mxu0 0.0
    %2795 = vmatpush1.msra.mxu0 0.0
    %2796 = vmatprep.subr.mxu0 0.0
    %2797 = vmatpush1.msra.mxu0 0.0
    %2798 = vmatprep.subr.mxu0 0.0
    %2799 = vmatpush1.msra.mxu0 0.0
    %2800 = vmatprep.subr.mxu0 0.0
    %2801 = vmatpush1.msra.mxu0 0.0
    %2802 = vmatprep.subr.mxu0 0.0
    %2803 = vmatpush1.msra.mxu0 0.0
    %2804 = vmatprep.subr.mxu0 0.0
    %2805 = vmatpush1.msra.mxu0 0.0
    %2806 = vmatprep.subr.mxu0 0.0
    %2807 = vmatpush1.msra.mxu0 0.0
    %2808 = vmatprep.subr.mxu0 0.0
    %2809 = vmatpush1.msra.mxu0 0.0
    %2810 = vmatprep.subr.mxu0 0.0
    %2811 = vmatpush1.msra.mxu0 0.0
    %2812 = vmatprep.subr.mxu0 0.0
    %2813 = vmatpush1.msra.mxu0 0.0
    %2814 = vmatprep.subr.mxu0 0.0
    %2815 = vmatpush1.msra.mxu0 0.0
    %2816 = vmatprep.subr.mxu0 0.0
    %2817 = vmatpush1.msra.mxu0 0.0
    %2818 = vmatprep.subr.mxu0 0.0
    %2819 = vmatpush1.msra.mxu0 0.0
    %2820 = vmatprep.subr.mxu0 0.0
    %2821 = vmatpush1.msra.mxu0 0.0
    %2822 = vmatprep.subr.mxu0 0.0
    %2823 = vmatpush1.msra.mxu0 0.0
    %2824 = vmatprep.subr.mxu0 0.0
    %2825 = vmatpush1.msra.mxu0 0.0
    %2826 = vmatprep.subr.mxu0 0.0
    %2827 = vmatpush1.msra.mxu0 0.0
    %2828 = vmatprep.subr.mxu0 0.0
    %2829 = vmatpush1.msra.mxu0 0.0
    %2830 = vmatprep.subr.mxu0 0.0
    %2831 = vmatpush1.msra.mxu0 0.0
    %2832 = vmatprep.subr.mxu0 0.0
    %2833 = vmatpush1.msra.mxu0 0.0
    %2834 = vmatprep.subr.mxu0 0.0
    %2835 = vmatpush1.msra.mxu0 0.0
    %2836 = vmatprep.subr.mxu0 0.0
    %2837 = vmatpush1.msra.mxu0 0.0
    %2838 = vmatprep.mubr.f32.mxu0 0.0
    %2839 = vmatmul.mubr.f32.gmra.mrb[0].mxu0 %v2772
    %v2840 = vpop.f32.mrb[0].mxu0
    %v2841 = vadd.f32 0.0, %v2840
    %v2842 = vpop.f32.mrb[0].mxu0
    %2843 = vdwg.mxu0
    %2844 = vst.msk [vmem:[#allocation2] sm:$0xff] %vm652, %v2841
    %2845 = vrot.lane.b32.xlu0 %v2368, 64
    %v2846 = vpop.permute.xlu0 %2845
    %2847 = vrot.lane.b32.xlu0 %v2595, 64
    %v2848 = vpop.permute.xlu0 %2847
    %v2849 = vsel %vm652, %v2846, 0
    %v2851 = vsel %vm652, %v2848, 0
    %2853 = vmatprep.subr.mxu0 0.0
    %2854 = vmatpush1.xpose.msra.mxu0 %v2851
    %2855 = vmatprep.subr.mxu0 0.0
    %2856 = vmatpush1.xpose.msra.mxu0 0.0
    %2857 = vmatprep.subr.mxu0 0.0
    %2858 = vmatpush1.xpose.msra.mxu0 0.0
    %2859 = vmatprep.subr.mxu0 0.0
    %2860 = vmatpush1.xpose.msra.mxu0 0.0
    %2861 = vmatprep.subr.mxu0 0.0
    %2862 = vmatpush1.xpose.msra.mxu0 0.0
    %2863 = vmatprep.subr.mxu0 0.0
    %2864 = vmatpush1.xpose.msra.mxu0 0.0
    %2865 = vmatprep.subr.mxu0 0.0
    %2866 = vmatpush1.xpose.msra.mxu0 0.0
    %2867 = vmatprep.subr.mxu0 0.0
    %2868 = vmatpush1.xpose.msra.mxu0 0.0
    %2869 = vmatprep.subr.mxu0 0.0
    %2870 = vmatpush1.xpose.msra.mxu0 0.0
    %2871 = vmatprep.subr.mxu0 0.0
    %2872 = vmatpush1.xpose.msra.mxu0 0.0
    %2873 = vmatprep.subr.mxu0 0.0
    %2874 = vmatpush1.xpose.msra.mxu0 0.0
    %2875 = vmatprep.subr.mxu0 0.0
    %2876 = vmatpush1.xpose.msra.mxu0 0.0
    %2877 = vmatprep.subr.mxu0 0.0
    %2878 = vmatpush1.xpose.msra.mxu0 0.0
    %2879 = vmatprep.subr.mxu0 0.0
    %2880 = vmatpush1.xpose.msra.mxu0 0.0
    %2881 = vmatprep.subr.mxu0 0.0
    %2882 = vmatpush1.xpose.msra.mxu0 0.0
    %2883 = vmatprep.subr.mxu0 0.0
    %2884 = vmatpush1.xpose.msra.mxu0 0.0
    %2885 = vmatprep.subr.mxu0 0.0
    %2886 = vmatpush1.xpose.msra.mxu0 0.0
    %2887 = vmatprep.subr.mxu0 0.0
    %2888 = vmatpush1.xpose.msra.mxu0 0.0
    %2889 = vmatprep.subr.mxu0 0.0
    %2890 = vmatpush1.xpose.msra.mxu0 0.0
    %2891 = vmatprep.subr.mxu0 0.0
    %2892 = vmatpush1.xpose.msra.mxu0 0.0
    %2893 = vmatprep.subr.mxu0 0.0
    %2894 = vmatpush1.xpose.msra.mxu0 0.0
    %2895 = vmatprep.subr.mxu0 0.0
    %2896 = vmatpush1.xpose.msra.mxu0 0.0
    %2897 = vmatprep.subr.mxu0 0.0
    %2898 = vmatpush1.xpose.msra.mxu0 0.0
    %2899 = vmatprep.subr.mxu0 0.0
    %2900 = vmatpush1.xpose.msra.mxu0 0.0
    %2901 = vmatprep.subr.mxu0 0.0
    %2902 = vmatpush1.xpose.msra.mxu0 0.0
    %2903 = vmatprep.subr.mxu0 0.0
    %2904 = vmatpush1.xpose.msra.mxu0 0.0
    %2905 = vmatprep.subr.mxu0 0.0
    %2906 = vmatpush1.xpose.msra.mxu0 0.0
    %2907 = vmatprep.subr.mxu0 0.0
    %2908 = vmatpush1.xpose.msra.mxu0 0.0
    %2909 = vmatprep.subr.mxu0 0.0
    %2910 = vmatpush1.xpose.msra.mxu0 0.0
    %2911 = vmatprep.subr.mxu0 0.0
    %2912 = vmatpush1.xpose.msra.mxu0 0.0
    %2913 = vmatprep.subr.mxu0 0.0
    %2914 = vmatpush1.xpose.msra.mxu0 0.0
    %2915 = vmatprep.subr.mxu0 0.0
    %2916 = vmatpush1.xpose.msra.mxu0 0.0
    %2917 = vmatprep.mubr.f32.mxu0 0.0
    %2918 = vmatmul.mubr.f32.gmra.mrb[0].mxu0 %v2849
    %v2919 = vpop.f32.mrb[0].mxu0
    %v2920 = vadd.f32 0.0, %v2919
    %v2921 = vpop.f32.mrb[0].mxu0
    %2922 = vdwg.mxu0
    %v2923 = vmul.f32 %v2920, 0.088388346
    %v2924 = vadd.f32 %v2923, %v190
    %v2925 = vsel %vm731, %v2924, -inf
    %2926 = vmax.xlane.f32.xlu0 %v2925
    %v2927 = vpop.xlane.xlu0 %2926
    %v2928 = vsub.f32 %v2924, %v2927
    %v2929 = vmul.f32 %v2928, 1.442695
    %v2930 = vpow.pop %v2929
    %v2931 = vsel %vm731, %v2930, 0.0
    %2932 = vadd.xlane.f32.xlu0 %v2931
    %v2933 = vpop.xlane.xlu0 %2932
    %v2934 = vrcp.pop %v2933
    %v2935 = vmul.f32 %v2930, %v2934
    %2937 = vrot.lane.b32.xlu0 %v2672, 64
    %v2938 = vpop.permute.xlu0 %2937
    %v2941 = vsel %vm731, %v2935, 0
    %2943 = vmatprep.subr.mxu0 0.0
    %2944 = vmatpush1.msra.mxu0 %v2938
    %2945 = vmatprep.subr.mxu0 0.0
    %2946 = vmatpush1.msra.mxu0 0.0
    %2947 = vmatprep.subr.mxu0 0.0
    %2948 = vmatpush1.msra.mxu0 0.0
    %2949 = vmatprep.subr.mxu0 0.0
    %2950 = vmatpush1.msra.mxu0 0.0
    %2951 = vmatprep.subr.mxu0 0.0
    %2952 = vmatpush1.msra.mxu0 0.0
    %2953 = vmatprep.subr.mxu0 0.0
    %2954 = vmatpush1.msra.mxu0 0.0
    %2955 = vmatprep.subr.mxu0 0.0
    %2956 = vmatpush1.msra.mxu0 0.0
    %2957 = vmatprep.subr.mxu0 0.0
    %2958 = vmatpush1.msra.mxu0 0.0
    %2959 = vmatprep.subr.mxu0 0.0
    %2960 = vmatpush1.msra.mxu0 0.0
    %2961 = vmatprep.subr.mxu0 0.0
    %2962 = vmatpush1.msra.mxu0 0.0
    %2963 = vmatprep.subr.mxu0 0.0
    %2964 = vmatpush1.msra.mxu0 0.0
    %2965 = vmatprep.subr.mxu0 0.0
    %2966 = vmatpush1.msra.mxu0 0.0
    %2967 = vmatprep.subr.mxu0 0.0
    %2968 = vmatpush1.msra.mxu0 0.0
    %2969 = vmatprep.subr.mxu0 0.0
    %2970 = vmatpush1.msra.mxu0 0.0
    %2971 = vmatprep.subr.mxu0 0.0
    %2972 = vmatpush1.msra.mxu0 0.0
    %2973 = vmatprep.subr.mxu0 0.0
    %2974 = vmatpush1.msra.mxu0 0.0
    %2975 = vmatprep.subr.mxu0 0.0
    %2976 = vmatpush1.msra.mxu0 0.0
    %2977 = vmatprep.subr.mxu0 0.0
    %2978 = vmatpush1.msra.mxu0 0.0
    %2979 = vmatprep.subr.mxu0 0.0
    %2980 = vmatpush1.msra.mxu0 0.0
    %2981 = vmatprep.subr.mxu0 0.0
    %2982 = vmatpush1.msra.mxu0 0.0
    %2983 = vmatprep.subr.mxu0 0.0
    %2984 = vmatpush1.msra.mxu0 0.0
    %2985 = vmatprep.subr.mxu0 0.0
    %2986 = vmatpush1.msra.mxu0 0.0
    %2987 = vmatprep.subr.mxu0 0.0
    %2988 = vmatpush1.msra.mxu0 0.0
    %2989 = vmatprep.subr.mxu0 0.0
    %2990 = vmatpush1.msra.mxu0 0.0
    %2991 = vmatprep.subr.mxu0 0.0
    %2992 = vmatpush1.msra.mxu0 0.0
    %2993 = vmatprep.subr.mxu0 0.0
    %2994 = vmatpush1.msra.mxu0 0.0
    %2995 = vmatprep.subr.mxu0 0.0
    %2996 = vmatpush1.msra.mxu0 0.0
    %2997 = vmatprep.subr.mxu0 0.0
    %2998 = vmatpush1.msra.mxu0 0.0
    %2999 = vmatprep.subr.mxu0 0.0
    %3000 = vmatpush1.msra.mxu0 0.0
    %3001 = vmatprep.subr.mxu0 0.0
    %3002 = vmatpush1.msra.mxu0 0.0
    %3003 = vmatprep.subr.mxu0 0.0
    %3004 = vmatpush1.msra.mxu0 0.0
    %3005 = vmatprep.subr.mxu0 0.0
    %3006 = vmatpush1.msra.mxu0 0.0
    %3007 = vmatprep.mubr.f32.mxu0 0.0
    %3008 = vmatmul.mubr.f32.gmra.mrb[0].mxu0 %v2941
    %v3009 = vpop.f32.mrb[0].mxu0
    %v3010 = vadd.f32 0.0, %v3009
    %v3011 = vpop.f32.mrb[0].mxu0
    %3012 = vdwg.mxu0
    %3014 = vrot.lane.b32.xlu0 %v3010, 64
    %v3015 = vpop.permute.xlu0 %3014
    %3017 = vst.msk [vmem:[#allocation2] sm:$0xff] %vm989, %v3015
    %v3019 = vsel %vm652, %v2370, 0
    %v3022 = vsel %vm652, %v2597, 0
    %3024 = vmatprep.subr.mxu0 0.0
    %3025 = vmatpush1.xpose.msra.mxu0 %v3022
    %3026 = vmatprep.subr.mxu0 0.0
    %3027 = vmatpush1.xpose.msra.mxu0 0.0
    %3028 = vmatprep.subr.mxu0 0.0
    %3029 = vmatpush1.xpose.msra.mxu0 0.0
    %3030 = vmatprep.subr.mxu0 0.0
    %3031 = vmatpush1.xpose.msra.mxu0 0.0
    %3032 = vmatprep.subr.mxu0 0.0
    %3033 = vmatpush1.xpose.msra.mxu0 0.0
    %3034 = vmatprep.subr.mxu0 0.0
    %3035 = vmatpush1.xpose.msra.mxu0 0.0
    %3036 = vmatprep.subr.mxu0 0.0
    %3037 = vmatpush1.xpose.msra.mxu0 0.0
    %3038 = vmatprep.subr.mxu0 0.0
    %3039 = vmatpush1.xpose.msra.mxu0 0.0
    %3040 = vmatprep.subr.mxu0 0.0
    %3041 = vmatpush1.xpose.msra.mxu0 0.0
    %3042 = vmatprep.subr.mxu0 0.0
    %3043 = vmatpush1.xpose.msra.mxu0 0.0
    %3044 = vmatprep.subr.mxu0 0.0
    %3045 = vmatpush1.xpose.msra.mxu0 0.0
    %3046 = vmatprep.subr.mxu0 0.0
    %3047 = vmatpush1.xpose.msra.mxu0 0.0
    %3048 = vmatprep.subr.mxu0 0.0
    %3049 = vmatpush1.xpose.msra.mxu0 0.0
    %3050 = vmatprep.subr.mxu0 0.0
    %3051 = vmatpush1.xpose.msra.mxu0 0.0
    %3052 = vmatprep.subr.mxu0 0.0
    %3053 = vmatpush1.xpose.msra.mxu0 0.0
    %3054 = vmatprep.subr.mxu0 0.0
    %3055 = vmatpush1.xpose.msra.mxu0 0.0
    %3056 = vmatprep.subr.mxu0 0.0
    %3057 = vmatpush1.xpose.msra.mxu0 0.0
    %3058 = vmatprep.subr.mxu0 0.0
    %3059 = vmatpush1.xpose.msra.mxu0 0.0
    %3060 = vmatprep.subr.mxu0 0.0
    %3061 = vmatpush1.xpose.msra.mxu0 0.0
    %3062 = vmatprep.subr.mxu0 0.0
    %3063 = vmatpush1.xpose.msra.mxu0 0.0
    %3064 = vmatprep.subr.mxu0 0.0
    %3065 = vmatpush1.xpose.msra.mxu0 0.0
    %3066 = vmatprep.subr.mxu0 0.0
    %3067 = vmatpush1.xpose.msra.mxu0 0.0
    %3068 = vmatprep.subr.mxu0 0.0
    %3069 = vmatpush1.xpose.msra.mxu0 0.0
    %3070 = vmatprep.subr.mxu0 0.0
    %3071 = vmatpush1.xpose.msra.mxu0 0.0
    %3072 = vmatprep.subr.mxu0 0.0
    %3073 = vmatpush1.xpose.msra.mxu0 0.0
    %3074 = vmatprep.subr.mxu0 0.0
    %3075 = vmatpush1.xpose.msra.mxu0 0.0
    %3076 = vmatprep.subr.mxu0 0.0
    %3077 = vmatpush1.xpose.msra.mxu0 0.0
    %3078 = vmatprep.subr.mxu0 0.0
    %3079 = vmatpush1.xpose.msra.mxu0 0.0
    %3080 = vmatprep.subr.mxu0 0.0
    %3081 = vmatpush1.xpose.msra.mxu0 0.0
    %3082 = vmatprep.subr.mxu0 0.0
    %3083 = vmatpush1.xpose.msra.mxu0 0.0
    %3084 = vmatprep.subr.mxu0 0.0
    %3085 = vmatpush1.xpose.msra.mxu0 0.0
    %3086 = vmatprep.subr.mxu0 0.0
    %3087 = vmatpush1.xpose.msra.mxu0 0.0
    %3088 = vmatprep.mubr.f32.mxu0 0.0
    %3089 = vmatmul.mubr.f32.gmra.mrb[0].mxu0 %v3019
    %v3090 = vpop.f32.mrb[0].mxu0
    %v3091 = vadd.f32 0.0, %v3090
    %v3092 = vpop.f32.mrb[0].mxu0
    %3093 = vdwg.mxu0
    %v3094 = vmul.f32 %v3091, 0.088388346
    %v3095 = vadd.f32 %v3094, %v191
    %v3096 = vsel %vm731, %v3095, -inf
    %3097 = vmax.xlane.f32.xlu0 %v3096
    %v3098 = vpop.xlane.xlu0 %3097
    %v3099 = vsub.f32 %v3095, %v3098
    %v3100 = vmul.f32 %v3099, 1.442695
    %v3101 = vpow.pop %v3100
    %v3102 = vsel %vm731, %v3101, 0.0
    %3103 = vadd.xlane.f32.xlu0 %v3102
    %v3104 = vpop.xlane.xlu0 %3103
    %v3105 = vrcp.pop %v3104
    %v3106 = vmul.f32 %v3101, %v3105
    %v3108 = vsel %vm731, %v3106, 0
    %3110 = vmatprep.subr.mxu0 0.0
    %3111 = vmatpush1.msra.mxu0 %v2674
    %3112 = vmatprep.subr.mxu0 0.0
    %3113 = vmatpush1.msra.mxu0 0.0
    %3114 = vmatprep.subr.mxu0 0.0
    %3115 = vmatpush1.msra.mxu0 0.0
    %3116 = vmatprep.subr.mxu0 0.0
    %3117 = vmatpush1.msra.mxu0 0.0
    %3118 = vmatprep.subr.mxu0 0.0
    %3119 = vmatpush1.msra.mxu0 0.0
    %3120 = vmatprep.subr.mxu0 0.0
    %3121 = vmatpush1.msra.mxu0 0.0
    %3122 = vmatprep.subr.mxu0 0.0
    %3123 = vmatpush1.msra.mxu0 0.0
    %3124 = vmatprep.subr.mxu0 0.0
    %3125 = vmatpush1.msra.mxu0 0.0
    %3126 = vmatprep.subr.mxu0 0.0
    %3127 = vmatpush1.msra.mxu0 0.0
    %3128 = vmatprep.subr.mxu0 0.0
    %3129 = vmatpush1.msra.mxu0 0.0
    %3130 = vmatprep.subr.mxu0 0.0
    %3131 = vmatpush1.msra.mxu0 0.0
    %3132 = vmatprep.subr.mxu0 0.0
    %3133 = vmatpush1.msra.mxu0 0.0
    %3134 = vmatprep.subr.mxu0 0.0
    %3135 = vmatpush1.msra.mxu0 0.0
    %3136 = vmatprep.subr.mxu0 0.0
    %3137 = vmatpush1.msra.mxu0 0.0
    %3138 = vmatprep.subr.mxu0 0.0
    %3139 = vmatpush1.msra.mxu0 0.0
    %3140 = vmatprep.subr.mxu0 0.0
    %3141 = vmatpush1.msra.mxu0 0.0
    %3142 = vmatprep.subr.mxu0 0.0
    %3143 = vmatpush1.msra.mxu0 0.0
    %3144 = vmatprep.subr.mxu0 0.0
    %3145 = vmatpush1.msra.mxu0 0.0
    %3146 = vmatprep.subr.mxu0 0.0
    %3147 = vmatpush1.msra.mxu0 0.0
    %3148 = vmatprep.subr.mxu0 0.0
    %3149 = vmatpush1.msra.mxu0 0.0
    %3150 = vmatprep.subr.mxu0 0.0
    %3151 = vmatpush1.msra.mxu0 0.0
    %3152 = vmatprep.subr.mxu0 0.0
    %3153 = vmatpush1.msra.mxu0 0.0
    %3154 = vmatprep.subr.mxu0 0.0
    %3155 = vmatpush1.msra.mxu0 0.0
    %3156 = vmatprep.subr.mxu0 0.0
    %3157 = vmatpush1.msra.mxu0 0.0
    %3158 = vmatprep.subr.mxu0 0.0
    %3159 = vmatpush1.msra.mxu0 0.0
    %3160 = vmatprep.subr.mxu0 0.0
    %3161 = vmatpush1.msra.mxu0 0.0
    %3162 = vmatprep.subr.mxu0 0.0
    %3163 = vmatpush1.msra.mxu0 0.0
    %3164 = vmatprep.subr.mxu0 0.0
    %3165 = vmatpush1.msra.mxu0 0.0
    %3166 = vmatprep.subr.mxu0 0.0
    %3167 = vmatpush1.msra.mxu0 0.0
    %3168 = vmatprep.subr.mxu0 0.0
    %3169 = vmatpush1.msra.mxu0 0.0
    %3170 = vmatprep.subr.mxu0 0.0
    %3171 = vmatpush1.msra.mxu0 0.0
    %3172 = vmatprep.subr.mxu0 0.0
    %3173 = vmatpush1.msra.mxu0 0.0
    %3174 = vmatprep.mubr.f32.mxu0 0.0
    %3175 = vmatmul.mubr.f32.gmra.mrb[0].mxu0 %v3108
    %v3176 = vpop.f32.mrb[0].mxu0
    %v3177 = vadd.f32 0.0, %v3176
    %v3178 = vpop.f32.mrb[0].mxu0
    %3179 = vdwg.mxu0
    %3180 = vst.msk [vmem:[#allocation2 + $0x8] sm:$0xff] %vm652, %v3177
    %3181 = vrot.lane.b32.xlu0 %v2370, 64
    %v3182 = vpop.permute.xlu0 %3181
    %3183 = vrot.lane.b32.xlu0 %v2597, 64
    %v3184 = vpop.permute.xlu0 %3183
    %v3185 = vsel %vm652, %v3182, 0
    %v3187 = vsel %vm652, %v3184, 0
    %3189 = vmatprep.subr.mxu0 0.0
    %3190 = vmatpush1.xpose.msra.mxu0 %v3187
    %3191 = vmatprep.subr.mxu0 0.0
    %3192 = vmatpush1.xpose.msra.mxu0 0.0
    %3193 = vmatprep.subr.mxu0 0.0
    %3194 = vmatpush1.xpose.msra.mxu0 0.0
    %3195 = vmatprep.subr.mxu0 0.0
    %3196 = vmatpush1.xpose.msra.mxu0 0.0
    %3197 = vmatprep.subr.mxu0 0.0
    %3198 = vmatpush1.xpose.msra.mxu0 0.0
    %3199 = vmatprep.subr.mxu0 0.0
    %3200 = vmatpush1.xpose.msra.mxu0 0.0
    %3201 = vmatprep.subr.mxu0 0.0
    %3202 = vmatpush1.xpose.msra.mxu0 0.0
    %3203 = vmatprep.subr.mxu0 0.0
    %3204 = vmatpush1.xpose.msra.mxu0 0.0
    %3205 = vmatprep.subr.mxu0 0.0
    %3206 = vmatpush1.xpose.msra.mxu0 0.0
    %3207 = vmatprep.subr.mxu0 0.0
    %3208 = vmatpush1.xpose.msra.mxu0 0.0
    %3209 = vmatprep.subr.mxu0 0.0
    %3210 = vmatpush1.xpose.msra.mxu0 0.0
    %3211 = vmatprep.subr.mxu0 0.0
    %3212 = vmatpush1.xpose.msra.mxu0 0.0
    %3213 = vmatprep.subr.mxu0 0.0
    %3214 = vmatpush1.xpose.msra.mxu0 0.0
    %3215 = vmatprep.subr.mxu0 0.0
    %3216 = vmatpush1.xpose.msra.mxu0 0.0
    %3217 = vmatprep.subr.mxu0 0.0
    %3218 = vmatpush1.xpose.msra.mxu0 0.0
    %3219 = vmatprep.subr.mxu0 0.0
    %3220 = vmatpush1.xpose.msra.mxu0 0.0
    %3221 = vmatprep.subr.mxu0 0.0
    %3222 = vmatpush1.xpose.msra.mxu0 0.0
    %3223 = vmatprep.subr.mxu0 0.0
    %3224 = vmatpush1.xpose.msra.mxu0 0.0
    %3225 = vmatprep.subr.mxu0 0.0
    %3226 = vmatpush1.xpose.msra.mxu0 0.0
    %3227 = vmatprep.subr.mxu0 0.0
    %3228 = vmatpush1.xpose.msra.mxu0 0.0
    %3229 = vmatprep.subr.mxu0 0.0
    %3230 = vmatpush1.xpose.msra.mxu0 0.0
    %3231 = vmatprep.subr.mxu0 0.0
    %3232 = vmatpush1.xpose.msra.mxu0 0.0
    %3233 = vmatprep.subr.mxu0 0.0
    %3234 = vmatpush1.xpose.msra.mxu0 0.0
    %3235 = vmatprep.subr.mxu0 0.0
    %3236 = vmatpush1.xpose.msra.mxu0 0.0
    %3237 = vmatprep.subr.mxu0 0.0
    %3238 = vmatpush1.xpose.msra.mxu0 0.0
    %3239 = vmatprep.subr.mxu0 0.0
    %3240 = vmatpush1.xpose.msra.mxu0 0.0
    %3241 = vmatprep.subr.mxu0 0.0
    %3242 = vmatpush1.xpose.msra.mxu0 0.0
    %3243 = vmatprep.subr.mxu0 0.0
    %3244 = vmatpush1.xpose.msra.mxu0 0.0
    %3245 = vmatprep.subr.mxu0 0.0
    %3246 = vmatpush1.xpose.msra.mxu0 0.0
    %3247 = vmatprep.subr.mxu0 0.0
    %3248 = vmatpush1.xpose.msra.mxu0 0.0
    %3249 = vmatprep.subr.mxu0 0.0
    %3250 = vmatpush1.xpose.msra.mxu0 0.0
    %3251 = vmatprep.subr.mxu0 0.0
    %3252 = vmatpush1.xpose.msra.mxu0 0.0
    %3253 = vmatprep.mubr.f32.mxu0 0.0
    %3254 = vmatmul.mubr.f32.gmra.mrb[0].mxu0 %v3185
    %v3255 = vpop.f32.mrb[0].mxu0
    %v3256 = vadd.f32 0.0, %v3255
    %v3257 = vpop.f32.mrb[0].mxu0
    %3258 = vdwg.mxu0
    %v3259 = vmul.f32 %v3256, 0.088388346
    %v3260 = vadd.f32 %v3259, %v192
    %v3261 = vsel %vm731, %v3260, -inf
    %3262 = vmax.xlane.f32.xlu0 %v3261
    %v3263 = vpop.xlane.xlu0 %3262
    %v3264 = vsub.f32 %v3260, %v3263
    %v3265 = vmul.f32 %v3264, 1.442695
    %v3266 = vpow.pop %v3265
    %v3267 = vsel %vm731, %v3266, 0.0
    %3268 = vadd.xlane.f32.xlu0 %v3267
    %v3269 = vpop.xlane.xlu0 %3268
    %v3270 = vrcp.pop %v3269
    %v3271 = vmul.f32 %v3266, %v3270
    %3273 = vrot.lane.b32.xlu0 %v2674, 64
    %v3274 = vpop.permute.xlu0 %3273
    %v3277 = vsel %vm731, %v3271, 0
    %3279 = vmatprep.subr.mxu0 0.0
    %3280 = vmatpush1.msra.mxu0 %v3274
    %3281 = vmatprep.subr.mxu0 0.0
    %3282 = vmatpush1.msra.mxu0 0.0
    %3283 = vmatprep.subr.mxu0 0.0
    %3284 = vmatpush1.msra.mxu0 0.0
    %3285 = vmatprep.subr.mxu0 0.0
    %3286 = vmatpush1.msra.mxu0 0.0
    %3287 = vmatprep.subr.mxu0 0.0
    %3288 = vmatpush1.msra.mxu0 0.0
    %3289 = vmatprep.subr.mxu0 0.0
    %3290 = vmatpush1.msra.mxu0 0.0
    %3291 = vmatprep.subr.mxu0 0.0
    %3292 = vmatpush1.msra.mxu0 0.0
    %3293 = vmatprep.subr.mxu0 0.0
    %3294 = vmatpush1.msra.mxu0 0.0
    %3295 = vmatprep.subr.mxu0 0.0
    %3296 = vmatpush1.msra.mxu0 0.0
    %3297 = vmatprep.subr.mxu0 0.0
    %3298 = vmatpush1.msra.mxu0 0.0
    %3299 = vmatprep.subr.mxu0 0.0
    %3300 = vmatpush1.msra.mxu0 0.0
    %3301 = vmatprep.subr.mxu0 0.0
    %3302 = vmatpush1.msra.mxu0 0.0
    %3303 = vmatprep.subr.mxu0 0.0
    %3304 = vmatpush1.msra.mxu0 0.0
    %3305 = vmatprep.subr.mxu0 0.0
    %3306 = vmatpush1.msra.mxu0 0.0
    %3307 = vmatprep.subr.mxu0 0.0
    %3308 = vmatpush1.msra.mxu0 0.0
    %3309 = vmatprep.subr.mxu0 0.0
    %3310 = vmatpush1.msra.mxu0 0.0
    %3311 = vmatprep.subr.mxu0 0.0
    %3312 = vmatpush1.msra.mxu0 0.0
    %3313 = vmatprep.subr.mxu0 0.0
    %3314 = vmatpush1.msra.mxu0 0.0
    %3315 = vmatprep.subr.mxu0 0.0
    %3316 = vmatpush1.msra.mxu0 0.0
    %3317 = vmatprep.subr.mxu0 0.0
    %3318 = vmatpush1.msra.mxu0 0.0
    %3319 = vmatprep.subr.mxu0 0.0
    %3320 = vmatpush1.msra.mxu0 0.0
    %3321 = vmatprep.subr.mxu0 0.0
    %3322 = vmatpush1.msra.mxu0 0.0
    %3323 = vmatprep.subr.mxu0 0.0
    %3324 = vmatpush1.msra.mxu0 0.0
    %3325 = vmatprep.subr.mxu0 0.0
    %3326 = vmatpush1.msra.mxu0 0.0
    %3327 = vmatprep.subr.mxu0 0.0
    %3328 = vmatpush1.msra.mxu0 0.0
    %3329 = vmatprep.subr.mxu0 0.0
    %3330 = vmatpush1.msra.mxu0 0.0
    %3331 = vmatprep.subr.mxu0 0.0
    %3332 = vmatpush1.msra.mxu0 0.0
    %3333 = vmatprep.subr.mxu0 0.0
    %3334 = vmatpush1.msra.mxu0 0.0
    %3335 = vmatprep.subr.mxu0 0.0
    %3336 = vmatpush1.msra.mxu0 0.0
    %3337 = vmatprep.subr.mxu0 0.0
    %3338 = vmatpush1.msra.mxu0 0.0
    %3339 = vmatprep.subr.mxu0 0.0
    %3340 = vmatpush1.msra.mxu0 0.0
    %3341 = vmatprep.subr.mxu0 0.0
    %3342 = vmatpush1.msra.mxu0 0.0
    %3343 = vmatprep.mubr.f32.mxu0 0.0
    %3344 = vmatmul.mubr.f32.gmra.mrb[0].mxu0 %v3277
    %v3345 = vpop.f32.mrb[0].mxu0
    %v3346 = vadd.f32 0.0, %v3345
    %v3347 = vpop.f32.mrb[0].mxu0
    %3348 = vdwg.mxu0
    %3350 = vrot.lane.b32.xlu0 %v3346, 64
    %v3351 = vpop.permute.xlu0 %3350
    %3353 = vst.msk [vmem:[#allocation2 + $0x8] sm:$0xff] %vm989, %v3351
    %v3355 = vsel %vm652, %v2374, 0
    %v3358 = vsel %vm652, %v2601, 0
    %3360 = vmatprep.subr.mxu0 0.0
    %3361 = vmatpush1.xpose.msra.mxu0 %v3358
    %3362 = vmatprep.subr.mxu0 0.0
    %3363 = vmatpush1.xpose.msra.mxu0 0.0
    %3364 = vmatprep.subr.mxu0 0.0
    %3365 = vmatpush1.xpose.msra.mxu0 0.0
    %3366 = vmatprep.subr.mxu0 0.0
    %3367 = vmatpush1.xpose.msra.mxu0 0.0
    %3368 = vmatprep.subr.mxu0 0.0
    %3369 = vmatpush1.xpose.msra.mxu0 0.0
    %3370 = vmatprep.subr.mxu0 0.0
    %3371 = vmatpush1.xpose.msra.mxu0 0.0
    %3372 = vmatprep.subr.mxu0 0.0
    %3373 = vmatpush1.xpose.msra.mxu0 0.0
    %3374 = vmatprep.subr.mxu0 0.0
    %3375 = vmatpush1.xpose.msra.mxu0 0.0
    %3376 = vmatprep.subr.mxu0 0.0
    %3377 = vmatpush1.xpose.msra.mxu0 0.0
    %3378 = vmatprep.subr.mxu0 0.0
    %3379 = vmatpush1.xpose.msra.mxu0 0.0
    %3380 = vmatprep.subr.mxu0 0.0
    %3381 = vmatpush1.xpose.msra.mxu0 0.0
    %3382 = vmatprep.subr.mxu0 0.0
    %3383 = vmatpush1.xpose.msra.mxu0 0.0
    %3384 = vmatprep.subr.mxu0 0.0
    %3385 = vmatpush1.xpose.msra.mxu0 0.0
    %3386 = vmatprep.subr.mxu0 0.0
    %3387 = vmatpush1.xpose.msra.mxu0 0.0
    %3388 = vmatprep.subr.mxu0 0.0
    %3389 = vmatpush1.xpose.msra.mxu0 0.0
    %3390 = vmatprep.subr.mxu0 0.0
    %3391 = vmatpush1.xpose.msra.mxu0 0.0
    %3392 = vmatprep.subr.mxu0 0.0
    %3393 = vmatpush1.xpose.msra.mxu0 0.0
    %3394 = vmatprep.subr.mxu0 0.0
    %3395 = vmatpush1.xpose.msra.mxu0 0.0
    %3396 = vmatprep.subr.mxu0 0.0
    %3397 = vmatpush1.xpose.msra.mxu0 0.0
    %3398 = vmatprep.subr.mxu0 0.0
    %3399 = vmatpush1.xpose.msra.mxu0 0.0
    %3400 = vmatprep.subr.mxu0 0.0
    %3401 = vmatpush1.xpose.msra.mxu0 0.0
    %3402 = vmatprep.subr.mxu0 0.0
    %3403 = vmatpush1.xpose.msra.mxu0 0.0
    %3404 = vmatprep.subr.mxu0 0.0
    %3405 = vmatpush1.xpose.msra.mxu0 0.0
    %3406 = vmatprep.subr.mxu0 0.0
    %3407 = vmatpush1.xpose.msra.mxu0 0.0
    %3408 = vmatprep.subr.mxu0 0.0
    %3409 = vmatpush1.xpose.msra.mxu0 0.0
    %3410 = vmatprep.subr.mxu0 0.0
    %3411 = vmatpush1.xpose.msra.mxu0 0.0
    %3412 = vmatprep.subr.mxu0 0.0
    %3413 = vmatpush1.xpose.msra.mxu0 0.0
    %3414 = vmatprep.subr.mxu0 0.0
    %3415 = vmatpush1.xpose.msra.mxu0 0.0
    %3416 = vmatprep.subr.mxu0 0.0
    %3417 = vmatpush1.xpose.msra.mxu0 0.0
    %3418 = vmatprep.subr.mxu0 0.0
    %3419 = vmatpush1.xpose.msra.mxu0 0.0
    %3420 = vmatprep.subr.mxu0 0.0
    %3421 = vmatpush1.xpose.msra.mxu0 0.0
    %3422 = vmatprep.subr.mxu0 0.0
    %3423 = vmatpush1.xpose.msra.mxu0 0.0
    %3424 = vmatprep.mubr.f32.mxu0 0.0
    %3425 = vmatmul.mubr.f32.gmra.mrb[0].mxu0 %v3355
    %v3426 = vpop.f32.mrb[0].mxu0
    %v3427 = vadd.f32 0.0, %v3426
    %v3428 = vpop.f32.mrb[0].mxu0
    %3429 = vdwg.mxu0
    %v3430 = vmul.f32 %v3427, 0.088388346
    %v3431 = vadd.f32 %v3430, %v193
    %v3432 = vsel %vm731, %v3431, -inf
    %3433 = vmax.xlane.f32.xlu0 %v3432
    %v3434 = vpop.xlane.xlu0 %3433
    %v3435 = vsub.f32 %v3431, %v3434
    %v3436 = vmul.f32 %v3435, 1.442695
    %v3437 = vpow.pop %v3436
    %v3438 = vsel %vm731, %v3437, 0.0
    %3439 = vadd.xlane.f32.xlu0 %v3438
    %v3440 = vpop.xlane.xlu0 %3439
    %v3441 = vrcp.pop %v3440
    %v3442 = vmul.f32 %v3437, %v3441
    %v3444 = vsel %vm731, %v3442, 0
    %3446 = vmatprep.subr.mxu0 0.0
    %3447 = vmatpush1.msra.mxu0 %v2678
    %3448 = vmatprep.subr.mxu0 0.0
    %3449 = vmatpush1.msra.mxu0 0.0
    %3450 = vmatprep.subr.mxu0 0.0
    %3451 = vmatpush1.msra.mxu0 0.0
    %3452 = vmatprep.subr.mxu0 0.0
    %3453 = vmatpush1.msra.mxu0 0.0
    %3454 = vmatprep.subr.mxu0 0.0
    %3455 = vmatpush1.msra.mxu0 0.0
    %3456 = vmatprep.subr.mxu0 0.0
    %3457 = vmatpush1.msra.mxu0 0.0
    %3458 = vmatprep.subr.mxu0 0.0
    %3459 = vmatpush1.msra.mxu0 0.0
    %3460 = vmatprep.subr.mxu0 0.0
    %3461 = vmatpush1.msra.mxu0 0.0
    %3462 = vmatprep.subr.mxu0 0.0
    %3463 = vmatpush1.msra.mxu0 0.0
    %3464 = vmatprep.subr.mxu0 0.0
    %3465 = vmatpush1.msra.mxu0 0.0
    %3466 = vmatprep.subr.mxu0 0.0
    %3467 = vmatpush1.msra.mxu0 0.0
    %3468 = vmatprep.subr.mxu0 0.0
    %3469 = vmatpush1.msra.mxu0 0.0
    %3470 = vmatprep.subr.mxu0 0.0
    %3471 = vmatpush1.msra.mxu0 0.0
    %3472 = vmatprep.subr.mxu0 0.0
    %3473 = vmatpush1.msra.mxu0 0.0
    %3474 = vmatprep.subr.mxu0 0.0
    %3475 = vmatpush1.msra.mxu0 0.0
    %3476 = vmatprep.subr.mxu0 0.0
    %3477 = vmatpush1.msra.mxu0 0.0
    %3478 = vmatprep.subr.mxu0 0.0
    %3479 = vmatpush1.msra.mxu0 0.0
    %3480 = vmatprep.subr.mxu0 0.0
    %3481 = vmatpush1.msra.mxu0 0.0
    %3482 = vmatprep.subr.mxu0 0.0
    %3483 = vmatpush1.msra.mxu0 0.0
    %3484 = vmatprep.subr.mxu0 0.0
    %3485 = vmatpush1.msra.mxu0 0.0
    %3486 = vmatprep.subr.mxu0 0.0
    %3487 = vmatpush1.msra.mxu0 0.0
    %3488 = vmatprep.subr.mxu0 0.0
    %3489 = vmatpush1.msra.mxu0 0.0
    %3490 = vmatprep.subr.mxu0 0.0
    %3491 = vmatpush1.msra.mxu0 0.0
    %3492 = vmatprep.subr.mxu0 0.0
    %3493 = vmatpush1.msra.mxu0 0.0
    %3494 = vmatprep.subr.mxu0 0.0
    %3495 = vmatpush1.msra.mxu0 0.0
    %3496 = vmatprep.subr.mxu0 0.0
    %3497 = vmatpush1.msra.mxu0 0.0
    %3498 = vmatprep.subr.mxu0 0.0
    %3499 = vmatpush1.msra.mxu0 0.0
    %3500 = vmatprep.subr.mxu0 0.0
    %3501 = vmatpush1.msra.mxu0 0.0
    %3502 = vmatprep.subr.mxu0 0.0
    %3503 = vmatpush1.msra.mxu0 0.0
    %3504 = vmatprep.subr.mxu0 0.0
    %3505 = vmatpush1.msra.mxu0 0.0
    %3506 = vmatprep.subr.mxu0 0.0
    %3507 = vmatpush1.msra.mxu0 0.0
    %3508 = vmatprep.subr.mxu0 0.0
    %3509 = vmatpush1.msra.mxu0 0.0
    %3510 = vmatprep.mubr.f32.mxu0 0.0
    %3511 = vmatmul.mubr.f32.gmra.mrb[0].mxu0 %v3444
    %v3512 = vpop.f32.mrb[0].mxu0
    %v3513 = vadd.f32 0.0, %v3512
    %v3514 = vpop.f32.mrb[0].mxu0
    %3515 = vdwg.mxu0
    %3516 = vst.msk [vmem:[#allocation2 + $0x10] sm:$0xff] %vm652, %v3513
    %3517 = vrot.lane.b32.xlu0 %v2374, 64
    %v3518 = vpop.permute.xlu0 %3517
    %3519 = vrot.lane.b32.xlu0 %v2601, 64
    %v3520 = vpop.permute.xlu0 %3519
    %v3521 = vsel %vm652, %v3518, 0
    %v3523 = vsel %vm652, %v3520, 0
    %3525 = vmatprep.subr.mxu0 0.0
    %3526 = vmatpush1.xpose.msra.mxu0 %v3523
    %3527 = vmatprep.subr.mxu0 0.0
    %3528 = vmatpush1.xpose.msra.mxu0 0.0
    %3529 = vmatprep.subr.mxu0 0.0
    %3530 = vmatpush1.xpose.msra.mxu0 0.0
    %3531 = vmatprep.subr.mxu0 0.0
    %3532 = vmatpush1.xpose.msra.mxu0 0.0
    %3533 = vmatprep.subr.mxu0 0.0
    %3534 = vmatpush1.xpose.msra.mxu0 0.0
    %3535 = vmatprep.subr.mxu0 0.0
    %3536 = vmatpush1.xpose.msra.mxu0 0.0
    %3537 = vmatprep.subr.mxu0 0.0
    %3538 = vmatpush1.xpose.msra.mxu0 0.0
    %3539 = vmatprep.subr.mxu0 0.0
    %3540 = vmatpush1.xpose.msra.mxu0 0.0
    %3541 = vmatprep.subr.mxu0 0.0
    %3542 = vmatpush1.xpose.msra.mxu0 0.0
    %3543 = vmatprep.subr.mxu0 0.0
    %3544 = vmatpush1.xpose.msra.mxu0 0.0
    %3545 = vmatprep.subr.mxu0 0.0
    %3546 = vmatpush1.xpose.msra.mxu0 0.0
    %3547 = vmatprep.subr.mxu0 0.0
    %3548 = vmatpush1.xpose.msra.mxu0 0.0
    %3549 = vmatprep.subr.mxu0 0.0
    %3550 = vmatpush1.xpose.msra.mxu0 0.0
    %3551 = vmatprep.subr.mxu0 0.0
    %3552 = vmatpush1.xpose.msra.mxu0 0.0
    %3553 = vmatprep.subr.mxu0 0.0
    %3554 = vmatpush1.xpose.msra.mxu0 0.0
    %3555 = vmatprep.subr.mxu0 0.0
    %3556 = vmatpush1.xpose.msra.mxu0 0.0
    %3557 = vmatprep.subr.mxu0 0.0
    %3558 = vmatpush1.xpose.msra.mxu0 0.0
    %3559 = vmatprep.subr.mxu0 0.0
    %3560 = vmatpush1.xpose.msra.mxu0 0.0
    %3561 = vmatprep.subr.mxu0 0.0
    %3562 = vmatpush1.xpose.msra.mxu0 0.0
    %3563 = vmatprep.subr.mxu0 0.0
    %3564 = vmatpush1.xpose.msra.mxu0 0.0
    %3565 = vmatprep.subr.mxu0 0.0
    %3566 = vmatpush1.xpose.msra.mxu0 0.0
    %3567 = vmatprep.subr.mxu0 0.0
    %3568 = vmatpush1.xpose.msra.mxu0 0.0
    %3569 = vmatprep.subr.mxu0 0.0
    %3570 = vmatpush1.xpose.msra.mxu0 0.0
    %3571 = vmatprep.subr.mxu0 0.0
    %3572 = vmatpush1.xpose.msra.mxu0 0.0
    %3573 = vmatprep.subr.mxu0 0.0
    %3574 = vmatpush1.xpose.msra.mxu0 0.0
    %3575 = vmatprep.subr.mxu0 0.0
    %3576 = vmatpush1.xpose.msra.mxu0 0.0
    %3577 = vmatprep.subr.mxu0 0.0
    %3578 = vmatpush1.xpose.msra.mxu0 0.0
    %3579 = vmatprep.subr.mxu0 0.0
    %3580 = vmatpush1.xpose.msra.mxu0 0.0
    %3581 = vmatprep.subr.mxu0 0.0
    %3582 = vmatpush1.xpose.msra.mxu0 0.0
    %3583 = vmatprep.subr.mxu0 0.0
    %3584 = vmatpush1.xpose.msra.mxu0 0.0
    %3585 = vmatprep.subr.mxu0 0.0
    %3586 = vmatpush1.xpose.msra.mxu0 0.0
    %3587 = vmatprep.subr.mxu0 0.0
    %3588 = vmatpush1.xpose.msra.mxu0 0.0
    %3589 = vmatprep.mubr.f32.mxu0 0.0
    %3590 = vmatmul.mubr.f32.gmra.mrb[0].mxu0 %v3521
    %v3591 = vpop.f32.mrb[0].mxu0
    %v3592 = vadd.f32 0.0, %v3591
    %v3593 = vpop.f32.mrb[0].mxu0
    %3594 = vdwg.mxu0
    %v3595 = vmul.f32 %v3592, 0.088388346
    %v3596 = vadd.f32 %v3595, %v194
    %v3597 = vsel %vm731, %v3596, -inf
    %3598 = vmax.xlane.f32.xlu0 %v3597
    %v3599 = vpop.xlane.xlu0 %3598
    %v3600 = vsub.f32 %v3596, %v3599
    %v3601 = vmul.f32 %v3600, 1.442695
    %v3602 = vpow.pop %v3601
    %v3603 = vsel %vm731, %v3602, 0.0
    %3604 = vadd.xlane.f32.xlu0 %v3603
    %v3605 = vpop.xlane.xlu0 %3604
    %v3606 = vrcp.pop %v3605
    %v3607 = vmul.f32 %v3602, %v3606
    %3609 = vrot.lane.b32.xlu0 %v2678, 64
    %v3610 = vpop.permute.xlu0 %3609
    %v3613 = vsel %vm731, %v3607, 0
    %3615 = vmatprep.subr.mxu0 0.0
    %3616 = vmatpush1.msra.mxu0 %v3610
    %3617 = vmatprep.subr.mxu0 0.0
    %3618 = vmatpush1.msra.mxu0 0.0
    %3619 = vmatprep.subr.mxu0 0.0
    %3620 = vmatpush1.msra.mxu0 0.0
    %3621 = vmatprep.subr.mxu0 0.0
    %3622 = vmatpush1.msra.mxu0 0.0
    %3623 = vmatprep.subr.mxu0 0.0
    %3624 = vmatpush1.msra.mxu0 0.0
    %3625 = vmatprep.subr.mxu0 0.0
    %3626 = vmatpush1.msra.mxu0 0.0
    %3627 = vmatprep.subr.mxu0 0.0
    %3628 = vmatpush1.msra.mxu0 0.0
    %3629 = vmatprep.subr.mxu0 0.0
    %3630 = vmatpush1.msra.mxu0 0.0
    %3631 = vmatprep.subr.mxu0 0.0
    %3632 = vmatpush1.msra.mxu0 0.0
    %3633 = vmatprep.subr.mxu0 0.0
    %3634 = vmatpush1.msra.mxu0 0.0
    %3635 = vmatprep.subr.mxu0 0.0
    %3636 = vmatpush1.msra.mxu0 0.0
    %3637 = vmatprep.subr.mxu0 0.0
    %3638 = vmatpush1.msra.mxu0 0.0
    %3639 = vmatprep.subr.mxu0 0.0
    %3640 = vmatpush1.msra.mxu0 0.0
    %3641 = vmatprep.subr.mxu0 0.0
    %3642 = vmatpush1.msra.mxu0 0.0
    %3643 = vmatprep.subr.mxu0 0.0
    %3644 = vmatpush1.msra.mxu0 0.0
    %3645 = vmatprep.subr.mxu0 0.0
    %3646 = vmatpush1.msra.mxu0 0.0
    %3647 = vmatprep.subr.mxu0 0.0
    %3648 = vmatpush1.msra.mxu0 0.0
    %3649 = vmatprep.subr.mxu0 0.0
    %3650 = vmatpush1.msra.mxu0 0.0
    %3651 = vmatprep.subr.mxu0 0.0
    %3652 = vmatpush1.msra.mxu0 0.0
    %3653 = vmatprep.subr.mxu0 0.0
    %3654 = vmatpush1.msra.mxu0 0.0
    %3655 = vmatprep.subr.mxu0 0.0
    %3656 = vmatpush1.msra.mxu0 0.0
    %3657 = vmatprep.subr.mxu0 0.0
    %3658 = vmatpush1.msra.mxu0 0.0
    %3659 = vmatprep.subr.mxu0 0.0
    %3660 = vmatpush1.msra.mxu0 0.0
    %3661 = vmatprep.subr.mxu0 0.0
    %3662 = vmatpush1.msra.mxu0 0.0
    %3663 = vmatprep.subr.mxu0 0.0
    %3664 = vmatpush1.msra.mxu0 0.0
    %3665 = vmatprep.subr.mxu0 0.0
    %3666 = vmatpush1.msra.mxu0 0.0
    %3667 = vmatprep.subr.mxu0 0.0
    %3668 = vmatpush1.msra.mxu0 0.0
    %3669 = vmatprep.subr.mxu0 0.0
    %3670 = vmatpush1.msra.mxu0 0.0
    %3671 = vmatprep.subr.mxu0 0.0
    %3672 = vmatpush1.msra.mxu0 0.0
    %3673 = vmatprep.subr.mxu0 0.0
    %3674 = vmatpush1.msra.mxu0 0.0
    %3675 = vmatprep.subr.mxu0 0.0
    %3676 = vmatpush1.msra.mxu0 0.0
    %3677 = vmatprep.subr.mxu0 0.0
    %3678 = vmatpush1.msra.mxu0 0.0
    %3679 = vmatprep.mubr.f32.mxu0 0.0
    %3680 = vmatmul.mubr.f32.gmra.mrb[0].mxu0 %v3613
    %v3681 = vpop.f32.mrb[0].mxu0
    %v3682 = vadd.f32 0.0, %v3681
    %v3683 = vpop.f32.mrb[0].mxu0
    %3684 = vdwg.mxu0
    %3686 = vrot.lane.b32.xlu0 %v3682, 64
    %v3687 = vpop.permute.xlu0 %3686
    %3689 = vst.msk [vmem:[#allocation2 + $0x10] sm:$0xff] %vm989, %v3687
    %v3691 = vsel %vm652, %v2376, 0
    %v3694 = vsel %vm652, %v2603, 0
    %3696 = vmatprep.subr.mxu0 0.0
    %3697 = vmatpush1.xpose.msra.mxu0 %v3694
    %3698 = vmatprep.subr.mxu0 0.0
    %3699 = vmatpush1.xpose.msra.mxu0 0.0
    %3700 = vmatprep.subr.mxu0 0.0
    %3701 = vmatpush1.xpose.msra.mxu0 0.0
    %3702 = vmatprep.subr.mxu0 0.0
    %3703 = vmatpush1.xpose.msra.mxu0 0.0
    %3704 = vmatprep.subr.mxu0 0.0
    %3705 = vmatpush1.xpose.msra.mxu0 0.0
    %3706 = vmatprep.subr.mxu0 0.0
    %3707 = vmatpush1.xpose.msra.mxu0 0.0
    %3708 = vmatprep.subr.mxu0 0.0
    %3709 = vmatpush1.xpose.msra.mxu0 0.0
    %3710 = vmatprep.subr.mxu0 0.0
    %3711 = vmatpush1.xpose.msra.mxu0 0.0
    %3712 = vmatprep.subr.mxu0 0.0
    %3713 = vmatpush1.xpose.msra.mxu0 0.0
    %3714 = vmatprep.subr.mxu0 0.0
    %3715 = vmatpush1.xpose.msra.mxu0 0.0
    %3716 = vmatprep.subr.mxu0 0.0
    %3717 = vmatpush1.xpose.msra.mxu0 0.0
    %3718 = vmatprep.subr.mxu0 0.0
    %3719 = vmatpush1.xpose.msra.mxu0 0.0
    %3720 = vmatprep.subr.mxu0 0.0
    %3721 = vmatpush1.xpose.msra.mxu0 0.0
    %3722 = vmatprep.subr.mxu0 0.0
    %3723 = vmatpush1.xpose.msra.mxu0 0.0
    %3724 = vmatprep.subr.mxu0 0.0
    %3725 = vmatpush1.xpose.msra.mxu0 0.0
    %3726 = vmatprep.subr.mxu0 0.0
    %3727 = vmatpush1.xpose.msra.mxu0 0.0
    %3728 = vmatprep.subr.mxu0 0.0
    %3729 = vmatpush1.xpose.msra.mxu0 0.0
    %3730 = vmatprep.subr.mxu0 0.0
    %3731 = vmatpush1.xpose.msra.mxu0 0.0
    %3732 = vmatprep.subr.mxu0 0.0
    %3733 = vmatpush1.xpose.msra.mxu0 0.0
    %3734 = vmatprep.subr.mxu0 0.0
    %3735 = vmatpush1.xpose.msra.mxu0 0.0
    %3736 = vmatprep.subr.mxu0 0.0
    %3737 = vmatpush1.xpose.msra.mxu0 0.0
    %3738 = vmatprep.subr.mxu0 0.0
    %3739 = vmatpush1.xpose.msra.mxu0 0.0
    %3740 = vmatprep.subr.mxu0 0.0
    %3741 = vmatpush1.xpose.msra.mxu0 0.0
    %3742 = vmatprep.subr.mxu0 0.0
    %3743 = vmatpush1.xpose.msra.mxu0 0.0
    %3744 = vmatprep.subr.mxu0 0.0
    %3745 = vmatpush1.xpose.msra.mxu0 0.0
    %3746 = vmatprep.subr.mxu0 0.0
    %3747 = vmatpush1.xpose.msra.mxu0 0.0
    %3748 = vmatprep.subr.mxu0 0.0
    %3749 = vmatpush1.xpose.msra.mxu0 0.0
    %3750 = vmatprep.subr.mxu0 0.0
    %3751 = vmatpush1.xpose.msra.mxu0 0.0
    %3752 = vmatprep.subr.mxu0 0.0
    %3753 = vmatpush1.xpose.msra.mxu0 0.0
    %3754 = vmatprep.subr.mxu0 0.0
    %3755 = vmatpush1.xpose.msra.mxu0 0.0
    %3756 = vmatprep.subr.mxu0 0.0
    %3757 = vmatpush1.xpose.msra.mxu0 0.0
    %3758 = vmatprep.subr.mxu0 0.0
    %3759 = vmatpush1.xpose.msra.mxu0 0.0
    %3760 = vmatprep.mubr.f32.mxu0 0.0
    %3761 = vmatmul.mubr.f32.gmra.mrb[0].mxu0 %v3691
    %v3762 = vpop.f32.mrb[0].mxu0
    %v3763 = vadd.f32 0.0, %v3762
    %v3764 = vpop.f32.mrb[0].mxu0
    %3765 = vdwg.mxu0
    %v3766 = vmul.f32 %v3763, 0.088388346
    %v3767 = vadd.f32 %v3766, %v195
    %v3768 = vsel %vm731, %v3767, -inf
    %3769 = vmax.xlane.f32.xlu0 %v3768
    %v3770 = vpop.xlane.xlu0 %3769
    %v3771 = vsub.f32 %v3767, %v3770
    %v3772 = vmul.f32 %v3771, 1.442695
    %v3773 = vpow.pop %v3772
    %v3774 = vsel %vm731, %v3773, 0.0
    %3775 = vadd.xlane.f32.xlu0 %v3774
    %v3776 = vpop.xlane.xlu0 %3775
    %v3777 = vrcp.pop %v3776
    %v3778 = vmul.f32 %v3773, %v3777
    %v3780 = vsel %vm731, %v3778, 0
    %3782 = vmatprep.subr.mxu0 0.0
    %3783 = vmatpush1.msra.mxu0 %v2680
    %3784 = vmatprep.subr.mxu0 0.0
    %3785 = vmatpush1.msra.mxu0 0.0
    %3786 = vmatprep.subr.mxu0 0.0
    %3787 = vmatpush1.msra.mxu0 0.0
    %3788 = vmatprep.subr.mxu0 0.0
    %3789 = vmatpush1.msra.mxu0 0.0
    %3790 = vmatprep.subr.mxu0 0.0
    %3791 = vmatpush1.msra.mxu0 0.0
    %3792 = vmatprep.subr.mxu0 0.0
    %3793 = vmatpush1.msra.mxu0 0.0
    %3794 = vmatprep.subr.mxu0 0.0
    %3795 = vmatpush1.msra.mxu0 0.0
    %3796 = vmatprep.subr.mxu0 0.0
    %3797 = vmatpush1.msra.mxu0 0.0
    %3798 = vmatprep.subr.mxu0 0.0
    %3799 = vmatpush1.msra.mxu0 0.0
    %3800 = vmatprep.subr.mxu0 0.0
    %3801 = vmatpush1.msra.mxu0 0.0
    %3802 = vmatprep.subr.mxu0 0.0
    %3803 = vmatpush1.msra.mxu0 0.0
    %3804 = vmatprep.subr.mxu0 0.0
    %3805 = vmatpush1.msra.mxu0 0.0
    %3806 = vmatprep.subr.mxu0 0.0
    %3807 = vmatpush1.msra.mxu0 0.0
    %3808 = vmatprep.subr.mxu0 0.0
    %3809 = vmatpush1.msra.mxu0 0.0
    %3810 = vmatprep.subr.mxu0 0.0
    %3811 = vmatpush1.msra.mxu0 0.0
    %3812 = vmatprep.subr.mxu0 0.0
    %3813 = vmatpush1.msra.mxu0 0.0
    %3814 = vmatprep.subr.mxu0 0.0
    %3815 = vmatpush1.msra.mxu0 0.0
    %3816 = vmatprep.subr.mxu0 0.0
    %3817 = vmatpush1.msra.mxu0 0.0
    %3818 = vmatprep.subr.mxu0 0.0
    %3819 = vmatpush1.msra.mxu0 0.0
    %3820 = vmatprep.subr.mxu0 0.0
    %3821 = vmatpush1.msra.mxu0 0.0
    %3822 = vmatprep.subr.mxu0 0.0
    %3823 = vmatpush1.msra.mxu0 0.0
    %3824 = vmatprep.subr.mxu0 0.0
    %3825 = vmatpush1.msra.mxu0 0.0
    %3826 = vmatprep.subr.mxu0 0.0
    %3827 = vmatpush1.msra.mxu0 0.0
    %3828 = vmatprep.subr.mxu0 0.0
    %3829 = vmatpush1.msra.mxu0 0.0
    %3830 = vmatprep.subr.mxu0 0.0
    %3831 = vmatpush1.msra.mxu0 0.0
    %3832 = vmatprep.subr.mxu0 0.0
    %3833 = vmatpush1.msra.mxu0 0.0
    %3834 = vmatprep.subr.mxu0 0.0
    %3835 = vmatpush1.msra.mxu0 0.0
    %3836 = vmatprep.subr.mxu0 0.0
    %3837 = vmatpush1.msra.mxu0 0.0
    %3838 = vmatprep.subr.mxu0 0.0
    %3839 = vmatpush1.msra.mxu0 0.0
    %3840 = vmatprep.subr.mxu0 0.0
    %3841 = vmatpush1.msra.mxu0 0.0
    %3842 = vmatprep.subr.mxu0 0.0
    %3843 = vmatpush1.msra.mxu0 0.0
    %3844 = vmatprep.subr.mxu0 0.0
    %3845 = vmatpush1.msra.mxu0 0.0
    %3846 = vmatprep.mubr.f32.mxu0 0.0
    %3847 = vmatmul.mubr.f32.gmra.mrb[0].mxu0 %v3780
    %v3848 = vpop.f32.mrb[0].mxu0
    %v3849 = vadd.f32 0.0, %v3848
    %v3850 = vpop.f32.mrb[0].mxu0
    %3851 = vdwg.mxu0
    %3852 = vst.msk [vmem:[#allocation2 + $0x18] sm:$0xff] %vm652, %v3849
    %3853 = vrot.lane.b32.xlu0 %v2376, 64
    %v3854 = vpop.permute.xlu0 %3853
    %3855 = vrot.lane.b32.xlu0 %v2603, 64
    %v3856 = vpop.permute.xlu0 %3855
    %v3857 = vsel %vm652, %v3854, 0
    %v3859 = vsel %vm652, %v3856, 0
    %3861 = vmatprep.subr.mxu0 0.0
    %3862 = vmatpush1.xpose.msra.mxu0 %v3859
    %3863 = vmatprep.subr.mxu0 0.0
    %3864 = vmatpush1.xpose.msra.mxu0 0.0
    %3865 = vmatprep.subr.mxu0 0.0
    %3866 = vmatpush1.xpose.msra.mxu0 0.0
    %3867 = vmatprep.subr.mxu0 0.0
    %3868 = vmatpush1.xpose.msra.mxu0 0.0
    %3869 = vmatprep.subr.mxu0 0.0
    %3870 = vmatpush1.xpose.msra.mxu0 0.0
    %3871 = vmatprep.subr.mxu0 0.0
    %3872 = vmatpush1.xpose.msra.mxu0 0.0
    %3873 = vmatprep.subr.mxu0 0.0
    %3874 = vmatpush1.xpose.msra.mxu0 0.0
    %3875 = vmatprep.subr.mxu0 0.0
    %3876 = vmatpush1.xpose.msra.mxu0 0.0
    %3877 = vmatprep.subr.mxu0 0.0
    %3878 = vmatpush1.xpose.msra.mxu0 0.0
    %3879 = vmatprep.subr.mxu0 0.0
    %3880 = vmatpush1.xpose.msra.mxu0 0.0
    %3881 = vmatprep.subr.mxu0 0.0
    %3882 = vmatpush1.xpose.msra.mxu0 0.0
    %3883 = vmatprep.subr.mxu0 0.0
    %3884 = vmatpush1.xpose.msra.mxu0 0.0
    %3885 = vmatprep.subr.mxu0 0.0
    %3886 = vmatpush1.xpose.msra.mxu0 0.0
    %3887 = vmatprep.subr.mxu0 0.0
    %3888 = vmatpush1.xpose.msra.mxu0 0.0
    %3889 = vmatprep.subr.mxu0 0.0
    %3890 = vmatpush1.xpose.msra.mxu0 0.0
    %3891 = vmatprep.subr.mxu0 0.0
    %3892 = vmatpush1.xpose.msra.mxu0 0.0
    %3893 = vmatprep.subr.mxu0 0.0
    %3894 = vmatpush1.xpose.msra.mxu0 0.0
    %3895 = vmatprep.subr.mxu0 0.0
    %3896 = vmatpush1.xpose.msra.mxu0 0.0
    %3897 = vmatprep.subr.mxu0 0.0
    %3898 = vmatpush1.xpose.msra.mxu0 0.0
    %3899 = vmatprep.subr.mxu0 0.0
    %3900 = vmatpush1.xpose.msra.mxu0 0.0
    %3901 = vmatprep.subr.mxu0 0.0
    %3902 = vmatpush1.xpose.msra.mxu0 0.0
    %3903 = vmatprep.subr.mxu0 0.0
    %3904 = vmatpush1.xpose.msra.mxu0 0.0
    %3905 = vmatprep.subr.mxu0 0.0
    %3906 = vmatpush1.xpose.msra.mxu0 0.0
    %3907 = vmatprep.subr.mxu0 0.0
    %3908 = vmatpush1.xpose.msra.mxu0 0.0
    %3909 = vmatprep.subr.mxu0 0.0
    %3910 = vmatpush1.xpose.msra.mxu0 0.0
    %3911 = vmatprep.subr.mxu0 0.0
    %3912 = vmatpush1.xpose.msra.mxu0 0.0
    %3913 = vmatprep.subr.mxu0 0.0
    %3914 = vmatpush1.xpose.msra.mxu0 0.0
    %3915 = vmatprep.subr.mxu0 0.0
    %3916 = vmatpush1.xpose.msra.mxu0 0.0
    %3917 = vmatprep.subr.mxu0 0.0
    %3918 = vmatpush1.xpose.msra.mxu0 0.0
    %3919 = vmatprep.subr.mxu0 0.0
    %3920 = vmatpush1.xpose.msra.mxu0 0.0
    %3921 = vmatprep.subr.mxu0 0.0
    %3922 = vmatpush1.xpose.msra.mxu0 0.0
    %3923 = vmatprep.subr.mxu0 0.0
    %3924 = vmatpush1.xpose.msra.mxu0 0.0
    %3925 = vmatprep.mubr.f32.mxu0 0.0
    %3926 = vmatmul.mubr.f32.gmra.mrb[0].mxu0 %v3857
    %v3927 = vpop.f32.mrb[0].mxu0
    %v3928 = vadd.f32 0.0, %v3927
    %v3929 = vpop.f32.mrb[0].mxu0
    %3930 = vdwg.mxu0
    %v3931 = vmul.f32 %v3928, 0.088388346
    %v3932 = vadd.f32 %v3931, %v196
    %v3933 = vsel %vm731, %v3932, -inf
    %3934 = vmax.xlane.f32.xlu0 %v3933
    %v3935 = vpop.xlane.xlu0 %3934
    %v3936 = vsub.f32 %v3932, %v3935
    %v3937 = vmul.f32 %v3936, 1.442695
    %v3938 = vpow.pop %v3937
    %v3939 = vsel %vm731, %v3938, 0.0
    %3940 = vadd.xlane.f32.xlu0 %v3939
    %v3941 = vpop.xlane.xlu0 %3940
    %v3942 = vrcp.pop %v3941
    %v3943 = vmul.f32 %v3938, %v3942
    %3945 = vrot.lane.b32.xlu0 %v2680, 64
    %v3946 = vpop.permute.xlu0 %3945
    %v3949 = vsel %vm731, %v3943, 0
    %3951 = vmatprep.subr.mxu0 0.0
    %3952 = vmatpush1.msra.mxu0 %v3946
    %3953 = vmatprep.subr.mxu0 0.0
    %3954 = vmatpush1.msra.mxu0 0.0
    %3955 = vmatprep.subr.mxu0 0.0
    %3956 = vmatpush1.msra.mxu0 0.0
    %3957 = vmatprep.subr.mxu0 0.0
    %3958 = vmatpush1.msra.mxu0 0.0
    %3959 = vmatprep.subr.mxu0 0.0
    %3960 = vmatpush1.msra.mxu0 0.0
    %3961 = vmatprep.subr.mxu0 0.0
    %3962 = vmatpush1.msra.mxu0 0.0
    %3963 = vmatprep.subr.mxu0 0.0
    %3964 = vmatpush1.msra.mxu0 0.0
    %3965 = vmatprep.subr.mxu0 0.0
    %3966 = vmatpush1.msra.mxu0 0.0
    %3967 = vmatprep.subr.mxu0 0.0
    %3968 = vmatpush1.msra.mxu0 0.0
    %3969 = vmatprep.subr.mxu0 0.0
    %3970 = vmatpush1.msra.mxu0 0.0
    %3971 = vmatprep.subr.mxu0 0.0
    %3972 = vmatpush1.msra.mxu0 0.0
    %3973 = vmatprep.subr.mxu0 0.0
    %3974 = vmatpush1.msra.mxu0 0.0
    %3975 = vmatprep.subr.mxu0 0.0
    %3976 = vmatpush1.msra.mxu0 0.0
    %3977 = vmatprep.subr.mxu0 0.0
    %3978 = vmatpush1.msra.mxu0 0.0
    %3979 = vmatprep.subr.mxu0 0.0
    %3980 = vmatpush1.msra.mxu0 0.0
    %3981 = vmatprep.subr.mxu0 0.0
    %3982 = vmatpush1.msra.mxu0 0.0
    %3983 = vmatprep.subr.mxu0 0.0
    %3984 = vmatpush1.msra.mxu0 0.0
    %3985 = vmatprep.subr.mxu0 0.0
    %3986 = vmatpush1.msra.mxu0 0.0
    %3987 = vmatprep.subr.mxu0 0.0
    %3988 = vmatpush1.msra.mxu0 0.0
    %3989 = vmatprep.subr.mxu0 0.0
    %3990 = vmatpush1.msra.mxu0 0.0
    %3991 = vmatprep.subr.mxu0 0.0
    %3992 = vmatpush1.msra.mxu0 0.0
    %3993 = vmatprep.subr.mxu0 0.0
    %3994 = vmatpush1.msra.mxu0 0.0
    %3995 = vmatprep.subr.mxu0 0.0
    %3996 = vmatpush1.msra.mxu0 0.0
    %3997 = vmatprep.subr.mxu0 0.0
    %3998 = vmatpush1.msra.mxu0 0.0
    %3999 = vmatprep.subr.mxu0 0.0
    %4000 = vmatpush1.msra.mxu0 0.0
    %4001 = vmatprep.subr.mxu0 0.0
    %4002 = vmatpush1.msra.mxu0 0.0
    %4003 = vmatprep.subr.mxu0 0.0
    %4004 = vmatpush1.msra.mxu0 0.0
    %4005 = vmatprep.subr.mxu0 0.0
    %4006 = vmatpush1.msra.mxu0 0.0
    %4007 = vmatprep.subr.mxu0 0.0
    %4008 = vmatpush1.msra.mxu0 0.0
    %4009 = vmatprep.subr.mxu0 0.0
    %4010 = vmatpush1.msra.mxu0 0.0
    %4011 = vmatprep.subr.mxu0 0.0
    %4012 = vmatpush1.msra.mxu0 0.0
    %4013 = vmatprep.subr.mxu0 0.0
    %4014 = vmatpush1.msra.mxu0 0.0
    %4015 = vmatprep.mubr.f32.mxu0 0.0
    %4016 = vmatmul.mubr.f32.gmra.mrb[0].mxu0 %v3949
    %v4017 = vpop.f32.mrb[0].mxu0
    %v4018 = vadd.f32 0.0, %v4017
    %v4019 = vpop.f32.mrb[0].mxu0
    %4020 = vdwg.mxu0
    %4022 = vrot.lane.b32.xlu0 %v4018, 64
    %v4023 = vpop.permute.xlu0 %4022
    %4025 = vst.msk [vmem:[#allocation2 + $0x18] sm:$0xff] %vm989, %v4023
    %v4026 = vld [vmem:[#allocation2] sm:$0xff]
    %v4027 = vld [vmem:[#allocation2 + $0x8] sm:$0xff]
    %v4028 = vld [vmem:[#allocation2 + $0x10] sm:$0xff]
    %v4029 = vld [vmem:[#allocation2 + $0x18] sm:$0xff]
    %v4030 = vld [vmem:[#allocation11] sm:$0xff]
    %v4031 = vld [vmem:[#allocation11 + $0x8] sm:$0xff]
    %v4032 = vld [vmem:[#allocation11 + $0x10] sm:$0xff]
    %v4033 = vld [vmem:[#allocation11 + $0x18] sm:$0xff]
    %v4034 = vld [vmem:[#allocation11 + $0x20] sm:$0xff]
    %v4035 = vld [vmem:[#allocation11 + $0x28] sm:$0xff]
    %v4036 = vld [vmem:[#allocation11 + $0x30] sm:$0xff]
    %v4037 = vld [vmem:[#allocation11 + $0x38] sm:$0xff]
    %v4038 = vld [vmem:[#allocation11 + $0x40] sm:$0xff]
    %v4039 = vld [vmem:[#allocation11 + $0x48] sm:$0xff]
    %v4040 = vld [vmem:[#allocation11 + $0x50] sm:$0xff]
    %v4041 = vld [vmem:[#allocation11 + $0x58] sm:$0xff]
    %v4042 = vld [vmem:[#allocation11 + $0x60] sm:$0xff]
    %v4043 = vld [vmem:[#allocation11 + $0x68] sm:$0xff]
    %v4044 = vld [vmem:[#allocation11 + $0x70] sm:$0xff]
    %v4045 = vld [vmem:[#allocation11 + $0x78] sm:$0xff]
    %v4046 = vld [vmem:[#allocation11 + $0x80] sm:$0xff]
    %v4047 = vld [vmem:[#allocation11 + $0x88] sm:$0xff]
    %v4048 = vld [vmem:[#allocation11 + $0x90] sm:$0xff]
    %v4049 = vld [vmem:[#allocation11 + $0x98] sm:$0xff]
    %v4050 = vld [vmem:[#allocation11 + $0xa0] sm:$0xff]
    %v4051 = vld [vmem:[#allocation11 + $0xa8] sm:$0xff]
    %v4052 = vld [vmem:[#allocation11 + $0xb0] sm:$0xff]
    %v4053 = vld [vmem:[#allocation11 + $0xb8] sm:$0xff]
    %v4054 = vld [vmem:[#allocation11 + $0xc0] sm:$0xff]
    %v4055 = vld [vmem:[#allocation11 + $0xc8] sm:$0xff]
    %v4056 = vld [vmem:[#allocation11 + $0xd0] sm:$0xff]
    %v4057 = vld [vmem:[#allocation11 + $0xd8] sm:$0xff]
    %v4058 = vld [vmem:[#allocation11 + $0xe0] sm:$0xff]
    %v4059 = vld [vmem:[#allocation11 + $0xe8] sm:$0xff]
    %v4060 = vld [vmem:[#allocation11 + $0xf0] sm:$0xff]
    %v4061 = vld [vmem:[#allocation11 + $0xf8] sm:$0xff]
    %v4062 = vld [vmem:[#allocation11 + $0x100] sm:$0xff]
    %v4063 = vld [vmem:[#allocation11 + $0x108] sm:$0xff]
    %v4064 = vld [vmem:[#allocation11 + $0x110] sm:$0xff]
    %v4065 = vld [vmem:[#allocation11 + $0x118] sm:$0xff]
    %v4066 = vld [vmem:[#allocation11 + $0x120] sm:$0xff]
    %v4067 = vld [vmem:[#allocation11 + $0x128] sm:$0xff]
    %v4068 = vld [vmem:[#allocation11 + $0x130] sm:$0xff]
    %v4069 = vld [vmem:[#allocation11 + $0x138] sm:$0xff]
    %v4070 = vld [vmem:[#allocation11 + $0x140] sm:$0xff]
    %v4071 = vld [vmem:[#allocation11 + $0x148] sm:$0xff]
    %v4072 = vld [vmem:[#allocation11 + $0x150] sm:$0xff]
    %v4073 = vld [vmem:[#allocation11 + $0x158] sm:$0xff]
    %v4074 = vld [vmem:[#allocation11 + $0x160] sm:$0xff]
    %v4075 = vld [vmem:[#allocation11 + $0x168] sm:$0xff]
    %v4076 = vld [vmem:[#allocation11 + $0x170] sm:$0xff]
    %v4077 = vld [vmem:[#allocation11 + $0x178] sm:$0xff]
    %v4078 = vld [vmem:[#allocation11 + $0x180] sm:$0xff]
    %v4079 = vld [vmem:[#allocation11 + $0x188] sm:$0xff]
    %v4080 = vld [vmem:[#allocation11 + $0x190] sm:$0xff]
    %v4081 = vld [vmem:[#allocation11 + $0x198] sm:$0xff]
    %v4082 = vld [vmem:[#allocation11 + $0x1a0] sm:$0xff]
    %v4083 = vld [vmem:[#allocation11 + $0x1a8] sm:$0xff]
    %v4084 = vld [vmem:[#allocation11 + $0x1b0] sm:$0xff]
    %v4085 = vld [vmem:[#allocation11 + $0x1b8] sm:$0xff]
    %v4086 = vld [vmem:[#allocation11 + $0x1c0] sm:$0xff]
    %v4087 = vld [vmem:[#allocation11 + $0x1c8] sm:$0xff]
    %v4088 = vld [vmem:[#allocation11 + $0x1d0] sm:$0xff]
    %v4089 = vld [vmem:[#allocation11 + $0x1d8] sm:$0xff]
    %v4090 = vld [vmem:[#allocation11 + $0x1e0] sm:$0xff]
    %v4091 = vld [vmem:[#allocation11 + $0x1e8] sm:$0xff]
    %v4092 = vld [vmem:[#allocation11 + $0x1f0] sm:$0xff]
    %v4093 = vld [vmem:[#allocation11 + $0x1f8] sm:$0xff]
    %v4094 = vld [vmem:[%s13] sm:$0x3]
    %v4096 = vlaneseq
    %v4097 = vshrl.u32 %v4096, 7
    %v4098 = vsub.s32 0, %v4097
    %v4099 = vrot.slane %v4094, %v4098
    %v4100 = vlaneseq
    %v4101 = vshrl.u32 %v4100, 7
    %v4102 = vsub.s32 1, %v4101
    %v4103 = vrot.slane %v4094, %v4102
    %4106 = vmatprep.subr.mxu0 %v4031
    %4107 = vmatpush1.msra.mxu0 %v4030
    %4108 = vmatprep.subr.mxu0 %v4033
    %4109 = vmatpush1.msra.mxu0 %v4032
    %4110 = vmatprep.subr.mxu0 %v4035
    %4111 = vmatpush1.msra.mxu0 %v4034
    %4112 = vmatprep.subr.mxu0 %v4037
    %4113 = vmatpush1.msra.mxu0 %v4036
    %4114 = vmatprep.subr.mxu0 %v4039
    %4115 = vmatpush1.msra.mxu0 %v4038
    %4116 = vmatprep.subr.mxu0 %v4041
    %4117 = vmatpush1.msra.mxu0 %v4040
    %4118 = vmatprep.subr.mxu0 %v4043
    %4119 = vmatpush1.msra.mxu0 %v4042
    %4120 = vmatprep.subr.mxu0 %v4045
    %4121 = vmatpush1.msra.mxu0 %v4044
    %4122 = vmatprep.subr.mxu0 %v4047
    %4123 = vmatpush1.msra.mxu0 %v4046
    %4124 = vmatprep.subr.mxu0 %v4049
    %4125 = vmatpush1.msra.mxu0 %v4048
    %4126 = vmatprep.subr.mxu0 %v4051
    %4127 = vmatpush1.msra.mxu0 %v4050
    %4128 = vmatprep.subr.mxu0 %v4053
    %4129 = vmatpush1.msra.mxu0 %v4052
    %4130 = vmatprep.subr.mxu0 %v4055
    %4131 = vmatpush1.msra.mxu0 %v4054
    %4132 = vmatprep.subr.mxu0 %v4057
    %4133 = vmatpush1.msra.mxu0 %v4056
    %4134 = vmatprep.subr.mxu0 %v4059
    %4135 = vmatpush1.msra.mxu0 %v4058
    %4136 = vmatprep.subr.mxu0 %v4061
    %4137 = vmatpush1.msra.mxu0 %v4060
    %4138 = vmatprep.subr.mxu0 %v4063
    %4139 = vmatpush1.msra.mxu0 %v4062
    %4140 = vmatprep.subr.mxu0 %v4065
    %4141 = vmatpush1.msra.mxu0 %v4064
    %4142 = vmatprep.subr.mxu0 %v4067
    %4143 = vmatpush1.msra.mxu0 %v4066
    %4144 = vmatprep.subr.mxu0 %v4069
    %4145 = vmatpush1.msra.mxu0 %v4068
    %4146 = vmatprep.subr.mxu0 %v4071
    %4147 = vmatpush1.msra.mxu0 %v4070
    %4148 = vmatprep.subr.mxu0 %v4073
    %4149 = vmatpush1.msra.mxu0 %v4072
    %4150 = vmatprep.subr.mxu0 %v4075
    %4151 = vmatpush1.msra.mxu0 %v4074
    %4152 = vmatprep.subr.mxu0 %v4077
    %4153 = vmatpush1.msra.mxu0 %v4076
    %4154 = vmatprep.subr.mxu0 %v4079
    %4155 = vmatpush1.msra.mxu0 %v4078
    %4156 = vmatprep.subr.mxu0 %v4081
    %4157 = vmatpush1.msra.mxu0 %v4080
    %4158 = vmatprep.subr.mxu0 %v4083
    %4159 = vmatpush1.msra.mxu0 %v4082
    %4160 = vmatprep.subr.mxu0 %v4085
    %4161 = vmatpush1.msra.mxu0 %v4084
    %4162 = vmatprep.subr.mxu0 %v4087
    %4163 = vmatpush1.msra.mxu0 %v4086
    %4164 = vmatprep.subr.mxu0 %v4089
    %4165 = vmatpush1.msra.mxu0 %v4088
    %4166 = vmatprep.subr.mxu0 %v4091
    %4167 = vmatpush1.msra.mxu0 %v4090
    %4168 = vmatprep.subr.mxu0 %v4093
    %4169 = vmatpush1.msra.mxu0 %v4092
    %4170 = vmatprep.mubr.f32.mxu0 %v4027
    %4171 = vmatmul.mubr.f32.gmra.mrb[0].mxu0 %v4026
    %v4172 = vpop.f32.mrb[0].mxu0
    %v4173 = vadd.f32 %v4099, %v4172
    %v4174 = vpop.f32.mrb[0].mxu0
    %v4175 = vadd.f32 %v4103, %v4174
    %4176 = vmatprep.mubr.f32.mxu0 %v4029
    %4177 = vmatmul.mubr.f32.gmra.mrb[0].mxu0 %v4028
    %v4178 = vpop.f32.mrb[0].mxu0
    %v4179 = vadd.f32 %v4099, %v4178
    %v4180 = vpop.f32.mrb[0].mxu0
    %v4181 = vadd.f32 %v4103, %v4180
    %4182 = vdwg.mxu0
    %v4183 = vadd.f32 %v4173, %v2221
    %v4184 = vadd.f32 %v4175, %v2222
    %v4185 = vadd.f32 %v4179, %v2223
    %v4186 = vadd.f32 %v4181, %v2224
    %v4187 = vld [vmem:[%s20] sm:$0x3]
    %v4188 = vld [vmem:[%s21] sm:$0x3]
    %v4189 = vadd.f32 %v4183, %v4184
    %4190 = vadd.xlane.f32.xlu0 %v4189
    %v4191 = vpop.xlane.xlu0 %4190
    %v4192 = vadd.f32 %v4185, %v4186
    %4193 = vadd.xlane.f32.xlu0 %v4192
    %v4194 = vpop.xlane.xlu0 %4193
    %v4195 = vmul.f32 %v4191, %v2168
    %v4196 = vmul.f32 %v4194, %v2168
    %v4197 = vsub.f32 %v4183, %v4195
    %v4198 = vsub.f32 %v4184, %v4195
    %v4199 = vsub.f32 %v4185, %v4196
    %v4200 = vsub.f32 %v4186, %v4196
    %v4201 = vmul.f32 %v4197, %v4197
    %v4202 = vmul.f32 %v4198, %v4198
    %v4203 = vmul.f32 %v4199, %v4199
    %v4204 = vmul.f32 %v4200, %v4200
    %v4205 = vadd.f32 %v4201, %v4202
    %4206 = vadd.xlane.f32.xlu0 %v4205
    %v4207 = vpop.xlane.xlu0 %4206
    %v4208 = vadd.f32 %v4203, %v4204
    %4209 = vadd.xlane.f32.xlu0 %v4208
    %v4210 = vpop.xlane.xlu0 %4209
    %v4211 = vmul.f32 %v4207, %v2168
    %v4212 = vmul.f32 %v4210, %v2168
    %v4213 = vadd.f32 %v4211, 1e-05
    %v4214 = vadd.f32 %v4212, 1e-05
    %v4215 = vrsqrt.pop %v4213
    %v4216 = vrsqrt.pop %v4214
    %v4217 = vmul.f32 %v4197, %v4215
    %v4218 = vmul.f32 %v4198, %v4215
    %v4219 = vmul.f32 %v4199, %v4216
    %v4220 = vmul.f32 %v4200, %v4216
    %v4222 = vlaneseq
    %v4223 = vshrl.u32 %v4222, 7
    %v4224 = vsub.s32 0, %v4223
    %v4225 = vrot.slane %v4187, %v4224
    %v4226 = vlaneseq
    %v4227 = vshrl.u32 %v4226, 7
    %v4228 = vsub.s32 1, %v4227
    %v4229 = vrot.slane %v4187, %v4228
    %v4232 = vmul.f32 %v4217, %v4225
    %v4233 = vmul.f32 %v4218, %v4229
    %v4234 = vmul.f32 %v4219, %v4225
    %v4235 = vmul.f32 %v4220, %v4229
    %v4237 = vlaneseq
    %v4238 = vshrl.u32 %v4237, 7
    %v4239 = vsub.s32 0, %v4238
    %v4240 = vrot.slane %v4188, %v4239
    %v4241 = vlaneseq
    %v4242 = vshrl.u32 %v4241, 7
    %v4243 = vsub.s32 1, %v4242
    %v4244 = vrot.slane %v4188, %v4243
    %v4247 = vadd.f32 %v4232, %v4240
    %v4248 = vadd.f32 %v4233, %v4244
    %v4249 = vadd.f32 %v4234, %v4240
    %v4250 = vadd.f32 %v4235, %v4244
    %v4251 = vld [vmem:[#allocation12] sm:$0xff]
    %v4252 = vld [vmem:[#allocation12 + $0x8] sm:$0xff]
    %v4253 = vld [vmem:[#allocation12 + $0x10] sm:$0xff]
    %v4254 = vld [vmem:[#allocation12 + $0x18] sm:$0xff]
    %v4255 = vld [vmem:[#allocation12 + $0x20] sm:$0xff]
    %v4256 = vld [vmem:[#allocation12 + $0x28] sm:$0xff]
    %v4257 = vld [vmem:[#allocation12 + $0x30] sm:$0xff]
    %v4258 = vld [vmem:[#allocation12 + $0x38] sm:$0xff]
    %v4259 = vld [vmem:[#allocation12 + $0x40] sm:$0xff]
    %v4260 = vld [vmem:[#allocation12 + $0x48] sm:$0xff]
    %v4261 = vld [vmem:[#allocation12 + $0x50] sm:$0xff]
    %v4262 = vld [vmem:[#allocation12 + $0x58] sm:$0xff]
    %v4263 = vld [vmem:[#allocation12 + $0x60] sm:$0xff]
    %v4264 = vld [vmem:[#allocation12 + $0x68] sm:$0xff]
    %v4265 = vld [vmem:[#allocation12 + $0x70] sm:$0xff]
    %v4266 = vld [vmem:[#allocation12 + $0x78] sm:$0xff]
    %v4267 = vld [vmem:[#allocation12 + $0x80] sm:$0xff]
    %v4268 = vld [vmem:[#allocation12 + $0x88] sm:$0xff]
    %v4269 = vld [vmem:[#allocation12 + $0x90] sm:$0xff]
    %v4270 = vld [vmem:[#allocation12 + $0x98] sm:$0xff]
    %v4271 = vld [vmem:[#allocation12 + $0xa0] sm:$0xff]
    %v4272 = vld [vmem:[#allocation12 + $0xa8] sm:$0xff]
    %v4273 = vld [vmem:[#allocation12 + $0xb0] sm:$0xff]
    %v4274 = vld [vmem:[#allocation12 + $0xb8] sm:$0xff]
    %v4275 = vld [vmem:[#allocation12 + $0xc0] sm:$0xff]
    %v4276 = vld [vmem:[#allocation12 + $0xc8] sm:$0xff]
    %v4277 = vld [vmem:[#allocation12 + $0xd0] sm:$0xff]
    %v4278 = vld [vmem:[#allocation12 + $0xd8] sm:$0xff]
    %v4279 = vld [vmem:[#allocation12 + $0xe0] sm:$0xff]
    %v4280 = vld [vmem:[#allocation12 + $0xe8] sm:$0xff]
    %v4281 = vld [vmem:[#allocation12 + $0xf0] sm:$0xff]
    %v4282 = vld [vmem:[#allocation12 + $0xf8] sm:$0xff]
    %v4283 = vld [vmem:[#allocation12 + $0x100] sm:$0xff]
    %v4284 = vld [vmem:[#allocation12 + $0x108] sm:$0xff]
    %v4285 = vld [vmem:[#allocation12 + $0x110] sm:$0xff]
    %v4286 = vld [vmem:[#allocation12 + $0x118] sm:$0xff]
    %v4287 = vld [vmem:[#allocation12 + $0x120] sm:$0xff]
    %v4288 = vld [vmem:[#allocation12 + $0x128] sm:$0xff]
    %v4289 = vld [vmem:[#allocation12 + $0x130] sm:$0xff]
    %v4290 = vld [vmem:[#allocation12 + $0x138] sm:$0xff]
    %v4291 = vld [vmem:[#allocation12 + $0x140] sm:$0xff]
    %v4292 = vld [vmem:[#allocation12 + $0x148] sm:$0xff]
    %v4293 = vld [vmem:[#allocation12 + $0x150] sm:$0xff]
    %v4294 = vld [vmem:[#allocation12 + $0x158] sm:$0xff]
    %v4295 = vld [vmem:[#allocation12 + $0x160] sm:$0xff]
    %v4296 = vld [vmem:[#allocation12 + $0x168] sm:$0xff]
    %v4297 = vld [vmem:[#allocation12 + $0x170] sm:$0xff]
    %v4298 = vld [vmem:[#allocation12 + $0x178] sm:$0xff]
    %v4299 = vld [vmem:[#allocation12 + $0x180] sm:$0xff]
    %v4300 = vld [vmem:[#allocation12 + $0x188] sm:$0xff]
    %v4301 = vld [vmem:[#allocation12 + $0x190] sm:$0xff]
    %v4302 = vld [vmem:[#allocation12 + $0x198] sm:$0xff]
    %v4303 = vld [vmem:[#allocation12 + $0x1a0] sm:$0xff]
    %v4304 = vld [vmem:[#allocation12 + $0x1a8] sm:$0xff]
    %v4305 = vld [vmem:[#allocation12 + $0x1b0] sm:$0xff]
    %v4306 = vld [vmem:[#allocation12 + $0x1b8] sm:$0xff]
    %v4307 = vld [vmem:[#allocation12 + $0x1c0] sm:$0xff]
    %v4308 = vld [vmem:[#allocation12 + $0x1c8] sm:$0xff]
    %v4309 = vld [vmem:[#allocation12 + $0x1d0] sm:$0xff]
    %v4310 = vld [vmem:[#allocation12 + $0x1d8] sm:$0xff]
    %v4311 = vld [vmem:[#allocation12 + $0x1e0] sm:$0xff]
    %v4312 = vld [vmem:[#allocation12 + $0x1e8] sm:$0xff]
    %v4313 = vld [vmem:[#allocation12 + $0x1f0] sm:$0xff]
    %v4314 = vld [vmem:[#allocation12 + $0x1f8] sm:$0xff]
    %v4315 = vld [vmem:[#allocation12 + $0x200] sm:$0xff]
    %v4316 = vld [vmem:[#allocation12 + $0x208] sm:$0xff]
    %v4317 = vld [vmem:[#allocation12 + $0x210] sm:$0xff]
    %v4318 = vld [vmem:[#allocation12 + $0x218] sm:$0xff]
    %v4319 = vld [vmem:[#allocation12 + $0x220] sm:$0xff]
    %v4320 = vld [vmem:[#allocation12 + $0x228] sm:$0xff]
    %v4321 = vld [vmem:[#allocation12 + $0x230] sm:$0xff]
    %v4322 = vld [vmem:[#allocation12 + $0x238] sm:$0xff]
    %v4323 = vld [vmem:[#allocation12 + $0x240] sm:$0xff]
    %v4324 = vld [vmem:[#allocation12 + $0x248] sm:$0xff]
    %v4325 = vld [vmem:[#allocation12 + $0x250] sm:$0xff]
    %v4326 = vld [vmem:[#allocation12 + $0x258] sm:$0xff]
    %v4327 = vld [vmem:[#allocation12 + $0x260] sm:$0xff]
    %v4328 = vld [vmem:[#allocation12 + $0x268] sm:$0xff]
    %v4329 = vld [vmem:[#allocation12 + $0x270] sm:$0xff]
    %v4330 = vld [vmem:[#allocation12 + $0x278] sm:$0xff]
    %v4331 = vld [vmem:[#allocation12 + $0x280] sm:$0xff]
    %v4332 = vld [vmem:[#allocation12 + $0x288] sm:$0xff]
    %v4333 = vld [vmem:[#allocation12 + $0x290] sm:$0xff]
    %v4334 = vld [vmem:[#allocation12 + $0x298] sm:$0xff]
    %v4335 = vld [vmem:[#allocation12 + $0x2a0] sm:$0xff]
    %v4336 = vld [vmem:[#allocation12 + $0x2a8] sm:$0xff]
    %v4337 = vld [vmem:[#allocation12 + $0x2b0] sm:$0xff]
    %v4338 = vld [vmem:[#allocation12 + $0x2b8] sm:$0xff]
    %v4339 = vld [vmem:[#allocation12 + $0x2c0] sm:$0xff]
    %v4340 = vld [vmem:[#allocation12 + $0x2c8] sm:$0xff]
    %v4341 = vld [vmem:[#allocation12 + $0x2d0] sm:$0xff]
    %v4342 = vld [vmem:[#allocation12 + $0x2d8] sm:$0xff]
    %v4343 = vld [vmem:[#allocation12 + $0x2e0] sm:$0xff]
    %v4344 = vld [vmem:[#allocation12 + $0x2e8] sm:$0xff]
    %v4345 = vld [vmem:[#allocation12 + $0x2f0] sm:$0xff]
    %v4346 = vld [vmem:[#allocation12 + $0x2f8] sm:$0xff]
    %v4347 = vld [vmem:[#allocation12 + $0x300] sm:$0xff]
    %v4348 = vld [vmem:[#allocation12 + $0x308] sm:$0xff]
    %v4349 = vld [vmem:[#allocation12 + $0x310] sm:$0xff]
    %v4350 = vld [vmem:[#allocation12 + $0x318] sm:$0xff]
    %v4351 = vld [vmem:[#allocation12 + $0x320] sm:$0xff]
    %v4352 = vld [vmem:[#allocation12 + $0x328] sm:$0xff]
    %v4353 = vld [vmem:[#allocation12 + $0x330] sm:$0xff]
    %v4354 = vld [vmem:[#allocation12 + $0x338] sm:$0xff]
    %v4355 = vld [vmem:[#allocation12 + $0x340] sm:$0xff]
    %v4356 = vld [vmem:[#allocation12 + $0x348] sm:$0xff]
    %v4357 = vld [vmem:[#allocation12 + $0x350] sm:$0xff]
    %v4358 = vld [vmem:[#allocation12 + $0x358] sm:$0xff]
    %v4359 = vld [vmem:[#allocation12 + $0x360] sm:$0xff]
    %v4360 = vld [vmem:[#allocation12 + $0x368] sm:$0xff]
    %v4361 = vld [vmem:[#allocation12 + $0x370] sm:$0xff]
    %v4362 = vld [vmem:[#allocation12 + $0x378] sm:$0xff]
    %v4363 = vld [vmem:[#allocation12 + $0x380] sm:$0xff]
    %v4364 = vld [vmem:[#allocation12 + $0x388] sm:$0xff]
    %v4365 = vld [vmem:[#allocation12 + $0x390] sm:$0xff]
    %v4366 = vld [vmem:[#allocation12 + $0x398] sm:$0xff]
    %v4367 = vld [vmem:[#allocation12 + $0x3a0] sm:$0xff]
    %v4368 = vld [vmem:[#allocation12 + $0x3a8] sm:$0xff]
    %v4369 = vld [vmem:[#allocation12 + $0x3b0] sm:$0xff]
    %v4370 = vld [vmem:[#allocation12 + $0x3b8] sm:$0xff]
    %v4371 = vld [vmem:[#allocation12 + $0x3c0] sm:$0xff]
    %v4372 = vld [vmem:[#allocation12 + $0x3c8] sm:$0xff]
    %v4373 = vld [vmem:[#allocation12 + $0x3d0] sm:$0xff]
    %v4374 = vld [vmem:[#allocation12 + $0x3d8] sm:$0xff]
    %v4375 = vld [vmem:[#allocation12 + $0x3e0] sm:$0xff]
    %v4376 = vld [vmem:[#allocation12 + $0x3e8] sm:$0xff]
    %v4377 = vld [vmem:[#allocation12 + $0x3f0] sm:$0xff]
    %v4378 = vld [vmem:[#allocation12 + $0x3f8] sm:$0xff]
    %v4379 = vld [vmem:[%s15] sm:$0xf]
    %v4381 = vlaneseq
    %v4382 = vshrl.u32 %v4381, 7
    %v4383 = vsub.s32 0, %v4382
    %v4384 = vrot.slane %v4379, %v4383
    %v4385 = vlaneseq
    %v4386 = vshrl.u32 %v4385, 7
    %v4387 = vsub.s32 1, %v4386
    %v4388 = vrot.slane %v4379, %v4387
    %v4389 = vlaneseq
    %v4390 = vshrl.u32 %v4389, 7
    %v4391 = vsub.s32 2, %v4390
    %v4392 = vrot.slane %v4379, %v4391
    %v4393 = vlaneseq
    %v4394 = vshrl.u32 %v4393, 7
    %v4395 = vsub.s32 3, %v4394
    %v4396 = vrot.slane %v4379, %v4395
    %4401 = vmatprep.subr.mxu0 %v4252
    %4402 = vmatpush1.msra.mxu0 %v4251
    %4403 = vmatprep.subr.mxu0 %v4256
    %4404 = vmatpush1.msra.mxu0 %v4255
    %4405 = vmatprep.subr.mxu0 %v4260
    %4406 = vmatpush1.msra.mxu0 %v4259
    %4407 = vmatprep.subr.mxu0 %v4264
    %4408 = vmatpush1.msra.mxu0 %v4263
    %4409 = vmatprep.subr.mxu0 %v4268
    %4410 = vmatpush1.msra.mxu0 %v4267
    %4411 = vmatprep.subr.mxu0 %v4272
    %4412 = vmatpush1.msra.mxu0 %v4271
    %4413 = vmatprep.subr.mxu0 %v4276
    %4414 = vmatpush1.msra.mxu0 %v4275
    %4415 = vmatprep.subr.mxu0 %v4280
    %4416 = vmatpush1.msra.mxu0 %v4279
    %4417 = vmatprep.subr.mxu0 %v4284
    %4418 = vmatpush1.msra.mxu0 %v4283
    %4419 = vmatprep.subr.mxu0 %v4288
    %4420 = vmatpush1.msra.mxu0 %v4287
    %4421 = vmatprep.subr.mxu0 %v4292
    %4422 = vmatpush1.msra.mxu0 %v4291
    %4423 = vmatprep.subr.mxu0 %v4296
    %4424 = vmatpush1.msra.mxu0 %v4295
    %4425 = vmatprep.subr.mxu0 %v4300
    %4426 = vmatpush1.msra.mxu0 %v4299
    %4427 = vmatprep.subr.mxu0 %v4304
    %4428 = vmatpush1.msra.mxu0 %v4303
    %4429 = vmatprep.subr.mxu0 %v4308
    %4430 = vmatpush1.msra.mxu0 %v4307
    %4431 = vmatprep.subr.mxu0 %v4312
    %4432 = vmatpush1.msra.mxu0 %v4311
    %4433 = vmatprep.subr.mxu0 %v4316
    %4434 = vmatpush1.msra.mxu0 %v4315
    %4435 = vmatprep.subr.mxu0 %v4320
    %4436 = vmatpush1.msra.mxu0 %v4319
    %4437 = vmatprep.subr.mxu0 %v4324
    %4438 = vmatpush1.msra.mxu0 %v4323
    %4439 = vmatprep.subr.mxu0 %v4328
    %4440 = vmatpush1.msra.mxu0 %v4327
    %4441 = vmatprep.subr.mxu0 %v4332
    %4442 = vmatpush1.msra.mxu0 %v4331
    %4443 = vmatprep.subr.mxu0 %v4336
    %4444 = vmatpush1.msra.mxu0 %v4335
    %4445 = vmatprep.subr.mxu0 %v4340
    %4446 = vmatpush1.msra.mxu0 %v4339
    %4447 = vmatprep.subr.mxu0 %v4344
    %4448 = vmatpush1.msra.mxu0 %v4343
    %4449 = vmatprep.subr.mxu0 %v4348
    %4450 = vmatpush1.msra.mxu0 %v4347
    %4451 = vmatprep.subr.mxu0 %v4352
    %4452 = vmatpush1.msra.mxu0 %v4351
    %4453 = vmatprep.subr.mxu0 %v4356
    %4454 = vmatpush1.msra.mxu0 %v4355
    %4455 = vmatprep.subr.mxu0 %v4360
    %4456 = vmatpush1.msra.mxu0 %v4359
    %4457 = vmatprep.subr.mxu0 %v4364
    %4458 = vmatpush1.msra.mxu0 %v4363
    %4459 = vmatprep.subr.mxu0 %v4368
    %4460 = vmatpush1.msra.mxu0 %v4367
    %4461 = vmatprep.subr.mxu0 %v4372
    %4462 = vmatpush1.msra.mxu0 %v4371
    %4463 = vmatprep.subr.mxu0 %v4376
    %4464 = vmatpush1.msra.mxu0 %v4375
    %4465 = vmatprep.mubr.f32.mxu0 %v4248
    %4466 = vmatmul.mubr.f32.gmra.mrb[0].mxu0 %v4247
    %v4467 = vpop.f32.mrb[0].mxu0
    %v4468 = vadd.f32 %v4384, %v4467
    %v4469 = vpop.f32.mrb[0].mxu0
    %v4470 = vadd.f32 %v4388, %v4469
    %4471 = vmatprep.mubr.f32.mxu0 %v4250
    %4472 = vmatmul.mubr.f32.gmra.mrb[0].mxu0 %v4249
    %v4473 = vpop.f32.mrb[0].mxu0
    %v4474 = vadd.f32 %v4384, %v4473
    %v4475 = vpop.f32.mrb[0].mxu0
    %v4476 = vadd.f32 %v4388, %v4475
    %4477 = vdwg.mxu0
    %4478 = vmatprep.subr.mxu0 %v4254
    %4479 = vmatpush1.msra.mxu0 %v4253
    %4480 = vmatprep.subr.mxu0 %v4258
    %4481 = vmatpush1.msra.mxu0 %v4257
    %4482 = vmatprep.subr.mxu0 %v4262
    %4483 = vmatpush1.msra.mxu0 %v4261
    %4484 = vmatprep.subr.mxu0 %v4266
    %4485 = vmatpush1.msra.mxu0 %v4265
    %4486 = vmatprep.subr.mxu0 %v4270
    %4487 = vmatpush1.msra.mxu0 %v4269
    %4488 = vmatprep.subr.mxu0 %v4274
    %4489 = vmatpush1.msra.mxu0 %v4273
    %4490 = vmatprep.subr.mxu0 %v4278
    %4491 = vmatpush1.msra.mxu0 %v4277
    %4492 = vmatprep.subr.mxu0 %v4282
    %4493 = vmatpush1.msra.mxu0 %v4281
    %4494 = vmatprep.subr.mxu0 %v4286
    %4495 = vmatpush1.msra.mxu0 %v4285
    %4496 = vmatprep.subr.mxu0 %v4290
    %4497 = vmatpush1.msra.mxu0 %v4289
    %4498 = vmatprep.subr.mxu0 %v4294
    %4499 = vmatpush1.msra.mxu0 %v4293
    %4500 = vmatprep.subr.mxu0 %v4298
    %4501 = vmatpush1.msra.mxu0 %v4297
    %4502 = vmatprep.subr.mxu0 %v4302
    %4503 = vmatpush1.msra.mxu0 %v4301
    %4504 = vmatprep.subr.mxu0 %v4306
    %4505 = vmatpush1.msra.mxu0 %v4305
    %4506 = vmatprep.subr.mxu0 %v4310
    %4507 = vmatpush1.msra.mxu0 %v4309
    %4508 = vmatprep.subr.mxu0 %v4314
    %4509 = vmatpush1.msra.mxu0 %v4313
    %4510 = vmatprep.subr.mxu0 %v4318
    %4511 = vmatpush1.msra.mxu0 %v4317
    %4512 = vmatprep.subr.mxu0 %v4322
    %4513 = vmatpush1.msra.mxu0 %v4321
    %4514 = vmatprep.subr.mxu0 %v4326
    %4515 = vmatpush1.msra.mxu0 %v4325
    %4516 = vmatprep.subr.mxu0 %v4330
    %4517 = vmatpush1.msra.mxu0 %v4329
    %4518 = vmatprep.subr.mxu0 %v4334
    %4519 = vmatpush1.msra.mxu0 %v4333
    %4520 = vmatprep.subr.mxu0 %v4338
    %4521 = vmatpush1.msra.mxu0 %v4337
    %4522 = vmatprep.subr.mxu0 %v4342
    %4523 = vmatpush1.msra.mxu0 %v4341
    %4524 = vmatprep.subr.mxu0 %v4346
    %4525 = vmatpush1.msra.mxu0 %v4345
    %4526 = vmatprep.subr.mxu0 %v4350
    %4527 = vmatpush1.msra.mxu0 %v4349
    %4528 = vmatprep.subr.mxu0 %v4354
    %4529 = vmatpush1.msra.mxu0 %v4353
    %4530 = vmatprep.subr.mxu0 %v4358
    %4531 = vmatpush1.msra.mxu0 %v4357
    %4532 = vmatprep.subr.mxu0 %v4362
    %4533 = vmatpush1.msra.mxu0 %v4361
    %4534 = vmatprep.subr.mxu0 %v4366
    %4535 = vmatpush1.msra.mxu0 %v4365
    %4536 = vmatprep.subr.mxu0 %v4370
    %4537 = vmatpush1.msra.mxu0 %v4369
    %4538 = vmatprep.subr.mxu0 %v4374
    %4539 = vmatpush1.msra.mxu0 %v4373
    %4540 = vmatprep.subr.mxu0 %v4378
    %4541 = vmatpush1.msra.mxu0 %v4377
    %4542 = vmatprep.mubr.f32.mxu0 %v4248
    %4543 = vmatmul.mubr.f32.gmra.mrb[0].mxu0 %v4247
    %v4544 = vpop.f32.mrb[0].mxu0
    %v4545 = vadd.f32 %v4392, %v4544
    %v4546 = vpop.f32.mrb[0].mxu0
    %v4547 = vadd.f32 %v4396, %v4546
    %4548 = vmatprep.mubr.f32.mxu0 %v4250
    %4549 = vmatmul.mubr.f32.gmra.mrb[0].mxu0 %v4249
    %v4550 = vpop.f32.mrb[0].mxu0
    %v4551 = vadd.f32 %v4392, %v4550
    %v4552 = vpop.f32.mrb[0].mxu0
    %v4553 = vadd.f32 %v4396, %v4552
    %4554 = vdwg.mxu0
    %v4555 = vmul.f32 %v4468, 0.5
    %v4556 = vmul.f32 %v4470, 0.5
    %v4557 = vmul.f32 %v4545, 0.5
    %v4558 = vmul.f32 %v4547, 0.5
    %v4559 = vmul.f32 %v4474, 0.5
    %v4560 = vmul.f32 %v4476, 0.5
    %v4561 = vmul.f32 %v4551, 0.5
    %v4562 = vmul.f32 %v4553, 0.5
    %v4563 = vmul.f32 %v4468, 0.70710677
    %v4564 = vmul.f32 %v4470, 0.70710677
    %v4565 = vmul.f32 %v4545, 0.70710677
    %v4566 = vmul.f32 %v4547, 0.70710677
    %v4567 = vmul.f32 %v4474, 0.70710677
    %v4568 = vmul.f32 %v4476, 0.70710677
    %v4569 = vmul.f32 %v4551, 0.70710677
    %v4570 = vmul.f32 %v4553, 0.70710677
    %v4571 = verf.f32.pop %v4563
    %v4572 = verf.f32.pop %v4564
    %v4573 = verf.f32.pop %v4565
    %v4574 = verf.f32.pop %v4566
    %v4575 = verf.f32.pop %v4567
    %v4576 = verf.f32.pop %v4568
    %v4577 = verf.f32.pop %v4569
    %v4578 = verf.f32.pop %v4570
    %v4579 = vadd.f32 %v4571, 1.0
    %v4580 = vadd.f32 %v4572, 1.0
    %v4581 = vadd.f32 %v4573, 1.0
    %v4582 = vadd.f32 %v4574, 1.0
    %v4583 = vadd.f32 %v4575, 1.0
    %v4584 = vadd.f32 %v4576, 1.0
    %v4585 = vadd.f32 %v4577, 1.0
    %v4586 = vadd.f32 %v4578, 1.0
    %v4587 = vmul.f32 %v4555, %v4579
    %v4588 = vmul.f32 %v4556, %v4580
    %v4589 = vmul.f32 %v4557, %v4581
    %v4590 = vmul.f32 %v4558, %v4582
    %v4591 = vmul.f32 %v4559, %v4583
    %v4592 = vmul.f32 %v4560, %v4584
    %v4593 = vmul.f32 %v4561, %v4585
    %v4594 = vmul.f32 %v4562, %v4586
    %v4595 = vld [vmem:[#allocation14] sm:$0xff]
    %v4596 = vld [vmem:[#allocation14 + $0x8] sm:$0xff]
    %v4597 = vld [vmem:[#allocation14 + $0x10] sm:$0xff]
    %v4598 = vld [vmem:[#allocation14 + $0x18] sm:$0xff]
    %v4599 = vld [vmem:[#allocation14 + $0x20] sm:$0xff]
    %v4600 = vld [vmem:[#allocation14 + $0x28] sm:$0xff]
    %v4601 = vld [vmem:[#allocation14 + $0x30] sm:$0xff]
    %v4602 = vld [vmem:[#allocation14 + $0x38] sm:$0xff]
    %v4603 = vld [vmem:[#allocation14 + $0x40] sm:$0xff]
    %v4604 = vld [vmem:[#allocation14 + $0x48] sm:$0xff]
    %v4605 = vld [vmem:[#allocation14 + $0x50] sm:$0xff]
    %v4606 = vld [vmem:[#allocation14 + $0x58] sm:$0xff]
    %v4607 = vld [vmem:[#allocation14 + $0x60] sm:$0xff]
    %v4608 = vld [vmem:[#allocation14 + $0x68] sm:$0xff]
    %v4609 = vld [vmem:[#allocation14 + $0x70] sm:$0xff]
    %v4610 = vld [vmem:[#allocation14 + $0x78] sm:$0xff]
    %v4611 = vld [vmem:[#allocation14 + $0x80] sm:$0xff]
    %v4612 = vld [vmem:[#allocation14 + $0x88] sm:$0xff]
    %v4613 = vld [vmem:[#allocation14 + $0x90] sm:$0xff]
    %v4614 = vld [vmem:[#allocation14 + $0x98] sm:$0xff]
    %v4615 = vld [vmem:[#allocation14 + $0xa0] sm:$0xff]
    %v4616 = vld [vmem:[#allocation14 + $0xa8] sm:$0xff]
    %v4617 = vld [vmem:[#allocation14 + $0xb0] sm:$0xff]
    %v4618 = vld [vmem:[#allocation14 + $0xb8] sm:$0xff]
    %v4619 = vld [vmem:[#allocation14 + $0xc0] sm:$0xff]
    %v4620 = vld [vmem:[#allocation14 + $0xc8] sm:$0xff]
    %v4621 = vld [vmem:[#allocation14 + $0xd0] sm:$0xff]
    %v4622 = vld [vmem:[#allocation14 + $0xd8] sm:$0xff]
    %v4623 = vld [vmem:[#allocation14 + $0xe0] sm:$0xff]
    %v4624 = vld [vmem:[#allocation14 + $0xe8] sm:$0xff]
    %v4625 = vld [vmem:[#allocation14 + $0xf0] sm:$0xff]
    %v4626 = vld [vmem:[#allocation14 + $0xf8] sm:$0xff]
    %v4627 = vld [vmem:[#allocation14 + $0x100] sm:$0xff]
    %v4628 = vld [vmem:[#allocation14 + $0x108] sm:$0xff]
    %v4629 = vld [vmem:[#allocation14 + $0x110] sm:$0xff]
    %v4630 = vld [vmem:[#allocation14 + $0x118] sm:$0xff]
    %v4631 = vld [vmem:[#allocation14 + $0x120] sm:$0xff]
    %v4632 = vld [vmem:[#allocation14 + $0x128] sm:$0xff]
    %v4633 = vld [vmem:[#allocation14 + $0x130] sm:$0xff]
    %v4634 = vld [vmem:[#allocation14 + $0x138] sm:$0xff]
    %v4635 = vld [vmem:[#allocation14 + $0x140] sm:$0xff]
    %v4636 = vld [vmem:[#allocation14 + $0x148] sm:$0xff]
    %v4637 = vld [vmem:[#allocation14 + $0x150] sm:$0xff]
    %v4638 = vld [vmem:[#allocation14 + $0x158] sm:$0xff]
    %v4639 = vld [vmem:[#allocation14 + $0x160] sm:$0xff]
    %v4640 = vld [vmem:[#allocation14 + $0x168] sm:$0xff]
    %v4641 = vld [vmem:[#allocation14 + $0x170] sm:$0xff]
    %v4642 = vld [vmem:[#allocation14 + $0x178] sm:$0xff]
    %v4643 = vld [vmem:[#allocation14 + $0x180] sm:$0xff]
    %v4644 = vld [vmem:[#allocation14 + $0x188] sm:$0xff]
    %v4645 = vld [vmem:[#allocation14 + $0x190] sm:$0xff]
    %v4646 = vld [vmem:[#allocation14 + $0x198] sm:$0xff]
    %v4647 = vld [vmem:[#allocation14 + $0x1a0] sm:$0xff]
    %v4648 = vld [vmem:[#allocation14 + $0x1a8] sm:$0xff]
    %v4649 = vld [vmem:[#allocation14 + $0x1b0] sm:$0xff]
    %v4650 = vld [vmem:[#allocation14 + $0x1b8] sm:$0xff]
    %v4651 = vld [vmem:[#allocation14 + $0x1c0] sm:$0xff]
    %v4652 = vld [vmem:[#allocation14 + $0x1c8] sm:$0xff]
    %v4653 = vld [vmem:[#allocation14 + $0x1d0] sm:$0xff]
    %v4654 = vld [vmem:[#allocation14 + $0x1d8] sm:$0xff]
    %v4655 = vld [vmem:[#allocation14 + $0x1e0] sm:$0xff]
    %v4656 = vld [vmem:[#allocation14 + $0x1e8] sm:$0xff]
    %v4657 = vld [vmem:[#allocation14 + $0x1f0] sm:$0xff]
    %v4658 = vld [vmem:[#allocation14 + $0x1f8] sm:$0xff]
    %v4659 = vld [vmem:[#allocation14 + $0x200] sm:$0xff]
    %v4660 = vld [vmem:[#allocation14 + $0x208] sm:$0xff]
    %v4661 = vld [vmem:[#allocation14 + $0x210] sm:$0xff]
    %v4662 = vld [vmem:[#allocation14 + $0x218] sm:$0xff]
    %v4663 = vld [vmem:[#allocation14 + $0x220] sm:$0xff]
    %v4664 = vld [vmem:[#allocation14 + $0x228] sm:$0xff]
    %v4665 = vld [vmem:[#allocation14 + $0x230] sm:$0xff]
    %v4666 = vld [vmem:[#allocation14 + $0x238] sm:$0xff]
    %v4667 = vld [vmem:[#allocation14 + $0x240] sm:$0xff]
    %v4668 = vld [vmem:[#allocation14 + $0x248] sm:$0xff]
    %v4669 = vld [vmem:[#allocation14 + $0x250] sm:$0xff]
    %v4670 = vld [vmem:[#allocation14 + $0x258] sm:$0xff]
    %v4671 = vld [vmem:[#allocation14 + $0x260] sm:$0xff]
    %v4672 = vld [vmem:[#allocation14 + $0x268] sm:$0xff]
    %v4673 = vld [vmem:[#allocation14 + $0x270] sm:$0xff]
    %v4674 = vld [vmem:[#allocation14 + $0x278] sm:$0xff]
    %v4675 = vld [vmem:[#allocation14 + $0x280] sm:$0xff]
    %v4676 = vld [vmem:[#allocation14 + $0x288] sm:$0xff]
    %v4677 = vld [vmem:[#allocation14 + $0x290] sm:$0xff]
    %v4678 = vld [vmem:[#allocation14 + $0x298] sm:$0xff]
    %v4679 = vld [vmem:[#allocation14 + $0x2a0] sm:$0xff]
    %v4680 = vld [vmem:[#allocation14 + $0x2a8] sm:$0xff]
    %v4681 = vld [vmem:[#allocation14 + $0x2b0] sm:$0xff]
    %v4682 = vld [vmem:[#allocation14 + $0x2b8] sm:$0xff]
    %v4683 = vld [vmem:[#allocation14 + $0x2c0] sm:$0xff]
    %v4684 = vld [vmem:[#allocation14 + $0x2c8] sm:$0xff]
    %v4685 = vld [vmem:[#allocation14 + $0x2d0] sm:$0xff]
    %v4686 = vld [vmem:[#allocation14 + $0x2d8] sm:$0xff]
    %v4687 = vld [vmem:[#allocation14 + $0x2e0] sm:$0xff]
    %v4688 = vld [vmem:[#allocation14 + $0x2e8] sm:$0xff]
    %v4689 = vld [vmem:[#allocation14 + $0x2f0] sm:$0xff]
    %v4690 = vld [vmem:[#allocation14 + $0x2f8] sm:$0xff]
    %v4691 = vld [vmem:[#allocation14 + $0x300] sm:$0xff]
    %v4692 = vld [vmem:[#allocation14 + $0x308] sm:$0xff]
    %v4693 = vld [vmem:[#allocation14 + $0x310] sm:$0xff]
    %v4694 = vld [vmem:[#allocation14 + $0x318] sm:$0xff]
    %v4695 = vld [vmem:[#allocation14 + $0x320] sm:$0xff]
    %v4696 = vld [vmem:[#allocation14 + $0x328] sm:$0xff]
    %v4697 = vld [vmem:[#allocation14 + $0x330] sm:$0xff]
    %v4698 = vld [vmem:[#allocation14 + $0x338] sm:$0xff]
    %v4699 = vld [vmem:[#allocation14 + $0x340] sm:$0xff]
    %v4700 = vld [vmem:[#allocation14 + $0x348] sm:$0xff]
    %v4701 = vld [vmem:[#allocation14 + $0x350] sm:$0xff]
    %v4702 = vld [vmem:[#allocation14 + $0x358] sm:$0xff]
    %v4703 = vld [vmem:[#allocation14 + $0x360] sm:$0xff]
    %v4704 = vld [vmem:[#allocation14 + $0x368] sm:$0xff]
    %v4705 = vld [vmem:[#allocation14 + $0x370] sm:$0xff]
    %v4706 = vld [vmem:[#allocation14 + $0x378] sm:$0xff]
    %v4707 = vld [vmem:[#allocation14 + $0x380] sm:$0xff]
    %v4708 = vld [vmem:[#allocation14 + $0x388] sm:$0xff]
    %v4709 = vld [vmem:[#allocation14 + $0x390] sm:$0xff]
    %v4710 = vld [vmem:[#allocation14 + $0x398] sm:$0xff]
    %v4711 = vld [vmem:[#allocation14 + $0x3a0] sm:$0xff]
    %v4712 = vld [vmem:[#allocation14 + $0x3a8] sm:$0xff]
    %v4713 = vld [vmem:[#allocation14 + $0x3b0] sm:$0xff]
    %v4714 = vld [vmem:[#allocation14 + $0x3b8] sm:$0xff]
    %v4715 = vld [vmem:[#allocation14 + $0x3c0] sm:$0xff]
    %v4716 = vld [vmem:[#allocation14 + $0x3c8] sm:$0xff]
    %v4717 = vld [vmem:[#allocation14 + $0x3d0] sm:$0xff]
    %v4718 = vld [vmem:[#allocation14 + $0x3d8] sm:$0xff]
    %v4719 = vld [vmem:[#allocation14 + $0x3e0] sm:$0xff]
    %v4720 = vld [vmem:[#allocation14 + $0x3e8] sm:$0xff]
    %v4721 = vld [vmem:[#allocation14 + $0x3f0] sm:$0xff]
    %v4722 = vld [vmem:[#allocation14 + $0x3f8] sm:$0xff]
    %v4723 = vld [vmem:[%s17] sm:$0x3]
    %v4725 = vlaneseq
    %v4726 = vshrl.u32 %v4725, 7
    %v4727 = vsub.s32 0, %v4726
    %v4728 = vrot.slane %v4723, %v4727
    %v4729 = vlaneseq
    %v4730 = vshrl.u32 %v4729, 7
    %v4731 = vsub.s32 1, %v4730
    %v4732 = vrot.slane %v4723, %v4731
    %4735 = vmatprep.subr.mxu0 %v4596
    %4736 = vmatpush1.msra.mxu0 %v4595
    %4737 = vmatprep.subr.mxu0 %v4598
    %4738 = vmatpush1.msra.mxu0 %v4597
    %4739 = vmatprep.subr.mxu0 %v4600
    %4740 = vmatpush1.msra.mxu0 %v4599
    %4741 = vmatprep.subr.mxu0 %v4602
    %4742 = vmatpush1.msra.mxu0 %v4601
    %4743 = vmatprep.subr.mxu0 %v4604
    %4744 = vmatpush1.msra.mxu0 %v4603
    %4745 = vmatprep.subr.mxu0 %v4606
    %4746 = vmatpush1.msra.mxu0 %v4605
    %4747 = vmatprep.subr.mxu0 %v4608
    %4748 = vmatpush1.msra.mxu0 %v4607
    %4749 = vmatprep.subr.mxu0 %v4610
    %4750 = vmatpush1.msra.mxu0 %v4609
    %4751 = vmatprep.subr.mxu0 %v4612
    %4752 = vmatpush1.msra.mxu0 %v4611
    %4753 = vmatprep.subr.mxu0 %v4614
    %4754 = vmatpush1.msra.mxu0 %v4613
    %4755 = vmatprep.subr.mxu0 %v4616
    %4756 = vmatpush1.msra.mxu0 %v4615
    %4757 = vmatprep.subr.mxu0 %v4618
    %4758 = vmatpush1.msra.mxu0 %v4617
    %4759 = vmatprep.subr.mxu0 %v4620
    %4760 = vmatpush1.msra.mxu0 %v4619
    %4761 = vmatprep.subr.mxu0 %v4622
    %4762 = vmatpush1.msra.mxu0 %v4621
    %4763 = vmatprep.subr.mxu0 %v4624
    %4764 = vmatpush1.msra.mxu0 %v4623
    %4765 = vmatprep.subr.mxu0 %v4626
    %4766 = vmatpush1.msra.mxu0 %v4625
    %4767 = vmatprep.subr.mxu0 %v4628
    %4768 = vmatpush1.msra.mxu0 %v4627
    %4769 = vmatprep.subr.mxu0 %v4630
    %4770 = vmatpush1.msra.mxu0 %v4629
    %4771 = vmatprep.subr.mxu0 %v4632
    %4772 = vmatpush1.msra.mxu0 %v4631
    %4773 = vmatprep.subr.mxu0 %v4634
    %4774 = vmatpush1.msra.mxu0 %v4633
    %4775 = vmatprep.subr.mxu0 %v4636
    %4776 = vmatpush1.msra.mxu0 %v4635
    %4777 = vmatprep.subr.mxu0 %v4638
    %4778 = vmatpush1.msra.mxu0 %v4637
    %4779 = vmatprep.subr.mxu0 %v4640
    %4780 = vmatpush1.msra.mxu0 %v4639
    %4781 = vmatprep.subr.mxu0 %v4642
    %4782 = vmatpush1.msra.mxu0 %v4641
    %4783 = vmatprep.subr.mxu0 %v4644
    %4784 = vmatpush1.msra.mxu0 %v4643
    %4785 = vmatprep.subr.mxu0 %v4646
    %4786 = vmatpush1.msra.mxu0 %v4645
    %4787 = vmatprep.subr.mxu0 %v4648
    %4788 = vmatpush1.msra.mxu0 %v4647
    %4789 = vmatprep.subr.mxu0 %v4650
    %4790 = vmatpush1.msra.mxu0 %v4649
    %4791 = vmatprep.subr.mxu0 %v4652
    %4792 = vmatpush1.msra.mxu0 %v4651
    %4793 = vmatprep.subr.mxu0 %v4654
    %4794 = vmatpush1.msra.mxu0 %v4653
    %4795 = vmatprep.subr.mxu0 %v4656
    %4796 = vmatpush1.msra.mxu0 %v4655
    %4797 = vmatprep.subr.mxu0 %v4658
    %4798 = vmatpush1.msra.mxu0 %v4657
    %4799 = vmatprep.mubr.f32.mxu0 %v4588
    %4800 = vmatmul.mubr.f32.gmra.mrb[0].mxu0 %v4587
    %v4801 = vpop.f32.mrb[0].mxu0
    %v4802 = vadd.f32 %v4728, %v4801
    %v4803 = vpop.f32.mrb[0].mxu0
    %v4804 = vadd.f32 %v4732, %v4803
    %4805 = vmatprep.mubr.f32.mxu0 %v4592
    %4806 = vmatmul.mubr.f32.gmra.mrb[0].mxu0 %v4591
    %v4807 = vpop.f32.mrb[0].mxu0
    %v4808 = vadd.f32 %v4728, %v4807
    %v4809 = vpop.f32.mrb[0].mxu0
    %v4810 = vadd.f32 %v4732, %v4809
    %4811 = vdwg.mxu0
    %4812 = vmatprep.subr.mxu0 %v4660
    %4813 = vmatpush1.msra.mxu0 %v4659
    %4814 = vmatprep.subr.mxu0 %v4662
    %4815 = vmatpush1.msra.mxu0 %v4661
    %4816 = vmatprep.subr.mxu0 %v4664
    %4817 = vmatpush1.msra.mxu0 %v4663
    %4818 = vmatprep.subr.mxu0 %v4666
    %4819 = vmatpush1.msra.mxu0 %v4665
    %4820 = vmatprep.subr.mxu0 %v4668
    %4821 = vmatpush1.msra.mxu0 %v4667
    %4822 = vmatprep.subr.mxu0 %v4670
    %4823 = vmatpush1.msra.mxu0 %v4669
    %4824 = vmatprep.subr.mxu0 %v4672
    %4825 = vmatpush1.msra.mxu0 %v4671
    %4826 = vmatprep.subr.mxu0 %v4674
    %4827 = vmatpush1.msra.mxu0 %v4673
    %4828 = vmatprep.subr.mxu0 %v4676
    %4829 = vmatpush1.msra.mxu0 %v4675
    %4830 = vmatprep.subr.mxu0 %v4678
    %4831 = vmatpush1.msra.mxu0 %v4677
    %4832 = vmatprep.subr.mxu0 %v4680
    %4833 = vmatpush1.msra.mxu0 %v4679
    %4834 = vmatprep.subr.mxu0 %v4682
    %4835 = vmatpush1.msra.mxu0 %v4681
    %4836 = vmatprep.subr.mxu0 %v4684
    %4837 = vmatpush1.msra.mxu0 %v4683
    %4838 = vmatprep.subr.mxu0 %v4686
    %4839 = vmatpush1.msra.mxu0 %v4685
    %4840 = vmatprep.subr.mxu0 %v4688
    %4841 = vmatpush1.msra.mxu0 %v4687
    %4842 = vmatprep.subr.mxu0 %v4690
    %4843 = vmatpush1.msra.mxu0 %v4689
    %4844 = vmatprep.subr.mxu0 %v4692
    %4845 = vmatpush1.msra.mxu0 %v4691
    %4846 = vmatprep.subr.mxu0 %v4694
    %4847 = vmatpush1.msra.mxu0 %v4693
    %4848 = vmatprep.subr.mxu0 %v4696
    %4849 = vmatpush1.msra.mxu0 %v4695
    %4850 = vmatprep.subr.mxu0 %v4698
    %4851 = vmatpush1.msra.mxu0 %v4697
    %4852 = vmatprep.subr.mxu0 %v4700
    %4853 = vmatpush1.msra.mxu0 %v4699
    %4854 = vmatprep.subr.mxu0 %v4702
    %4855 = vmatpush1.msra.mxu0 %v4701
    %4856 = vmatprep.subr.mxu0 %v4704
    %4857 = vmatpush1.msra.mxu0 %v4703
    %4858 = vmatprep.subr.mxu0 %v4706
    %4859 = vmatpush1.msra.mxu0 %v4705
    %4860 = vmatprep.subr.mxu0 %v4708
    %4861 = vmatpush1.msra.mxu0 %v4707
    %4862 = vmatprep.subr.mxu0 %v4710
    %4863 = vmatpush1.msra.mxu0 %v4709
    %4864 = vmatprep.subr.mxu0 %v4712
    %4865 = vmatpush1.msra.mxu0 %v4711
    %4866 = vmatprep.subr.mxu0 %v4714
    %4867 = vmatpush1.msra.mxu0 %v4713
    %4868 = vmatprep.subr.mxu0 %v4716
    %4869 = vmatpush1.msra.mxu0 %v4715
    %4870 = vmatprep.subr.mxu0 %v4718
    %4871 = vmatpush1.msra.mxu0 %v4717
    %4872 = vmatprep.subr.mxu0 %v4720
    %4873 = vmatpush1.msra.mxu0 %v4719
    %4874 = vmatprep.subr.mxu0 %v4722
    %4875 = vmatpush1.msra.mxu0 %v4721
    %4876 = vmatprep.mubr.f32.mxu0 %v4590
    %4877 = vmatmul.mubr.f32.gmra.mrb[0].mxu0 %v4589
    %v4878 = vpop.f32.mrb[0].mxu0
    %v4879 = vadd.f32 %v4802, %v4878
    %v4880 = vpop.f32.mrb[0].mxu0
    %v4881 = vadd.f32 %v4804, %v4880
    %4882 = vmatprep.mubr.f32.mxu0 %v4594
    %4883 = vmatmul.mubr.f32.gmra.mrb[0].mxu0 %v4593
    %v4884 = vpop.f32.mrb[0].mxu0
    %v4885 = vadd.f32 %v4808, %v4884
    %v4886 = vpop.f32.mrb[0].mxu0
    %v4887 = vadd.f32 %v4810, %v4886
    %4888 = vdwg.mxu0
    %v4889 = vadd.f32 %v4879, %v4247
    %v4890 = vadd.f32 %v4881, %v4248
    %v4891 = vadd.f32 %v4885, %v4249
    %v4892 = vadd.f32 %v4887, %v4250
    %v4893 = vld [vmem:[%s22] sm:$0x3]
    %v4894 = vld [vmem:[%s23] sm:$0x3]
    %v4895 = vadd.f32 %v4889, %v4890
    %4896 = vadd.xlane.f32.xlu0 %v4895
    %v4897 = vpop.xlane.xlu0 %4896
    %v4898 = vadd.f32 %v4891, %v4892
    %4899 = vadd.xlane.f32.xlu0 %v4898
    %v4900 = vpop.xlane.xlu0 %4899
    %v4901 = vmul.f32 %v4897, %v2168
    %v4902 = vmul.f32 %v4900, %v2168
    %v4903 = vsub.f32 %v4889, %v4901
    %v4904 = vsub.f32 %v4890, %v4901
    %v4905 = vsub.f32 %v4891, %v4902
    %v4906 = vsub.f32 %v4892, %v4902
    %v4907 = vmul.f32 %v4903, %v4903
    %v4908 = vmul.f32 %v4904, %v4904
    %v4909 = vmul.f32 %v4905, %v4905
    %v4910 = vmul.f32 %v4906, %v4906
    %v4911 = vadd.f32 %v4907, %v4908
    %4912 = vadd.xlane.f32.xlu0 %v4911
    %v4913 = vpop.xlane.xlu0 %4912
    %v4914 = vadd.f32 %v4909, %v4910
    %4915 = vadd.xlane.f32.xlu0 %v4914
    %v4916 = vpop.xlane.xlu0 %4915
    %v4917 = vmul.f32 %v4913, %v2168
    %v4918 = vmul.f32 %v4916, %v2168
    %v4919 = vadd.f32 %v4917, 1e-05
    %v4920 = vadd.f32 %v4918, 1e-05
    %v4921 = vrsqrt.pop %v4919
    %v4922 = vrsqrt.pop %v4920
    %v4923 = vmul.f32 %v4903, %v4921
    %v4924 = vmul.f32 %v4904, %v4921
    %v4925 = vmul.f32 %v4905, %v4922
    %v4926 = vmul.f32 %v4906, %v4922
    %v4928 = vlaneseq
    %v4929 = vshrl.u32 %v4928, 7
    %v4930 = vsub.s32 0, %v4929
    %v4931 = vrot.slane %v4893, %v4930
    %v4932 = vlaneseq
    %v4933 = vshrl.u32 %v4932, 7
    %v4934 = vsub.s32 1, %v4933
    %v4935 = vrot.slane %v4893, %v4934
    %v4938 = vmul.f32 %v4923, %v4931
    %v4939 = vmul.f32 %v4924, %v4935
    %v4940 = vmul.f32 %v4925, %v4931
    %v4941 = vmul.f32 %v4926, %v4935
    %v4943 = vlaneseq
    %v4944 = vshrl.u32 %v4943, 7
    %v4945 = vsub.s32 0, %v4944
    %v4946 = vrot.slane %v4894, %v4945
    %v4947 = vlaneseq
    %v4948 = vshrl.u32 %v4947, 7
    %v4949 = vsub.s32 1, %v4948
    %v4950 = vrot.slane %v4894, %v4949
    %v4953 = vadd.f32 %v4938, %v4946
    %v4954 = vadd.f32 %v4939, %v4950
    %v4955 = vadd.f32 %v4940, %v4946
    %v4956 = vadd.f32 %v4941, %v4950
    %4957 = vst [vmem:[#allocation15] sm:$0xff] %v4953
    %4958 = vst [vmem:[#allocation15 + $0x8] sm:$0xff] %v4954
    %4959 = vst [vmem:[#allocation15 + $0x10] sm:$0xff] %v4955
    %4960 = vst [vmem:[#allocation15 + $0x18] sm:$0xff] %v4956
    // Predicated region
    $region126: #{transformer_decoder_layer_untie.1} parent=1 // pred_check
      _
    $region127: #{transformer_decoder_layer_untie.1} parent=1 // pred_check_branch
      %4962 = sbr.rel (0) target = $region129
    $region128: #{transformer_decoder_layer_untie.1} parent=1 // pred_region
      %s4964 = ssub.s32 512, 512
      %4965 = vsyncadd [#allocation5], %s4964
      %s4966 = sshll.u32 [#allocation15], 4
      %s4967 = int_to_ptr.vmem [resolvable:$true] %s4966
      %4972 = dma.vmem_to_hbm [thread:$0]  %s4967, 512, %s24, [#allocation5], 256, 256, 16
    $region129: #{transformer_decoder_layer_untie.1} parent=1 // pred_fallthru
      _
    // Predicated region
    $region130: #{transformer_decoder_layer_untie.1} parent=1 // pred_check
      _
    $region131: #{transformer_decoder_layer_untie.1} parent=1 // pred_check_branch
      %4974 = sbr.rel (0) target = $region133
    $region132: #{transformer_decoder_layer_untie.1} parent=1 // pred_region
      %4975 = dma.done [#allocation5], 512
    $region133: #{transformer_decoder_layer_untie.1} parent=1 // pred_fallthru
      _
    %4976 = vsyncpa [#allocation4], 1
    %4977 = vsyncpa [#allocation7], 1
    %4978 = vsyncpa [#allocation10], 1
    %4979 = vsyncpa [#allocation13], 1
    %4980 = vsyncpa [#allocation5], 1

</llo_original>
